<compile_context>
chip_gen: v7x
topology: tpu7x:2x2x1
jax: 0.10.0
libtpu: 0.0.40
codegen_flags: <defaults>
</compile_context>

<pallas_src>
import math
from functools import partial

import jax
import jax.numpy as jnp
from jax.experimental import pallas as pl
from jax.experimental.pallas import tpu as pltpu

E = 128          # embed dim
NH = 2           # num heads (module instantiates num_heads=2)
HD = E // NH     # head dim
LN_EPS = 1e-5
BN_EPS = 1e-5


def _rep0(ndim):
    # index_map that always returns block (0, 0, ...) -> weight stays resident in VMEM
    if ndim == 2:
        return lambda b: (0, 0)
    return lambda b: (0, 0, 0)


def _pool_select(P, pad):
    # 0/1 matrix of shape (P + 2*pad, 2*P - 1) that selects every other row (stride-2
    # subsampling of the pairwise-max vector) and simultaneously inserts `pad` zero rows
    # on each side (the zero padding of the following conv layer).  Used as an MXU matmul.
    M = 2 * P - 1
    r = jnp.arange(P + 2 * pad)[:, None]
    c = jnp.arange(M)[None, :]
    return (c == 2 * (r - pad)).astype(jnp.float32)


# ----------------------------------------------------------------------------
# Fused FeatureCNN branch: conv1+BN+ReLU+MaxPool + conv2+BN+ReLU+MaxPool
# (per-batch grid, all activations time-major (T, C) so C is the lane dim)
# ----------------------------------------------------------------------------
def _cnn_branch_kernel(x1_ref, w1_ref, s1_ref, t1_ref, sel1_ref,
                       w2_ref, s2_ref, t2_ref, sel2_ref, o_ref):
    # x1_ref : (1, L1, Cin*K1) bf16 im2col of the padded input
    # w1_ref : (Cin*K1, C1) bf16     s1/t1 : (1, C1) folded BN scale/shift (f32)
    # sel1   : (P1 + 2*pad2, 2*P1-1) f32 pool-select + conv2-zero-pad matrix
    # w2_ref : (K2, C1, C2) bf16     s2/t2 : (1, C2)
    # sel2   : (P2, 2*P2-1) f32      o_ref : (1, P2, C2) f32
    K2, _, C2 = w2_ref.shape
    M1 = sel1_ref.shape[1]             # 2*P1 - 1
    M2 = sel2_ref.shape[1]             # 2*P2 - 1
    L2 = sel1_ref.shape[0] - K2 + 1    # conv2 output length

    # conv1 + BN(eval, folded) + ReLU : single MXU matmul over the flattened taps
    h1 = jnp.dot(x1_ref[0], w1_ref[...], preferred_element_type=jnp.float32)
    h1 = jnp.maximum(h1 * s1_ref[...] + t1_ref[...], 0.0)              # (L1, C1)

    # MaxPool1d(2): pairwise max of adjacent rows, then stride-2 row selection
    # (selection done as an exact 0/1 matmul; also inserts conv2's zero padding rows)
    m1 = jnp.maximum(h1[0:M1, :], h1[1:M1 + 1, :])                     # (2*P1-1, C1)
    p1p = jnp.dot(sel1_ref[...], m1,
                  preferred_element_type=jnp.float32).astype(jnp.bfloat16)  # (P1+2*pad, C1)

    # conv2 + BN + ReLU : K2-tap loop of (L2, C1) @ (C1, C2) matmuls (sublane-shifted views)
    acc = jnp.zeros((L2, C2), jnp.float32)
    for k in range(K2):
        acc = acc + jnp.dot(p1p[k:k + L2, :], w2_ref[k],
                            preferred_element_type=jnp.float32)
    h2 = jnp.maximum(acc * s2_ref[...] + t2_ref[...], 0.0)             # (L2, C2)

    # MaxPool1d(2) again
    m2 = jnp.maximum(h2[0:M2, :], h2[1:M2 + 1, :])
    o_ref[0] = jnp.dot(sel2_ref[...], m2, preferred_element_type=jnp.float32)


def feature_cnn(x, p):
    # x: (B, Cin, L)  ->  (B, T, 128) lane-dense, matching FeatureCNN up to layout
    B, Cin, L = x.shape
    K1, PAD1 = 5, 3
    K2, PAD2 = 3, 2
    C1, C2 = 64, 128
    L1 = L + 2 * PAD1 - K1 + 1
    P1 = L1 // 2
    L2 = P1 + 2 * PAD2 - K2 + 1
    P2 = L2 // 2

    # im2col for conv1 (tiny trace-time glue): im2col[b, t, c*K1 + k] = xpad[b, c, t + k]
    xp = jnp.pad(x, ((0, 0), (0, 0), (PAD1, PAD1)))
    cols = jnp.stack([xp[:, :, k:k + L1] for k in range(K1)], axis=-1)   # (B, Cin, L1, K1)
    im2col = cols.transpose(0, 2, 1, 3).reshape(B, L1, Cin * K1).astype(jnp.bfloat16)

    # conv1 weight flattened to (Cin*K1, C1) matching the im2col feature order
    w1 = p["w1"].transpose(1, 2, 0).reshape(Cin * K1, C1).astype(jnp.bfloat16)
    s1 = p["g1"] / jnp.sqrt(p["rv1"] + BN_EPS)                # fold BN (eval mode)
    t1 = p["be1"] + (p["b1"] - p["rm1"]) * s1
    s1 = s1.reshape(1, C1)
    t1 = t1.reshape(1, C1)

    # conv2 weight per tap: (K2, C1, C2)
    w2 = p["w2"].transpose(2, 1, 0).astype(jnp.bfloat16)
    s2 = p["g2"] / jnp.sqrt(p["rv2"] + BN_EPS)
    t2 = p["be2"] + (p["b2"] - p["rm2"]) * s2
    s2 = s2.reshape(1, C2)
    t2 = t2.reshape(1, C2)

    sel1 = _pool_select(P1, PAD2)          # (P1 + 4, 2*P1 - 1): pool + conv2 zero-pad
    sel2 = _pool_select(P2, 0)             # (P2, 2*P2 - 1)

    return pl.pallas_call(
        _cnn_branch_kernel,
        out_shape=jax.ShapeDtypeStruct((B, P2, C2), jnp.float32),
        grid=(B,),
        in_specs=[
            pl.BlockSpec((1, L1, Cin * K1), lambda b: (b, 0, 0)),
            pl.BlockSpec((Cin * K1, C1), lambda b: (0, 0)),
            pl.BlockSpec((1, C1), lambda b: (0, 0)),
            pl.BlockSpec((1, C1), lambda b: (0, 0)),
            pl.BlockSpec(sel1.shape, lambda b: (0, 0)),
            pl.BlockSpec((K2, C1, C2), lambda b: (0, 0, 0)),
            pl.BlockSpec((1, C2), lambda b: (0, 0)),
            pl.BlockSpec((1, C2), lambda b: (0, 0)),
            pl.BlockSpec(sel2.shape, lambda b: (0, 0)),
        ],
        out_specs=pl.BlockSpec((1, P2, C2), lambda b: (b, 0, 0)),
        compiler_params=pltpu.CompilerParams(dimension_semantics=("parallel",)),
    )(im2col, w1, s1, t1, sel1, w2, s2, t2, sel2)


# ----------------------------------------------------------------------------
# Fused SelfCrossAttentionBlock (+ AdaptiveAvgPool1d(1) epilogue), per-batch grid
# ----------------------------------------------------------------------------
def _attn_block_kernel(x_ref, c_ref,
                       swq_ref, swk_ref, swv_ref, sbq_ref, sbk_ref, sbv_ref, swo_ref, sbo_ref,
                       cwq_ref, cwk_ref, cwv_ref, cbq_ref, cbk_ref, cbv_ref, cwo_ref, cbo_ref,
                       g1_ref, b1_ref, g2_ref, b2_ref,
                       o_ref, p_ref):
    # x_ref: (1, Tq, E)  c_ref: (1, Tkv, E)   (already batch_first / lane-dense)
    # *wq/wk/wv: (NH, E, HD) bf16   *bq/bk/bv: (NH, 1, HD) f32
    # *wo: (NH, HD, E) bf16         *bo: (1, E) f32
    x = x_ref[0]
    c = c_ref[0]
    scale = 1.0 / math.sqrt(HD)

    def mha(q_in, kv_in, wq_ref, wk_ref, wv_ref, bq_ref, bk_ref, bv_ref, wo_ref, bo_ref):
        q16 = q_in.astype(jnp.bfloat16)
        kv16 = kv_in.astype(jnp.bfloat16)
        out = jnp.zeros((q_in.shape[0], E), jnp.float32)
        for h in range(NH):  # static head loop; weights pre-sliced per head in the wrapper
            qh = jnp.dot(q16, wq_ref[h], preferred_element_type=jnp.float32) + bq_ref[h]
            kh = jnp.dot(kv16, wk_ref[h], preferred_element_type=jnp.float32) + bk_ref[h]
            vh = jnp.dot(kv16, wv_ref[h], preferred_element_type=jnp.float32) + bv_ref[h]
            s = jax.lax.dot_general(
                (qh * scale).astype(jnp.bfloat16), kh.astype(jnp.bfloat16),
                (((1,), (1,)), ((), ())), preferred_element_type=jnp.float32)   # (Tq, Tkv)
            s = s - jnp.max(s, axis=-1, keepdims=True)
            pr = jnp.exp(s)
            pr = pr * pl.reciprocal(jnp.sum(pr, axis=-1, keepdims=True), approx=True)
            ctx = jnp.dot(pr.astype(jnp.bfloat16), vh.astype(jnp.bfloat16),
                          preferred_element_type=jnp.float32)                   # (Tq, HD)
            # accumulate straight into the output projection (no head concat)
            out = out + jnp.dot(ctx.astype(jnp.bfloat16), wo_ref[h],
                                preferred_element_type=jnp.float32)
        return out + bo_ref[...]

    def layer_norm(z, g_ref, bt_ref):
        mu = jnp.mean(z, axis=-1, keepdims=True)
        var = jnp.mean((z - mu) ** 2, axis=-1, keepdims=True)
        return (z - mu) * jax.lax.rsqrt(var + LN_EPS) * g_ref[...] + bt_ref[...]

    sa = mha(x, x, swq_ref, swk_ref, swv_ref, sbq_ref, sbk_ref, sbv_ref, swo_ref, sbo_ref)
    x1 = layer_norm(x + sa, g1_ref, b1_ref)
    ca = mha(x1, c, cwq_ref, cwk_ref, cwv_ref, cbq_ref, cbk_ref, cbv_ref, cwo_ref, cbo_ref)
    x2 = layer_norm(x1 + ca, g2_ref, b2_ref)
    o_ref[0] = x2                                       # full sequence (needed as cross input)
    p_ref[0] = jnp.mean(x2, axis=0, keepdims=True)      # AdaptiveAvgPool1d(1) fused epilogue


def self_cross_attn_block(x, c, p):
    # x: (B, Tq, E), c: (B, Tkv, E) -> (full (B, Tq, E), pooled (B, E))
    B, Tq, _ = x.shape
    Tkv = c.shape[1]

    def mha_weights(in_w, in_b, out_w, out_b):
        wq, wk, wv = in_w[0:E], in_w[E:2 * E], in_w[2 * E:3 * E]
        bq, bk, bv = in_b[0:E], in_b[E:2 * E], in_b[2 * E:3 * E]

        def heads_T(w):   # (E, E) -> (NH, E, HD): per-head W_h.T
            return jnp.stack([w[h * HD:(h + 1) * HD, :].T for h in range(NH)], axis=0)

        wo = jnp.stack([out_w[:, h * HD:(h + 1) * HD].T for h in range(NH)], axis=0)
        return [heads_T(wq).astype(jnp.bfloat16),
                heads_T(wk).astype(jnp.bfloat16),
                heads_T(wv).astype(jnp.bfloat16),
                bq.reshape(NH, 1, HD), bk.reshape(NH, 1, HD), bv.reshape(NH, 1, HD),
                wo.astype(jnp.bfloat16),
                out_b.reshape(1, E)]

    weight_args = (
        mha_weights(p["self_in_w"], p["self_in_b"], p["self_out_w"], p["self_out_b"])
        + mha_weights(p["cross_in_w"], p["cross_in_b"], p["cross_out_w"], p["cross_out_b"])
        + [p["ln1_g"].reshape(1, E), p["ln1_b"].reshape(1, E),
           p["ln2_g"].reshape(1, E), p["ln2_b"].reshape(1, E)])

    in_specs = ([pl.BlockSpec((1, Tq, E), lambda b: (b, 0, 0)),
                 pl.BlockSpec((1, Tkv, E), lambda b: (b, 0, 0))]
                + [pl.BlockSpec(a.shape, _rep0(a.ndim)) for a in weight_args])

    full, pooled = pl.pallas_call(
        _attn_block_kernel,
        out_shape=(jax.ShapeDtypeStruct((B, Tq, E), jnp.float32),
                   jax.ShapeDtypeStruct((B, 1, E), jnp.float32)),
        grid=(B,),
        in_specs=in_specs,
        out_specs=(pl.BlockSpec((1, Tq, E), lambda b: (b, 0, 0)),
                   pl.BlockSpec((1, 1, E), lambda b: (b, 0, 0))),
        compiler_params=pltpu.CompilerParams(dimension_semantics=("parallel",)),
    )(x, c, *weight_args)
    return full, pooled.reshape(B, E)


# ----------------------------------------------------------------------------
# MLP head on pooled features: concat([acc, ecg, bmi]) @ W1 split along its 257-wide input
# ----------------------------------------------------------------------------
def _mlp_kernel(pa_ref, pe_ref, bmi_ref,
                w1a_ref, w1e_ref, w1b_ref, b1_ref,
                w2_ref, b2_ref, w3_ref, b3_ref, o_ref):
    pa = pa_ref[...].astype(jnp.bfloat16)       # (B, E)
    pe = pe_ref[...].astype(jnp.bfloat16)       # (B, E)
    bmi = bmi_ref[...]                          # (B, 1) f32
    h1 = (jnp.dot(pa, w1a_ref[...], preferred_element_type=jnp.float32)
          + jnp.dot(pe, w1e_ref[...], preferred_element_type=jnp.float32)
          + bmi * w1b_ref[...]
          + b1_ref[...])
    h1 = jnp.maximum(h1, 0.0)
    # nn.Dropout(0.5): identity at inference time.
    h2 = jnp.maximum(
        jnp.dot(h1.astype(jnp.bfloat16), w2_ref[...],
                preferred_element_type=jnp.float32) + b2_ref[...], 0.0)
    o_ref[...] = jnp.dot(h2.astype(jnp.bfloat16), w3_ref[...],
                         preferred_element_type=jnp.float32) + b3_ref[...]


def pool_mlp(pool_acc, pool_ecg, bmi, p):
    # pool_acc/pool_ecg: (B, E) pooled attention outputs, bmi: (B,)
    B = pool_acc.shape[0]
    W1 = p["w1"]  # (128, 257), PyTorch (out, in); split: [acc(128) | ecg(128) | bmi(1)]
    args = [
        pool_acc, pool_ecg, bmi.reshape(B, 1),
        W1[:, 0:E].T.astype(jnp.bfloat16),
        W1[:, E:2 * E].T.astype(jnp.bfloat16),
        W1[:, 2 * E:2 * E + 1].T,                 # (1, 128), used elementwise in f32
        p["b1"].reshape(1, -1),
        p["w2"].T.astype(jnp.bfloat16), p["b2"].reshape(1, -1),
        p["w3"].T.astype(jnp.bfloat16), p["b3"].reshape(1, -1),
    ]
    vmem = pl.BlockSpec(memory_space=pltpu.MemorySpace.VMEM)
    return pl.pallas_call(
        _mlp_kernel,
        out_shape=jax.ShapeDtypeStruct((B, 1), jnp.float32),
        in_specs=[vmem] * len(args),
        out_specs=vmem,
    )(*args)


# ----------------------------------------------------------------------------
# Full forward
# ----------------------------------------------------------------------------
@jax.jit
def cardiovascular_predictor(params, acc, ecg, bmi):
    x_acc = feature_cnn(acc, params["acc_net"])                               # (B, T, 128)
    x_ecg = feature_cnn(ecg, params["ecg_net"])                               # (B, T, 128)
    x_acc_full, pool_acc = self_cross_attn_block(x_acc, x_ecg, params["acc_attn"])
    _, pool_ecg = self_cross_attn_block(x_ecg, x_acc_full, params["ecg_attn"])  # cross = updated acc
    return pool_mlp(pool_acc, pool_ecg, bmi, params["mlp"])                   # (B, 1)


# ----------------------------------------------------------------------------
# Deterministic parameter init (shapes follow the PyTorch module __init__)
# ----------------------------------------------------------------------------
def init_params(key):
    keys = iter(jax.random.split(key, 60))

    def w(shape, scale=0.08):
        return jax.random.normal(next(keys), shape, jnp.float32) * scale

    def cnn_params(cin):
        return dict(
            w1=w((64, cin, 5)), b1=w((64,)),
            g1=1.0 + w((64,)), be1=w((64,)),
            rm1=w((64,)), rv1=jnp.abs(w((64,))) + 1.0,
            w2=w((128, 64, 3)), b2=w((128,)),
            g2=1.0 + w((128,)), be2=w((128,)),
            rm2=w((128,)), rv2=jnp.abs(w((128,))) + 1.0,
        )

    def attn_params():
        return dict(
            self_in_w=w((3 * E, E)), self_in_b=w((3 * E,)),
            self_out_w=w((E, E)), self_out_b=w((E,)),
            cross_in_w=w((3 * E, E)), cross_in_b=w((3 * E,)),
            cross_out_w=w((E, E)), cross_out_b=w((E,)),
            ln1_g=1.0 + w((E,)), ln1_b=w((E,)),
            ln2_g=1.0 + w((E,)), ln2_b=w((E,)),
        )

    return dict(
        acc_net=cnn_params(3),
        ecg_net=cnn_params(1),
        acc_attn=attn_params(),
        ecg_attn=attn_params(),
        mlp=dict(w1=w((128, 257)), b1=w((128,)),
                 w2=w((64, 128)), b2=w((64,)),
                 w3=w((1, 64)), b3=w((1,))),
    )


if __name__ == "__main__":
    key = jax.random.PRNGKey(0)
    kp, ka, ke, kb = jax.random.split(key, 4)
    B, L = 2, 64
    acc = jax.random.normal(ka, (B, 3, L), jnp.float32)   # accelerometer: 3 channels
    ecg = jax.random.normal(ke, (B, 1, L), jnp.float32)   # ECG: 1 channel
    bmi = jax.random.uniform(kb, (B,), jnp.float32, 18.0, 30.0)

    params = init_params(kp)
    out = cardiovascular_predictor(params, acc, ecg, bmi)
    out = jax.block_until_ready(out)
    assert out.shape == (B, 1) and out.dtype == jnp.float32
    print("KERNEL_OK")
</pallas_src>

<mosaic_0001>
module attributes {stable_mosaic.version = 11 : i64} {
  func.func @_cnn_branch_kernel(%arg0: i32, %arg1: memref<1x66x5xbf16, #tpu.memory_space<vmem>>, %arg2: memref<5x64xbf16, #tpu.memory_space<vmem>>, %arg3: memref<1x64xf32, #tpu.memory_space<vmem>>, %arg4: memref<1x64xf32, #tpu.memory_space<vmem>>, %arg5: memref<37x65xf32, #tpu.memory_space<vmem>>, %arg6: memref<3x64x128xbf16, #tpu.memory_space<vmem>>, %arg7: memref<1x128xf32, #tpu.memory_space<vmem>>, %arg8: memref<1x128xf32, #tpu.memory_space<vmem>>, %arg9: memref<17x33xf32, #tpu.memory_space<vmem>>, %arg10: memref<1x17x128xf32, #tpu.memory_space<vmem>>) attributes {dimension_semantics = [#tpu.dimension_semantics<parallel>], iteration_bounds = array<i64: 2>, scalar_prefetch = 0 : i64, scratch_operands = 0 : i64, tpu.core_type = #tpu.core_type<tc>, window_params = [{transform_indices = @transform_0, window_bounds = array<i64: 1, 66, 5>}, {pipeline_mode = #tpu.pipeline_mode<synchronous>, transform_indices = @transform_1, window_bounds = array<i64: 5, 64>}, {pipeline_mode = #tpu.pipeline_mode<synchronous>, transform_indices = @transform_2, window_bounds = array<i64: 1, 64>}, {pipeline_mode = #tpu.pipeline_mode<synchronous>, transform_indices = @transform_3, window_bounds = array<i64: 1, 64>}, {pipeline_mode = #tpu.pipeline_mode<synchronous>, transform_indices = @transform_4, window_bounds = array<i64: 37, 65>}, {pipeline_mode = #tpu.pipeline_mode<synchronous>, transform_indices = @transform_5, window_bounds = array<i64: 3, 64, 128>}, {pipeline_mode = #tpu.pipeline_mode<synchronous>, transform_indices = @transform_6, window_bounds = array<i64: 1, 128>}, {pipeline_mode = #tpu.pipeline_mode<synchronous>, transform_indices = @transform_7, window_bounds = array<i64: 1, 128>}, {pipeline_mode = #tpu.pipeline_mode<synchronous>, transform_indices = @transform_8, window_bounds = array<i64: 17, 33>}, {transform_indices = @transform_9, window_bounds = array<i64: 1, 17, 128>}]} {
    %c0 = arith.constant 0 : index
    %c0_0 = arith.constant 0 : index
    %c0_1 = arith.constant 0 : index
    %0 = vector.load %arg1[%c0, %c0_0, %c0_1] : memref<1x66x5xbf16, #tpu.memory_space<vmem>>, vector<1x66x5xbf16>
    %1 = vector.shape_cast %0 : vector<1x66x5xbf16> to vector<66x5xbf16>
    %c0_2 = arith.constant 0 : index
    %c0_3 = arith.constant 0 : index
    %2 = vector.load %arg2[%c0_2, %c0_3] : memref<5x64xbf16, #tpu.memory_space<vmem>>, vector<5x64xbf16>
    %cst = arith.constant dense<0.000000e+00> : vector<66x64xf32>
    %3 = tpu.matmul %1, %2, %cst {dimension_numbers = #tpu.dot_dimension_numbers<[1], [0], [0], [1], [0, 0, 1, 1], [], []>} : vector<66x5xbf16>, vector<5x64xbf16>, vector<66x64xf32> -> vector<66x64xf32>
    %c0_4 = arith.constant 0 : index
    %c0_5 = arith.constant 0 : index
    %4 = vector.load %arg3[%c0_4, %c0_5] : memref<1x64xf32, #tpu.memory_space<vmem>>, vector<1x64xf32>
    %5 = vector.broadcast %4 : vector<1x64xf32> to vector<66x64xf32>
    %6 = arith.mulf %3, %5 : vector<66x64xf32>
    %c0_6 = arith.constant 0 : index
    %c0_7 = arith.constant 0 : index
    %7 = vector.load %arg4[%c0_6, %c0_7] : memref<1x64xf32, #tpu.memory_space<vmem>>, vector<1x64xf32>
    %8 = vector.broadcast %7 : vector<1x64xf32> to vector<66x64xf32>
    %9 = arith.addf %6, %8 : vector<66x64xf32>
    %cst_8 = arith.constant 0.000000e+00 : f32
    %10 = vector.broadcast %cst_8 : f32 to vector<66x64xf32>
    %11 = arith.maximumf %9, %10 : vector<66x64xf32>
    %12 = vector.extract_strided_slice %11 {offsets = [0, 0], sizes = [65, 64], strides = [1, 1]} : vector<66x64xf32> to vector<65x64xf32>
    %13 = vector.extract_strided_slice %11 {offsets = [1, 0], sizes = [65, 64], strides = [1, 1]} : vector<66x64xf32> to vector<65x64xf32>
    %14 = arith.maximumf %12, %13 : vector<65x64xf32>
    %c0_9 = arith.constant 0 : index
    %c0_10 = arith.constant 0 : index
    %15 = vector.load %arg5[%c0_9, %c0_10] : memref<37x65xf32, #tpu.memory_space<vmem>>, vector<37x65xf32>
    %cst_11 = arith.constant dense<0.000000e+00> : vector<37x64xf32>
    %16 = tpu.matmul %15, %14, %cst_11 {dimension_numbers = #tpu.dot_dimension_numbers<[1], [0], [0], [1], [0, 0, 1, 1], [], []>} : vector<37x65xf32>, vector<65x64xf32>, vector<37x64xf32> -> vector<37x64xf32>
    %17 = arith.truncf %16 : vector<37x64xf32> to vector<37x64xbf16>
    %cst_12 = arith.constant 0.000000e+00 : f32
    %18 = vector.broadcast %cst_12 : f32 to vector<35x128xf32>
    %19 = vector.extract_strided_slice %17 {offsets = [0, 0], sizes = [35, 64], strides = [1, 1]} : vector<37x64xbf16> to vector<35x64xbf16>
    %c0_13 = arith.constant 0 : index
    %c0_14 = arith.constant 0 : index
    %c0_15 = arith.constant 0 : index
    %20 = vector.load %arg6[%c0_13, %c0_14, %c0_15] : memref<3x64x128xbf16, #tpu.memory_space<vmem>>, vector<1x64x128xbf16>
    %21 = vector.shape_cast %20 : vector<1x64x128xbf16> to vector<64x128xbf16>
    %cst_16 = arith.constant dense<0.000000e+00> : vector<35x128xf32>
    %22 = tpu.matmul %19, %21, %cst_16 {dimension_numbers = #tpu.dot_dimension_numbers<[1], [0], [0], [1], [0, 0, 1, 1], [], []>} : vector<35x64xbf16>, vector<64x128xbf16>, vector<35x128xf32> -> vector<35x128xf32>
    %23 = arith.addf %18, %22 : vector<35x128xf32>
    %24 = vector.extract_strided_slice %17 {offsets = [1, 0], sizes = [35, 64], strides = [1, 1]} : vector<37x64xbf16> to vector<35x64xbf16>
    %c1 = arith.constant 1 : index
    %c0_17 = arith.constant 0 : index
    %c0_18 = arith.constant 0 : index
    %25 = vector.load %arg6[%c1, %c0_17, %c0_18] : memref<3x64x128xbf16, #tpu.memory_space<vmem>>, vector<1x64x128xbf16>
    %26 = vector.shape_cast %25 : vector<1x64x128xbf16> to vector<64x128xbf16>
    %cst_19 = arith.constant dense<0.000000e+00> : vector<35x128xf32>
    %27 = tpu.matmul %24, %26, %cst_19 {dimension_numbers = #tpu.dot_dimension_numbers<[1], [0], [0], [1], [0, 0, 1, 1], [], []>} : vector<35x64xbf16>, vector<64x128xbf16>, vector<35x128xf32> -> vector<35x128xf32>
    %28 = arith.addf %23, %27 : vector<35x128xf32>
    %29 = vector.extract_strided_slice %17 {offsets = [2, 0], sizes = [35, 64], strides = [1, 1]} : vector<37x64xbf16> to vector<35x64xbf16>
    %c2 = arith.constant 2 : index
    %c0_20 = arith.constant 0 : index
    %c0_21 = arith.constant 0 : index
    %30 = vector.load %arg6[%c2, %c0_20, %c0_21] : memref<3x64x128xbf16, #tpu.memory_space<vmem>>, vector<1x64x128xbf16>
    %31 = vector.shape_cast %30 : vector<1x64x128xbf16> to vector<64x128xbf16>
    %cst_22 = arith.constant dense<0.000000e+00> : vector<35x128xf32>
    %32 = tpu.matmul %29, %31, %cst_22 {dimension_numbers = #tpu.dot_dimension_numbers<[1], [0], [0], [1], [0, 0, 1, 1], [], []>} : vector<35x64xbf16>, vector<64x128xbf16>, vector<35x128xf32> -> vector<35x128xf32>
    %33 = arith.addf %28, %32 : vector<35x128xf32>
    %c0_23 = arith.constant 0 : index
    %c0_24 = arith.constant 0 : index
    %34 = vector.load %arg7[%c0_23, %c0_24] : memref<1x128xf32, #tpu.memory_space<vmem>>, vector<1x128xf32>
    %35 = vector.broadcast %34 : vector<1x128xf32> to vector<35x128xf32>
    %36 = arith.mulf %33, %35 : vector<35x128xf32>
    %c0_25 = arith.constant 0 : index
    %c0_26 = arith.constant 0 : index
    %37 = vector.load %arg8[%c0_25, %c0_26] : memref<1x128xf32, #tpu.memory_space<vmem>>, vector<1x128xf32>
    %38 = vector.broadcast %37 : vector<1x128xf32> to vector<35x128xf32>
    %39 = arith.addf %36, %38 : vector<35x128xf32>
    %cst_27 = arith.constant 0.000000e+00 : f32
    %40 = vector.broadcast %cst_27 : f32 to vector<35x128xf32>
    %41 = arith.maximumf %39, %40 : vector<35x128xf32>
    %42 = vector.extract_strided_slice %41 {offsets = [0, 0], sizes = [33, 128], strides = [1, 1]} : vector<35x128xf32> to vector<33x128xf32>
    %43 = vector.extract_strided_slice %41 {offsets = [1, 0], sizes = [33, 128], strides = [1, 1]} : vector<35x128xf32> to vector<33x128xf32>
    %44 = arith.maximumf %42, %43 : vector<33x128xf32>
    %c0_28 = arith.constant 0 : index
    %c0_29 = arith.constant 0 : index
    %45 = vector.load %arg9[%c0_28, %c0_29] : memref<17x33xf32, #tpu.memory_space<vmem>>, vector<17x33xf32>
    %cst_30 = arith.constant dense<0.000000e+00> : vector<17x128xf32>
    %46 = tpu.matmul %45, %44, %cst_30 {dimension_numbers = #tpu.dot_dimension_numbers<[1], [0], [0], [1], [0, 0, 1, 1], [], []>} : vector<17x33xf32>, vector<33x128xf32>, vector<17x128xf32> -> vector<17x128xf32>
    %c0_31 = arith.constant 0 : index
    %c0_32 = arith.constant 0 : index
    %c0_33 = arith.constant 0 : index
    %47 = vector.load %arg10[%c0_31, %c0_32, %c0_33] : memref<1x17x128xf32, #tpu.memory_space<vmem>>, vector<1x17x128xf32>
    %48 = vector.shape_cast %47 : vector<1x17x128xf32> to vector<17x128xf32>
    %49 = vector.shape_cast %46 : vector<17x128xf32> to vector<1x17x128xf32>
    tpu.vector_store %arg10[%c0_31, %c0_32, %c0_33], %49 {strides = array<i32>} : memref<1x17x128xf32, #tpu.memory_space<vmem>>, vector<1x17x128xf32>,
    return
  }
  func.func @transform_0(%arg0: i32) -> (i32, i32, i32) {
    %c0_i32 = arith.constant 0 : i32
    %c0_i32_0 = arith.constant 0 : i32
    %c0_i32_1 = arith.constant 0 : i32
    return %arg0, %c0_i32, %c0_i32_0 : i32, i32, i32
  }
  func.func @transform_1(%arg0: i32) -> (i32, i32) {
    %c0_i32 = arith.constant 0 : i32
    %c0_i32_0 = arith.constant 0 : i32
    %c0_i32_1 = arith.constant 0 : i32
    return %c0_i32, %c0_i32_0 : i32, i32
  }
  func.func @transform_2(%arg0: i32) -> (i32, i32) {
    %c0_i32 = arith.constant 0 : i32
    %c0_i32_0 = arith.constant 0 : i32
    %c0_i32_1 = arith.constant 0 : i32
    return %c0_i32, %c0_i32_0 : i32, i32
  }
  func.func @transform_3(%arg0: i32) -> (i32, i32) {
    %c0_i32 = arith.constant 0 : i32
    %c0_i32_0 = arith.constant 0 : i32
    %c0_i32_1 = arith.constant 0 : i32
    return %c0_i32, %c0_i32_0 : i32, i32
  }
  func.func @transform_4(%arg0: i32) -> (i32, i32) {
    %c0_i32 = arith.constant 0 : i32
    %c0_i32_0 = arith.constant 0 : i32
    %c0_i32_1 = arith.constant 0 : i32
    return %c0_i32, %c0_i32_0 : i32, i32
  }
  func.func @transform_5(%arg0: i32) -> (i32, i32, i32) {
    %c0_i32 = arith.constant 0 : i32
    %c0_i32_0 = arith.constant 0 : i32
    %c0_i32_1 = arith.constant 0 : i32
    %c0_i32_2 = arith.constant 0 : i32
    return %c0_i32, %c0_i32_0, %c0_i32_1 : i32, i32, i32
  }
  func.func @transform_6(%arg0: i32) -> (i32, i32) {
    %c0_i32 = arith.constant 0 : i32
    %c0_i32_0 = arith.constant 0 : i32
    %c0_i32_1 = arith.constant 0 : i32
    return %c0_i32, %c0_i32_0 : i32, i32
  }
  func.func @transform_7(%arg0: i32) -> (i32, i32) {
    %c0_i32 = arith.constant 0 : i32
    %c0_i32_0 = arith.constant 0 : i32
    %c0_i32_1 = arith.constant 0 : i32
    return %c0_i32, %c0_i32_0 : i32, i32
  }
  func.func @transform_8(%arg0: i32) -> (i32, i32) {
    %c0_i32 = arith.constant 0 : i32
    %c0_i32_0 = arith.constant 0 : i32
    %c0_i32_1 = arith.constant 0 : i32
    return %c0_i32, %c0_i32_0 : i32, i32
  }
  func.func @transform_9(%arg0: i32) -> (i32, i32, i32) {
    %c0_i32 = arith.constant 0 : i32
    %c0_i32_0 = arith.constant 0 : i32
    %c0_i32_1 = arith.constant 0 : i32
    return %arg0, %c0_i32, %c0_i32_0 : i32, i32, i32
  }
}

module attributes {stable_mosaic.version = 11 : i64} {
  func.func @_cnn_branch_kernel(%arg0: i32, %arg1: memref<1x66x15xbf16, #tpu.memory_space<vmem>>, %arg2: memref<15x64xbf16, #tpu.memory_space<vmem>>, %arg3: memref<1x64xf32, #tpu.memory_space<vmem>>, %arg4: memref<1x64xf32, #tpu.memory_space<vmem>>, %arg5: memref<37x65xf32, #tpu.memory_space<vmem>>, %arg6: memref<3x64x128xbf16, #tpu.memory_space<vmem>>, %arg7: memref<1x128xf32, #tpu.memory_space<vmem>>, %arg8: memref<1x128xf32, #tpu.memory_space<vmem>>, %arg9: memref<17x33xf32, #tpu.memory_space<vmem>>, %arg10: memref<1x17x128xf32, #tpu.memory_space<vmem>>) attributes {dimension_semantics = [#tpu.dimension_semantics<parallel>], iteration_bounds = array<i64: 2>, scalar_prefetch = 0 : i64, scratch_operands = 0 : i64, tpu.core_type = #tpu.core_type<tc>, window_params = [{transform_indices = @transform_0, window_bounds = array<i64: 1, 66, 15>}, {pipeline_mode = #tpu.pipeline_mode<synchronous>, transform_indices = @transform_1, window_bounds = array<i64: 15, 64>}, {pipeline_mode = #tpu.pipeline_mode<synchronous>, transform_indices = @transform_2, window_bounds = array<i64: 1, 64>}, {pipeline_mode = #tpu.pipeline_mode<synchronous>, transform_indices = @transform_3, window_bounds = array<i64: 1, 64>}, {pipeline_mode = #tpu.pipeline_mode<synchronous>, transform_indices = @transform_4, window_bounds = array<i64: 37, 65>}, {pipeline_mode = #tpu.pipeline_mode<synchronous>, transform_indices = @transform_5, window_bounds = array<i64: 3, 64, 128>}, {pipeline_mode = #tpu.pipeline_mode<synchronous>, transform_indices = @transform_6, window_bounds = array<i64: 1, 128>}, {pipeline_mode = #tpu.pipeline_mode<synchronous>, transform_indices = @transform_7, window_bounds = array<i64: 1, 128>}, {pipeline_mode = #tpu.pipeline_mode<synchronous>, transform_indices = @transform_8, window_bounds = array<i64: 17, 33>}, {transform_indices = @transform_9, window_bounds = array<i64: 1, 17, 128>}]} {
    %c0 = arith.constant 0 : index
    %c0_0 = arith.constant 0 : index
    %c0_1 = arith.constant 0 : index
    %0 = vector.load %arg1[%c0, %c0_0, %c0_1] : memref<1x66x15xbf16, #tpu.memory_space<vmem>>, vector<1x66x15xbf16>
    %1 = vector.shape_cast %0 : vector<1x66x15xbf16> to vector<66x15xbf16>
    %c0_2 = arith.constant 0 : index
    %c0_3 = arith.constant 0 : index
    %2 = vector.load %arg2[%c0_2, %c0_3] : memref<15x64xbf16, #tpu.memory_space<vmem>>, vector<15x64xbf16>
    %cst = arith.constant dense<0.000000e+00> : vector<66x64xf32>
    %3 = tpu.matmul %1, %2, %cst {dimension_numbers = #tpu.dot_dimension_numbers<[1], [0], [0], [1], [0, 0, 1, 1], [], []>} : vector<66x15xbf16>, vector<15x64xbf16>, vector<66x64xf32> -> vector<66x64xf32>
    %c0_4 = arith.constant 0 : index
    %c0_5 = arith.constant 0 : index
    %4 = vector.load %arg3[%c0_4, %c0_5] : memref<1x64xf32, #tpu.memory_space<vmem>>, vector<1x64xf32>
    %5 = vector.broadcast %4 : vector<1x64xf32> to vector<66x64xf32>
    %6 = arith.mulf %3, %5 : vector<66x64xf32>
    %c0_6 = arith.constant 0 : index
    %c0_7 = arith.constant 0 : index
    %7 = vector.load %arg4[%c0_6, %c0_7] : memref<1x64xf32, #tpu.memory_space<vmem>>, vector<1x64xf32>
    %8 = vector.broadcast %7 : vector<1x64xf32> to vector<66x64xf32>
    %9 = arith.addf %6, %8 : vector<66x64xf32>
    %cst_8 = arith.constant 0.000000e+00 : f32
    %10 = vector.broadcast %cst_8 : f32 to vector<66x64xf32>
    %11 = arith.maximumf %9, %10 : vector<66x64xf32>
    %12 = vector.extract_strided_slice %11 {offsets = [0, 0], sizes = [65, 64], strides = [1, 1]} : vector<66x64xf32> to vector<65x64xf32>
    %13 = vector.extract_strided_slice %11 {offsets = [1, 0], sizes = [65, 64], strides = [1, 1]} : vector<66x64xf32> to vector<65x64xf32>
    %14 = arith.maximumf %12, %13 : vector<65x64xf32>
    %c0_9 = arith.constant 0 : index
    %c0_10 = arith.constant 0 : index
    %15 = vector.load %arg5[%c0_9, %c0_10] : memref<37x65xf32, #tpu.memory_space<vmem>>, vector<37x65xf32>
    %cst_11 = arith.constant dense<0.000000e+00> : vector<37x64xf32>
    %16 = tpu.matmul %15, %14, %cst_11 {dimension_numbers = #tpu.dot_dimension_numbers<[1], [0], [0], [1], [0, 0, 1, 1], [], []>} : vector<37x65xf32>, vector<65x64xf32>, vector<37x64xf32> -> vector<37x64xf32>
    %17 = arith.truncf %16 : vector<37x64xf32> to vector<37x64xbf16>
    %cst_12 = arith.constant 0.000000e+00 : f32
    %18 = vector.broadcast %cst_12 : f32 to vector<35x128xf32>
    %19 = vector.extract_strided_slice %17 {offsets = [0, 0], sizes = [35, 64], strides = [1, 1]} : vector<37x64xbf16> to vector<35x64xbf16>
    %c0_13 = arith.constant 0 : index
    %c0_14 = arith.constant 0 : index
    %c0_15 = arith.constant 0 : index
    %20 = vector.load %arg6[%c0_13, %c0_14, %c0_15] : memref<3x64x128xbf16, #tpu.memory_space<vmem>>, vector<1x64x128xbf16>
    %21 = vector.shape_cast %20 : vector<1x64x128xbf16> to vector<64x128xbf16>
    %cst_16 = arith.constant dense<0.000000e+00> : vector<35x128xf32>
    %22 = tpu.matmul %19, %21, %cst_16 {dimension_numbers = #tpu.dot_dimension_numbers<[1], [0], [0], [1], [0, 0, 1, 1], [], []>} : vector<35x64xbf16>, vector<64x128xbf16>, vector<35x128xf32> -> vector<35x128xf32>
    %23 = arith.addf %18, %22 : vector<35x128xf32>
    %24 = vector.extract_strided_slice %17 {offsets = [1, 0], sizes = [35, 64], strides = [1, 1]} : vector<37x64xbf16> to vector<35x64xbf16>
    %c1 = arith.constant 1 : index
    %c0_17 = arith.constant 0 : index
    %c0_18 = arith.constant 0 : index
    %25 = vector.load %arg6[%c1, %c0_17, %c0_18] : memref<3x64x128xbf16, #tpu.memory_space<vmem>>, vector<1x64x128xbf16>
    %26 = vector.shape_cast %25 : vector<1x64x128xbf16> to vector<64x128xbf16>
    %cst_19 = arith.constant dense<0.000000e+00> : vector<35x128xf32>
    %27 = tpu.matmul %24, %26, %cst_19 {dimension_numbers = #tpu.dot_dimension_numbers<[1], [0], [0], [1], [0, 0, 1, 1], [], []>} : vector<35x64xbf16>, vector<64x128xbf16>, vector<35x128xf32> -> vector<35x128xf32>
    %28 = arith.addf %23, %27 : vector<35x128xf32>
    %29 = vector.extract_strided_slice %17 {offsets = [2, 0], sizes = [35, 64], strides = [1, 1]} : vector<37x64xbf16> to vector<35x64xbf16>
    %c2 = arith.constant 2 : index
    %c0_20 = arith.constant 0 : index
    %c0_21 = arith.constant 0 : index
    %30 = vector.load %arg6[%c2, %c0_20, %c0_21] : memref<3x64x128xbf16, #tpu.memory_space<vmem>>, vector<1x64x128xbf16>
    %31 = vector.shape_cast %30 : vector<1x64x128xbf16> to vector<64x128xbf16>
    %cst_22 = arith.constant dense<0.000000e+00> : vector<35x128xf32>
    %32 = tpu.matmul %29, %31, %cst_22 {dimension_numbers = #tpu.dot_dimension_numbers<[1], [0], [0], [1], [0, 0, 1, 1], [], []>} : vector<35x64xbf16>, vector<64x128xbf16>, vector<35x128xf32> -> vector<35x128xf32>
    %33 = arith.addf %28, %32 : vector<35x128xf32>
    %c0_23 = arith.constant 0 : index
    %c0_24 = arith.constant 0 : index
    %34 = vector.load %arg7[%c0_23, %c0_24] : memref<1x128xf32, #tpu.memory_space<vmem>>, vector<1x128xf32>
    %35 = vector.broadcast %34 : vector<1x128xf32> to vector<35x128xf32>
    %36 = arith.mulf %33, %35 : vector<35x128xf32>
    %c0_25 = arith.constant 0 : index
    %c0_26 = arith.constant 0 : index
    %37 = vector.load %arg8[%c0_25, %c0_26] : memref<1x128xf32, #tpu.memory_space<vmem>>, vector<1x128xf32>
    %38 = vector.broadcast %37 : vector<1x128xf32> to vector<35x128xf32>
    %39 = arith.addf %36, %38 : vector<35x128xf32>
    %cst_27 = arith.constant 0.000000e+00 : f32
    %40 = vector.broadcast %cst_27 : f32 to vector<35x128xf32>
    %41 = arith.maximumf %39, %40 : vector<35x128xf32>
    %42 = vector.extract_strided_slice %41 {offsets = [0, 0], sizes = [33, 128], strides = [1, 1]} : vector<35x128xf32> to vector<33x128xf32>
    %43 = vector.extract_strided_slice %41 {offsets = [1, 0], sizes = [33, 128], strides = [1, 1]} : vector<35x128xf32> to vector<33x128xf32>
    %44 = arith.maximumf %42, %43 : vector<33x128xf32>
    %c0_28 = arith.constant 0 : index
    %c0_29 = arith.constant 0 : index
    %45 = vector.load %arg9[%c0_28, %c0_29] : memref<17x33xf32, #tpu.memory_space<vmem>>, vector<17x33xf32>
    %cst_30 = arith.constant dense<0.000000e+00> : vector<17x128xf32>
    %46 = tpu.matmul %45, %44, %cst_30 {dimension_numbers = #tpu.dot_dimension_numbers<[1], [0], [0], [1], [0, 0, 1, 1], [], []>} : vector<17x33xf32>, vector<33x128xf32>, vector<17x128xf32> -> vector<17x128xf32>
    %c0_31 = arith.constant 0 : index
    %c0_32 = arith.constant 0 : index
    %c0_33 = arith.constant 0 : index
    %47 = vector.load %arg10[%c0_31, %c0_32, %c0_33] : memref<1x17x128xf32, #tpu.memory_space<vmem>>, vector<1x17x128xf32>
    %48 = vector.shape_cast %47 : vector<1x17x128xf32> to vector<17x128xf32>
    %49 = vector.shape_cast %46 : vector<17x128xf32> to vector<1x17x128xf32>
    tpu.vector_store %arg10[%c0_31, %c0_32, %c0_33], %49 {strides = array<i32>} : memref<1x17x128xf32, #tpu.memory_space<vmem>>, vector<1x17x128xf32>,
    return
  }
  func.func @transform_0(%arg0: i32) -> (i32, i32, i32) {
    %c0_i32 = arith.constant 0 : i32
    %c0_i32_0 = arith.constant 0 : i32
    %c0_i32_1 = arith.constant 0 : i32
    return %arg0, %c0_i32, %c0_i32_0 : i32, i32, i32
  }
  func.func @transform_1(%arg0: i32) -> (i32, i32) {
    %c0_i32 = arith.constant 0 : i32
    %c0_i32_0 = arith.constant 0 : i32
    %c0_i32_1 = arith.constant 0 : i32
    return %c0_i32, %c0_i32_0 : i32, i32
  }
  func.func @transform_2(%arg0: i32) -> (i32, i32) {
    %c0_i32 = arith.constant 0 : i32
    %c0_i32_0 = arith.constant 0 : i32
    %c0_i32_1 = arith.constant 0 : i32
    return %c0_i32, %c0_i32_0 : i32, i32
  }
  func.func @transform_3(%arg0: i32) -> (i32, i32) {
    %c0_i32 = arith.constant 0 : i32
    %c0_i32_0 = arith.constant 0 : i32
    %c0_i32_1 = arith.constant 0 : i32
    return %c0_i32, %c0_i32_0 : i32, i32
  }
  func.func @transform_4(%arg0: i32) -> (i32, i32) {
    %c0_i32 = arith.constant 0 : i32
    %c0_i32_0 = arith.constant 0 : i32
    %c0_i32_1 = arith.constant 0 : i32
    return %c0_i32, %c0_i32_0 : i32, i32
  }
  func.func @transform_5(%arg0: i32) -> (i32, i32, i32) {
    %c0_i32 = arith.constant 0 : i32
    %c0_i32_0 = arith.constant 0 : i32
    %c0_i32_1 = arith.constant 0 : i32
    %c0_i32_2 = arith.constant 0 : i32
    return %c0_i32, %c0_i32_0, %c0_i32_1 : i32, i32, i32
  }
  func.func @transform_6(%arg0: i32) -> (i32, i32) {
    %c0_i32 = arith.constant 0 : i32
    %c0_i32_0 = arith.constant 0 : i32
    %c0_i32_1 = arith.constant 0 : i32
    return %c0_i32, %c0_i32_0 : i32, i32
  }
  func.func @transform_7(%arg0: i32) -> (i32, i32) {
    %c0_i32 = arith.constant 0 : i32
    %c0_i32_0 = arith.constant 0 : i32
    %c0_i32_1 = arith.constant 0 : i32
    return %c0_i32, %c0_i32_0 : i32, i32
  }
  func.func @transform_8(%arg0: i32) -> (i32, i32) {
    %c0_i32 = arith.constant 0 : i32
    %c0_i32_0 = arith.constant 0 : i32
    %c0_i32_1 = arith.constant 0 : i32
    return %c0_i32, %c0_i32_0 : i32, i32
  }
  func.func @transform_9(%arg0: i32) -> (i32, i32, i32) {
    %c0_i32 = arith.constant 0 : i32
    %c0_i32_0 = arith.constant 0 : i32
    %c0_i32_1 = arith.constant 0 : i32
    return %arg0, %c0_i32, %c0_i32_0 : i32, i32, i32
  }
}

module attributes {stable_mosaic.version = 11 : i64} {
  func.func @_attn_block_kernel(%arg0: i32, %arg1: memref<1x17x128xf32, #tpu.memory_space<vmem>>, %arg2: memref<1x17x128xf32, #tpu.memory_space<vmem>>, %arg3: memref<2x128x64xbf16, #tpu.memory_space<vmem>>, %arg4: memref<2x128x64xbf16, #tpu.memory_space<vmem>>, %arg5: memref<2x128x64xbf16, #tpu.memory_space<vmem>>, %arg6: memref<2x1x64xf32, #tpu.memory_space<vmem>>, %arg7: memref<2x1x64xf32, #tpu.memory_space<vmem>>, %arg8: memref<2x1x64xf32, #tpu.memory_space<vmem>>, %arg9: memref<2x64x128xbf16, #tpu.memory_space<vmem>>, %arg10: memref<1x128xf32, #tpu.memory_space<vmem>>, %arg11: memref<2x128x64xbf16, #tpu.memory_space<vmem>>, %arg12: memref<2x128x64xbf16, #tpu.memory_space<vmem>>, %arg13: memref<2x128x64xbf16, #tpu.memory_space<vmem>>, %arg14: memref<2x1x64xf32, #tpu.memory_space<vmem>>, %arg15: memref<2x1x64xf32, #tpu.memory_space<vmem>>, %arg16: memref<2x1x64xf32, #tpu.memory_space<vmem>>, %arg17: memref<2x64x128xbf16, #tpu.memory_space<vmem>>, %arg18: memref<1x128xf32, #tpu.memory_space<vmem>>, %arg19: memref<1x128xf32, #tpu.memory_space<vmem>>, %arg20: memref<1x128xf32, #tpu.memory_space<vmem>>, %arg21: memref<1x128xf32, #tpu.memory_space<vmem>>, %arg22: memref<1x128xf32, #tpu.memory_space<vmem>>, %arg23: memref<1x17x128xf32, #tpu.memory_space<vmem>>, %arg24: memref<1x1x128xf32, #tpu.memory_space<vmem>>) attributes {dimension_semantics = [#tpu.dimension_semantics<parallel>], iteration_bounds = array<i64: 2>, scalar_prefetch = 0 : i64, scratch_operands = 0 : i64, tpu.core_type = #tpu.core_type<tc>, window_params = [{transform_indices = @transform_0, window_bounds = array<i64: 1, 17, 128>}, {transform_indices = @transform_1, window_bounds = array<i64: 1, 17, 128>}, {pipeline_mode = #tpu.pipeline_mode<synchronous>, transform_indices = @transform_2, window_bounds = array<i64: 2, 128, 64>}, {pipeline_mode = #tpu.pipeline_mode<synchronous>, transform_indices = @transform_3, window_bounds = array<i64: 2, 128, 64>}, {pipeline_mode = #tpu.pipeline_mode<synchronous>, transform_indices = @transform_4, window_bounds = array<i64: 2, 128, 64>}, {pipeline_mode = #tpu.pipeline_mode<synchronous>, transform_indices = @transform_5, window_bounds = array<i64: 2, 1, 64>}, {pipeline_mode = #tpu.pipeline_mode<synchronous>, transform_indices = @transform_6, window_bounds = array<i64: 2, 1, 64>}, {pipeline_mode = #tpu.pipeline_mode<synchronous>, transform_indices = @transform_7, window_bounds = array<i64: 2, 1, 64>}, {pipeline_mode = #tpu.pipeline_mode<synchronous>, transform_indices = @transform_8, window_bounds = array<i64: 2, 64, 128>}, {pipeline_mode = #tpu.pipeline_mode<synchronous>, transform_indices = @transform_9, window_bounds = array<i64: 1, 128>}, {pipeline_mode = #tpu.pipeline_mode<synchronous>, transform_indices = @transform_10, window_bounds = array<i64: 2, 128, 64>}, {pipeline_mode = #tpu.pipeline_mode<synchronous>, transform_indices = @transform_11, window_bounds = array<i64: 2, 128, 64>}, {pipeline_mode = #tpu.pipeline_mode<synchronous>, transform_indices = @transform_12, window_bounds = array<i64: 2, 128, 64>}, {pipeline_mode = #tpu.pipeline_mode<synchronous>, transform_indices = @transform_13, window_bounds = array<i64: 2, 1, 64>}, {pipeline_mode = #tpu.pipeline_mode<synchronous>, transform_indices = @transform_14, window_bounds = array<i64: 2, 1, 64>}, {pipeline_mode = #tpu.pipeline_mode<synchronous>, transform_indices = @transform_15, window_bounds = array<i64: 2, 1, 64>}, {pipeline_mode = #tpu.pipeline_mode<synchronous>, transform_indices = @transform_16, window_bounds = array<i64: 2, 64, 128>}, {pipeline_mode = #tpu.pipeline_mode<synchronous>, transform_indices = @transform_17, window_bounds = array<i64: 1, 128>}, {pipeline_mode = #tpu.pipeline_mode<synchronous>, transform_indices = @transform_18, window_bounds = array<i64: 1, 128>}, {pipeline_mode = #tpu.pipeline_mode<synchronous>, transform_indices = @transform_19, window_bounds = array<i64: 1, 128>}, {pipeline_mode = #tpu.pipeline_mode<synchronous>, transform_indices = @transform_20, window_bounds = array<i64: 1, 128>}, {pipeline_mode = #tpu.pipeline_mode<synchronous>, transform_indices = @transform_21, window_bounds = array<i64: 1, 128>}, {transform_indices = @transform_22, window_bounds = array<i64: 1, 17, 128>}, {transform_indices = @transform_23, window_bounds = array<i64: 1, 1, 128>}]} {
    %c0 = arith.constant 0 : index
    %c0_0 = arith.constant 0 : index
    %c0_1 = arith.constant 0 : index
    %0 = vector.load %arg1[%c0, %c0_0, %c0_1] : memref<1x17x128xf32, #tpu.memory_space<vmem>>, vector<1x17x128xf32>
    %1 = vector.shape_cast %0 : vector<1x17x128xf32> to vector<17x128xf32>
    %c0_2 = arith.constant 0 : index
    %c0_3 = arith.constant 0 : index
    %c0_4 = arith.constant 0 : index
    %2 = vector.load %arg2[%c0_2, %c0_3, %c0_4] : memref<1x17x128xf32, #tpu.memory_space<vmem>>, vector<1x17x128xf32>
    %3 = vector.shape_cast %2 : vector<1x17x128xf32> to vector<17x128xf32>
    %4 = arith.truncf %1 : vector<17x128xf32> to vector<17x128xbf16>
    %5 = arith.truncf %1 : vector<17x128xf32> to vector<17x128xbf16>
    %cst = arith.constant 0.000000e+00 : f32
    %6 = vector.broadcast %cst : f32 to vector<17x128xf32>
    %c0_5 = arith.constant 0 : index
    %c0_6 = arith.constant 0 : index
    %c0_7 = arith.constant 0 : index
    %7 = vector.load %arg3[%c0_5, %c0_6, %c0_7] : memref<2x128x64xbf16, #tpu.memory_space<vmem>>, vector<1x128x64xbf16>
    %8 = vector.shape_cast %7 : vector<1x128x64xbf16> to vector<128x64xbf16>
    %cst_8 = arith.constant dense<0.000000e+00> : vector<17x64xf32>
    %9 = tpu.matmul %4, %8, %cst_8 {dimension_numbers = #tpu.dot_dimension_numbers<[1], [0], [0], [1], [0, 0, 1, 1], [], []>} : vector<17x128xbf16>, vector<128x64xbf16>, vector<17x64xf32> -> vector<17x64xf32>
    %c0_9 = arith.constant 0 : index
    %c0_10 = arith.constant 0 : index
    %c0_11 = arith.constant 0 : index
    %10 = vector.load %arg6[%c0_9, %c0_10, %c0_11] : memref<2x1x64xf32, #tpu.memory_space<vmem>>, vector<1x1x64xf32>
    %11 = vector.shape_cast %10 : vector<1x1x64xf32> to vector<1x64xf32>
    %12 = vector.broadcast %11 : vector<1x64xf32> to vector<17x64xf32>
    %13 = arith.addf %9, %12 : vector<17x64xf32>
    %c0_12 = arith.constant 0 : index
    %c0_13 = arith.constant 0 : index
    %c0_14 = arith.constant 0 : index
    %14 = vector.load %arg4[%c0_12, %c0_13, %c0_14] : memref<2x128x64xbf16, #tpu.memory_space<vmem>>, vector<1x128x64xbf16>
    %15 = vector.shape_cast %14 : vector<1x128x64xbf16> to vector<128x64xbf16>
    %cst_15 = arith.constant dense<0.000000e+00> : vector<17x64xf32>
    %16 = tpu.matmul %5, %15, %cst_15 {dimension_numbers = #tpu.dot_dimension_numbers<[1], [0], [0], [1], [0, 0, 1, 1], [], []>} : vector<17x128xbf16>, vector<128x64xbf16>, vector<17x64xf32> -> vector<17x64xf32>
    %c0_16 = arith.constant 0 : index
    %c0_17 = arith.constant 0 : index
    %c0_18 = arith.constant 0 : index
    %17 = vector.load %arg7[%c0_16, %c0_17, %c0_18] : memref<2x1x64xf32, #tpu.memory_space<vmem>>, vector<1x1x64xf32>
    %18 = vector.shape_cast %17 : vector<1x1x64xf32> to vector<1x64xf32>
    %19 = vector.broadcast %18 : vector<1x64xf32> to vector<17x64xf32>
    %20 = arith.addf %16, %19 : vector<17x64xf32>
    %c0_19 = arith.constant 0 : index
    %c0_20 = arith.constant 0 : index
    %c0_21 = arith.constant 0 : index
    %21 = vector.load %arg5[%c0_19, %c0_20, %c0_21] : memref<2x128x64xbf16, #tpu.memory_space<vmem>>, vector<1x128x64xbf16>
    %22 = vector.shape_cast %21 : vector<1x128x64xbf16> to vector<128x64xbf16>
    %cst_22 = arith.constant dense<0.000000e+00> : vector<17x64xf32>
    %23 = tpu.matmul %5, %22, %cst_22 {dimension_numbers = #tpu.dot_dimension_numbers<[1], [0], [0], [1], [0, 0, 1, 1], [], []>} : vector<17x128xbf16>, vector<128x64xbf16>, vector<17x64xf32> -> vector<17x64xf32>
    %c0_23 = arith.constant 0 : index
    %c0_24 = arith.constant 0 : index
    %c0_25 = arith.constant 0 : index
    %24 = vector.load %arg8[%c0_23, %c0_24, %c0_25] : memref<2x1x64xf32, #tpu.memory_space<vmem>>, vector<1x1x64xf32>
    %25 = vector.shape_cast %24 : vector<1x1x64xf32> to vector<1x64xf32>
    %26 = vector.broadcast %25 : vector<1x64xf32> to vector<17x64xf32>
    %27 = arith.addf %23, %26 : vector<17x64xf32>
    %cst_26 = arith.constant 1.250000e-01 : f32
    %28 = vector.broadcast %cst_26 : f32 to vector<17x64xf32>
    %29 = arith.mulf %13, %28 : vector<17x64xf32>
    %30 = arith.truncf %29 : vector<17x64xf32> to vector<17x64xbf16>
    %31 = arith.truncf %20 : vector<17x64xf32> to vector<17x64xbf16>
    %cst_27 = arith.constant dense<0.000000e+00> : vector<17x17xf32>
    %32 = tpu.matmul %30, %31, %cst_27 {dimension_numbers = #tpu.dot_dimension_numbers<[1], [1], [0], [0], [0, 0, 1, 0], [], []>} : vector<17x64xbf16>, vector<17x64xbf16>, vector<17x17xf32> -> vector<17x17xf32>
    %cst_28 = arith.constant dense<0xFF800000> : vector<17xf32>
    %33 = vector.multi_reduction <maximumf>, %32, %cst_28 [1] : vector<17x17xf32> to vector<17xf32>
    %34 = vector.shape_cast %33 : vector<17xf32> to vector<17x1xf32>
    %35 = vector.broadcast %34 : vector<17x1xf32> to vector<17x17xf32>
    %36 = arith.subf %32, %35 : vector<17x17xf32>
    %37 = math.exp %36 : vector<17x17xf32>
    %cst_29 = arith.constant dense<0.000000e+00> : vector<17xf32>
    %38 = vector.multi_reduction <add>, %37, %cst_29 [1] : vector<17x17xf32> to vector<17xf32>
    %39 = vector.shape_cast %38 : vector<17xf32> to vector<17x1xf32>
    %40 = tpu.reciprocal %39 {approx = true} : vector<17x1xf32> -> vector<17x1xf32>
    %41 = vector.broadcast %40 : vector<17x1xf32> to vector<17x17xf32>
    %42 = arith.mulf %37, %41 : vector<17x17xf32>
    %43 = arith.truncf %42 : vector<17x17xf32> to vector<17x17xbf16>
    %44 = arith.truncf %27 : vector<17x64xf32> to vector<17x64xbf16>
    %cst_30 = arith.constant dense<0.000000e+00> : vector<17x64xf32>
    %45 = tpu.matmul %43, %44, %cst_30 {dimension_numbers = #tpu.dot_dimension_numbers<[1], [0], [0], [1], [0, 0, 1, 1], [], []>} : vector<17x17xbf16>, vector<17x64xbf16>, vector<17x64xf32> -> vector<17x64xf32>
    %46 = arith.truncf %45 : vector<17x64xf32> to vector<17x64xbf16>
    %c0_31 = arith.constant 0 : index
    %c0_32 = arith.constant 0 : index
    %c0_33 = arith.constant 0 : index
    %47 = vector.load %arg9[%c0_31, %c0_32, %c0_33] : memref<2x64x128xbf16, #tpu.memory_space<vmem>>, vector<1x64x128xbf16>
    %48 = vector.shape_cast %47 : vector<1x64x128xbf16> to vector<64x128xbf16>
    %cst_34 = arith.constant dense<0.000000e+00> : vector<17x128xf32>
    %49 = tpu.matmul %46, %48, %cst_34 {dimension_numbers = #tpu.dot_dimension_numbers<[1], [0], [0], [1], [0, 0, 1, 1], [], []>} : vector<17x64xbf16>, vector<64x128xbf16>, vector<17x128xf32> -> vector<17x128xf32>
    %50 = arith.addf %6, %49 : vector<17x128xf32>
    %c1 = arith.constant 1 : index
    %c0_35 = arith.constant 0 : index
    %c0_36 = arith.constant 0 : index
    %51 = vector.load %arg3[%c1, %c0_35, %c0_36] : memref<2x128x64xbf16, #tpu.memory_space<vmem>>, vector<1x128x64xbf16>
    %52 = vector.shape_cast %51 : vector<1x128x64xbf16> to vector<128x64xbf16>
    %cst_37 = arith.constant dense<0.000000e+00> : vector<17x64xf32>
    %53 = tpu.matmul %4, %52, %cst_37 {dimension_numbers = #tpu.dot_dimension_numbers<[1], [0], [0], [1], [0, 0, 1, 1], [], []>} : vector<17x128xbf16>, vector<128x64xbf16>, vector<17x64xf32> -> vector<17x64xf32>
    %c1_38 = arith.constant 1 : index
    %c0_39 = arith.constant 0 : index
    %c0_40 = arith.constant 0 : index
    %54 = vector.load %arg6[%c1_38, %c0_39, %c0_40] : memref<2x1x64xf32, #tpu.memory_space<vmem>>, vector<1x1x64xf32>
    %55 = vector.shape_cast %54 : vector<1x1x64xf32> to vector<1x64xf32>
    %56 = vector.broadcast %55 : vector<1x64xf32> to vector<17x64xf32>
    %57 = arith.addf %53, %56 : vector<17x64xf32>
    %c1_41 = arith.constant 1 : index
    %c0_42 = arith.constant 0 : index
    %c0_43 = arith.constant 0 : index
    %58 = vector.load %arg4[%c1_41, %c0_42, %c0_43] : memref<2x128x64xbf16, #tpu.memory_space<vmem>>, vector<1x128x64xbf16>
    %59 = vector.shape_cast %58 : vector<1x128x64xbf16> to vector<128x64xbf16>
    %cst_44 = arith.constant dense<0.000000e+00> : vector<17x64xf32>
    %60 = tpu.matmul %5, %59, %cst_44 {dimension_numbers = #tpu.dot_dimension_numbers<[1], [0], [0], [1], [0, 0, 1, 1], [], []>} : vector<17x128xbf16>, vector<128x64xbf16>, vector<17x64xf32> -> vector<17x64xf32>
    %c1_45 = arith.constant 1 : index
    %c0_46 = arith.constant 0 : index
    %c0_47 = arith.constant 0 : index
    %61 = vector.load %arg7[%c1_45, %c0_46, %c0_47] : memref<2x1x64xf32, #tpu.memory_space<vmem>>, vector<1x1x64xf32>
    %62 = vector.shape_cast %61 : vector<1x1x64xf32> to vector<1x64xf32>
    %63 = vector.broadcast %62 : vector<1x64xf32> to vector<17x64xf32>
    %64 = arith.addf %60, %63 : vector<17x64xf32>
    %c1_48 = arith.constant 1 : index
    %c0_49 = arith.constant 0 : index
    %c0_50 = arith.constant 0 : index
    %65 = vector.load %arg5[%c1_48, %c0_49, %c0_50] : memref<2x128x64xbf16, #tpu.memory_space<vmem>>, vector<1x128x64xbf16>
    %66 = vector.shape_cast %65 : vector<1x128x64xbf16> to vector<128x64xbf16>
    %cst_51 = arith.constant dense<0.000000e+00> : vector<17x64xf32>
    %67 = tpu.matmul %5, %66, %cst_51 {dimension_numbers = #tpu.dot_dimension_numbers<[1], [0], [0], [1], [0, 0, 1, 1], [], []>} : vector<17x128xbf16>, vector<128x64xbf16>, vector<17x64xf32> -> vector<17x64xf32>
    %c1_52 = arith.constant 1 : index
    %c0_53 = arith.constant 0 : index
    %c0_54 = arith.constant 0 : index
    %68 = vector.load %arg8[%c1_52, %c0_53, %c0_54] : memref<2x1x64xf32, #tpu.memory_space<vmem>>, vector<1x1x64xf32>
    %69 = vector.shape_cast %68 : vector<1x1x64xf32> to vector<1x64xf32>
    %70 = vector.broadcast %69 : vector<1x64xf32> to vector<17x64xf32>
    %71 = arith.addf %67, %70 : vector<17x64xf32>
    %cst_55 = arith.constant 1.250000e-01 : f32
    %72 = vector.broadcast %cst_55 : f32 to vector<17x64xf32>
    %73 = arith.mulf %57, %72 : vector<17x64xf32>
    %74 = arith.truncf %73 : vector<17x64xf32> to vector<17x64xbf16>
    %75 = arith.truncf %64 : vector<17x64xf32> to vector<17x64xbf16>
    %cst_56 = arith.constant dense<0.000000e+00> : vector<17x17xf32>
    %76 = tpu.matmul %74, %75, %cst_56 {dimension_numbers = #tpu.dot_dimension_numbers<[1], [1], [0], [0], [0, 0, 1, 0], [], []>} : vector<17x64xbf16>, vector<17x64xbf16>, vector<17x17xf32> -> vector<17x17xf32>
    %cst_57 = arith.constant dense<0xFF800000> : vector<17xf32>
    %77 = vector.multi_reduction <maximumf>, %76, %cst_57 [1] : vector<17x17xf32> to vector<17xf32>
    %78 = vector.shape_cast %77 : vector<17xf32> to vector<17x1xf32>
    %79 = vector.broadcast %78 : vector<17x1xf32> to vector<17x17xf32>
    %80 = arith.subf %76, %79 : vector<17x17xf32>
    %81 = math.exp %80 : vector<17x17xf32>
    %cst_58 = arith.constant dense<0.000000e+00> : vector<17xf32>
    %82 = vector.multi_reduction <add>, %81, %cst_58 [1] : vector<17x17xf32> to vector<17xf32>
    %83 = vector.shape_cast %82 : vector<17xf32> to vector<17x1xf32>
    %84 = tpu.reciprocal %83 {approx = true} : vector<17x1xf32> -> vector<17x1xf32>
    %85 = vector.broadcast %84 : vector<17x1xf32> to vector<17x17xf32>
    %86 = arith.mulf %81, %85 : vector<17x17xf32>
    %87 = arith.truncf %86 : vector<17x17xf32> to vector<17x17xbf16>
    %88 = arith.truncf %71 : vector<17x64xf32> to vector<17x64xbf16>
    %cst_59 = arith.constant dense<0.000000e+00> : vector<17x64xf32>
    %89 = tpu.matmul %87, %88, %cst_59 {dimension_numbers = #tpu.dot_dimension_numbers<[1], [0], [0], [1], [0, 0, 1, 1], [], []>} : vector<17x17xbf16>, vector<17x64xbf16>, vector<17x64xf32> -> vector<17x64xf32>
    %90 = arith.truncf %89 : vector<17x64xf32> to vector<17x64xbf16>
    %c1_60 = arith.constant 1 : index
    %c0_61 = arith.constant 0 : index
    %c0_62 = arith.constant 0 : index
    %91 = vector.load %arg9[%c1_60, %c0_61, %c0_62] : memref<2x64x128xbf16, #tpu.memory_space<vmem>>, vector<1x64x128xbf16>
    %92 = vector.shape_cast %91 : vector<1x64x128xbf16> to vector<64x128xbf16>
    %cst_63 = arith.constant dense<0.000000e+00> : vector<17x128xf32>
    %93 = tpu.matmul %90, %92, %cst_63 {dimension_numbers = #tpu.dot_dimension_numbers<[1], [0], [0], [1], [0, 0, 1, 1], [], []>} : vector<17x64xbf16>, vector<64x128xbf16>, vector<17x128xf32> -> vector<17x128xf32>
    %94 = arith.addf %50, %93 : vector<17x128xf32>
    %c0_64 = arith.constant 0 : index
    %c0_65 = arith.constant 0 : index
    %95 = vector.load %arg10[%c0_64, %c0_65] : memref<1x128xf32, #tpu.memory_space<vmem>>, vector<1x128xf32>
    %96 = vector.broadcast %95 : vector<1x128xf32> to vector<17x128xf32>
    %97 = arith.addf %94, %96 : vector<17x128xf32>
    %98 = arith.addf %1, %97 : vector<17x128xf32>
    %cst_66 = arith.constant dense<0.000000e+00> : vector<17xf32>
    %99 = vector.multi_reduction <add>, %98, %cst_66 [1] : vector<17x128xf32> to vector<17xf32>
    %100 = vector.shape_cast %99 : vector<17xf32> to vector<17x1xf32>
    %cst_67 = arith.constant 1.280000e+02 : f32
    %101 = vector.broadcast %cst_67 : f32 to vector<17x1xf32>
    %102 = arith.divf %100, %101 : vector<17x1xf32>
    %103 = vector.broadcast %102 : vector<17x1xf32> to vector<17x128xf32>
    %104 = arith.subf %98, %103 : vector<17x128xf32>
    %105 = arith.mulf %104, %104 : vector<17x128xf32>
    %cst_68 = arith.constant dense<0.000000e+00> : vector<17xf32>
    %106 = vector.multi_reduction <add>, %105, %cst_68 [1] : vector<17x128xf32> to vector<17xf32>
    %107 = vector.shape_cast %106 : vector<17xf32> to vector<17x1xf32>
    %cst_69 = arith.constant 1.280000e+02 : f32
    %108 = vector.broadcast %cst_69 : f32 to vector<17x1xf32>
    %109 = arith.divf %107, %108 : vector<17x1xf32>
    %110 = vector.broadcast %102 : vector<17x1xf32> to vector<17x128xf32>
    %111 = arith.subf %98, %110 : vector<17x128xf32>
    %cst_70 = arith.constant 9.99999974E-6 : f32
    %112 = vector.broadcast %cst_70 : f32 to vector<17x1xf32>
    %113 = arith.addf %109, %112 : vector<17x1xf32>
    %114 = math.rsqrt %113 : vector<17x1xf32>
    %115 = vector.broadcast %114 : vector<17x1xf32> to vector<17x128xf32>
    %116 = arith.mulf %111, %115 : vector<17x128xf32>
    %c0_71 = arith.constant 0 : index
    %c0_72 = arith.constant 0 : index
    %117 = vector.load %arg19[%c0_71, %c0_72] : memref<1x128xf32, #tpu.memory_space<vmem>>, vector<1x128xf32>
    %118 = vector.broadcast %117 : vector<1x128xf32> to vector<17x128xf32>
    %119 = arith.mulf %116, %118 : vector<17x128xf32>
    %c0_73 = arith.constant 0 : index
    %c0_74 = arith.constant 0 : index
    %120 = vector.load %arg20[%c0_73, %c0_74] : memref<1x128xf32, #tpu.memory_space<vmem>>, vector<1x128xf32>
    %121 = vector.broadcast %120 : vector<1x128xf32> to vector<17x128xf32>
    %122 = arith.addf %119, %121 : vector<17x128xf32>
    %123 = arith.truncf %122 : vector<17x128xf32> to vector<17x128xbf16>
    %124 = arith.truncf %3 : vector<17x128xf32> to vector<17x128xbf16>
    %cst_75 = arith.constant 0.000000e+00 : f32
    %125 = vector.broadcast %cst_75 : f32 to vector<17x128xf32>
    %c0_76 = arith.constant 0 : index
    %c0_77 = arith.constant 0 : index
    %c0_78 = arith.constant 0 : index
    %126 = vector.load %arg11[%c0_76, %c0_77, %c0_78] : memref<2x128x64xbf16, #tpu.memory_space<vmem>>, vector<1x128x64xbf16>
    %127 = vector.shape_cast %126 : vector<1x128x64xbf16> to vector<128x64xbf16>
    %cst_79 = arith.constant dense<0.000000e+00> : vector<17x64xf32>
    %128 = tpu.matmul %123, %127, %cst_79 {dimension_numbers = #tpu.dot_dimension_numbers<[1], [0], [0], [1], [0, 0, 1, 1], [], []>} : vector<17x128xbf16>, vector<128x64xbf16>, vector<17x64xf32> -> vector<17x64xf32>
    %c0_80 = arith.constant 0 : index
    %c0_81 = arith.constant 0 : index
    %c0_82 = arith.constant 0 : index
    %129 = vector.load %arg14[%c0_80, %c0_81, %c0_82] : memref<2x1x64xf32, #tpu.memory_space<vmem>>, vector<1x1x64xf32>
    %130 = vector.shape_cast %129 : vector<1x1x64xf32> to vector<1x64xf32>
    %131 = vector.broadcast %130 : vector<1x64xf32> to vector<17x64xf32>
    %132 = arith.addf %128, %131 : vector<17x64xf32>
    %c0_83 = arith.constant 0 : index
    %c0_84 = arith.constant 0 : index
    %c0_85 = arith.constant 0 : index
    %133 = vector.load %arg12[%c0_83, %c0_84, %c0_85] : memref<2x128x64xbf16, #tpu.memory_space<vmem>>, vector<1x128x64xbf16>
    %134 = vector.shape_cast %133 : vector<1x128x64xbf16> to vector<128x64xbf16>
    %cst_86 = arith.constant dense<0.000000e+00> : vector<17x64xf32>
    %135 = tpu.matmul %124, %134, %cst_86 {dimension_numbers = #tpu.dot_dimension_numbers<[1], [0], [0], [1], [0, 0, 1, 1], [], []>} : vector<17x128xbf16>, vector<128x64xbf16>, vector<17x64xf32> -> vector<17x64xf32>
    %c0_87 = arith.constant 0 : index
    %c0_88 = arith.constant 0 : index
    %c0_89 = arith.constant 0 : index
    %136 = vector.load %arg15[%c0_87, %c0_88, %c0_89] : memref<2x1x64xf32, #tpu.memory_space<vmem>>, vector<1x1x64xf32>
    %137 = vector.shape_cast %136 : vector<1x1x64xf32> to vector<1x64xf32>
    %138 = vector.broadcast %137 : vector<1x64xf32> to vector<17x64xf32>
    %139 = arith.addf %135, %138 : vector<17x64xf32>
    %c0_90 = arith.constant 0 : index
    %c0_91 = arith.constant 0 : index
    %c0_92 = arith.constant 0 : index
    %140 = vector.load %arg13[%c0_90, %c0_91, %c0_92] : memref<2x128x64xbf16, #tpu.memory_space<vmem>>, vector<1x128x64xbf16>
    %141 = vector.shape_cast %140 : vector<1x128x64xbf16> to vector<128x64xbf16>
    %cst_93 = arith.constant dense<0.000000e+00> : vector<17x64xf32>
    %142 = tpu.matmul %124, %141, %cst_93 {dimension_numbers = #tpu.dot_dimension_numbers<[1], [0], [0], [1], [0, 0, 1, 1], [], []>} : vector<17x128xbf16>, vector<128x64xbf16>, vector<17x64xf32> -> vector<17x64xf32>
    %c0_94 = arith.constant 0 : index
    %c0_95 = arith.constant 0 : index
    %c0_96 = arith.constant 0 : index
    %143 = vector.load %arg16[%c0_94, %c0_95, %c0_96] : memref<2x1x64xf32, #tpu.memory_space<vmem>>, vector<1x1x64xf32>
    %144 = vector.shape_cast %143 : vector<1x1x64xf32> to vector<1x64xf32>
    %145 = vector.broadcast %144 : vector<1x64xf32> to vector<17x64xf32>
    %146 = arith.addf %142, %145 : vector<17x64xf32>
    %cst_97 = arith.constant 1.250000e-01 : f32
    %147 = vector.broadcast %cst_97 : f32 to vector<17x64xf32>
    %148 = arith.mulf %132, %147 : vector<17x64xf32>
    %149 = arith.truncf %148 : vector<17x64xf32> to vector<17x64xbf16>
    %150 = arith.truncf %139 : vector<17x64xf32> to vector<17x64xbf16>
    %cst_98 = arith.constant dense<0.000000e+00> : vector<17x17xf32>
    %151 = tpu.matmul %149, %150, %cst_98 {dimension_numbers = #tpu.dot_dimension_numbers<[1], [1], [0], [0], [0, 0, 1, 0], [], []>} : vector<17x64xbf16>, vector<17x64xbf16>, vector<17x17xf32> -> vector<17x17xf32>
    %cst_99 = arith.constant dense<0xFF800000> : vector<17xf32>
    %152 = vector.multi_reduction <maximumf>, %151, %cst_99 [1] : vector<17x17xf32> to vector<17xf32>
    %153 = vector.shape_cast %152 : vector<17xf32> to vector<17x1xf32>
    %154 = vector.broadcast %153 : vector<17x1xf32> to vector<17x17xf32>
    %155 = arith.subf %151, %154 : vector<17x17xf32>
    %156 = math.exp %155 : vector<17x17xf32>
    %cst_100 = arith.constant dense<0.000000e+00> : vector<17xf32>
    %157 = vector.multi_reduction <add>, %156, %cst_100 [1] : vector<17x17xf32> to vector<17xf32>
    %158 = vector.shape_cast %157 : vector<17xf32> to vector<17x1xf32>
    %159 = tpu.reciprocal %158 {approx = true} : vector<17x1xf32> -> vector<17x1xf32>
    %160 = vector.broadcast %159 : vector<17x1xf32> to vector<17x17xf32>
    %161 = arith.mulf %156, %160 : vector<17x17xf32>
    %162 = arith.truncf %161 : vector<17x17xf32> to vector<17x17xbf16>
    %163 = arith.truncf %146 : vector<17x64xf32> to vector<17x64xbf16>
    %cst_101 = arith.constant dense<0.000000e+00> : vector<17x64xf32>
    %164 = tpu.matmul %162, %163, %cst_101 {dimension_numbers = #tpu.dot_dimension_numbers<[1], [0], [0], [1], [0, 0, 1, 1], [], []>} : vector<17x17xbf16>, vector<17x64xbf16>, vector<17x64xf32> -> vector<17x64xf32>
    %165 = arith.truncf %164 : vector<17x64xf32> to vector<17x64xbf16>
    %c0_102 = arith.constant 0 : index
    %c0_103 = arith.constant 0 : index
    %c0_104 = arith.constant 0 : index
    %166 = vector.load %arg17[%c0_102, %c0_103, %c0_104] : memref<2x64x128xbf16, #tpu.memory_space<vmem>>, vector<1x64x128xbf16>
    %167 = vector.shape_cast %166 : vector<1x64x128xbf16> to vector<64x128xbf16>
    %cst_105 = arith.constant dense<0.000000e+00> : vector<17x128xf32>
    %168 = tpu.matmul %165, %167, %cst_105 {dimension_numbers = #tpu.dot_dimension_numbers<[1], [0], [0], [1], [0, 0, 1, 1], [], []>} : vector<17x64xbf16>, vector<64x128xbf16>, vector<17x128xf32> -> vector<17x128xf32>
    %169 = arith.addf %125, %168 : vector<17x128xf32>
    %c1_106 = arith.constant 1 : index
    %c0_107 = arith.constant 0 : index
    %c0_108 = arith.constant 0 : index
    %170 = vector.load %arg11[%c1_106, %c0_107, %c0_108] : memref<2x128x64xbf16, #tpu.memory_space<vmem>>, vector<1x128x64xbf16>
    %171 = vector.shape_cast %170 : vector<1x128x64xbf16> to vector<128x64xbf16>
    %cst_109 = arith.constant dense<0.000000e+00> : vector<17x64xf32>
    %172 = tpu.matmul %123, %171, %cst_109 {dimension_numbers = #tpu.dot_dimension_numbers<[1], [0], [0], [1], [0, 0, 1, 1], [], []>} : vector<17x128xbf16>, vector<128x64xbf16>, vector<17x64xf32> -> vector<17x64xf32>
    %c1_110 = arith.constant 1 : index
    %c0_111 = arith.constant 0 : index
    %c0_112 = arith.constant 0 : index
    %173 = vector.load %arg14[%c1_110, %c0_111, %c0_112] : memref<2x1x64xf32, #tpu.memory_space<vmem>>, vector<1x1x64xf32>
    %174 = vector.shape_cast %173 : vector<1x1x64xf32> to vector<1x64xf32>
    %175 = vector.broadcast %174 : vector<1x64xf32> to vector<17x64xf32>
    %176 = arith.addf %172, %175 : vector<17x64xf32>
    %c1_113 = arith.constant 1 : index
    %c0_114 = arith.constant 0 : index
    %c0_115 = arith.constant 0 : index
    %177 = vector.load %arg12[%c1_113, %c0_114, %c0_115] : memref<2x128x64xbf16, #tpu.memory_space<vmem>>, vector<1x128x64xbf16>
    %178 = vector.shape_cast %177 : vector<1x128x64xbf16> to vector<128x64xbf16>
    %cst_116 = arith.constant dense<0.000000e+00> : vector<17x64xf32>
    %179 = tpu.matmul %124, %178, %cst_116 {dimension_numbers = #tpu.dot_dimension_numbers<[1], [0], [0], [1], [0, 0, 1, 1], [], []>} : vector<17x128xbf16>, vector<128x64xbf16>, vector<17x64xf32> -> vector<17x64xf32>
    %c1_117 = arith.constant 1 : index
    %c0_118 = arith.constant 0 : index
    %c0_119 = arith.constant 0 : index
    %180 = vector.load %arg15[%c1_117, %c0_118, %c0_119] : memref<2x1x64xf32, #tpu.memory_space<vmem>>, vector<1x1x64xf32>
    %181 = vector.shape_cast %180 : vector<1x1x64xf32> to vector<1x64xf32>
    %182 = vector.broadcast %181 : vector<1x64xf32> to vector<17x64xf32>
    %183 = arith.addf %179, %182 : vector<17x64xf32>
    %c1_120 = arith.constant 1 : index
    %c0_121 = arith.constant 0 : index
    %c0_122 = arith.constant 0 : index
    %184 = vector.load %arg13[%c1_120, %c0_121, %c0_122] : memref<2x128x64xbf16, #tpu.memory_space<vmem>>, vector<1x128x64xbf16>
    %185 = vector.shape_cast %184 : vector<1x128x64xbf16> to vector<128x64xbf16>
    %cst_123 = arith.constant dense<0.000000e+00> : vector<17x64xf32>
    %186 = tpu.matmul %124, %185, %cst_123 {dimension_numbers = #tpu.dot_dimension_numbers<[1], [0], [0], [1], [0, 0, 1, 1], [], []>} : vector<17x128xbf16>, vector<128x64xbf16>, vector<17x64xf32> -> vector<17x64xf32>
    %c1_124 = arith.constant 1 : index
    %c0_125 = arith.constant 0 : index
    %c0_126 = arith.constant 0 : index
    %187 = vector.load %arg16[%c1_124, %c0_125, %c0_126] : memref<2x1x64xf32, #tpu.memory_space<vmem>>, vector<1x1x64xf32>
    %188 = vector.shape_cast %187 : vector<1x1x64xf32> to vector<1x64xf32>
    %189 = vector.broadcast %188 : vector<1x64xf32> to vector<17x64xf32>
    %190 = arith.addf %186, %189 : vector<17x64xf32>
    %cst_127 = arith.constant 1.250000e-01 : f32
    %191 = vector.broadcast %cst_127 : f32 to vector<17x64xf32>
    %192 = arith.mulf %176, %191 : vector<17x64xf32>
    %193 = arith.truncf %192 : vector<17x64xf32> to vector<17x64xbf16>
    %194 = arith.truncf %183 : vector<17x64xf32> to vector<17x64xbf16>
    %cst_128 = arith.constant dense<0.000000e+00> : vector<17x17xf32>
    %195 = tpu.matmul %193, %194, %cst_128 {dimension_numbers = #tpu.dot_dimension_numbers<[1], [1], [0], [0], [0, 0, 1, 0], [], []>} : vector<17x64xbf16>, vector<17x64xbf16>, vector<17x17xf32> -> vector<17x17xf32>
    %cst_129 = arith.constant dense<0xFF800000> : vector<17xf32>
    %196 = vector.multi_reduction <maximumf>, %195, %cst_129 [1] : vector<17x17xf32> to vector<17xf32>
    %197 = vector.shape_cast %196 : vector<17xf32> to vector<17x1xf32>
    %198 = vector.broadcast %197 : vector<17x1xf32> to vector<17x17xf32>
    %199 = arith.subf %195, %198 : vector<17x17xf32>
    %200 = math.exp %199 : vector<17x17xf32>
    %cst_130 = arith.constant dense<0.000000e+00> : vector<17xf32>
    %201 = vector.multi_reduction <add>, %200, %cst_130 [1] : vector<17x17xf32> to vector<17xf32>
    %202 = vector.shape_cast %201 : vector<17xf32> to vector<17x1xf32>
    %203 = tpu.reciprocal %202 {approx = true} : vector<17x1xf32> -> vector<17x1xf32>
    %204 = vector.broadcast %203 : vector<17x1xf32> to vector<17x17xf32>
    %205 = arith.mulf %200, %204 : vector<17x17xf32>
    %206 = arith.truncf %205 : vector<17x17xf32> to vector<17x17xbf16>
    %207 = arith.truncf %190 : vector<17x64xf32> to vector<17x64xbf16>
    %cst_131 = arith.constant dense<0.000000e+00> : vector<17x64xf32>
    %208 = tpu.matmul %206, %207, %cst_131 {dimension_numbers = #tpu.dot_dimension_numbers<[1], [0], [0], [1], [0, 0, 1, 1], [], []>} : vector<17x17xbf16>, vector<17x64xbf16>, vector<17x64xf32> -> vector<17x64xf32>
    %209 = arith.truncf %208 : vector<17x64xf32> to vector<17x64xbf16>
    %c1_132 = arith.constant 1 : index
    %c0_133 = arith.constant 0 : index
    %c0_134 = arith.constant 0 : index
    %210 = vector.load %arg17[%c1_132, %c0_133, %c0_134] : memref<2x64x128xbf16, #tpu.memory_space<vmem>>, vector<1x64x128xbf16>
    %211 = vector.shape_cast %210 : vector<1x64x128xbf16> to vector<64x128xbf16>
    %cst_135 = arith.constant dense<0.000000e+00> : vector<17x128xf32>
    %212 = tpu.matmul %209, %211, %cst_135 {dimension_numbers = #tpu.dot_dimension_numbers<[1], [0], [0], [1], [0, 0, 1, 1], [], []>} : vector<17x64xbf16>, vector<64x128xbf16>, vector<17x128xf32> -> vector<17x128xf32>
    %213 = arith.addf %169, %212 : vector<17x128xf32>
    %c0_136 = arith.constant 0 : index
    %c0_137 = arith.constant 0 : index
    %214 = vector.load %arg18[%c0_136, %c0_137] : memref<1x128xf32, #tpu.memory_space<vmem>>, vector<1x128xf32>
    %215 = vector.broadcast %214 : vector<1x128xf32> to vector<17x128xf32>
    %216 = arith.addf %213, %215 : vector<17x128xf32>
    %217 = arith.addf %122, %216 : vector<17x128xf32>
    %cst_138 = arith.constant dense<0.000000e+00> : vector<17xf32>
    %218 = vector.multi_reduction <add>, %217, %cst_138 [1] : vector<17x128xf32> to vector<17xf32>
    %219 = vector.shape_cast %218 : vector<17xf32> to vector<17x1xf32>
    %cst_139 = arith.constant 1.280000e+02 : f32
    %220 = vector.broadcast %cst_139 : f32 to vector<17x1xf32>
    %221 = arith.divf %219, %220 : vector<17x1xf32>
    %222 = vector.broadcast %221 : vector<17x1xf32> to vector<17x128xf32>
    %223 = arith.subf %217, %222 : vector<17x128xf32>
    %224 = arith.mulf %223, %223 : vector<17x128xf32>
    %cst_140 = arith.constant dense<0.000000e+00> : vector<17xf32>
    %225 = vector.multi_reduction <add>, %224, %cst_140 [1] : vector<17x128xf32> to vector<17xf32>
    %226 = vector.shape_cast %225 : vector<17xf32> to vector<17x1xf32>
    %cst_141 = arith.constant 1.280000e+02 : f32
    %227 = vector.broadcast %cst_141 : f32 to vector<17x1xf32>
    %228 = arith.divf %226, %227 : vector<17x1xf32>
    %229 = vector.broadcast %221 : vector<17x1xf32> to vector<17x128xf32>
    %230 = arith.subf %217, %229 : vector<17x128xf32>
    %cst_142 = arith.constant 9.99999974E-6 : f32
    %231 = vector.broadcast %cst_142 : f32 to vector<17x1xf32>
    %232 = arith.addf %228, %231 : vector<17x1xf32>
    %233 = math.rsqrt %232 : vector<17x1xf32>
    %234 = vector.broadcast %233 : vector<17x1xf32> to vector<17x128xf32>
    %235 = arith.mulf %230, %234 : vector<17x128xf32>
    %c0_143 = arith.constant 0 : index
    %c0_144 = arith.constant 0 : index
    %236 = vector.load %arg21[%c0_143, %c0_144] : memref<1x128xf32, #tpu.memory_space<vmem>>, vector<1x128xf32>
    %237 = vector.broadcast %236 : vector<1x128xf32> to vector<17x128xf32>
    %238 = arith.mulf %235, %237 : vector<17x128xf32>
    %c0_145 = arith.constant 0 : index
    %c0_146 = arith.constant 0 : index
    %239 = vector.load %arg22[%c0_145, %c0_146] : memref<1x128xf32, #tpu.memory_space<vmem>>, vector<1x128xf32>
    %240 = vector.broadcast %239 : vector<1x128xf32> to vector<17x128xf32>
    %241 = arith.addf %238, %240 : vector<17x128xf32>
    %c0_147 = arith.constant 0 : index
    %c0_148 = arith.constant 0 : index
    %c0_149 = arith.constant 0 : index
    %242 = vector.load %arg23[%c0_147, %c0_148, %c0_149] : memref<1x17x128xf32, #tpu.memory_space<vmem>>, vector<1x17x128xf32>
    %243 = vector.shape_cast %242 : vector<1x17x128xf32> to vector<17x128xf32>
    %244 = vector.shape_cast %241 : vector<17x128xf32> to vector<1x17x128xf32>
    tpu.vector_store %arg23[%c0_147, %c0_148, %c0_149], %244 {strides = array<i32>} : memref<1x17x128xf32, #tpu.memory_space<vmem>>, vector<1x17x128xf32>,
    %cst_150 = arith.constant dense<0.000000e+00> : vector<128xf32>
    %245 = vector.multi_reduction <add>, %241, %cst_150 [0] : vector<17x128xf32> to vector<128xf32>
    %246 = vector.shape_cast %245 : vector<128xf32> to vector<1x128xf32>
    %cst_151 = arith.constant 1.700000e+01 : f32
    %247 = vector.broadcast %cst_151 : f32 to vector<1x128xf32>
    %248 = arith.divf %246, %247 : vector<1x128xf32>
    %c0_152 = arith.constant 0 : index
    %c0_153 = arith.constant 0 : index
    %c0_154 = arith.constant 0 : index
    %249 = vector.load %arg24[%c0_152, %c0_153, %c0_154] : memref<1x1x128xf32, #tpu.memory_space<vmem>>, vector<1x1x128xf32>
    %250 = vector.shape_cast %249 : vector<1x1x128xf32> to vector<1x128xf32>
    %251 = vector.shape_cast %248 : vector<1x128xf32> to vector<1x1x128xf32>
    tpu.vector_store %arg24[%c0_152, %c0_153, %c0_154], %251 {strides = array<i32>} : memref<1x1x128xf32, #tpu.memory_space<vmem>>, vector<1x1x128xf32>,
    return
  }
  func.func @transform_0(%arg0: i32) -> (i32, i32, i32) {
    %c0_i32 = arith.constant 0 : i32
    %c0_i32_0 = arith.constant 0 : i32
    %c0_i32_1 = arith.constant 0 : i32
    return %arg0, %c0_i32, %c0_i32_0 : i32, i32, i32
  }
  func.func @transform_1(%arg0: i32) -> (i32, i32, i32) {
    %c0_i32 = arith.constant 0 : i32
    %c0_i32_0 = arith.constant 0 : i32
    %c0_i32_1 = arith.constant 0 : i32
    return %arg0, %c0_i32, %c0_i32_0 : i32, i32, i32
  }
  func.func @transform_2(%arg0: i32) -> (i32, i32, i32) {
    %c0_i32 = arith.constant 0 : i32
    %c0_i32_0 = arith.constant 0 : i32
    %c0_i32_1 = arith.constant 0 : i32
    %c0_i32_2 = arith.constant 0 : i32
    return %c0_i32, %c0_i32_0, %c0_i32_1 : i32, i32, i32
  }
  func.func @transform_3(%arg0: i32) -> (i32, i32, i32) {
    %c0_i32 = arith.constant 0 : i32
    %c0_i32_0 = arith.constant 0 : i32
    %c0_i32_1 = arith.constant 0 : i32
    %c0_i32_2 = arith.constant 0 : i32
    return %c0_i32, %c0_i32_0, %c0_i32_1 : i32, i32, i32
  }
  func.func @transform_4(%arg0: i32) -> (i32, i32, i32) {
    %c0_i32 = arith.constant 0 : i32
    %c0_i32_0 = arith.constant 0 : i32
    %c0_i32_1 = arith.constant 0 : i32
    %c0_i32_2 = arith.constant 0 : i32
    return %c0_i32, %c0_i32_0, %c0_i32_1 : i32, i32, i32
  }
  func.func @transform_5(%arg0: i32) -> (i32, i32, i32) {
    %c0_i32 = arith.constant 0 : i32
    %c0_i32_0 = arith.constant 0 : i32
    %c0_i32_1 = arith.constant 0 : i32
    %c0_i32_2 = arith.constant 0 : i32
    return %c0_i32, %c0_i32_0, %c0_i32_1 : i32, i32, i32
  }
  func.func @transform_6(%arg0: i32) -> (i32, i32, i32) {
    %c0_i32 = arith.constant 0 : i32
    %c0_i32_0 = arith.constant 0 : i32
    %c0_i32_1 = arith.constant 0 : i32
    %c0_i32_2 = arith.constant 0 : i32
    return %c0_i32, %c0_i32_0, %c0_i32_1 : i32, i32, i32
  }
  func.func @transform_7(%arg0: i32) -> (i32, i32, i32) {
    %c0_i32 = arith.constant 0 : i32
    %c0_i32_0 = arith.constant 0 : i32
    %c0_i32_1 = arith.constant 0 : i32
    %c0_i32_2 = arith.constant 0 : i32
    return %c0_i32, %c0_i32_0, %c0_i32_1 : i32, i32, i32
  }
  func.func @transform_8(%arg0: i32) -> (i32, i32, i32) {
    %c0_i32 = arith.constant 0 : i32
    %c0_i32_0 = arith.constant 0 : i32
    %c0_i32_1 = arith.constant 0 : i32
    %c0_i32_2 = arith.constant 0 : i32
    return %c0_i32, %c0_i32_0, %c0_i32_1 : i32, i32, i32
  }
  func.func @transform_9(%arg0: i32) -> (i32, i32) {
    %c0_i32 = arith.constant 0 : i32
    %c0_i32_0 = arith.constant 0 : i32
    %c0_i32_1 = arith.constant 0 : i32
    return %c0_i32, %c0_i32_0 : i32, i32
  }
  func.func @transform_10(%arg0: i32) -> (i32, i32, i32) {
    %c0_i32 = arith.constant 0 : i32
    %c0_i32_0 = arith.constant 0 : i32
    %c0_i32_1 = arith.constant 0 : i32
    %c0_i32_2 = arith.constant 0 : i32
    return %c0_i32, %c0_i32_0, %c0_i32_1 : i32, i32, i32
  }
  func.func @transform_11(%arg0: i32) -> (i32, i32, i32) {
    %c0_i32 = arith.constant 0 : i32
    %c0_i32_0 = arith.constant 0 : i32
    %c0_i32_1 = arith.constant 0 : i32
    %c0_i32_2 = arith.constant 0 : i32
    return %c0_i32, %c0_i32_0, %c0_i32_1 : i32, i32, i32
  }
  func.func @transform_12(%arg0: i32) -> (i32, i32, i32) {
    %c0_i32 = arith.constant 0 : i32
    %c0_i32_0 = arith.constant 0 : i32
    %c0_i32_1 = arith.constant 0 : i32
    %c0_i32_2 = arith.constant 0 : i32
    return %c0_i32, %c0_i32_0, %c0_i32_1 : i32, i32, i32
  }
  func.func @transform_13(%arg0: i32) -> (i32, i32, i32) {
    %c0_i32 = arith.constant 0 : i32
    %c0_i32_0 = arith.constant 0 : i32
    %c0_i32_1 = arith.constant 0 : i32
    %c0_i32_2 = arith.constant 0 : i32
    return %c0_i32, %c0_i32_0, %c0_i32_1 : i32, i32, i32
  }
  func.func @transform_14(%arg0: i32) -> (i32, i32, i32) {
    %c0_i32 = arith.constant 0 : i32
    %c0_i32_0 = arith.constant 0 : i32
    %c0_i32_1 = arith.constant 0 : i32
    %c0_i32_2 = arith.constant 0 : i32
    return %c0_i32, %c0_i32_0, %c0_i32_1 : i32, i32, i32
  }
  func.func @transform_15(%arg0: i32) -> (i32, i32, i32) {
    %c0_i32 = arith.constant 0 : i32
    %c0_i32_0 = arith.constant 0 : i32
    %c0_i32_1 = arith.constant 0 : i32
    %c0_i32_2 = arith.constant 0 : i32
    return %c0_i32, %c0_i32_0, %c0_i32_1 : i32, i32, i32
  }
  func.func @transform_16(%arg0: i32) -> (i32, i32, i32) {
    %c0_i32 = arith.constant 0 : i32
    %c0_i32_0 = arith.constant 0 : i32
    %c0_i32_1 = arith.constant 0 : i32
    %c0_i32_2 = arith.constant 0 : i32
    return %c0_i32, %c0_i32_0, %c0_i32_1 : i32, i32, i32
  }
  func.func @transform_17(%arg0: i32) -> (i32, i32) {
    %c0_i32 = arith.constant 0 : i32
    %c0_i32_0 = arith.constant 0 : i32
    %c0_i32_1 = arith.constant 0 : i32
    return %c0_i32, %c0_i32_0 : i32, i32
  }
  func.func @transform_18(%arg0: i32) -> (i32, i32) {
    %c0_i32 = arith.constant 0 : i32
    %c0_i32_0 = arith.constant 0 : i32
    %c0_i32_1 = arith.constant 0 : i32
    return %c0_i32, %c0_i32_0 : i32, i32
  }
  func.func @transform_19(%arg0: i32) -> (i32, i32) {
    %c0_i32 = arith.constant 0 : i32
    %c0_i32_0 = arith.constant 0 : i32
    %c0_i32_1 = arith.constant 0 : i32
    return %c0_i32, %c0_i32_0 : i32, i32
  }
  func.func @transform_20(%arg0: i32) -> (i32, i32) {
    %c0_i32 = arith.constant 0 : i32
    %c0_i32_0 = arith.constant 0 : i32
    %c0_i32_1 = arith.constant 0 : i32
    return %c0_i32, %c0_i32_0 : i32, i32
  }
  func.func @transform_21(%arg0: i32) -> (i32, i32) {
    %c0_i32 = arith.constant 0 : i32
    %c0_i32_0 = arith.constant 0 : i32
    %c0_i32_1 = arith.constant 0 : i32
    return %c0_i32, %c0_i32_0 : i32, i32
  }
  func.func @transform_22(%arg0: i32) -> (i32, i32, i32) {
    %c0_i32 = arith.constant 0 : i32
    %c0_i32_0 = arith.constant 0 : i32
    %c0_i32_1 = arith.constant 0 : i32
    return %arg0, %c0_i32, %c0_i32_0 : i32, i32, i32
  }
  func.func @transform_23(%arg0: i32) -> (i32, i32, i32) {
    %c0_i32 = arith.constant 0 : i32
    %c0_i32_0 = arith.constant 0 : i32
    %c0_i32_1 = arith.constant 0 : i32
    return %arg0, %c0_i32, %c0_i32_0 : i32, i32, i32
  }
}

module attributes {stable_mosaic.version = 11 : i64} {
  func.func @_attn_block_kernel(%arg0: i32, %arg1: memref<1x17x128xf32, #tpu.memory_space<vmem>>, %arg2: memref<1x17x128xf32, #tpu.memory_space<vmem>>, %arg3: memref<2x128x64xbf16, #tpu.memory_space<vmem>>, %arg4: memref<2x128x64xbf16, #tpu.memory_space<vmem>>, %arg5: memref<2x128x64xbf16, #tpu.memory_space<vmem>>, %arg6: memref<2x1x64xf32, #tpu.memory_space<vmem>>, %arg7: memref<2x1x64xf32, #tpu.memory_space<vmem>>, %arg8: memref<2x1x64xf32, #tpu.memory_space<vmem>>, %arg9: memref<2x64x128xbf16, #tpu.memory_space<vmem>>, %arg10: memref<1x128xf32, #tpu.memory_space<vmem>>, %arg11: memref<2x128x64xbf16, #tpu.memory_space<vmem>>, %arg12: memref<2x128x64xbf16, #tpu.memory_space<vmem>>, %arg13: memref<2x128x64xbf16, #tpu.memory_space<vmem>>, %arg14: memref<2x1x64xf32, #tpu.memory_space<vmem>>, %arg15: memref<2x1x64xf32, #tpu.memory_space<vmem>>, %arg16: memref<2x1x64xf32, #tpu.memory_space<vmem>>, %arg17: memref<2x64x128xbf16, #tpu.memory_space<vmem>>, %arg18: memref<1x128xf32, #tpu.memory_space<vmem>>, %arg19: memref<1x128xf32, #tpu.memory_space<vmem>>, %arg20: memref<1x128xf32, #tpu.memory_space<vmem>>, %arg21: memref<1x128xf32, #tpu.memory_space<vmem>>, %arg22: memref<1x128xf32, #tpu.memory_space<vmem>>, %arg23: memref<1x17x128xf32, #tpu.memory_space<vmem>>, %arg24: memref<1x1x128xf32, #tpu.memory_space<vmem>>) attributes {dimension_semantics = [#tpu.dimension_semantics<parallel>], iteration_bounds = array<i64: 2>, scalar_prefetch = 0 : i64, scratch_operands = 0 : i64, tpu.core_type = #tpu.core_type<tc>, window_params = [{transform_indices = @transform_0, window_bounds = array<i64: 1, 17, 128>}, {transform_indices = @transform_1, window_bounds = array<i64: 1, 17, 128>}, {pipeline_mode = #tpu.pipeline_mode<synchronous>, transform_indices = @transform_2, window_bounds = array<i64: 2, 128, 64>}, {pipeline_mode = #tpu.pipeline_mode<synchronous>, transform_indices = @transform_3, window_bounds = array<i64: 2, 128, 64>}, {pipeline_mode = #tpu.pipeline_mode<synchronous>, transform_indices = @transform_4, window_bounds = array<i64: 2, 128, 64>}, {pipeline_mode = #tpu.pipeline_mode<synchronous>, transform_indices = @transform_5, window_bounds = array<i64: 2, 1, 64>}, {pipeline_mode = #tpu.pipeline_mode<synchronous>, transform_indices = @transform_6, window_bounds = array<i64: 2, 1, 64>}, {pipeline_mode = #tpu.pipeline_mode<synchronous>, transform_indices = @transform_7, window_bounds = array<i64: 2, 1, 64>}, {pipeline_mode = #tpu.pipeline_mode<synchronous>, transform_indices = @transform_8, window_bounds = array<i64: 2, 64, 128>}, {pipeline_mode = #tpu.pipeline_mode<synchronous>, transform_indices = @transform_9, window_bounds = array<i64: 1, 128>}, {pipeline_mode = #tpu.pipeline_mode<synchronous>, transform_indices = @transform_10, window_bounds = array<i64: 2, 128, 64>}, {pipeline_mode = #tpu.pipeline_mode<synchronous>, transform_indices = @transform_11, window_bounds = array<i64: 2, 128, 64>}, {pipeline_mode = #tpu.pipeline_mode<synchronous>, transform_indices = @transform_12, window_bounds = array<i64: 2, 128, 64>}, {pipeline_mode = #tpu.pipeline_mode<synchronous>, transform_indices = @transform_13, window_bounds = array<i64: 2, 1, 64>}, {pipeline_mode = #tpu.pipeline_mode<synchronous>, transform_indices = @transform_14, window_bounds = array<i64: 2, 1, 64>}, {pipeline_mode = #tpu.pipeline_mode<synchronous>, transform_indices = @transform_15, window_bounds = array<i64: 2, 1, 64>}, {pipeline_mode = #tpu.pipeline_mode<synchronous>, transform_indices = @transform_16, window_bounds = array<i64: 2, 64, 128>}, {pipeline_mode = #tpu.pipeline_mode<synchronous>, transform_indices = @transform_17, window_bounds = array<i64: 1, 128>}, {pipeline_mode = #tpu.pipeline_mode<synchronous>, transform_indices = @transform_18, window_bounds = array<i64: 1, 128>}, {pipeline_mode = #tpu.pipeline_mode<synchronous>, transform_indices = @transform_19, window_bounds = array<i64: 1, 128>}, {pipeline_mode = #tpu.pipeline_mode<synchronous>, transform_indices = @transform_20, window_bounds = array<i64: 1, 128>}, {pipeline_mode = #tpu.pipeline_mode<synchronous>, transform_indices = @transform_21, window_bounds = array<i64: 1, 128>}, {transform_indices = @transform_22, window_bounds = array<i64: 1, 17, 128>}, {transform_indices = @transform_23, window_bounds = array<i64: 1, 1, 128>}]} {
    %c0 = arith.constant 0 : index
    %c0_0 = arith.constant 0 : index
    %c0_1 = arith.constant 0 : index
    %0 = vector.load %arg1[%c0, %c0_0, %c0_1] : memref<1x17x128xf32, #tpu.memory_space<vmem>>, vector<1x17x128xf32>
    %1 = vector.shape_cast %0 : vector<1x17x128xf32> to vector<17x128xf32>
    %c0_2 = arith.constant 0 : index
    %c0_3 = arith.constant 0 : index
    %c0_4 = arith.constant 0 : index
    %2 = vector.load %arg2[%c0_2, %c0_3, %c0_4] : memref<1x17x128xf32, #tpu.memory_space<vmem>>, vector<1x17x128xf32>
    %3 = vector.shape_cast %2 : vector<1x17x128xf32> to vector<17x128xf32>
    %4 = arith.truncf %1 : vector<17x128xf32> to vector<17x128xbf16>
    %5 = arith.truncf %1 : vector<17x128xf32> to vector<17x128xbf16>
    %cst = arith.constant 0.000000e+00 : f32
    %6 = vector.broadcast %cst : f32 to vector<17x128xf32>
    %c0_5 = arith.constant 0 : index
    %c0_6 = arith.constant 0 : index
    %c0_7 = arith.constant 0 : index
    %7 = vector.load %arg3[%c0_5, %c0_6, %c0_7] : memref<2x128x64xbf16, #tpu.memory_space<vmem>>, vector<1x128x64xbf16>
    %8 = vector.shape_cast %7 : vector<1x128x64xbf16> to vector<128x64xbf16>
    %cst_8 = arith.constant dense<0.000000e+00> : vector<17x64xf32>
    %9 = tpu.matmul %4, %8, %cst_8 {dimension_numbers = #tpu.dot_dimension_numbers<[1], [0], [0], [1], [0, 0, 1, 1], [], []>} : vector<17x128xbf16>, vector<128x64xbf16>, vector<17x64xf32> -> vector<17x64xf32>
    %c0_9 = arith.constant 0 : index
    %c0_10 = arith.constant 0 : index
    %c0_11 = arith.constant 0 : index
    %10 = vector.load %arg6[%c0_9, %c0_10, %c0_11] : memref<2x1x64xf32, #tpu.memory_space<vmem>>, vector<1x1x64xf32>
    %11 = vector.shape_cast %10 : vector<1x1x64xf32> to vector<1x64xf32>
    %12 = vector.broadcast %11 : vector<1x64xf32> to vector<17x64xf32>
    %13 = arith.addf %9, %12 : vector<17x64xf32>
    %c0_12 = arith.constant 0 : index
    %c0_13 = arith.constant 0 : index
    %c0_14 = arith.constant 0 : index
    %14 = vector.load %arg4[%c0_12, %c0_13, %c0_14] : memref<2x128x64xbf16, #tpu.memory_space<vmem>>, vector<1x128x64xbf16>
    %15 = vector.shape_cast %14 : vector<1x128x64xbf16> to vector<128x64xbf16>
    %cst_15 = arith.constant dense<0.000000e+00> : vector<17x64xf32>
    %16 = tpu.matmul %5, %15, %cst_15 {dimension_numbers = #tpu.dot_dimension_numbers<[1], [0], [0], [1], [0, 0, 1, 1], [], []>} : vector<17x128xbf16>, vector<128x64xbf16>, vector<17x64xf32> -> vector<17x64xf32>
    %c0_16 = arith.constant 0 : index
    %c0_17 = arith.constant 0 : index
    %c0_18 = arith.constant 0 : index
    %17 = vector.load %arg7[%c0_16, %c0_17, %c0_18] : memref<2x1x64xf32, #tpu.memory_space<vmem>>, vector<1x1x64xf32>
    %18 = vector.shape_cast %17 : vector<1x1x64xf32> to vector<1x64xf32>
    %19 = vector.broadcast %18 : vector<1x64xf32> to vector<17x64xf32>
    %20 = arith.addf %16, %19 : vector<17x64xf32>
    %c0_19 = arith.constant 0 : index
    %c0_20 = arith.constant 0 : index
    %c0_21 = arith.constant 0 : index
    %21 = vector.load %arg5[%c0_19, %c0_20, %c0_21] : memref<2x128x64xbf16, #tpu.memory_space<vmem>>, vector<1x128x64xbf16>
    %22 = vector.shape_cast %21 : vector<1x128x64xbf16> to vector<128x64xbf16>
    %cst_22 = arith.constant dense<0.000000e+00> : vector<17x64xf32>
    %23 = tpu.matmul %5, %22, %cst_22 {dimension_numbers = #tpu.dot_dimension_numbers<[1], [0], [0], [1], [0, 0, 1, 1], [], []>} : vector<17x128xbf16>, vector<128x64xbf16>, vector<17x64xf32> -> vector<17x64xf32>
    %c0_23 = arith.constant 0 : index
    %c0_24 = arith.constant 0 : index
    %c0_25 = arith.constant 0 : index
    %24 = vector.load %arg8[%c0_23, %c0_24, %c0_25] : memref<2x1x64xf32, #tpu.memory_space<vmem>>, vector<1x1x64xf32>
    %25 = vector.shape_cast %24 : vector<1x1x64xf32> to vector<1x64xf32>
    %26 = vector.broadcast %25 : vector<1x64xf32> to vector<17x64xf32>
    %27 = arith.addf %23, %26 : vector<17x64xf32>
    %cst_26 = arith.constant 1.250000e-01 : f32
    %28 = vector.broadcast %cst_26 : f32 to vector<17x64xf32>
    %29 = arith.mulf %13, %28 : vector<17x64xf32>
    %30 = arith.truncf %29 : vector<17x64xf32> to vector<17x64xbf16>
    %31 = arith.truncf %20 : vector<17x64xf32> to vector<17x64xbf16>
    %cst_27 = arith.constant dense<0.000000e+00> : vector<17x17xf32>
    %32 = tpu.matmul %30, %31, %cst_27 {dimension_numbers = #tpu.dot_dimension_numbers<[1], [1], [0], [0], [0, 0, 1, 0], [], []>} : vector<17x64xbf16>, vector<17x64xbf16>, vector<17x17xf32> -> vector<17x17xf32>
    %cst_28 = arith.constant dense<0xFF800000> : vector<17xf32>
    %33 = vector.multi_reduction <maximumf>, %32, %cst_28 [1] : vector<17x17xf32> to vector<17xf32>
    %34 = vector.shape_cast %33 : vector<17xf32> to vector<17x1xf32>
    %35 = vector.broadcast %34 : vector<17x1xf32> to vector<17x17xf32>
    %36 = arith.subf %32, %35 : vector<17x17xf32>
    %37 = math.exp %36 : vector<17x17xf32>
    %cst_29 = arith.constant dense<0.000000e+00> : vector<17xf32>
    %38 = vector.multi_reduction <add>, %37, %cst_29 [1] : vector<17x17xf32> to vector<17xf32>
    %39 = vector.shape_cast %38 : vector<17xf32> to vector<17x1xf32>
    %40 = tpu.reciprocal %39 {approx = true} : vector<17x1xf32> -> vector<17x1xf32>
    %41 = vector.broadcast %40 : vector<17x1xf32> to vector<17x17xf32>
    %42 = arith.mulf %37, %41 : vector<17x17xf32>
    %43 = arith.truncf %42 : vector<17x17xf32> to vector<17x17xbf16>
    %44 = arith.truncf %27 : vector<17x64xf32> to vector<17x64xbf16>
    %cst_30 = arith.constant dense<0.000000e+00> : vector<17x64xf32>
    %45 = tpu.matmul %43, %44, %cst_30 {dimension_numbers = #tpu.dot_dimension_numbers<[1], [0], [0], [1], [0, 0, 1, 1], [], []>} : vector<17x17xbf16>, vector<17x64xbf16>, vector<17x64xf32> -> vector<17x64xf32>
    %46 = arith.truncf %45 : vector<17x64xf32> to vector<17x64xbf16>
    %c0_31 = arith.constant 0 : index
    %c0_32 = arith.constant 0 : index
    %c0_33 = arith.constant 0 : index
    %47 = vector.load %arg9[%c0_31, %c0_32, %c0_33] : memref<2x64x128xbf16, #tpu.memory_space<vmem>>, vector<1x64x128xbf16>
    %48 = vector.shape_cast %47 : vector<1x64x128xbf16> to vector<64x128xbf16>
    %cst_34 = arith.constant dense<0.000000e+00> : vector<17x128xf32>
    %49 = tpu.matmul %46, %48, %cst_34 {dimension_numbers = #tpu.dot_dimension_numbers<[1], [0], [0], [1], [0, 0, 1, 1], [], []>} : vector<17x64xbf16>, vector<64x128xbf16>, vector<17x128xf32> -> vector<17x128xf32>
    %50 = arith.addf %6, %49 : vector<17x128xf32>
    %c1 = arith.constant 1 : index
    %c0_35 = arith.constant 0 : index
    %c0_36 = arith.constant 0 : index
    %51 = vector.load %arg3[%c1, %c0_35, %c0_36] : memref<2x128x64xbf16, #tpu.memory_space<vmem>>, vector<1x128x64xbf16>
    %52 = vector.shape_cast %51 : vector<1x128x64xbf16> to vector<128x64xbf16>
    %cst_37 = arith.constant dense<0.000000e+00> : vector<17x64xf32>
    %53 = tpu.matmul %4, %52, %cst_37 {dimension_numbers = #tpu.dot_dimension_numbers<[1], [0], [0], [1], [0, 0, 1, 1], [], []>} : vector<17x128xbf16>, vector<128x64xbf16>, vector<17x64xf32> -> vector<17x64xf32>
    %c1_38 = arith.constant 1 : index
    %c0_39 = arith.constant 0 : index
    %c0_40 = arith.constant 0 : index
    %54 = vector.load %arg6[%c1_38, %c0_39, %c0_40] : memref<2x1x64xf32, #tpu.memory_space<vmem>>, vector<1x1x64xf32>
    %55 = vector.shape_cast %54 : vector<1x1x64xf32> to vector<1x64xf32>
    %56 = vector.broadcast %55 : vector<1x64xf32> to vector<17x64xf32>
    %57 = arith.addf %53, %56 : vector<17x64xf32>
    %c1_41 = arith.constant 1 : index
    %c0_42 = arith.constant 0 : index
    %c0_43 = arith.constant 0 : index
    %58 = vector.load %arg4[%c1_41, %c0_42, %c0_43] : memref<2x128x64xbf16, #tpu.memory_space<vmem>>, vector<1x128x64xbf16>
    %59 = vector.shape_cast %58 : vector<1x128x64xbf16> to vector<128x64xbf16>
    %cst_44 = arith.constant dense<0.000000e+00> : vector<17x64xf32>
    %60 = tpu.matmul %5, %59, %cst_44 {dimension_numbers = #tpu.dot_dimension_numbers<[1], [0], [0], [1], [0, 0, 1, 1], [], []>} : vector<17x128xbf16>, vector<128x64xbf16>, vector<17x64xf32> -> vector<17x64xf32>
    %c1_45 = arith.constant 1 : index
    %c0_46 = arith.constant 0 : index
    %c0_47 = arith.constant 0 : index
    %61 = vector.load %arg7[%c1_45, %c0_46, %c0_47] : memref<2x1x64xf32, #tpu.memory_space<vmem>>, vector<1x1x64xf32>
    %62 = vector.shape_cast %61 : vector<1x1x64xf32> to vector<1x64xf32>
    %63 = vector.broadcast %62 : vector<1x64xf32> to vector<17x64xf32>
    %64 = arith.addf %60, %63 : vector<17x64xf32>
    %c1_48 = arith.constant 1 : index
    %c0_49 = arith.constant 0 : index
    %c0_50 = arith.constant 0 : index
    %65 = vector.load %arg5[%c1_48, %c0_49, %c0_50] : memref<2x128x64xbf16, #tpu.memory_space<vmem>>, vector<1x128x64xbf16>
    %66 = vector.shape_cast %65 : vector<1x128x64xbf16> to vector<128x64xbf16>
    %cst_51 = arith.constant dense<0.000000e+00> : vector<17x64xf32>
    %67 = tpu.matmul %5, %66, %cst_51 {dimension_numbers = #tpu.dot_dimension_numbers<[1], [0], [0], [1], [0, 0, 1, 1], [], []>} : vector<17x128xbf16>, vector<128x64xbf16>, vector<17x64xf32> -> vector<17x64xf32>
    %c1_52 = arith.constant 1 : index
    %c0_53 = arith.constant 0 : index
    %c0_54 = arith.constant 0 : index
    %68 = vector.load %arg8[%c1_52, %c0_53, %c0_54] : memref<2x1x64xf32, #tpu.memory_space<vmem>>, vector<1x1x64xf32>
    %69 = vector.shape_cast %68 : vector<1x1x64xf32> to vector<1x64xf32>
    %70 = vector.broadcast %69 : vector<1x64xf32> to vector<17x64xf32>
    %71 = arith.addf %67, %70 : vector<17x64xf32>
    %cst_55 = arith.constant 1.250000e-01 : f32
    %72 = vector.broadcast %cst_55 : f32 to vector<17x64xf32>
    %73 = arith.mulf %57, %72 : vector<17x64xf32>
    %74 = arith.truncf %73 : vector<17x64xf32> to vector<17x64xbf16>
    %75 = arith.truncf %64 : vector<17x64xf32> to vector<17x64xbf16>
    %cst_56 = arith.constant dense<0.000000e+00> : vector<17x17xf32>
    %76 = tpu.matmul %74, %75, %cst_56 {dimension_numbers = #tpu.dot_dimension_numbers<[1], [1], [0], [0], [0, 0, 1, 0], [], []>} : vector<17x64xbf16>, vector<17x64xbf16>, vector<17x17xf32> -> vector<17x17xf32>
    %cst_57 = arith.constant dense<0xFF800000> : vector<17xf32>
    %77 = vector.multi_reduction <maximumf>, %76, %cst_57 [1] : vector<17x17xf32> to vector<17xf32>
    %78 = vector.shape_cast %77 : vector<17xf32> to vector<17x1xf32>
    %79 = vector.broadcast %78 : vector<17x1xf32> to vector<17x17xf32>
    %80 = arith.subf %76, %79 : vector<17x17xf32>
    %81 = math.exp %80 : vector<17x17xf32>
    %cst_58 = arith.constant dense<0.000000e+00> : vector<17xf32>
    %82 = vector.multi_reduction <add>, %81, %cst_58 [1] : vector<17x17xf32> to vector<17xf32>
    %83 = vector.shape_cast %82 : vector<17xf32> to vector<17x1xf32>
    %84 = tpu.reciprocal %83 {approx = true} : vector<17x1xf32> -> vector<17x1xf32>
    %85 = vector.broadcast %84 : vector<17x1xf32> to vector<17x17xf32>
    %86 = arith.mulf %81, %85 : vector<17x17xf32>
    %87 = arith.truncf %86 : vector<17x17xf32> to vector<17x17xbf16>
    %88 = arith.truncf %71 : vector<17x64xf32> to vector<17x64xbf16>
    %cst_59 = arith.constant dense<0.000000e+00> : vector<17x64xf32>
    %89 = tpu.matmul %87, %88, %cst_59 {dimension_numbers = #tpu.dot_dimension_numbers<[1], [0], [0], [1], [0, 0, 1, 1], [], []>} : vector<17x17xbf16>, vector<17x64xbf16>, vector<17x64xf32> -> vector<17x64xf32>
    %90 = arith.truncf %89 : vector<17x64xf32> to vector<17x64xbf16>
    %c1_60 = arith.constant 1 : index
    %c0_61 = arith.constant 0 : index
    %c0_62 = arith.constant 0 : index
    %91 = vector.load %arg9[%c1_60, %c0_61, %c0_62] : memref<2x64x128xbf16, #tpu.memory_space<vmem>>, vector<1x64x128xbf16>
    %92 = vector.shape_cast %91 : vector<1x64x128xbf16> to vector<64x128xbf16>
    %cst_63 = arith.constant dense<0.000000e+00> : vector<17x128xf32>
    %93 = tpu.matmul %90, %92, %cst_63 {dimension_numbers = #tpu.dot_dimension_numbers<[1], [0], [0], [1], [0, 0, 1, 1], [], []>} : vector<17x64xbf16>, vector<64x128xbf16>, vector<17x128xf32> -> vector<17x128xf32>
    %94 = arith.addf %50, %93 : vector<17x128xf32>
    %c0_64 = arith.constant 0 : index
    %c0_65 = arith.constant 0 : index
    %95 = vector.load %arg10[%c0_64, %c0_65] : memref<1x128xf32, #tpu.memory_space<vmem>>, vector<1x128xf32>
    %96 = vector.broadcast %95 : vector<1x128xf32> to vector<17x128xf32>
    %97 = arith.addf %94, %96 : vector<17x128xf32>
    %98 = arith.addf %1, %97 : vector<17x128xf32>
    %cst_66 = arith.constant dense<0.000000e+00> : vector<17xf32>
    %99 = vector.multi_reduction <add>, %98, %cst_66 [1] : vector<17x128xf32> to vector<17xf32>
    %100 = vector.shape_cast %99 : vector<17xf32> to vector<17x1xf32>
    %cst_67 = arith.constant 1.280000e+02 : f32
    %101 = vector.broadcast %cst_67 : f32 to vector<17x1xf32>
    %102 = arith.divf %100, %101 : vector<17x1xf32>
    %103 = vector.broadcast %102 : vector<17x1xf32> to vector<17x128xf32>
    %104 = arith.subf %98, %103 : vector<17x128xf32>
    %105 = arith.mulf %104, %104 : vector<17x128xf32>
    %cst_68 = arith.constant dense<0.000000e+00> : vector<17xf32>
    %106 = vector.multi_reduction <add>, %105, %cst_68 [1] : vector<17x128xf32> to vector<17xf32>
    %107 = vector.shape_cast %106 : vector<17xf32> to vector<17x1xf32>
    %cst_69 = arith.constant 1.280000e+02 : f32
    %108 = vector.broadcast %cst_69 : f32 to vector<17x1xf32>
    %109 = arith.divf %107, %108 : vector<17x1xf32>
    %110 = vector.broadcast %102 : vector<17x1xf32> to vector<17x128xf32>
    %111 = arith.subf %98, %110 : vector<17x128xf32>
    %cst_70 = arith.constant 9.99999974E-6 : f32
    %112 = vector.broadcast %cst_70 : f32 to vector<17x1xf32>
    %113 = arith.addf %109, %112 : vector<17x1xf32>
    %114 = math.rsqrt %113 : vector<17x1xf32>
    %115 = vector.broadcast %114 : vector<17x1xf32> to vector<17x128xf32>
    %116 = arith.mulf %111, %115 : vector<17x128xf32>
    %c0_71 = arith.constant 0 : index
    %c0_72 = arith.constant 0 : index
    %117 = vector.load %arg19[%c0_71, %c0_72] : memref<1x128xf32, #tpu.memory_space<vmem>>, vector<1x128xf32>
    %118 = vector.broadcast %117 : vector<1x128xf32> to vector<17x128xf32>
    %119 = arith.mulf %116, %118 : vector<17x128xf32>
    %c0_73 = arith.constant 0 : index
    %c0_74 = arith.constant 0 : index
    %120 = vector.load %arg20[%c0_73, %c0_74] : memref<1x128xf32, #tpu.memory_space<vmem>>, vector<1x128xf32>
    %121 = vector.broadcast %120 : vector<1x128xf32> to vector<17x128xf32>
    %122 = arith.addf %119, %121 : vector<17x128xf32>
    %123 = arith.truncf %122 : vector<17x128xf32> to vector<17x128xbf16>
    %124 = arith.truncf %3 : vector<17x128xf32> to vector<17x128xbf16>
    %cst_75 = arith.constant 0.000000e+00 : f32
    %125 = vector.broadcast %cst_75 : f32 to vector<17x128xf32>
    %c0_76 = arith.constant 0 : index
    %c0_77 = arith.constant 0 : index
    %c0_78 = arith.constant 0 : index
    %126 = vector.load %arg11[%c0_76, %c0_77, %c0_78] : memref<2x128x64xbf16, #tpu.memory_space<vmem>>, vector<1x128x64xbf16>
    %127 = vector.shape_cast %126 : vector<1x128x64xbf16> to vector<128x64xbf16>
    %cst_79 = arith.constant dense<0.000000e+00> : vector<17x64xf32>
    %128 = tpu.matmul %123, %127, %cst_79 {dimension_numbers = #tpu.dot_dimension_numbers<[1], [0], [0], [1], [0, 0, 1, 1], [], []>} : vector<17x128xbf16>, vector<128x64xbf16>, vector<17x64xf32> -> vector<17x64xf32>
    %c0_80 = arith.constant 0 : index
    %c0_81 = arith.constant 0 : index
    %c0_82 = arith.constant 0 : index
    %129 = vector.load %arg14[%c0_80, %c0_81, %c0_82] : memref<2x1x64xf32, #tpu.memory_space<vmem>>, vector<1x1x64xf32>
    %130 = vector.shape_cast %129 : vector<1x1x64xf32> to vector<1x64xf32>
    %131 = vector.broadcast %130 : vector<1x64xf32> to vector<17x64xf32>
    %132 = arith.addf %128, %131 : vector<17x64xf32>
    %c0_83 = arith.constant 0 : index
    %c0_84 = arith.constant 0 : index
    %c0_85 = arith.constant 0 : index
    %133 = vector.load %arg12[%c0_83, %c0_84, %c0_85] : memref<2x128x64xbf16, #tpu.memory_space<vmem>>, vector<1x128x64xbf16>
    %134 = vector.shape_cast %133 : vector<1x128x64xbf16> to vector<128x64xbf16>
    %cst_86 = arith.constant dense<0.000000e+00> : vector<17x64xf32>
    %135 = tpu.matmul %124, %134, %cst_86 {dimension_numbers = #tpu.dot_dimension_numbers<[1], [0], [0], [1], [0, 0, 1, 1], [], []>} : vector<17x128xbf16>, vector<128x64xbf16>, vector<17x64xf32> -> vector<17x64xf32>
    %c0_87 = arith.constant 0 : index
    %c0_88 = arith.constant 0 : index
    %c0_89 = arith.constant 0 : index
    %136 = vector.load %arg15[%c0_87, %c0_88, %c0_89] : memref<2x1x64xf32, #tpu.memory_space<vmem>>, vector<1x1x64xf32>
    %137 = vector.shape_cast %136 : vector<1x1x64xf32> to vector<1x64xf32>
    %138 = vector.broadcast %137 : vector<1x64xf32> to vector<17x64xf32>
    %139 = arith.addf %135, %138 : vector<17x64xf32>
    %c0_90 = arith.constant 0 : index
    %c0_91 = arith.constant 0 : index
    %c0_92 = arith.constant 0 : index
    %140 = vector.load %arg13[%c0_90, %c0_91, %c0_92] : memref<2x128x64xbf16, #tpu.memory_space<vmem>>, vector<1x128x64xbf16>
    %141 = vector.shape_cast %140 : vector<1x128x64xbf16> to vector<128x64xbf16>
    %cst_93 = arith.constant dense<0.000000e+00> : vector<17x64xf32>
    %142 = tpu.matmul %124, %141, %cst_93 {dimension_numbers = #tpu.dot_dimension_numbers<[1], [0], [0], [1], [0, 0, 1, 1], [], []>} : vector<17x128xbf16>, vector<128x64xbf16>, vector<17x64xf32> -> vector<17x64xf32>
    %c0_94 = arith.constant 0 : index
    %c0_95 = arith.constant 0 : index
    %c0_96 = arith.constant 0 : index
    %143 = vector.load %arg16[%c0_94, %c0_95, %c0_96] : memref<2x1x64xf32, #tpu.memory_space<vmem>>, vector<1x1x64xf32>
    %144 = vector.shape_cast %143 : vector<1x1x64xf32> to vector<1x64xf32>
    %145 = vector.broadcast %144 : vector<1x64xf32> to vector<17x64xf32>
    %146 = arith.addf %142, %145 : vector<17x64xf32>
    %cst_97 = arith.constant 1.250000e-01 : f32
    %147 = vector.broadcast %cst_97 : f32 to vector<17x64xf32>
    %148 = arith.mulf %132, %147 : vector<17x64xf32>
    %149 = arith.truncf %148 : vector<17x64xf32> to vector<17x64xbf16>
    %150 = arith.truncf %139 : vector<17x64xf32> to vector<17x64xbf16>
    %cst_98 = arith.constant dense<0.000000e+00> : vector<17x17xf32>
    %151 = tpu.matmul %149, %150, %cst_98 {dimension_numbers = #tpu.dot_dimension_numbers<[1], [1], [0], [0], [0, 0, 1, 0], [], []>} : vector<17x64xbf16>, vector<17x64xbf16>, vector<17x17xf32> -> vector<17x17xf32>
    %cst_99 = arith.constant dense<0xFF800000> : vector<17xf32>
    %152 = vector.multi_reduction <maximumf>, %151, %cst_99 [1] : vector<17x17xf32> to vector<17xf32>
    %153 = vector.shape_cast %152 : vector<17xf32> to vector<17x1xf32>
    %154 = vector.broadcast %153 : vector<17x1xf32> to vector<17x17xf32>
    %155 = arith.subf %151, %154 : vector<17x17xf32>
    %156 = math.exp %155 : vector<17x17xf32>
    %cst_100 = arith.constant dense<0.000000e+00> : vector<17xf32>
    %157 = vector.multi_reduction <add>, %156, %cst_100 [1] : vector<17x17xf32> to vector<17xf32>
    %158 = vector.shape_cast %157 : vector<17xf32> to vector<17x1xf32>
    %159 = tpu.reciprocal %158 {approx = true} : vector<17x1xf32> -> vector<17x1xf32>
    %160 = vector.broadcast %159 : vector<17x1xf32> to vector<17x17xf32>
    %161 = arith.mulf %156, %160 : vector<17x17xf32>
    %162 = arith.truncf %161 : vector<17x17xf32> to vector<17x17xbf16>
    %163 = arith.truncf %146 : vector<17x64xf32> to vector<17x64xbf16>
    %cst_101 = arith.constant dense<0.000000e+00> : vector<17x64xf32>
    %164 = tpu.matmul %162, %163, %cst_101 {dimension_numbers = #tpu.dot_dimension_numbers<[1], [0], [0], [1], [0, 0, 1, 1], [], []>} : vector<17x17xbf16>, vector<17x64xbf16>, vector<17x64xf32> -> vector<17x64xf32>
    %165 = arith.truncf %164 : vector<17x64xf32> to vector<17x64xbf16>
    %c0_102 = arith.constant 0 : index
    %c0_103 = arith.constant 0 : index
    %c0_104 = arith.constant 0 : index
    %166 = vector.load %arg17[%c0_102, %c0_103, %c0_104] : memref<2x64x128xbf16, #tpu.memory_space<vmem>>, vector<1x64x128xbf16>
    %167 = vector.shape_cast %166 : vector<1x64x128xbf16> to vector<64x128xbf16>
    %cst_105 = arith.constant dense<0.000000e+00> : vector<17x128xf32>
    %168 = tpu.matmul %165, %167, %cst_105 {dimension_numbers = #tpu.dot_dimension_numbers<[1], [0], [0], [1], [0, 0, 1, 1], [], []>} : vector<17x64xbf16>, vector<64x128xbf16>, vector<17x128xf32> -> vector<17x128xf32>
    %169 = arith.addf %125, %168 : vector<17x128xf32>
    %c1_106 = arith.constant 1 : index
    %c0_107 = arith.constant 0 : index
    %c0_108 = arith.constant 0 : index
    %170 = vector.load %arg11[%c1_106, %c0_107, %c0_108] : memref<2x128x64xbf16, #tpu.memory_space<vmem>>, vector<1x128x64xbf16>
    %171 = vector.shape_cast %170 : vector<1x128x64xbf16> to vector<128x64xbf16>
    %cst_109 = arith.constant dense<0.000000e+00> : vector<17x64xf32>
    %172 = tpu.matmul %123, %171, %cst_109 {dimension_numbers = #tpu.dot_dimension_numbers<[1], [0], [0], [1], [0, 0, 1, 1], [], []>} : vector<17x128xbf16>, vector<128x64xbf16>, vector<17x64xf32> -> vector<17x64xf32>
    %c1_110 = arith.constant 1 : index
    %c0_111 = arith.constant 0 : index
    %c0_112 = arith.constant 0 : index
    %173 = vector.load %arg14[%c1_110, %c0_111, %c0_112] : memref<2x1x64xf32, #tpu.memory_space<vmem>>, vector<1x1x64xf32>
    %174 = vector.shape_cast %173 : vector<1x1x64xf32> to vector<1x64xf32>
    %175 = vector.broadcast %174 : vector<1x64xf32> to vector<17x64xf32>
    %176 = arith.addf %172, %175 : vector<17x64xf32>
    %c1_113 = arith.constant 1 : index
    %c0_114 = arith.constant 0 : index
    %c0_115 = arith.constant 0 : index
    %177 = vector.load %arg12[%c1_113, %c0_114, %c0_115] : memref<2x128x64xbf16, #tpu.memory_space<vmem>>, vector<1x128x64xbf16>
    %178 = vector.shape_cast %177 : vector<1x128x64xbf16> to vector<128x64xbf16>
    %cst_116 = arith.constant dense<0.000000e+00> : vector<17x64xf32>
    %179 = tpu.matmul %124, %178, %cst_116 {dimension_numbers = #tpu.dot_dimension_numbers<[1], [0], [0], [1], [0, 0, 1, 1], [], []>} : vector<17x128xbf16>, vector<128x64xbf16>, vector<17x64xf32> -> vector<17x64xf32>
    %c1_117 = arith.constant 1 : index
    %c0_118 = arith.constant 0 : index
    %c0_119 = arith.constant 0 : index
    %180 = vector.load %arg15[%c1_117, %c0_118, %c0_119] : memref<2x1x64xf32, #tpu.memory_space<vmem>>, vector<1x1x64xf32>
    %181 = vector.shape_cast %180 : vector<1x1x64xf32> to vector<1x64xf32>
    %182 = vector.broadcast %181 : vector<1x64xf32> to vector<17x64xf32>
    %183 = arith.addf %179, %182 : vector<17x64xf32>
    %c1_120 = arith.constant 1 : index
    %c0_121 = arith.constant 0 : index
    %c0_122 = arith.constant 0 : index
    %184 = vector.load %arg13[%c1_120, %c0_121, %c0_122] : memref<2x128x64xbf16, #tpu.memory_space<vmem>>, vector<1x128x64xbf16>
    %185 = vector.shape_cast %184 : vector<1x128x64xbf16> to vector<128x64xbf16>
    %cst_123 = arith.constant dense<0.000000e+00> : vector<17x64xf32>
    %186 = tpu.matmul %124, %185, %cst_123 {dimension_numbers = #tpu.dot_dimension_numbers<[1], [0], [0], [1], [0, 0, 1, 1], [], []>} : vector<17x128xbf16>, vector<128x64xbf16>, vector<17x64xf32> -> vector<17x64xf32>
    %c1_124 = arith.constant 1 : index
    %c0_125 = arith.constant 0 : index
    %c0_126 = arith.constant 0 : index
    %187 = vector.load %arg16[%c1_124, %c0_125, %c0_126] : memref<2x1x64xf32, #tpu.memory_space<vmem>>, vector<1x1x64xf32>
    %188 = vector.shape_cast %187 : vector<1x1x64xf32> to vector<1x64xf32>
    %189 = vector.broadcast %188 : vector<1x64xf32> to vector<17x64xf32>
    %190 = arith.addf %186, %189 : vector<17x64xf32>
    %cst_127 = arith.constant 1.250000e-01 : f32
    %191 = vector.broadcast %cst_127 : f32 to vector<17x64xf32>
    %192 = arith.mulf %176, %191 : vector<17x64xf32>
    %193 = arith.truncf %192 : vector<17x64xf32> to vector<17x64xbf16>
    %194 = arith.truncf %183 : vector<17x64xf32> to vector<17x64xbf16>
    %cst_128 = arith.constant dense<0.000000e+00> : vector<17x17xf32>
    %195 = tpu.matmul %193, %194, %cst_128 {dimension_numbers = #tpu.dot_dimension_numbers<[1], [1], [0], [0], [0, 0, 1, 0], [], []>} : vector<17x64xbf16>, vector<17x64xbf16>, vector<17x17xf32> -> vector<17x17xf32>
    %cst_129 = arith.constant dense<0xFF800000> : vector<17xf32>
    %196 = vector.multi_reduction <maximumf>, %195, %cst_129 [1] : vector<17x17xf32> to vector<17xf32>
    %197 = vector.shape_cast %196 : vector<17xf32> to vector<17x1xf32>
    %198 = vector.broadcast %197 : vector<17x1xf32> to vector<17x17xf32>
    %199 = arith.subf %195, %198 : vector<17x17xf32>
    %200 = math.exp %199 : vector<17x17xf32>
    %cst_130 = arith.constant dense<0.000000e+00> : vector<17xf32>
    %201 = vector.multi_reduction <add>, %200, %cst_130 [1] : vector<17x17xf32> to vector<17xf32>
    %202 = vector.shape_cast %201 : vector<17xf32> to vector<17x1xf32>
    %203 = tpu.reciprocal %202 {approx = true} : vector<17x1xf32> -> vector<17x1xf32>
    %204 = vector.broadcast %203 : vector<17x1xf32> to vector<17x17xf32>
    %205 = arith.mulf %200, %204 : vector<17x17xf32>
    %206 = arith.truncf %205 : vector<17x17xf32> to vector<17x17xbf16>
    %207 = arith.truncf %190 : vector<17x64xf32> to vector<17x64xbf16>
    %cst_131 = arith.constant dense<0.000000e+00> : vector<17x64xf32>
    %208 = tpu.matmul %206, %207, %cst_131 {dimension_numbers = #tpu.dot_dimension_numbers<[1], [0], [0], [1], [0, 0, 1, 1], [], []>} : vector<17x17xbf16>, vector<17x64xbf16>, vector<17x64xf32> -> vector<17x64xf32>
    %209 = arith.truncf %208 : vector<17x64xf32> to vector<17x64xbf16>
    %c1_132 = arith.constant 1 : index
    %c0_133 = arith.constant 0 : index
    %c0_134 = arith.constant 0 : index
    %210 = vector.load %arg17[%c1_132, %c0_133, %c0_134] : memref<2x64x128xbf16, #tpu.memory_space<vmem>>, vector<1x64x128xbf16>
    %211 = vector.shape_cast %210 : vector<1x64x128xbf16> to vector<64x128xbf16>
    %cst_135 = arith.constant dense<0.000000e+00> : vector<17x128xf32>
    %212 = tpu.matmul %209, %211, %cst_135 {dimension_numbers = #tpu.dot_dimension_numbers<[1], [0], [0], [1], [0, 0, 1, 1], [], []>} : vector<17x64xbf16>, vector<64x128xbf16>, vector<17x128xf32> -> vector<17x128xf32>
    %213 = arith.addf %169, %212 : vector<17x128xf32>
    %c0_136 = arith.constant 0 : index
    %c0_137 = arith.constant 0 : index
    %214 = vector.load %arg18[%c0_136, %c0_137] : memref<1x128xf32, #tpu.memory_space<vmem>>, vector<1x128xf32>
    %215 = vector.broadcast %214 : vector<1x128xf32> to vector<17x128xf32>
    %216 = arith.addf %213, %215 : vector<17x128xf32>
    %217 = arith.addf %122, %216 : vector<17x128xf32>
    %cst_138 = arith.constant dense<0.000000e+00> : vector<17xf32>
    %218 = vector.multi_reduction <add>, %217, %cst_138 [1] : vector<17x128xf32> to vector<17xf32>
    %219 = vector.shape_cast %218 : vector<17xf32> to vector<17x1xf32>
    %cst_139 = arith.constant 1.280000e+02 : f32
    %220 = vector.broadcast %cst_139 : f32 to vector<17x1xf32>
    %221 = arith.divf %219, %220 : vector<17x1xf32>
    %222 = vector.broadcast %221 : vector<17x1xf32> to vector<17x128xf32>
    %223 = arith.subf %217, %222 : vector<17x128xf32>
    %224 = arith.mulf %223, %223 : vector<17x128xf32>
    %cst_140 = arith.constant dense<0.000000e+00> : vector<17xf32>
    %225 = vector.multi_reduction <add>, %224, %cst_140 [1] : vector<17x128xf32> to vector<17xf32>
    %226 = vector.shape_cast %225 : vector<17xf32> to vector<17x1xf32>
    %cst_141 = arith.constant 1.280000e+02 : f32
    %227 = vector.broadcast %cst_141 : f32 to vector<17x1xf32>
    %228 = arith.divf %226, %227 : vector<17x1xf32>
    %229 = vector.broadcast %221 : vector<17x1xf32> to vector<17x128xf32>
    %230 = arith.subf %217, %229 : vector<17x128xf32>
    %cst_142 = arith.constant 9.99999974E-6 : f32
    %231 = vector.broadcast %cst_142 : f32 to vector<17x1xf32>
    %232 = arith.addf %228, %231 : vector<17x1xf32>
    %233 = math.rsqrt %232 : vector<17x1xf32>
    %234 = vector.broadcast %233 : vector<17x1xf32> to vector<17x128xf32>
    %235 = arith.mulf %230, %234 : vector<17x128xf32>
    %c0_143 = arith.constant 0 : index
    %c0_144 = arith.constant 0 : index
    %236 = vector.load %arg21[%c0_143, %c0_144] : memref<1x128xf32, #tpu.memory_space<vmem>>, vector<1x128xf32>
    %237 = vector.broadcast %236 : vector<1x128xf32> to vector<17x128xf32>
    %238 = arith.mulf %235, %237 : vector<17x128xf32>
    %c0_145 = arith.constant 0 : index
    %c0_146 = arith.constant 0 : index
    %239 = vector.load %arg22[%c0_145, %c0_146] : memref<1x128xf32, #tpu.memory_space<vmem>>, vector<1x128xf32>
    %240 = vector.broadcast %239 : vector<1x128xf32> to vector<17x128xf32>
    %241 = arith.addf %238, %240 : vector<17x128xf32>
    %c0_147 = arith.constant 0 : index
    %c0_148 = arith.constant 0 : index
    %c0_149 = arith.constant 0 : index
    %242 = vector.load %arg23[%c0_147, %c0_148, %c0_149] : memref<1x17x128xf32, #tpu.memory_space<vmem>>, vector<1x17x128xf32>
    %243 = vector.shape_cast %242 : vector<1x17x128xf32> to vector<17x128xf32>
    %244 = vector.shape_cast %241 : vector<17x128xf32> to vector<1x17x128xf32>
    tpu.vector_store %arg23[%c0_147, %c0_148, %c0_149], %244 {strides = array<i32>} : memref<1x17x128xf32, #tpu.memory_space<vmem>>, vector<1x17x128xf32>,
    %cst_150 = arith.constant dense<0.000000e+00> : vector<128xf32>
    %245 = vector.multi_reduction <add>, %241, %cst_150 [0] : vector<17x128xf32> to vector<128xf32>
    %246 = vector.shape_cast %245 : vector<128xf32> to vector<1x128xf32>
    %cst_151 = arith.constant 1.700000e+01 : f32
    %247 = vector.broadcast %cst_151 : f32 to vector<1x128xf32>
    %248 = arith.divf %246, %247 : vector<1x128xf32>
    %c0_152 = arith.constant 0 : index
    %c0_153 = arith.constant 0 : index
    %c0_154 = arith.constant 0 : index
    %249 = vector.load %arg24[%c0_152, %c0_153, %c0_154] : memref<1x1x128xf32, #tpu.memory_space<vmem>>, vector<1x1x128xf32>
    %250 = vector.shape_cast %249 : vector<1x1x128xf32> to vector<1x128xf32>
    %251 = vector.shape_cast %248 : vector<1x128xf32> to vector<1x1x128xf32>
    tpu.vector_store %arg24[%c0_152, %c0_153, %c0_154], %251 {strides = array<i32>} : memref<1x1x128xf32, #tpu.memory_space<vmem>>, vector<1x1x128xf32>,
    return
  }
  func.func @transform_0(%arg0: i32) -> (i32, i32, i32) {
    %c0_i32 = arith.constant 0 : i32
    %c0_i32_0 = arith.constant 0 : i32
    %c0_i32_1 = arith.constant 0 : i32
    return %arg0, %c0_i32, %c0_i32_0 : i32, i32, i32
  }
  func.func @transform_1(%arg0: i32) -> (i32, i32, i32) {
    %c0_i32 = arith.constant 0 : i32
    %c0_i32_0 = arith.constant 0 : i32
    %c0_i32_1 = arith.constant 0 : i32
    return %arg0, %c0_i32, %c0_i32_0 : i32, i32, i32
  }
  func.func @transform_2(%arg0: i32) -> (i32, i32, i32) {
    %c0_i32 = arith.constant 0 : i32
    %c0_i32_0 = arith.constant 0 : i32
    %c0_i32_1 = arith.constant 0 : i32
    %c0_i32_2 = arith.constant 0 : i32
    return %c0_i32, %c0_i32_0, %c0_i32_1 : i32, i32, i32
  }
  func.func @transform_3(%arg0: i32) -> (i32, i32, i32) {
    %c0_i32 = arith.constant 0 : i32
    %c0_i32_0 = arith.constant 0 : i32
    %c0_i32_1 = arith.constant 0 : i32
    %c0_i32_2 = arith.constant 0 : i32
    return %c0_i32, %c0_i32_0, %c0_i32_1 : i32, i32, i32
  }
  func.func @transform_4(%arg0: i32) -> (i32, i32, i32) {
    %c0_i32 = arith.constant 0 : i32
    %c0_i32_0 = arith.constant 0 : i32
    %c0_i32_1 = arith.constant 0 : i32
    %c0_i32_2 = arith.constant 0 : i32
    return %c0_i32, %c0_i32_0, %c0_i32_1 : i32, i32, i32
  }
  func.func @transform_5(%arg0: i32) -> (i32, i32, i32) {
    %c0_i32 = arith.constant 0 : i32
    %c0_i32_0 = arith.constant 0 : i32
    %c0_i32_1 = arith.constant 0 : i32
    %c0_i32_2 = arith.constant 0 : i32
    return %c0_i32, %c0_i32_0, %c0_i32_1 : i32, i32, i32
  }
  func.func @transform_6(%arg0: i32) -> (i32, i32, i32) {
    %c0_i32 = arith.constant 0 : i32
    %c0_i32_0 = arith.constant 0 : i32
    %c0_i32_1 = arith.constant 0 : i32
    %c0_i32_2 = arith.constant 0 : i32
    return %c0_i32, %c0_i32_0, %c0_i32_1 : i32, i32, i32
  }
  func.func @transform_7(%arg0: i32) -> (i32, i32, i32) {
    %c0_i32 = arith.constant 0 : i32
    %c0_i32_0 = arith.constant 0 : i32
    %c0_i32_1 = arith.constant 0 : i32
    %c0_i32_2 = arith.constant 0 : i32
    return %c0_i32, %c0_i32_0, %c0_i32_1 : i32, i32, i32
  }
  func.func @transform_8(%arg0: i32) -> (i32, i32, i32) {
    %c0_i32 = arith.constant 0 : i32
    %c0_i32_0 = arith.constant 0 : i32
    %c0_i32_1 = arith.constant 0 : i32
    %c0_i32_2 = arith.constant 0 : i32
    return %c0_i32, %c0_i32_0, %c0_i32_1 : i32, i32, i32
  }
  func.func @transform_9(%arg0: i32) -> (i32, i32) {
    %c0_i32 = arith.constant 0 : i32
    %c0_i32_0 = arith.constant 0 : i32
    %c0_i32_1 = arith.constant 0 : i32
    return %c0_i32, %c0_i32_0 : i32, i32
  }
  func.func @transform_10(%arg0: i32) -> (i32, i32, i32) {
    %c0_i32 = arith.constant 0 : i32
    %c0_i32_0 = arith.constant 0 : i32
    %c0_i32_1 = arith.constant 0 : i32
    %c0_i32_2 = arith.constant 0 : i32
    return %c0_i32, %c0_i32_0, %c0_i32_1 : i32, i32, i32
  }
  func.func @transform_11(%arg0: i32) -> (i32, i32, i32) {
    %c0_i32 = arith.constant 0 : i32
    %c0_i32_0 = arith.constant 0 : i32
    %c0_i32_1 = arith.constant 0 : i32
    %c0_i32_2 = arith.constant 0 : i32
    return %c0_i32, %c0_i32_0, %c0_i32_1 : i32, i32, i32
  }
  func.func @transform_12(%arg0: i32) -> (i32, i32, i32) {
    %c0_i32 = arith.constant 0 : i32
    %c0_i32_0 = arith.constant 0 : i32
    %c0_i32_1 = arith.constant 0 : i32
    %c0_i32_2 = arith.constant 0 : i32
    return %c0_i32, %c0_i32_0, %c0_i32_1 : i32, i32, i32
  }
  func.func @transform_13(%arg0: i32) -> (i32, i32, i32) {
    %c0_i32 = arith.constant 0 : i32
    %c0_i32_0 = arith.constant 0 : i32
    %c0_i32_1 = arith.constant 0 : i32
    %c0_i32_2 = arith.constant 0 : i32
    return %c0_i32, %c0_i32_0, %c0_i32_1 : i32, i32, i32
  }
  func.func @transform_14(%arg0: i32) -> (i32, i32, i32) {
    %c0_i32 = arith.constant 0 : i32
    %c0_i32_0 = arith.constant 0 : i32
    %c0_i32_1 = arith.constant 0 : i32
    %c0_i32_2 = arith.constant 0 : i32
    return %c0_i32, %c0_i32_0, %c0_i32_1 : i32, i32, i32
  }
  func.func @transform_15(%arg0: i32) -> (i32, i32, i32) {
    %c0_i32 = arith.constant 0 : i32
    %c0_i32_0 = arith.constant 0 : i32
    %c0_i32_1 = arith.constant 0 : i32
    %c0_i32_2 = arith.constant 0 : i32
    return %c0_i32, %c0_i32_0, %c0_i32_1 : i32, i32, i32
  }
  func.func @transform_16(%arg0: i32) -> (i32, i32, i32) {
    %c0_i32 = arith.constant 0 : i32
    %c0_i32_0 = arith.constant 0 : i32
    %c0_i32_1 = arith.constant 0 : i32
    %c0_i32_2 = arith.constant 0 : i32
    return %c0_i32, %c0_i32_0, %c0_i32_1 : i32, i32, i32
  }
  func.func @transform_17(%arg0: i32) -> (i32, i32) {
    %c0_i32 = arith.constant 0 : i32
    %c0_i32_0 = arith.constant 0 : i32
    %c0_i32_1 = arith.constant 0 : i32
    return %c0_i32, %c0_i32_0 : i32, i32
  }
  func.func @transform_18(%arg0: i32) -> (i32, i32) {
    %c0_i32 = arith.constant 0 : i32
    %c0_i32_0 = arith.constant 0 : i32
    %c0_i32_1 = arith.constant 0 : i32
    return %c0_i32, %c0_i32_0 : i32, i32
  }
  func.func @transform_19(%arg0: i32) -> (i32, i32) {
    %c0_i32 = arith.constant 0 : i32
    %c0_i32_0 = arith.constant 0 : i32
    %c0_i32_1 = arith.constant 0 : i32
    return %c0_i32, %c0_i32_0 : i32, i32
  }
  func.func @transform_20(%arg0: i32) -> (i32, i32) {
    %c0_i32 = arith.constant 0 : i32
    %c0_i32_0 = arith.constant 0 : i32
    %c0_i32_1 = arith.constant 0 : i32
    return %c0_i32, %c0_i32_0 : i32, i32
  }
  func.func @transform_21(%arg0: i32) -> (i32, i32) {
    %c0_i32 = arith.constant 0 : i32
    %c0_i32_0 = arith.constant 0 : i32
    %c0_i32_1 = arith.constant 0 : i32
    return %c0_i32, %c0_i32_0 : i32, i32
  }
  func.func @transform_22(%arg0: i32) -> (i32, i32, i32) {
    %c0_i32 = arith.constant 0 : i32
    %c0_i32_0 = arith.constant 0 : i32
    %c0_i32_1 = arith.constant 0 : i32
    return %arg0, %c0_i32, %c0_i32_0 : i32, i32, i32
  }
  func.func @transform_23(%arg0: i32) -> (i32, i32, i32) {
    %c0_i32 = arith.constant 0 : i32
    %c0_i32_0 = arith.constant 0 : i32
    %c0_i32_1 = arith.constant 0 : i32
    return %arg0, %c0_i32, %c0_i32_0 : i32, i32, i32
  }
}

module attributes {stable_mosaic.version = 11 : i64} {
  func.func @_mlp_kernel(%arg0: memref<2x128xf32, #tpu.memory_space<vmem>>, %arg1: memref<2x128xf32, #tpu.memory_space<vmem>>, %arg2: memref<2x1xf32, #tpu.memory_space<vmem>>, %arg3: memref<128x128xbf16, #tpu.memory_space<vmem>>, %arg4: memref<128x128xbf16, #tpu.memory_space<vmem>>, %arg5: memref<1x128xf32, #tpu.memory_space<vmem>>, %arg6: memref<1x128xf32, #tpu.memory_space<vmem>>, %arg7: memref<128x64xbf16, #tpu.memory_space<vmem>>, %arg8: memref<1x64xf32, #tpu.memory_space<vmem>>, %arg9: memref<64x1xbf16, #tpu.memory_space<vmem>>, %arg10: memref<1x1xf32, #tpu.memory_space<vmem>>, %arg11: memref<2x1xf32, #tpu.memory_space<vmem>>) attributes {dimension_semantics = [], scalar_prefetch = 0 : i64, scratch_operands = 0 : i64, tpu.core_type = #tpu.core_type<tc>} {
    %c0 = arith.constant 0 : index
    %c0_0 = arith.constant 0 : index
    %0 = vector.load %arg0[%c0, %c0_0] : memref<2x128xf32, #tpu.memory_space<vmem>>, vector<2x128xf32>
    %1 = arith.truncf %0 : vector<2x128xf32> to vector<2x128xbf16>
    %c0_1 = arith.constant 0 : index
    %c0_2 = arith.constant 0 : index
    %2 = vector.load %arg1[%c0_1, %c0_2] : memref<2x128xf32, #tpu.memory_space<vmem>>, vector<2x128xf32>
    %3 = arith.truncf %2 : vector<2x128xf32> to vector<2x128xbf16>
    %c0_3 = arith.constant 0 : index
    %c0_4 = arith.constant 0 : index
    %4 = vector.load %arg2[%c0_3, %c0_4] : memref<2x1xf32, #tpu.memory_space<vmem>>, vector<2x1xf32>
    %c0_5 = arith.constant 0 : index
    %c0_6 = arith.constant 0 : index
    %5 = vector.load %arg3[%c0_5, %c0_6] : memref<128x128xbf16, #tpu.memory_space<vmem>>, vector<128x128xbf16>
    %cst = arith.constant dense<0.000000e+00> : vector<2x128xf32>
    %6 = tpu.matmul %1, %5, %cst {dimension_numbers = #tpu.dot_dimension_numbers<[1], [0], [0], [1], [0, 0, 1, 1], [], []>} : vector<2x128xbf16>, vector<128x128xbf16>, vector<2x128xf32> -> vector<2x128xf32>
    %c0_7 = arith.constant 0 : index
    %c0_8 = arith.constant 0 : index
    %7 = vector.load %arg4[%c0_7, %c0_8] : memref<128x128xbf16, #tpu.memory_space<vmem>>, vector<128x128xbf16>
    %cst_9 = arith.constant dense<0.000000e+00> : vector<2x128xf32>
    %8 = tpu.matmul %3, %7, %cst_9 {dimension_numbers = #tpu.dot_dimension_numbers<[1], [0], [0], [1], [0, 0, 1, 1], [], []>} : vector<2x128xbf16>, vector<128x128xbf16>, vector<2x128xf32> -> vector<2x128xf32>
    %9 = arith.addf %6, %8 : vector<2x128xf32>
    %c0_10 = arith.constant 0 : index
    %c0_11 = arith.constant 0 : index
    %10 = vector.load %arg5[%c0_10, %c0_11] : memref<1x128xf32, #tpu.memory_space<vmem>>, vector<1x128xf32>
    %11 = vector.broadcast %4 : vector<2x1xf32> to vector<2x128xf32>
    %12 = vector.broadcast %10 : vector<1x128xf32> to vector<2x128xf32>
    %13 = arith.mulf %11, %12 : vector<2x128xf32>
    %14 = arith.addf %9, %13 : vector<2x128xf32>
    %c0_12 = arith.constant 0 : index
    %c0_13 = arith.constant 0 : index
    %15 = vector.load %arg6[%c0_12, %c0_13] : memref<1x128xf32, #tpu.memory_space<vmem>>, vector<1x128xf32>
    %16 = vector.broadcast %15 : vector<1x128xf32> to vector<2x128xf32>
    %17 = arith.addf %14, %16 : vector<2x128xf32>
    %cst_14 = arith.constant 0.000000e+00 : f32
    %18 = vector.broadcast %cst_14 : f32 to vector<2x128xf32>
    %19 = arith.maximumf %17, %18 : vector<2x128xf32>
    %20 = arith.truncf %19 : vector<2x128xf32> to vector<2x128xbf16>
    %c0_15 = arith.constant 0 : index
    %c0_16 = arith.constant 0 : index
    %21 = vector.load %arg7[%c0_15, %c0_16] : memref<128x64xbf16, #tpu.memory_space<vmem>>, vector<128x64xbf16>
    %cst_17 = arith.constant dense<0.000000e+00> : vector<2x64xf32>
    %22 = tpu.matmul %20, %21, %cst_17 {dimension_numbers = #tpu.dot_dimension_numbers<[1], [0], [0], [1], [0, 0, 1, 1], [], []>} : vector<2x128xbf16>, vector<128x64xbf16>, vector<2x64xf32> -> vector<2x64xf32>
    %c0_18 = arith.constant 0 : index
    %c0_19 = arith.constant 0 : index
    %23 = vector.load %arg8[%c0_18, %c0_19] : memref<1x64xf32, #tpu.memory_space<vmem>>, vector<1x64xf32>
    %24 = vector.broadcast %23 : vector<1x64xf32> to vector<2x64xf32>
    %25 = arith.addf %22, %24 : vector<2x64xf32>
    %cst_20 = arith.constant 0.000000e+00 : f32
    %26 = vector.broadcast %cst_20 : f32 to vector<2x64xf32>
    %27 = arith.maximumf %25, %26 : vector<2x64xf32>
    %28 = arith.truncf %27 : vector<2x64xf32> to vector<2x64xbf16>
    %c0_21 = arith.constant 0 : index
    %c0_22 = arith.constant 0 : index
    %29 = vector.load %arg9[%c0_21, %c0_22] : memref<64x1xbf16, #tpu.memory_space<vmem>>, vector<64x1xbf16>
    %cst_23 = arith.constant dense<0.000000e+00> : vector<2x1xf32>
    %30 = tpu.matmul %28, %29, %cst_23 {dimension_numbers = #tpu.dot_dimension_numbers<[1], [0], [0], [1], [0, 0, 1, 1], [], []>} : vector<2x64xbf16>, vector<64x1xbf16>, vector<2x1xf32> -> vector<2x1xf32>
    %c0_24 = arith.constant 0 : index
    %c0_25 = arith.constant 0 : index
    %31 = vector.load %arg10[%c0_24, %c0_25] : memref<1x1xf32, #tpu.memory_space<vmem>>, vector<1x1xf32>
    %32 = vector.broadcast %31 : vector<1x1xf32> to vector<2x1xf32>
    %33 = arith.addf %30, %32 : vector<2x1xf32>
    %c0_26 = arith.constant 0 : index
    %c0_27 = arith.constant 0 : index
    %34 = vector.load %arg11[%c0_26, %c0_27] : memref<2x1xf32, #tpu.memory_space<vmem>>, vector<2x1xf32>
    tpu.vector_store %arg11[%c0_26, %c0_27], %33 {strides = array<i32>} : memref<2x1xf32, #tpu.memory_space<vmem>>, vector<2x1xf32>,
    return
  }
}

</mosaic_0001>

<llo_original>
// kernel: cardiovascular_predictor.6
$region0: #{cardiovascular_predictor.6}
  #allocation0 [shape = 'u32[]', space=smem, size = 0x4, offset = 0x4, fixed_abs, tag = 'smem constant byte address 0x4 - core index']
  #allocation1 [shape = 'u32[144,128]{1,0:T(1,128)}', space=vmem, size = 0x12000, scoped, tag = 'internal scratch']
  %s0 = inlined_call_operand.vmem [shape: bf16[2,66,5], index: 0, kind: input, shape index: {}]
  %s1 = inlined_call_operand.vmem [shape: bf16[5,64], index: 1, kind: input, shape index: {}]
  %s2 = inlined_call_operand.vmem [shape: f32[1,64], index: 2, kind: input, shape index: {}]
  %s3 = inlined_call_operand.vmem [shape: f32[1,64], index: 3, kind: input, shape index: {}]
  %s4 = inlined_call_operand.vmem [shape: f32[37,65], index: 4, kind: input, shape index: {}]
  %s5 = inlined_call_operand.vmem [shape: bf16[3,64,128], index: 5, kind: input, shape index: {}]
  %s6 = inlined_call_operand.vmem [shape: f32[1,128], index: 6, kind: input, shape index: {}]
  %s7 = inlined_call_operand.vmem [shape: f32[1,128], index: 7, kind: input, shape index: {}]
  %s8 = inlined_call_operand.vmem [shape: f32[17,33], index: 8, kind: input, shape index: {}]
  %s9 = inlined_call_operand.vmem [shape: f32[2,17,128], index: 9, kind: output, shape index: {}]
  %s10 = sld [smem:[#allocation0]]
  $region69: #{cardiovascular_predictor.6} parent=0
    _
  %s12 = ssub.s32 1, %s10
  %s13 = scalar_select 0, %s12, %s10
  loop: start=0, step=1, limit=4
  $region2: #{cardiovascular_predictor.6} parent=0 // loop_pre_header
    _
  $region3: #{cardiovascular_predictor.6} parent=0 // loop_header
    %s15 = sphi 0, %s19
    %p16 = scmp.ge.s32.totalorder %s15, 4
    %s25 = sphi 0, %s27
    %s28 = sphi 0, %s25
    %s29 = sphi 0, %s28
    %s45 = sphi 0, %s29
    %s49 = sphi 0, %s49
    %s51 = sphi 0, %s49
    %s52 = sphi 0, %s51
    %s66 = sphi 0, %s52
    %s70 = sphi 0, %s70
    %s72 = sphi 0, %s70
    %s73 = sphi 0, %s72
    %s87 = sphi 0, %s73
    %s91 = sphi 0, %s91
    %s93 = sphi 0, %s91
    %s94 = sphi 0, %s93
    %s108 = sphi 0, %s94
    %s112 = sphi 0, %s112
    %s114 = sphi 0, %s112
    %s115 = sphi 0, %s114
    %s129 = sphi 0, %s115
    %s133 = sphi 0, %s133
    %s135 = sphi 0, %s133
    %s136 = sphi 0, %s135
    %s150 = sphi 0, %s136
    %s154 = sphi 0, %s154
    %s156 = sphi 0, %s154
    %s157 = sphi 0, %s156
    %s171 = sphi 0, %s157
    %s175 = sphi 0, %s175
    %s177 = sphi 0, %s175
    %s178 = sphi 0, %s177
    %s192 = sphi 0, %s178
    %s196 = sphi 0, %s196
    %s198 = sphi 0, %s196
    %s199 = sphi 0, %s198
    %s213 = sphi 0, %s199
    %s219 = sphi 0, %s221
    %s222 = sphi 0, %s219
    %s223 = sphi 0, %s222
    %s239 = sphi 0, %s223
  $region4: #{cardiovascular_predictor.6} parent=0 // loop_header_branch
    %18 = sbr.rel (%p16) target = $region8
  $region5: #{cardiovascular_predictor.6} parent=0 // loop_body
    %s20 = ssub.s32 %s15, 1
    %s21 = ssub.s32 %s15, 2
    %s22 = sadd.s32 %s15, 1
    %s23 = ssub.s32 %s15, %s22
    %p24 = scmp.eq.s32.totalorder %s23, 0
    %s26 = sadd.s32 %s25, 1
    %s27 = scalar_select %p24, %s25, %s26
    %p30 = pneg %p24
    %p31 = scmp.eq.s32.totalorder %s15, 1
    %p32 = por %p30, %p31
    %p33 = scmp.ne.s32.totalorder %s25, %s28
    %p34 = scmp.eq.s32.totalorder %s15, 0
    %p35 = por %p33, %p34
    %p36 = scmp.ne.s32.totalorder %s25, %s28
    %p37 = scmp.eq.s32.totalorder %s20, 1
    %p38 = por %p36, %p37
    %p39 = scmp.ne.s32.totalorder %s28, %s29
    %p40 = scmp.eq.s32.totalorder %s20, 0
    %p41 = por %p39, %p40
    %p42 = scmp.ne.s32.totalorder %s28, %s29
    %p43 = scmp.eq.s32.totalorder %s21, 1
    %p44 = por %p42, %p43
    %p46 = scmp.ne.s32.totalorder %s29, %s45
    %p47 = scmp.eq.s32.totalorder %s21, 0
    %p48 = por %p46, %p47
    %s50 = sadd.s32 %s49, 1
    %p53 = scmp.eq.s32.totalorder %s15, 1
    %p54 = scmp.ne.s32.totalorder %s49, %s51
    %p55 = scmp.eq.s32.totalorder %s15, 0
    %p56 = por %p54, %p55
    %p57 = scmp.ne.s32.totalorder %s49, %s51
    %p58 = scmp.eq.s32.totalorder %s20, 1
    %p59 = por %p57, %p58
    %p60 = scmp.ne.s32.totalorder %s51, %s52
    %p61 = scmp.eq.s32.totalorder %s20, 0
    %p62 = por %p60, %p61
    %p63 = scmp.ne.s32.totalorder %s51, %s52
    %p64 = scmp.eq.s32.totalorder %s21, 1
    %p65 = por %p63, %p64
    %p67 = scmp.ne.s32.totalorder %s52, %s66
    %p68 = scmp.eq.s32.totalorder %s21, 0
    %p69 = por %p67, %p68
    %s71 = sadd.s32 %s70, 1
    %p74 = scmp.eq.s32.totalorder %s15, 1
    %p75 = scmp.ne.s32.totalorder %s70, %s72
    %p76 = scmp.eq.s32.totalorder %s15, 0
    %p77 = por %p75, %p76
    %p78 = scmp.ne.s32.totalorder %s70, %s72
    %p79 = scmp.eq.s32.totalorder %s20, 1
    %p80 = por %p78, %p79
    %p81 = scmp.ne.s32.totalorder %s72, %s73
    %p82 = scmp.eq.s32.totalorder %s20, 0
    %p83 = por %p81, %p82
    %p84 = scmp.ne.s32.totalorder %s72, %s73
    %p85 = scmp.eq.s32.totalorder %s21, 1
    %p86 = por %p84, %p85
    %p88 = scmp.ne.s32.totalorder %s73, %s87
    %p89 = scmp.eq.s32.totalorder %s21, 0
    %p90 = por %p88, %p89
    %s92 = sadd.s32 %s91, 1
    %p95 = scmp.eq.s32.totalorder %s15, 1
    %p96 = scmp.ne.s32.totalorder %s91, %s93
    %p97 = scmp.eq.s32.totalorder %s15, 0
    %p98 = por %p96, %p97
    %p99 = scmp.ne.s32.totalorder %s91, %s93
    %p100 = scmp.eq.s32.totalorder %s20, 1
    %p101 = por %p99, %p100
    %p102 = scmp.ne.s32.totalorder %s93, %s94
    %p103 = scmp.eq.s32.totalorder %s20, 0
    %p104 = por %p102, %p103
    %p105 = scmp.ne.s32.totalorder %s93, %s94
    %p106 = scmp.eq.s32.totalorder %s21, 1
    %p107 = por %p105, %p106
    %p109 = scmp.ne.s32.totalorder %s94, %s108
    %p110 = scmp.eq.s32.totalorder %s21, 0
    %p111 = por %p109, %p110
    %s113 = sadd.s32 %s112, 1
    %p116 = scmp.eq.s32.totalorder %s15, 1
    %p117 = scmp.ne.s32.totalorder %s112, %s114
    %p118 = scmp.eq.s32.totalorder %s15, 0
    %p119 = por %p117, %p118
    %p120 = scmp.ne.s32.totalorder %s112, %s114
    %p121 = scmp.eq.s32.totalorder %s20, 1
    %p122 = por %p120, %p121
    %p123 = scmp.ne.s32.totalorder %s114, %s115
    %p124 = scmp.eq.s32.totalorder %s20, 0
    %p125 = por %p123, %p124
    %p126 = scmp.ne.s32.totalorder %s114, %s115
    %p127 = scmp.eq.s32.totalorder %s21, 1
    %p128 = por %p126, %p127
    %p130 = scmp.ne.s32.totalorder %s115, %s129
    %p131 = scmp.eq.s32.totalorder %s21, 0
    %p132 = por %p130, %p131
    %s134 = sadd.s32 %s133, 1
    %p137 = scmp.eq.s32.totalorder %s15, 1
    %p138 = scmp.ne.s32.totalorder %s133, %s135
    %p139 = scmp.eq.s32.totalorder %s15, 0
    %p140 = por %p138, %p139
    %p141 = scmp.ne.s32.totalorder %s133, %s135
    %p142 = scmp.eq.s32.totalorder %s20, 1
    %p143 = por %p141, %p142
    %p144 = scmp.ne.s32.totalorder %s135, %s136
    %p145 = scmp.eq.s32.totalorder %s20, 0
    %p146 = por %p144, %p145
    %p147 = scmp.ne.s32.totalorder %s135, %s136
    %p148 = scmp.eq.s32.totalorder %s21, 1
    %p149 = por %p147, %p148
    %p151 = scmp.ne.s32.totalorder %s136, %s150
    %p152 = scmp.eq.s32.totalorder %s21, 0
    %p153 = por %p151, %p152
    %s155 = sadd.s32 %s154, 1
    %p158 = scmp.eq.s32.totalorder %s15, 1
    %p159 = scmp.ne.s32.totalorder %s154, %s156
    %p160 = scmp.eq.s32.totalorder %s15, 0
    %p161 = por %p159, %p160
    %p162 = scmp.ne.s32.totalorder %s154, %s156
    %p163 = scmp.eq.s32.totalorder %s20, 1
    %p164 = por %p162, %p163
    %p165 = scmp.ne.s32.totalorder %s156, %s157
    %p166 = scmp.eq.s32.totalorder %s20, 0
    %p167 = por %p165, %p166
    %p168 = scmp.ne.s32.totalorder %s156, %s157
    %p169 = scmp.eq.s32.totalorder %s21, 1
    %p170 = por %p168, %p169
    %p172 = scmp.ne.s32.totalorder %s157, %s171
    %p173 = scmp.eq.s32.totalorder %s21, 0
    %p174 = por %p172, %p173
    %s176 = sadd.s32 %s175, 1
    %p179 = scmp.eq.s32.totalorder %s15, 1
    %p180 = scmp.ne.s32.totalorder %s175, %s177
    %p181 = scmp.eq.s32.totalorder %s15, 0
    %p182 = por %p180, %p181
    %p183 = scmp.ne.s32.totalorder %s175, %s177
    %p184 = scmp.eq.s32.totalorder %s20, 1
    %p185 = por %p183, %p184
    %p186 = scmp.ne.s32.totalorder %s177, %s178
    %p187 = scmp.eq.s32.totalorder %s20, 0
    %p188 = por %p186, %p187
    %p189 = scmp.ne.s32.totalorder %s177, %s178
    %p190 = scmp.eq.s32.totalorder %s21, 1
    %p191 = por %p189, %p190
    %p193 = scmp.ne.s32.totalorder %s178, %s192
    %p194 = scmp.eq.s32.totalorder %s21, 0
    %p195 = por %p193, %p194
    %s197 = sadd.s32 %s196, 1
    %p200 = scmp.eq.s32.totalorder %s15, 1
    %p201 = scmp.ne.s32.totalorder %s196, %s198
    %p202 = scmp.eq.s32.totalorder %s15, 0
    %p203 = por %p201, %p202
    %p204 = scmp.ne.s32.totalorder %s196, %s198
    %p205 = scmp.eq.s32.totalorder %s20, 1
    %p206 = por %p204, %p205
    %p207 = scmp.ne.s32.totalorder %s198, %s199
    %p208 = scmp.eq.s32.totalorder %s20, 0
    %p209 = por %p207, %p208
    %p210 = scmp.ne.s32.totalorder %s198, %s199
    %p211 = scmp.eq.s32.totalorder %s21, 1
    %p212 = por %p210, %p211
    %p214 = scmp.ne.s32.totalorder %s199, %s213
    %p215 = scmp.eq.s32.totalorder %s21, 0
    %p216 = por %p214, %p215
    %s217 = ssub.s32 %s15, %s22
    %p218 = scmp.eq.s32.totalorder %s217, 0
    %s220 = sadd.s32 %s219, 1
    %s221 = scalar_select %p218, %s219, %s220
    %p224 = pneg %p218
    %p225 = scmp.eq.s32.totalorder %s15, 1
    %p226 = por %p224, %p225
    %p227 = scmp.ne.s32.totalorder %s219, %s222
    %p228 = scmp.eq.s32.totalorder %s15, 0
    %p229 = por %p227, %p228
    %p230 = scmp.ne.s32.totalorder %s219, %s222
    %p231 = scmp.eq.s32.totalorder %s20, 1
    %p232 = por %p230, %p231
    %p233 = scmp.ne.s32.totalorder %s222, %s223
    %p234 = scmp.eq.s32.totalorder %s20, 0
    %p235 = por %p233, %p234
    %p236 = scmp.ne.s32.totalorder %s222, %s223
    %p237 = scmp.eq.s32.totalorder %s21, 1
    %p238 = por %p236, %p237
    %p240 = scmp.ne.s32.totalorder %s223, %s239
    %p241 = scmp.eq.s32.totalorder %s21, 0
    %p242 = por %p240, %p241
    %p243 = scmp.le.s32.totalorder 1, %s15
    %p244 = scmp.lt.s32.totalorder %s15, 3
    %p245 = pnand %p243, %p244
    %p246 = pneg %p245
    // Predicated region
    $region9: #{cardiovascular_predictor.6} parent=5 // pred_check
      _
    $region10: #{cardiovascular_predictor.6} parent=5 // pred_check_branch
      %248 = sbr.rel (%p245) target = $region12
    $region11: #{cardiovascular_predictor.6} parent=5 // pred_region
      %s249 = ssub.s32 %s15, 1
      // Predicated region
      $region13: #{cardiovascular_predictor.6} parent=11 // pred_check
        %p250 = pneg %p62
      $region14: #{cardiovascular_predictor.6} parent=11 // pred_check_branch
        %252 = sbr.rel (%p250) target = $region16
      $region15: #{cardiovascular_predictor.6} parent=11 // pred_region
        _
      $region16: #{cardiovascular_predictor.6} parent=11 // pred_fallthru
        _
      // Predicated region
      $region17: #{cardiovascular_predictor.6} parent=11 // pred_check
        %p253 = pneg %p83
      $region18: #{cardiovascular_predictor.6} parent=11 // pred_check_branch
        %255 = sbr.rel (%p253) target = $region20
      $region19: #{cardiovascular_predictor.6} parent=11 // pred_region
        _
      $region20: #{cardiovascular_predictor.6} parent=11 // pred_fallthru
        _
      // Predicated region
      $region21: #{cardiovascular_predictor.6} parent=11 // pred_check
        %p256 = pneg %p104
      $region22: #{cardiovascular_predictor.6} parent=11 // pred_check_branch
        %258 = sbr.rel (%p256) target = $region24
      $region23: #{cardiovascular_predictor.6} parent=11 // pred_region
        _
      $region24: #{cardiovascular_predictor.6} parent=11 // pred_fallthru
        _
      // Predicated region
      $region25: #{cardiovascular_predictor.6} parent=11 // pred_check
        %p259 = pneg %p125
      $region26: #{cardiovascular_predictor.6} parent=11 // pred_check_branch
        %261 = sbr.rel (%p259) target = $region28
      $region27: #{cardiovascular_predictor.6} parent=11 // pred_region
        _
      $region28: #{cardiovascular_predictor.6} parent=11 // pred_fallthru
        _
      // Predicated region
      $region29: #{cardiovascular_predictor.6} parent=11 // pred_check
        %p262 = pneg %p146
      $region30: #{cardiovascular_predictor.6} parent=11 // pred_check_branch
        %264 = sbr.rel (%p262) target = $region32
      $region31: #{cardiovascular_predictor.6} parent=11 // pred_region
        _
      $region32: #{cardiovascular_predictor.6} parent=11 // pred_fallthru
        _
      // Predicated region
      $region33: #{cardiovascular_predictor.6} parent=11 // pred_check
        %p265 = pneg %p167
      $region34: #{cardiovascular_predictor.6} parent=11 // pred_check_branch
        %267 = sbr.rel (%p265) target = $region36
      $region35: #{cardiovascular_predictor.6} parent=11 // pred_region
        _
      $region36: #{cardiovascular_predictor.6} parent=11 // pred_fallthru
        _
      // Predicated region
      $region37: #{cardiovascular_predictor.6} parent=11 // pred_check
        %p268 = pneg %p188
      $region38: #{cardiovascular_predictor.6} parent=11 // pred_check_branch
        %270 = sbr.rel (%p268) target = $region40
      $region39: #{cardiovascular_predictor.6} parent=11 // pred_region
        _
      $region40: #{cardiovascular_predictor.6} parent=11 // pred_fallthru
        _
      // Predicated region
      $region41: #{cardiovascular_predictor.6} parent=11 // pred_check
        %p271 = pneg %p209
      $region42: #{cardiovascular_predictor.6} parent=11 // pred_check_branch
        %273 = sbr.rel (%p271) target = $region44
      $region43: #{cardiovascular_predictor.6} parent=11 // pred_region
        _
      $region44: #{cardiovascular_predictor.6} parent=11 // pred_fallthru
        _
    $region12: #{cardiovascular_predictor.6} parent=5 // pred_fallthru
      _
    %p274 = scmp.lt.s32.totalorder %s15, 2
    // Predicated region
    $region45: #{cardiovascular_predictor.6} parent=5 // pred_check
      %p275 = pneg %p274
    $region46: #{cardiovascular_predictor.6} parent=5 // pred_check_branch
      %277 = sbr.rel (%p275) target = $region48
    $region47: #{cardiovascular_predictor.6} parent=5 // pred_region
      // Predicated region
      $region49: #{cardiovascular_predictor.6} parent=47 // pred_check
        %p278 = pneg %p35
      $region50: #{cardiovascular_predictor.6} parent=47 // pred_check_branch
        %280 = sbr.rel (%p278) target = $region52
      $region51: #{cardiovascular_predictor.6} parent=47 // pred_region
        %p281 = scmp.lt.s32.totalorder %s15, 1
        %s282 = scalar_select %p281, %s15, 1
        %s283 = smul.addr %s282, 9
        %s284 = smul.addr %s283, 4
        %s285 = scalar_lea.vmem %s0, %s284
      $region52: #{cardiovascular_predictor.6} parent=47 // pred_fallthru
        _
    $region48: #{cardiovascular_predictor.6} parent=5 // pred_fallthru
      _
    %p286 = scmp.le.s32.totalorder 1, %s15
    %p287 = scmp.lt.s32.totalorder %s15, 3
    %p288 = pnand %p286, %p287
    %p289 = pneg %p288
    // Predicated region
    $region53: #{cardiovascular_predictor.6} parent=5 // pred_check
      _
    $region54: #{cardiovascular_predictor.6} parent=5 // pred_check_branch
      %291 = sbr.rel (%p288) target = $region56
    $region55: #{cardiovascular_predictor.6} parent=5 // pred_region
      %s292 = ssub.s32 %s15, 1
      %p293 = scmp.lt.s32.totalorder %s20, 1
      %s294 = scalar_select %p293, %s20, 1
      %s295 = smul.addr %s294, 9
      %s296 = smul.addr %s295, 4
      %s297 = scalar_lea.vmem %s0, %s296
      %p298 = pneg %p41
      %p299 = pneg %p38
      %p300 = pneg %p62
      %p301 = pneg %p59
      %p302 = pneg %p83
      %p303 = pneg %p80
      %p304 = pneg %p104
      %p305 = pneg %p101
      %p306 = pneg %p125
      %p307 = pneg %p122
      %p308 = pneg %p146
      %p309 = pneg %p143
      %p310 = pneg %p167
      %p311 = pneg %p164
      %p312 = pneg %p188
      %p313 = pneg %p185
      %p314 = pneg %p209
      %p315 = pneg %p206
      %p316 = pneg %p235
      %p317 = pneg %p232
      %p318 = scmp.lt.s32.totalorder %s20, 1
      %s319 = scalar_select %p318, %s20, 1
      %s320 = smul.addr %s319, 3
      %s321 = smul.addr %s320, 8
      %s322 = scalar_lea.vmem %s9, %s321
      %p323 = scmp.lt.s32.totalorder %s20, 1
      %s324 = scalar_select %p323, %s20, 1
      %s325 = smul.addr %s324, 9
      %s326 = smul.addr %s325, 4
      %s327 = scalar_lea.vmem %s0, %s326
      %p328 = scmp.lt.s32.totalorder %s20, 1
      %s329 = scalar_select %p328, %s20, 1
      %s330 = smul.addr %s329, 3
      %s331 = smul.addr %s330, 8
      %s332 = scalar_lea.vmem %s9, %s331
      %v334 = vld [vmem:[%s327] sm:$0xf]
      %v335 = vld [vmem:[%s327 + $0x4] sm:$0xf]
      %v336 = vld [vmem:[%s327 + $0x8] sm:$0xf]
      %v337 = vld [vmem:[%s327 + $0xc] sm:$0xf]
      %v338 = vld [vmem:[%s327 + $0x10] sm:$0xf]
      %v339 = vld [vmem:[%s327 + $0x14] sm:$0xf]
      %v340 = vld [vmem:[%s327 + $0x18] sm:$0xf]
      %v341 = vld [vmem:[%s327 + $0x1c] sm:$0xf]
      %v342 = vld [vmem:[%s327 + $0x20] sm:$0x1]
      %v343 = vld [vmem:[%s1] sm:$0x7]
      %v353 = vunpack.c.l.b16 %v334
      %v354 = vunpack.c.l.b16 %v335
      %v355 = vunpack.c.l.b16 %v336
      %v356 = vunpack.c.l.b16 %v337
      %v357 = vunpack.c.l.b16 %v338
      %v358 = vunpack.c.l.b16 %v339
      %v359 = vunpack.c.l.b16 %v340
      %v360 = vunpack.c.l.b16 %v341
      %v361 = vunpack.c.l.b16 %v342
      %v362 = vpack.c.b16 %v354, %v353
      %v363 = vpack.c.b16 %v356, %v355
      %v364 = vpack.c.b16 %v358, %v357
      %v365 = vpack.c.b16 %v360, %v359
      %v366 = vpack.c.b16 %v361, %v361
      %vm367 = vcmask 39936
      %v369 = vsel %vm367, %v362, 0
      %v372 = vsel %vm367, %v363, 0
      %v375 = vsel %vm367, %v364, 0
      %v378 = vsel %vm367, %v365, 0
      %v381 = vsel %vm367, %v366, 0
      %vm383 = vcmask 1041408
      %vm384 = vcmask 1042432
      %v385 = vsel %vm383, 4294967295, 65535
      %v386 = vsel %vm384, %v385, 0
      %v388 = vand.u32 %v343, %v386
      %390 = vmatprep.subr.bf16.mxu0 0
      %391 = vmatpush1.bf16.msra.mxu0 %v388
      %392 = vmatprep.subr.bf16.mxu0 0
      %393 = vmatpush1.bf16.msra.mxu0 0
      %394 = vmatprep.subr.bf16.mxu0 0
      %395 = vmatpush1.bf16.msra.mxu0 0
      %396 = vmatprep.subr.bf16.mxu0 0
      %397 = vmatpush1.bf16.msra.mxu0 0
      %398 = vmatprep.subr.bf16.mxu0 0
      %399 = vmatpush1.bf16.msra.mxu0 0
      %400 = vmatprep.subr.bf16.mxu0 0
      %401 = vmatpush1.bf16.msra.mxu0 0
      %402 = vmatprep.subr.bf16.mxu0 0
      %403 = vmatpush1.bf16.msra.mxu0 0
      %404 = vmatprep.subr.bf16.mxu0 0
      %405 = vmatpush1.bf16.msra.mxu0 0
      %406 = vmatprep.subr.bf16.mxu0 0
      %407 = vmatpush1.bf16.msra.mxu0 0
      %408 = vmatprep.subr.bf16.mxu0 0
      %409 = vmatpush1.bf16.msra.mxu0 0
      %410 = vmatprep.subr.bf16.mxu0 0
      %411 = vmatpush1.bf16.msra.mxu0 0
      %412 = vmatprep.subr.bf16.mxu0 0
      %413 = vmatpush1.bf16.msra.mxu0 0
      %414 = vmatprep.subr.bf16.mxu0 0
      %415 = vmatpush1.bf16.msra.mxu0 0
      %416 = vmatprep.subr.bf16.mxu0 0
      %417 = vmatpush1.bf16.msra.mxu0 0
      %418 = vmatprep.subr.bf16.mxu0 0
      %419 = vmatpush1.bf16.msra.mxu0 0
      %420 = vmatprep.subr.bf16.mxu0 0
      %421 = vmatpush1.bf16.msra.mxu0 0
      %422 = vmatprep.mubr.bf16.mxu0 0
      %423 = vmatmul.mubr.bf16.gmra.mrb[0].mxu0 %v369
      %v424 = vpop.f32.mrb[0].mxu0
      %v425 = vadd.f32 0.0, %v424
      %v426 = vpop.f32.mrb[0].mxu0
      %v427 = vpop.f32.mrb[0].mxu0
      %v428 = vadd.f32 0.0, %v427
      %v429 = vpop.f32.mrb[0].mxu0
      %430 = vmatprep.mubr.bf16.mxu0 0
      %431 = vmatmul.mubr.bf16.gmra.mrb[0].mxu0 %v372
      %v432 = vpop.f32.mrb[0].mxu0
      %v433 = vadd.f32 0.0, %v432
      %v434 = vpop.f32.mrb[0].mxu0
      %v435 = vpop.f32.mrb[0].mxu0
      %v436 = vadd.f32 0.0, %v435
      %v437 = vpop.f32.mrb[0].mxu0
      %438 = vmatprep.mubr.bf16.mxu0 0
      %439 = vmatmul.mubr.bf16.gmra.mrb[0].mxu0 %v375
      %v440 = vpop.f32.mrb[0].mxu0
      %v441 = vadd.f32 0.0, %v440
      %v442 = vpop.f32.mrb[0].mxu0
      %v443 = vpop.f32.mrb[0].mxu0
      %v444 = vadd.f32 0.0, %v443
      %v445 = vpop.f32.mrb[0].mxu0
      %446 = vmatprep.mubr.bf16.mxu0 0
      %447 = vmatmul.mubr.bf16.gmra.mrb[0].mxu0 %v378
      %v448 = vpop.f32.mrb[0].mxu0
      %v449 = vadd.f32 0.0, %v448
      %v450 = vpop.f32.mrb[0].mxu0
      %v451 = vpop.f32.mrb[0].mxu0
      %v452 = vadd.f32 0.0, %v451
      %v453 = vpop.f32.mrb[0].mxu0
      %454 = vmatprep.mubr.bf16.mxu0 0
      %455 = vmatmul.mubr.bf16.gmra.mrb[0].mxu0 %v381
      %v456 = vpop.f32.mrb[0].mxu0
      %v457 = vadd.f32 0.0, %v456
      %v458 = vpop.f32.mrb[0].mxu0
      %v459 = vpop.f32.mrb[0].mxu0
      %v460 = vpop.f32.mrb[0].mxu0
      %461 = vdwg.mxu0
      %v462 = vld [vmem:[%s2] sm:$0x1]
      %v464 = vlaneseq
      %v465 = vshrl.u32 %v464, 7
      %v466 = vsub.s32 0, %v465
      %v467 = vrot.slane %v462, %v466
      %v469 = vmul.f32 %v425, %v467
      %v470 = vmul.f32 %v428, %v467
      %v471 = vmul.f32 %v433, %v467
      %v472 = vmul.f32 %v436, %v467
      %v473 = vmul.f32 %v441, %v467
      %v474 = vmul.f32 %v444, %v467
      %v475 = vmul.f32 %v449, %v467
      %v476 = vmul.f32 %v452, %v467
      %v477 = vmul.f32 %v457, %v467
      %v478 = vld [vmem:[%s3] sm:$0x1]
      %v480 = vlaneseq
      %v481 = vshrl.u32 %v480, 7
      %v482 = vsub.s32 0, %v481
      %v483 = vrot.slane %v478, %v482
      %v485 = vadd.f32 %v469, %v483
      %v486 = vadd.f32 %v470, %v483
      %v487 = vadd.f32 %v471, %v483
      %v488 = vadd.f32 %v472, %v483
      %v489 = vadd.f32 %v473, %v483
      %v490 = vadd.f32 %v474, %v483
      %v491 = vadd.f32 %v475, %v483
      %v492 = vadd.f32 %v476, %v483
      %v493 = vadd.f32 %v477, %v483
      %v494 = vmax.f32 %v485, 0.0
      %v495 = vmax.f32 %v486, 0.0
      %v496 = vmax.f32 %v487, 0.0
      %v497 = vmax.f32 %v488, 0.0
      %v498 = vmax.f32 %v489, 0.0
      %v499 = vmax.f32 %v490, 0.0
      %v500 = vmax.f32 %v491, 0.0
      %v501 = vmax.f32 %v492, 0.0
      %v502 = vmax.f32 %v493, 0.0
      %vm512 = vcmask 1046528
      %v513 = vrot.slane %v494, 1
      %v514 = vrot.slane %v495, 1
      %v515 = vsel %vm512, %v513, %v514
      %v516 = vrot.slane %v496, 1
      %v517 = vsel %vm512, %v514, %v516
      %v518 = vrot.slane %v497, 1
      %v519 = vsel %vm512, %v516, %v518
      %v520 = vrot.slane %v498, 1
      %v521 = vsel %vm512, %v518, %v520
      %v522 = vrot.slane %v499, 1
      %v523 = vsel %vm512, %v520, %v522
      %v524 = vrot.slane %v500, 1
      %v525 = vsel %vm512, %v522, %v524
      %v526 = vrot.slane %v501, 1
      %v527 = vsel %vm512, %v524, %v526
      %v528 = vrot.slane %v502, 1
      %v529 = vsel %vm512, %v526, %v528
      %v539 = vmax.f32 %v494, %v515
      %v540 = vmax.f32 %v495, %v517
      %v541 = vmax.f32 %v496, %v519
      %v542 = vmax.f32 %v497, %v521
      %v543 = vmax.f32 %v498, %v523
      %v544 = vmax.f32 %v499, %v525
      %v545 = vmax.f32 %v500, %v527
      %v546 = vmax.f32 %v501, %v529
      %v547 = vmax.f32 %v502, %v528
      %v548 = vld [vmem:[%s4] sm:$0xff]
      %v549 = vld [vmem:[%s4 + $0x8] sm:$0xff]
      %v550 = vld [vmem:[%s4 + $0x10] sm:$0xff]
      %v551 = vld [vmem:[%s4 + $0x18] sm:$0xff]
      %v552 = vld [vmem:[%s4 + $0x20] sm:$0x1f]
      %vm553 = vcmask 531456
      %v555 = vsel %vm553, %v548, 0
      %v558 = vsel %vm553, %v549, 0
      %v561 = vsel %vm553, %v550, 0
      %v564 = vsel %vm553, %v551, 0
      %v567 = vsel %vm553, %v552, 0
      %vm569 = vcmask 1040384
      %v571 = vsel %vm569, %v547, 0
      %573 = vmatprep.subr.mxu0 0.0
      %574 = vmatpush1.msra.mxu0 %v539
      %575 = vmatprep.subr.mxu0 0.0
      %576 = vmatpush1.msra.mxu0 %v540
      %577 = vmatprep.subr.mxu0 0.0
      %578 = vmatpush1.msra.mxu0 %v541
      %579 = vmatprep.subr.mxu0 0.0
      %580 = vmatpush1.msra.mxu0 %v542
      %581 = vmatprep.subr.mxu0 0.0
      %582 = vmatpush1.msra.mxu0 %v543
      %583 = vmatprep.subr.mxu0 0.0
      %584 = vmatpush1.msra.mxu0 %v544
      %585 = vmatprep.subr.mxu0 0.0
      %586 = vmatpush1.msra.mxu0 %v545
      %587 = vmatprep.subr.mxu0 0.0
      %588 = vmatpush1.msra.mxu0 %v546
      %589 = vmatprep.subr.mxu0 0.0
      %590 = vmatpush1.msra.mxu0 %v571
      %591 = vmatprep.subr.mxu0 0.0
      %592 = vmatpush1.msra.mxu0 0.0
      %593 = vmatprep.subr.mxu0 0.0
      %594 = vmatpush1.msra.mxu0 0.0
      %595 = vmatprep.subr.mxu0 0.0
      %596 = vmatpush1.msra.mxu0 0.0
      %597 = vmatprep.subr.mxu0 0.0
      %598 = vmatpush1.msra.mxu0 0.0
      %599 = vmatprep.subr.mxu0 0.0
      %600 = vmatpush1.msra.mxu0 0.0
      %601 = vmatprep.subr.mxu0 0.0
      %602 = vmatpush1.msra.mxu0 0.0
      %603 = vmatprep.subr.mxu0 0.0
      %604 = vmatpush1.msra.mxu0 0.0
      %605 = vmatprep.subr.mxu0 0.0
      %606 = vmatpush1.msra.mxu0 0.0
      %607 = vmatprep.subr.mxu0 0.0
      %608 = vmatpush1.msra.mxu0 0.0
      %609 = vmatprep.subr.mxu0 0.0
      %610 = vmatpush1.msra.mxu0 0.0
      %611 = vmatprep.subr.mxu0 0.0
      %612 = vmatpush1.msra.mxu0 0.0
      %613 = vmatprep.subr.mxu0 0.0
      %614 = vmatpush1.msra.mxu0 0.0
      %615 = vmatprep.subr.mxu0 0.0
      %616 = vmatpush1.msra.mxu0 0.0
      %617 = vmatprep.subr.mxu0 0.0
      %618 = vmatpush1.msra.mxu0 0.0
      %619 = vmatprep.subr.mxu0 0.0
      %620 = vmatpush1.msra.mxu0 0.0
      %621 = vmatprep.subr.mxu0 0.0
      %622 = vmatpush1.msra.mxu0 0.0
      %623 = vmatprep.subr.mxu0 0.0
      %624 = vmatpush1.msra.mxu0 0.0
      %625 = vmatprep.subr.mxu0 0.0
      %626 = vmatpush1.msra.mxu0 0.0
      %627 = vmatprep.subr.mxu0 0.0
      %628 = vmatpush1.msra.mxu0 0.0
      %629 = vmatprep.subr.mxu0 0.0
      %630 = vmatpush1.msra.mxu0 0.0
      %631 = vmatprep.subr.mxu0 0.0
      %632 = vmatpush1.msra.mxu0 0.0
      %633 = vmatprep.subr.mxu0 0.0
      %634 = vmatpush1.msra.mxu0 0.0
      %635 = vmatprep.subr.mxu0 0.0
      %636 = vmatpush1.msra.mxu0 0.0
      %637 = vmatprep.mubr.f32.mxu0 0.0
      %638 = vmatmul.mubr.f32.gmra.mrb[0].mxu0 %v555
      %v639 = vpop.f32.mrb[0].mxu0
      %v640 = vadd.f32 0.0, %v639
      %v641 = vpop.f32.mrb[0].mxu0
      %642 = vmatprep.mubr.f32.mxu0 0.0
      %643 = vmatmul.mubr.f32.gmra.mrb[0].mxu0 %v558
      %v644 = vpop.f32.mrb[0].mxu0
      %v645 = vadd.f32 0.0, %v644
      %v646 = vpop.f32.mrb[0].mxu0
      %647 = vmatprep.mubr.f32.mxu0 0.0
      %648 = vmatmul.mubr.f32.gmra.mrb[0].mxu0 %v561
      %v649 = vpop.f32.mrb[0].mxu0
      %v650 = vadd.f32 0.0, %v649
      %v651 = vpop.f32.mrb[0].mxu0
      %652 = vmatprep.mubr.f32.mxu0 0.0
      %653 = vmatmul.mubr.f32.gmra.mrb[0].mxu0 %v564
      %v654 = vpop.f32.mrb[0].mxu0
      %v655 = vadd.f32 0.0, %v654
      %v656 = vpop.f32.mrb[0].mxu0
      %657 = vmatprep.mubr.f32.mxu0 0.0
      %658 = vmatmul.mubr.f32.gmra.mrb[0].mxu0 %v567
      %v659 = vpop.f32.mrb[0].mxu0
      %v660 = vadd.f32 0.0, %v659
      %v661 = vpop.f32.mrb[0].mxu0
      %662 = vdwg.mxu0
      %v663 = vpack.c.bf16 %v645, %v640
      %v664 = vpack.c.bf16 %v655, %v650
      %v665 = vpack.c.bf16 %v660, %v660
      %v666 = vld [vmem:[%s5] sm:$0xf]
      %v667 = vld [vmem:[%s5 + $0x4] sm:$0xf]
      %v668 = vld [vmem:[%s5 + $0x8] sm:$0xf]
      %v669 = vld [vmem:[%s5 + $0xc] sm:$0xf]
      %v670 = vld [vmem:[%s5 + $0x10] sm:$0xf]
      %v671 = vld [vmem:[%s5 + $0x14] sm:$0xf]
      %v672 = vld [vmem:[%s5 + $0x18] sm:$0xf]
      %v673 = vld [vmem:[%s5 + $0x1c] sm:$0xf]
      %s674 = scalar_lea.vmem %s5, 32
      %v675 = vld [vmem:[%s674] sm:$0xf]
      %v676 = vld [vmem:[%s674 + $0x4] sm:$0xf]
      %v677 = vld [vmem:[%s674 + $0x8] sm:$0xf]
      %v678 = vld [vmem:[%s674 + $0xc] sm:$0xf]
      %v679 = vld [vmem:[%s674 + $0x10] sm:$0xf]
      %v680 = vld [vmem:[%s674 + $0x14] sm:$0xf]
      %v681 = vld [vmem:[%s674 + $0x18] sm:$0xf]
      %v682 = vld [vmem:[%s674 + $0x1c] sm:$0xf]
      %vm683 = vsmask.f32 7424
      %v685 = vshrl.u32 %v663, 16
      %v687 = vshll.u32 %v663, 16
      %v689 = vrot.slane %v687, 1
      %v690 = vor.u32 %v685, %v689
      %v692 = vshll.u32 %v664, 16
      %v694 = vrot.slane %v692, 1
      %v695 = vsel %vm683, %v690, %v694
      %v696 = vshrl.u32 %v664, 16
      %v698 = vor.u32 %v696, %v694
      %v700 = vshll.u32 %v665, 16
      %v702 = vrot.slane %v700, 1
      %v703 = vsel %vm683, %v698, %v702
      %v704 = vshrl.u32 %v665, 16
      %v706 = vor.u32 %v704, %v702
      %v715 = vunpack.c.l.b16 %v675
      %v716 = vunpack.c.l.b16 %v676
      %v717 = vunpack.c.l.b16 %v677
      %v718 = vunpack.c.l.b16 %v678
      %v719 = vunpack.c.l.b16 %v679
      %v720 = vunpack.c.l.b16 %v680
      %v721 = vunpack.c.l.b16 %v681
      %v722 = vunpack.c.l.b16 %v682
      %v723 = vpack.c.b16 %v716, %v715
      %v724 = vpack.c.b16 %v718, %v717
      %v725 = vpack.c.b16 %v720, %v719
      %v726 = vpack.c.b16 %v722, %v721
      %vm731 = vcmask 523264
      %v733 = vsel %vm731, %v695, 0
      %v736 = vsel %vm731, %v703, 0
      %v739 = vsel %vm731, %v706, 0
      %741 = vmatprep.subr.bf16.mxu0 0
      %742 = vmatpush1.bf16.msra.mxu0 %v723
      %743 = vmatprep.subr.bf16.mxu0 0
      %744 = vmatpush1.bf16.msra.mxu0 %v724
      %745 = vmatprep.subr.bf16.mxu0 0
      %746 = vmatpush1.bf16.msra.mxu0 %v725
      %747 = vmatprep.subr.bf16.mxu0 0
      %748 = vmatpush1.bf16.msra.mxu0 %v726
      %749 = vmatprep.subr.bf16.mxu0 0
      %750 = vmatpush1.bf16.msra.mxu0 0
      %751 = vmatprep.subr.bf16.mxu0 0
      %752 = vmatpush1.bf16.msra.mxu0 0
      %753 = vmatprep.subr.bf16.mxu0 0
      %754 = vmatpush1.bf16.msra.mxu0 0
      %755 = vmatprep.subr.bf16.mxu0 0
      %756 = vmatpush1.bf16.msra.mxu0 0
      %757 = vmatprep.subr.bf16.mxu0 0
      %758 = vmatpush1.bf16.msra.mxu0 0
      %759 = vmatprep.subr.bf16.mxu0 0
      %760 = vmatpush1.bf16.msra.mxu0 0
      %761 = vmatprep.subr.bf16.mxu0 0
      %762 = vmatpush1.bf16.msra.mxu0 0
      %763 = vmatprep.subr.bf16.mxu0 0
      %764 = vmatpush1.bf16.msra.mxu0 0
      %765 = vmatprep.subr.bf16.mxu0 0
      %766 = vmatpush1.bf16.msra.mxu0 0
      %767 = vmatprep.subr.bf16.mxu0 0
      %768 = vmatpush1.bf16.msra.mxu0 0
      %769 = vmatprep.subr.bf16.mxu0 0
      %770 = vmatpush1.bf16.msra.mxu0 0
      %771 = vmatprep.subr.bf16.mxu0 0
      %772 = vmatpush1.bf16.msra.mxu0 0
      %773 = vmatprep.mubr.bf16.mxu0 0
      %774 = vmatmul.mubr.bf16.gmra.mrb[0].mxu0 %v733
      %v775 = vpop.f32.mrb[0].mxu0
      %v776 = vadd.f32 0.0, %v775
      %v777 = vpop.f32.mrb[0].mxu0
      %v778 = vpop.f32.mrb[0].mxu0
      %v779 = vadd.f32 0.0, %v778
      %v780 = vpop.f32.mrb[0].mxu0
      %781 = vmatprep.mubr.bf16.mxu0 0
      %782 = vmatmul.mubr.bf16.gmra.mrb[0].mxu0 %v736
      %v783 = vpop.f32.mrb[0].mxu0
      %v784 = vadd.f32 0.0, %v783
      %v785 = vpop.f32.mrb[0].mxu0
      %v786 = vpop.f32.mrb[0].mxu0
      %v787 = vadd.f32 0.0, %v786
      %v788 = vpop.f32.mrb[0].mxu0
      %789 = vmatprep.mubr.bf16.mxu0 0
      %790 = vmatmul.mubr.bf16.gmra.mrb[0].mxu0 %v739
      %v791 = vpop.f32.mrb[0].mxu0
      %v792 = vadd.f32 0.0, %v791
      %v793 = vpop.f32.mrb[0].mxu0
      %v794 = vpop.f32.mrb[0].mxu0
      %v795 = vpop.f32.mrb[0].mxu0
      %796 = vdwg.mxu0
      %v805 = vunpack.c.l.b16 %v666
      %v806 = vunpack.c.l.b16 %v667
      %v807 = vunpack.c.l.b16 %v668
      %v808 = vunpack.c.l.b16 %v669
      %v809 = vunpack.c.l.b16 %v670
      %v810 = vunpack.c.l.b16 %v671
      %v811 = vunpack.c.l.b16 %v672
      %v812 = vunpack.c.l.b16 %v673
      %v813 = vpack.c.b16 %v806, %v805
      %v814 = vpack.c.b16 %v808, %v807
      %v815 = vpack.c.b16 %v810, %v809
      %v816 = vpack.c.b16 %v812, %v811
      %v821 = vsel %vm731, %v663, 0
      %v823 = vsel %vm731, %v664, 0
      %v825 = vsel %vm731, %v665, 0
      %827 = vmatprep.subr.bf16.mxu0 0
      %828 = vmatpush1.bf16.msra.mxu0 %v813
      %829 = vmatprep.subr.bf16.mxu0 0
      %830 = vmatpush1.bf16.msra.mxu0 %v814
      %831 = vmatprep.subr.bf16.mxu0 0
      %832 = vmatpush1.bf16.msra.mxu0 %v815
      %833 = vmatprep.subr.bf16.mxu0 0
      %834 = vmatpush1.bf16.msra.mxu0 %v816
      %835 = vmatprep.subr.bf16.mxu0 0
      %836 = vmatpush1.bf16.msra.mxu0 0
      %837 = vmatprep.subr.bf16.mxu0 0
      %838 = vmatpush1.bf16.msra.mxu0 0
      %839 = vmatprep.subr.bf16.mxu0 0
      %840 = vmatpush1.bf16.msra.mxu0 0
      %841 = vmatprep.subr.bf16.mxu0 0
      %842 = vmatpush1.bf16.msra.mxu0 0
      %843 = vmatprep.subr.bf16.mxu0 0
      %844 = vmatpush1.bf16.msra.mxu0 0
      %845 = vmatprep.subr.bf16.mxu0 0
      %846 = vmatpush1.bf16.msra.mxu0 0
      %847 = vmatprep.subr.bf16.mxu0 0
      %848 = vmatpush1.bf16.msra.mxu0 0
      %849 = vmatprep.subr.bf16.mxu0 0
      %850 = vmatpush1.bf16.msra.mxu0 0
      %851 = vmatprep.subr.bf16.mxu0 0
      %852 = vmatpush1.bf16.msra.mxu0 0
      %853 = vmatprep.subr.bf16.mxu0 0
      %854 = vmatpush1.bf16.msra.mxu0 0
      %855 = vmatprep.subr.bf16.mxu0 0
      %856 = vmatpush1.bf16.msra.mxu0 0
      %857 = vmatprep.subr.bf16.mxu0 0
      %858 = vmatpush1.bf16.msra.mxu0 0
      %859 = vmatprep.mubr.bf16.mxu0 0
      %860 = vmatmul.mubr.bf16.gmra.mrb[0].mxu0 %v821
      %v861 = vpop.f32.mrb[0].mxu0
      %v862 = vadd.f32 %v776, %v861
      %v863 = vpop.f32.mrb[0].mxu0
      %v864 = vpop.f32.mrb[0].mxu0
      %v865 = vadd.f32 %v779, %v864
      %v866 = vpop.f32.mrb[0].mxu0
      %867 = vmatprep.mubr.bf16.mxu0 0
      %868 = vmatmul.mubr.bf16.gmra.mrb[0].mxu0 %v823
      %v869 = vpop.f32.mrb[0].mxu0
      %v870 = vadd.f32 %v784, %v869
      %v871 = vpop.f32.mrb[0].mxu0
      %v872 = vpop.f32.mrb[0].mxu0
      %v873 = vadd.f32 %v787, %v872
      %v874 = vpop.f32.mrb[0].mxu0
      %875 = vmatprep.mubr.bf16.mxu0 0
      %876 = vmatmul.mubr.bf16.gmra.mrb[0].mxu0 %v825
      %v877 = vpop.f32.mrb[0].mxu0
      %v878 = vadd.f32 %v792, %v877
      %v879 = vpop.f32.mrb[0].mxu0
      %v880 = vpop.f32.mrb[0].mxu0
      %v881 = vpop.f32.mrb[0].mxu0
      %882 = vdwg.mxu0
      %s883 = scalar_lea.vmem %s5, 64
      %v884 = vld [vmem:[%s883] sm:$0xf]
      %v885 = vld [vmem:[%s883 + $0x4] sm:$0xf]
      %v886 = vld [vmem:[%s883 + $0x8] sm:$0xf]
      %v887 = vld [vmem:[%s883 + $0xc] sm:$0xf]
      %v888 = vld [vmem:[%s883 + $0x10] sm:$0xf]
      %v889 = vld [vmem:[%s883 + $0x14] sm:$0xf]
      %v890 = vld [vmem:[%s883 + $0x18] sm:$0xf]
      %v891 = vld [vmem:[%s883 + $0x1c] sm:$0xf]
      %vm895 = vcmask 1046528
      %v896 = vrot.slane %v663, 1
      %v897 = vrot.slane %v664, 1
      %v898 = vsel %vm895, %v896, %v897
      %v899 = vrot.slane %v665, 1
      %v900 = vsel %vm895, %v897, %v899
      %v909 = vunpack.c.l.b16 %v884
      %v910 = vunpack.c.l.b16 %v885
      %v911 = vunpack.c.l.b16 %v886
      %v912 = vunpack.c.l.b16 %v887
      %v913 = vunpack.c.l.b16 %v888
      %v914 = vunpack.c.l.b16 %v889
      %v915 = vunpack.c.l.b16 %v890
      %v916 = vunpack.c.l.b16 %v891
      %v917 = vpack.c.b16 %v910, %v909
      %v918 = vpack.c.b16 %v912, %v911
      %v919 = vpack.c.b16 %v914, %v913
      %v920 = vpack.c.b16 %v916, %v915
      %v926 = vsel %vm731, %v898, 0
      %v929 = vsel %vm731, %v900, 0
      %v932 = vsel %vm731, %v899, 0
      %934 = vmatprep.subr.bf16.mxu0 0
      %935 = vmatpush1.bf16.msra.mxu0 %v917
      %936 = vmatprep.subr.bf16.mxu0 0
      %937 = vmatpush1.bf16.msra.mxu0 %v918
      %938 = vmatprep.subr.bf16.mxu0 0
      %939 = vmatpush1.bf16.msra.mxu0 %v919
      %940 = vmatprep.subr.bf16.mxu0 0
      %941 = vmatpush1.bf16.msra.mxu0 %v920
      %942 = vmatprep.subr.bf16.mxu0 0
      %943 = vmatpush1.bf16.msra.mxu0 0
      %944 = vmatprep.subr.bf16.mxu0 0
      %945 = vmatpush1.bf16.msra.mxu0 0
      %946 = vmatprep.subr.bf16.mxu0 0
      %947 = vmatpush1.bf16.msra.mxu0 0
      %948 = vmatprep.subr.bf16.mxu0 0
      %949 = vmatpush1.bf16.msra.mxu0 0
      %950 = vmatprep.subr.bf16.mxu0 0
      %951 = vmatpush1.bf16.msra.mxu0 0
      %952 = vmatprep.subr.bf16.mxu0 0
      %953 = vmatpush1.bf16.msra.mxu0 0
      %954 = vmatprep.subr.bf16.mxu0 0
      %955 = vmatpush1.bf16.msra.mxu0 0
      %956 = vmatprep.subr.bf16.mxu0 0
      %957 = vmatpush1.bf16.msra.mxu0 0
      %958 = vmatprep.subr.bf16.mxu0 0
      %959 = vmatpush1.bf16.msra.mxu0 0
      %960 = vmatprep.subr.bf16.mxu0 0
      %961 = vmatpush1.bf16.msra.mxu0 0
      %962 = vmatprep.subr.bf16.mxu0 0
      %963 = vmatpush1.bf16.msra.mxu0 0
      %964 = vmatprep.subr.bf16.mxu0 0
      %965 = vmatpush1.bf16.msra.mxu0 0
      %966 = vmatprep.mubr.bf16.mxu0 0
      %967 = vmatmul.mubr.bf16.gmra.mrb[0].mxu0 %v926
      %v968 = vpop.f32.mrb[0].mxu0
      %v969 = vadd.f32 0.0, %v968
      %v970 = vpop.f32.mrb[0].mxu0
      %v971 = vpop.f32.mrb[0].mxu0
      %v972 = vadd.f32 0.0, %v971
      %v973 = vpop.f32.mrb[0].mxu0
      %974 = vmatprep.mubr.bf16.mxu0 0
      %975 = vmatmul.mubr.bf16.gmra.mrb[0].mxu0 %v929
      %v976 = vpop.f32.mrb[0].mxu0
      %v977 = vadd.f32 0.0, %v976
      %v978 = vpop.f32.mrb[0].mxu0
      %v979 = vpop.f32.mrb[0].mxu0
      %v980 = vadd.f32 0.0, %v979
      %v981 = vpop.f32.mrb[0].mxu0
      %982 = vmatprep.mubr.bf16.mxu0 0
      %983 = vmatmul.mubr.bf16.gmra.mrb[0].mxu0 %v932
      %v984 = vpop.f32.mrb[0].mxu0
      %v985 = vadd.f32 0.0, %v984
      %v986 = vpop.f32.mrb[0].mxu0
      %v987 = vpop.f32.mrb[0].mxu0
      %v988 = vpop.f32.mrb[0].mxu0
      %989 = vdwg.mxu0
      %v990 = vadd.f32 %v862, %v969
      %v991 = vadd.f32 %v865, %v972
      %v992 = vadd.f32 %v870, %v977
      %v993 = vadd.f32 %v873, %v980
      %v994 = vadd.f32 %v878, %v985
      %v995 = vld [vmem:[%s6] sm:$0x1]
      %v997 = vlaneseq
      %v998 = vshrl.u32 %v997, 7
      %v999 = vsub.s32 0, %v998
      %v1000 = vrot.slane %v995, %v999
      %v1002 = vmul.f32 %v990, %v1000
      %v1003 = vmul.f32 %v991, %v1000
      %v1004 = vmul.f32 %v992, %v1000
      %v1005 = vmul.f32 %v993, %v1000
      %v1006 = vmul.f32 %v994, %v1000
      %v1007 = vld [vmem:[%s7] sm:$0x1]
      %v1009 = vlaneseq
      %v1010 = vshrl.u32 %v1009, 7
      %v1011 = vsub.s32 0, %v1010
      %v1012 = vrot.slane %v1007, %v1011
      %v1014 = vadd.f32 %v1002, %v1012
      %v1015 = vadd.f32 %v1003, %v1012
      %v1016 = vadd.f32 %v1004, %v1012
      %v1017 = vadd.f32 %v1005, %v1012
      %v1018 = vadd.f32 %v1006, %v1012
      %v1019 = vmax.f32 %v1014, 0.0
      %v1020 = vmax.f32 %v1015, 0.0
      %v1021 = vmax.f32 %v1016, 0.0
      %v1022 = vmax.f32 %v1017, 0.0
      %v1023 = vmax.f32 %v1018, 0.0
      %v1029 = vrot.slane %v1019, 1
      %v1030 = vrot.slane %v1020, 1
      %v1031 = vsel %vm512, %v1029, %v1030
      %v1032 = vrot.slane %v1021, 1
      %v1033 = vsel %vm512, %v1030, %v1032
      %v1034 = vrot.slane %v1022, 1
      %v1035 = vsel %vm512, %v1032, %v1034
      %v1036 = vrot.slane %v1023, 1
      %v1037 = vsel %vm512, %v1034, %v1036
      %v1043 = vmax.f32 %v1019, %v1031
      %v1044 = vmax.f32 %v1020, %v1033
      %v1045 = vmax.f32 %v1021, %v1035
      %v1046 = vmax.f32 %v1022, %v1037
      %v1047 = vmax.f32 %v1023, %v1036
      %v1048 = vld [vmem:[%s8] sm:$0xff]
      %v1049 = vld [vmem:[%s8 + $0x8] sm:$0xff]
      %v1050 = vld [vmem:[%s8 + $0x10] sm:$0x1]
      %vm1051 = vcmask 269312
      %v1053 = vsel %vm1051, %v1048, 0
      %v1056 = vsel %vm1051, %v1049, 0
      %v1059 = vsel %vm1051, %v1050, 0
      %v1062 = vsel %vm569, %v1047, 0
      %1064 = vmatprep.subr.mxu0 0.0
      %1065 = vmatpush1.msra.mxu0 %v1043
      %1066 = vmatprep.subr.mxu0 0.0
      %1067 = vmatpush1.msra.mxu0 %v1044
      %1068 = vmatprep.subr.mxu0 0.0
      %1069 = vmatpush1.msra.mxu0 %v1045
      %1070 = vmatprep.subr.mxu0 0.0
      %1071 = vmatpush1.msra.mxu0 %v1046
      %1072 = vmatprep.subr.mxu0 0.0
      %1073 = vmatpush1.msra.mxu0 %v1062
      %1074 = vmatprep.subr.mxu0 0.0
      %1075 = vmatpush1.msra.mxu0 0.0
      %1076 = vmatprep.subr.mxu0 0.0
      %1077 = vmatpush1.msra.mxu0 0.0
      %1078 = vmatprep.subr.mxu0 0.0
      %1079 = vmatpush1.msra.mxu0 0.0
      %1080 = vmatprep.subr.mxu0 0.0
      %1081 = vmatpush1.msra.mxu0 0.0
      %1082 = vmatprep.subr.mxu0 0.0
      %1083 = vmatpush1.msra.mxu0 0.0
      %1084 = vmatprep.subr.mxu0 0.0
      %1085 = vmatpush1.msra.mxu0 0.0
      %1086 = vmatprep.subr.mxu0 0.0
      %1087 = vmatpush1.msra.mxu0 0.0
      %1088 = vmatprep.subr.mxu0 0.0
      %1089 = vmatpush1.msra.mxu0 0.0
      %1090 = vmatprep.subr.mxu0 0.0
      %1091 = vmatpush1.msra.mxu0 0.0
      %1092 = vmatprep.subr.mxu0 0.0
      %1093 = vmatpush1.msra.mxu0 0.0
      %1094 = vmatprep.subr.mxu0 0.0
      %1095 = vmatpush1.msra.mxu0 0.0
      %1096 = vmatprep.subr.mxu0 0.0
      %1097 = vmatpush1.msra.mxu0 0.0
      %1098 = vmatprep.subr.mxu0 0.0
      %1099 = vmatpush1.msra.mxu0 0.0
      %1100 = vmatprep.subr.mxu0 0.0
      %1101 = vmatpush1.msra.mxu0 0.0
      %1102 = vmatprep.subr.mxu0 0.0
      %1103 = vmatpush1.msra.mxu0 0.0
      %1104 = vmatprep.subr.mxu0 0.0
      %1105 = vmatpush1.msra.mxu0 0.0
      %1106 = vmatprep.subr.mxu0 0.0
      %1107 = vmatpush1.msra.mxu0 0.0
      %1108 = vmatprep.subr.mxu0 0.0
      %1109 = vmatpush1.msra.mxu0 0.0
      %1110 = vmatprep.subr.mxu0 0.0
      %1111 = vmatpush1.msra.mxu0 0.0
      %1112 = vmatprep.subr.mxu0 0.0
      %1113 = vmatpush1.msra.mxu0 0.0
      %1114 = vmatprep.subr.mxu0 0.0
      %1115 = vmatpush1.msra.mxu0 0.0
      %1116 = vmatprep.subr.mxu0 0.0
      %1117 = vmatpush1.msra.mxu0 0.0
      %1118 = vmatprep.subr.mxu0 0.0
      %1119 = vmatpush1.msra.mxu0 0.0
      %1120 = vmatprep.subr.mxu0 0.0
      %1121 = vmatpush1.msra.mxu0 0.0
      %1122 = vmatprep.subr.mxu0 0.0
      %1123 = vmatpush1.msra.mxu0 0.0
      %1124 = vmatprep.subr.mxu0 0.0
      %1125 = vmatpush1.msra.mxu0 0.0
      %1126 = vmatprep.subr.mxu0 0.0
      %1127 = vmatpush1.msra.mxu0 0.0
      %1128 = vmatprep.mubr.f32.mxu0 0.0
      %1129 = vmatmul.mubr.f32.gmra.mrb[0].mxu0 %v1053
      %v1130 = vpop.f32.mrb[0].mxu0
      %v1131 = vadd.f32 0.0, %v1130
      %v1132 = vpop.f32.mrb[0].mxu0
      %1133 = vmatprep.mubr.f32.mxu0 0.0
      %1134 = vmatmul.mubr.f32.gmra.mrb[0].mxu0 %v1056
      %v1135 = vpop.f32.mrb[0].mxu0
      %v1136 = vadd.f32 0.0, %v1135
      %v1137 = vpop.f32.mrb[0].mxu0
      %1138 = vmatprep.mubr.f32.mxu0 0.0
      %1139 = vmatmul.mubr.f32.gmra.mrb[0].mxu0 %v1059
      %v1140 = vpop.f32.mrb[0].mxu0
      %v1141 = vadd.f32 0.0, %v1140
      %v1142 = vpop.f32.mrb[0].mxu0
      %1143 = vdwg.mxu0
      %1144 = vst [vmem:[%s332] sm:$0xff] %v1131
      %1145 = vst [vmem:[%s332 + $0x8] sm:$0xff] %v1136
      %1146 = vst [vmem:[%s332 + $0x10] sm:$0x1] %v1141
      %p1147 = scmp.lt.s32.totalorder %s20, 1
      %s1148 = scalar_select %p1147, %s20, 1
      %s1149 = smul.addr %s1148, 3
      %s1150 = smul.addr %s1149, 8
      %s1151 = scalar_lea.vmem %s9, %s1150
      // Predicated region
      $region57: #{cardiovascular_predictor.6} parent=55 // pred_check
        %p1152 = pneg %p232
      $region58: #{cardiovascular_predictor.6} parent=55 // pred_check_branch
        %1154 = sbr.rel (%p1152) target = $region60
      $region59: #{cardiovascular_predictor.6} parent=55 // pred_region
        _
      $region60: #{cardiovascular_predictor.6} parent=55 // pred_fallthru
        _
    $region56: #{cardiovascular_predictor.6} parent=5 // pred_fallthru
      _
    %p1155 = scmp.le.s32.totalorder 2, %s15
    // Predicated region
    $region61: #{cardiovascular_predictor.6} parent=5 // pred_check
      %p1156 = pneg %p1155
    $region62: #{cardiovascular_predictor.6} parent=5 // pred_check_branch
      %1158 = sbr.rel (%p1156) target = $region64
    $region63: #{cardiovascular_predictor.6} parent=5 // pred_region
      %s1159 = ssub.s32 %s15, 2
      // Predicated region
      $region65: #{cardiovascular_predictor.6} parent=63 // pred_check
        %p1160 = pneg %p238
      $region66: #{cardiovascular_predictor.6} parent=63 // pred_check_branch
        %1162 = sbr.rel (%p1160) target = $region68
      $region67: #{cardiovascular_predictor.6} parent=63 // pred_region
        %p1163 = scmp.lt.s32.totalorder %s21, 1
        %s1164 = scalar_select %p1163, %s21, 1
        %s1165 = smul.addr %s1164, 3
        %s1166 = smul.addr %s1165, 8
        %s1167 = scalar_lea.vmem %s9, %s1166
      $region68: #{cardiovascular_predictor.6} parent=63 // pred_fallthru
        _
    $region64: #{cardiovascular_predictor.6} parent=5 // pred_fallthru
      _
  $region6: #{cardiovascular_predictor.6} parent=0 // loop_footer
    %s19 = sadd.s32 1, %s15
  $region7: #{cardiovascular_predictor.6} parent=0 // loop_footer_branch
    %14 = sbr.rel target = $region3
  $region8: #{cardiovascular_predictor.6} parent=0 // loop_exit
    _

// kernel: cardiovascular_predictor.5
$region0: #{cardiovascular_predictor.5}
  #allocation0 [shape = 'u32[]', space=smem, size = 0x4, offset = 0x4, fixed_abs, tag = 'smem constant byte address 0x4 - core index']
  #allocation1 [shape = 'u32[144,128]{1,0:T(1,128)}', space=vmem, size = 0x12000, scoped, tag = 'internal scratch']
  %s0 = inlined_call_operand.vmem [shape: bf16[2,66,15], index: 0, kind: input, shape index: {}]
  %s1 = inlined_call_operand.vmem [shape: bf16[15,64], index: 1, kind: input, shape index: {}]
  %s2 = inlined_call_operand.vmem [shape: f32[1,64], index: 2, kind: input, shape index: {}]
  %s3 = inlined_call_operand.vmem [shape: f32[1,64], index: 3, kind: input, shape index: {}]
  %s4 = inlined_call_operand.vmem [shape: f32[37,65], index: 4, kind: input, shape index: {}]
  %s5 = inlined_call_operand.vmem [shape: bf16[3,64,128], index: 5, kind: input, shape index: {}]
  %s6 = inlined_call_operand.vmem [shape: f32[1,128], index: 6, kind: input, shape index: {}]
  %s7 = inlined_call_operand.vmem [shape: f32[1,128], index: 7, kind: input, shape index: {}]
  %s8 = inlined_call_operand.vmem [shape: f32[17,33], index: 8, kind: input, shape index: {}]
  %s9 = inlined_call_operand.vmem [shape: f32[2,17,128], index: 9, kind: output, shape index: {}]
  %s10 = sld [smem:[#allocation0]]
  $region69: #{cardiovascular_predictor.5} parent=0
    _
  %s12 = ssub.s32 1, %s10
  %s13 = scalar_select 0, %s12, %s10
  loop: start=0, step=1, limit=4
  $region2: #{cardiovascular_predictor.5} parent=0 // loop_pre_header
    _
  $region3: #{cardiovascular_predictor.5} parent=0 // loop_header
    %s15 = sphi 0, %s19
    %p16 = scmp.ge.s32.totalorder %s15, 4
    %s25 = sphi 0, %s27
    %s28 = sphi 0, %s25
    %s29 = sphi 0, %s28
    %s45 = sphi 0, %s29
    %s49 = sphi 0, %s49
    %s51 = sphi 0, %s49
    %s52 = sphi 0, %s51
    %s66 = sphi 0, %s52
    %s70 = sphi 0, %s70
    %s72 = sphi 0, %s70
    %s73 = sphi 0, %s72
    %s87 = sphi 0, %s73
    %s91 = sphi 0, %s91
    %s93 = sphi 0, %s91
    %s94 = sphi 0, %s93
    %s108 = sphi 0, %s94
    %s112 = sphi 0, %s112
    %s114 = sphi 0, %s112
    %s115 = sphi 0, %s114
    %s129 = sphi 0, %s115
    %s133 = sphi 0, %s133
    %s135 = sphi 0, %s133
    %s136 = sphi 0, %s135
    %s150 = sphi 0, %s136
    %s154 = sphi 0, %s154
    %s156 = sphi 0, %s154
    %s157 = sphi 0, %s156
    %s171 = sphi 0, %s157
    %s175 = sphi 0, %s175
    %s177 = sphi 0, %s175
    %s178 = sphi 0, %s177
    %s192 = sphi 0, %s178
    %s196 = sphi 0, %s196
    %s198 = sphi 0, %s196
    %s199 = sphi 0, %s198
    %s213 = sphi 0, %s199
    %s219 = sphi 0, %s221
    %s222 = sphi 0, %s219
    %s223 = sphi 0, %s222
    %s239 = sphi 0, %s223
  $region4: #{cardiovascular_predictor.5} parent=0 // loop_header_branch
    %18 = sbr.rel (%p16) target = $region8
  $region5: #{cardiovascular_predictor.5} parent=0 // loop_body
    %s20 = ssub.s32 %s15, 1
    %s21 = ssub.s32 %s15, 2
    %s22 = sadd.s32 %s15, 1
    %s23 = ssub.s32 %s15, %s22
    %p24 = scmp.eq.s32.totalorder %s23, 0
    %s26 = sadd.s32 %s25, 1
    %s27 = scalar_select %p24, %s25, %s26
    %p30 = pneg %p24
    %p31 = scmp.eq.s32.totalorder %s15, 1
    %p32 = por %p30, %p31
    %p33 = scmp.ne.s32.totalorder %s25, %s28
    %p34 = scmp.eq.s32.totalorder %s15, 0
    %p35 = por %p33, %p34
    %p36 = scmp.ne.s32.totalorder %s25, %s28
    %p37 = scmp.eq.s32.totalorder %s20, 1
    %p38 = por %p36, %p37
    %p39 = scmp.ne.s32.totalorder %s28, %s29
    %p40 = scmp.eq.s32.totalorder %s20, 0
    %p41 = por %p39, %p40
    %p42 = scmp.ne.s32.totalorder %s28, %s29
    %p43 = scmp.eq.s32.totalorder %s21, 1
    %p44 = por %p42, %p43
    %p46 = scmp.ne.s32.totalorder %s29, %s45
    %p47 = scmp.eq.s32.totalorder %s21, 0
    %p48 = por %p46, %p47
    %s50 = sadd.s32 %s49, 1
    %p53 = scmp.eq.s32.totalorder %s15, 1
    %p54 = scmp.ne.s32.totalorder %s49, %s51
    %p55 = scmp.eq.s32.totalorder %s15, 0
    %p56 = por %p54, %p55
    %p57 = scmp.ne.s32.totalorder %s49, %s51
    %p58 = scmp.eq.s32.totalorder %s20, 1
    %p59 = por %p57, %p58
    %p60 = scmp.ne.s32.totalorder %s51, %s52
    %p61 = scmp.eq.s32.totalorder %s20, 0
    %p62 = por %p60, %p61
    %p63 = scmp.ne.s32.totalorder %s51, %s52
    %p64 = scmp.eq.s32.totalorder %s21, 1
    %p65 = por %p63, %p64
    %p67 = scmp.ne.s32.totalorder %s52, %s66
    %p68 = scmp.eq.s32.totalorder %s21, 0
    %p69 = por %p67, %p68
    %s71 = sadd.s32 %s70, 1
    %p74 = scmp.eq.s32.totalorder %s15, 1
    %p75 = scmp.ne.s32.totalorder %s70, %s72
    %p76 = scmp.eq.s32.totalorder %s15, 0
    %p77 = por %p75, %p76
    %p78 = scmp.ne.s32.totalorder %s70, %s72
    %p79 = scmp.eq.s32.totalorder %s20, 1
    %p80 = por %p78, %p79
    %p81 = scmp.ne.s32.totalorder %s72, %s73
    %p82 = scmp.eq.s32.totalorder %s20, 0
    %p83 = por %p81, %p82
    %p84 = scmp.ne.s32.totalorder %s72, %s73
    %p85 = scmp.eq.s32.totalorder %s21, 1
    %p86 = por %p84, %p85
    %p88 = scmp.ne.s32.totalorder %s73, %s87
    %p89 = scmp.eq.s32.totalorder %s21, 0
    %p90 = por %p88, %p89
    %s92 = sadd.s32 %s91, 1
    %p95 = scmp.eq.s32.totalorder %s15, 1
    %p96 = scmp.ne.s32.totalorder %s91, %s93
    %p97 = scmp.eq.s32.totalorder %s15, 0
    %p98 = por %p96, %p97
    %p99 = scmp.ne.s32.totalorder %s91, %s93
    %p100 = scmp.eq.s32.totalorder %s20, 1
    %p101 = por %p99, %p100
    %p102 = scmp.ne.s32.totalorder %s93, %s94
    %p103 = scmp.eq.s32.totalorder %s20, 0
    %p104 = por %p102, %p103
    %p105 = scmp.ne.s32.totalorder %s93, %s94
    %p106 = scmp.eq.s32.totalorder %s21, 1
    %p107 = por %p105, %p106
    %p109 = scmp.ne.s32.totalorder %s94, %s108
    %p110 = scmp.eq.s32.totalorder %s21, 0
    %p111 = por %p109, %p110
    %s113 = sadd.s32 %s112, 1
    %p116 = scmp.eq.s32.totalorder %s15, 1
    %p117 = scmp.ne.s32.totalorder %s112, %s114
    %p118 = scmp.eq.s32.totalorder %s15, 0
    %p119 = por %p117, %p118
    %p120 = scmp.ne.s32.totalorder %s112, %s114
    %p121 = scmp.eq.s32.totalorder %s20, 1
    %p122 = por %p120, %p121
    %p123 = scmp.ne.s32.totalorder %s114, %s115
    %p124 = scmp.eq.s32.totalorder %s20, 0
    %p125 = por %p123, %p124
    %p126 = scmp.ne.s32.totalorder %s114, %s115
    %p127 = scmp.eq.s32.totalorder %s21, 1
    %p128 = por %p126, %p127
    %p130 = scmp.ne.s32.totalorder %s115, %s129
    %p131 = scmp.eq.s32.totalorder %s21, 0
    %p132 = por %p130, %p131
    %s134 = sadd.s32 %s133, 1
    %p137 = scmp.eq.s32.totalorder %s15, 1
    %p138 = scmp.ne.s32.totalorder %s133, %s135
    %p139 = scmp.eq.s32.totalorder %s15, 0
    %p140 = por %p138, %p139
    %p141 = scmp.ne.s32.totalorder %s133, %s135
    %p142 = scmp.eq.s32.totalorder %s20, 1
    %p143 = por %p141, %p142
    %p144 = scmp.ne.s32.totalorder %s135, %s136
    %p145 = scmp.eq.s32.totalorder %s20, 0
    %p146 = por %p144, %p145
    %p147 = scmp.ne.s32.totalorder %s135, %s136
    %p148 = scmp.eq.s32.totalorder %s21, 1
    %p149 = por %p147, %p148
    %p151 = scmp.ne.s32.totalorder %s136, %s150
    %p152 = scmp.eq.s32.totalorder %s21, 0
    %p153 = por %p151, %p152
    %s155 = sadd.s32 %s154, 1
    %p158 = scmp.eq.s32.totalorder %s15, 1
    %p159 = scmp.ne.s32.totalorder %s154, %s156
    %p160 = scmp.eq.s32.totalorder %s15, 0
    %p161 = por %p159, %p160
    %p162 = scmp.ne.s32.totalorder %s154, %s156
    %p163 = scmp.eq.s32.totalorder %s20, 1
    %p164 = por %p162, %p163
    %p165 = scmp.ne.s32.totalorder %s156, %s157
    %p166 = scmp.eq.s32.totalorder %s20, 0
    %p167 = por %p165, %p166
    %p168 = scmp.ne.s32.totalorder %s156, %s157
    %p169 = scmp.eq.s32.totalorder %s21, 1
    %p170 = por %p168, %p169
    %p172 = scmp.ne.s32.totalorder %s157, %s171
    %p173 = scmp.eq.s32.totalorder %s21, 0
    %p174 = por %p172, %p173
    %s176 = sadd.s32 %s175, 1
    %p179 = scmp.eq.s32.totalorder %s15, 1
    %p180 = scmp.ne.s32.totalorder %s175, %s177
    %p181 = scmp.eq.s32.totalorder %s15, 0
    %p182 = por %p180, %p181
    %p183 = scmp.ne.s32.totalorder %s175, %s177
    %p184 = scmp.eq.s32.totalorder %s20, 1
    %p185 = por %p183, %p184
    %p186 = scmp.ne.s32.totalorder %s177, %s178
    %p187 = scmp.eq.s32.totalorder %s20, 0
    %p188 = por %p186, %p187
    %p189 = scmp.ne.s32.totalorder %s177, %s178
    %p190 = scmp.eq.s32.totalorder %s21, 1
    %p191 = por %p189, %p190
    %p193 = scmp.ne.s32.totalorder %s178, %s192
    %p194 = scmp.eq.s32.totalorder %s21, 0
    %p195 = por %p193, %p194
    %s197 = sadd.s32 %s196, 1
    %p200 = scmp.eq.s32.totalorder %s15, 1
    %p201 = scmp.ne.s32.totalorder %s196, %s198
    %p202 = scmp.eq.s32.totalorder %s15, 0
    %p203 = por %p201, %p202
    %p204 = scmp.ne.s32.totalorder %s196, %s198
    %p205 = scmp.eq.s32.totalorder %s20, 1
    %p206 = por %p204, %p205
    %p207 = scmp.ne.s32.totalorder %s198, %s199
    %p208 = scmp.eq.s32.totalorder %s20, 0
    %p209 = por %p207, %p208
    %p210 = scmp.ne.s32.totalorder %s198, %s199
    %p211 = scmp.eq.s32.totalorder %s21, 1
    %p212 = por %p210, %p211
    %p214 = scmp.ne.s32.totalorder %s199, %s213
    %p215 = scmp.eq.s32.totalorder %s21, 0
    %p216 = por %p214, %p215
    %s217 = ssub.s32 %s15, %s22
    %p218 = scmp.eq.s32.totalorder %s217, 0
    %s220 = sadd.s32 %s219, 1
    %s221 = scalar_select %p218, %s219, %s220
    %p224 = pneg %p218
    %p225 = scmp.eq.s32.totalorder %s15, 1
    %p226 = por %p224, %p225
    %p227 = scmp.ne.s32.totalorder %s219, %s222
    %p228 = scmp.eq.s32.totalorder %s15, 0
    %p229 = por %p227, %p228
    %p230 = scmp.ne.s32.totalorder %s219, %s222
    %p231 = scmp.eq.s32.totalorder %s20, 1
    %p232 = por %p230, %p231
    %p233 = scmp.ne.s32.totalorder %s222, %s223
    %p234 = scmp.eq.s32.totalorder %s20, 0
    %p235 = por %p233, %p234
    %p236 = scmp.ne.s32.totalorder %s222, %s223
    %p237 = scmp.eq.s32.totalorder %s21, 1
    %p238 = por %p236, %p237
    %p240 = scmp.ne.s32.totalorder %s223, %s239
    %p241 = scmp.eq.s32.totalorder %s21, 0
    %p242 = por %p240, %p241
    %p243 = scmp.le.s32.totalorder 1, %s15
    %p244 = scmp.lt.s32.totalorder %s15, 3
    %p245 = pnand %p243, %p244
    %p246 = pneg %p245
    // Predicated region
    $region9: #{cardiovascular_predictor.5} parent=5 // pred_check
      _
    $region10: #{cardiovascular_predictor.5} parent=5 // pred_check_branch
      %248 = sbr.rel (%p245) target = $region12
    $region11: #{cardiovascular_predictor.5} parent=5 // pred_region
      %s249 = ssub.s32 %s15, 1
      // Predicated region
      $region13: #{cardiovascular_predictor.5} parent=11 // pred_check
        %p250 = pneg %p62
      $region14: #{cardiovascular_predictor.5} parent=11 // pred_check_branch
        %252 = sbr.rel (%p250) target = $region16
      $region15: #{cardiovascular_predictor.5} parent=11 // pred_region
        _
      $region16: #{cardiovascular_predictor.5} parent=11 // pred_fallthru
        _
      // Predicated region
      $region17: #{cardiovascular_predictor.5} parent=11 // pred_check
        %p253 = pneg %p83
      $region18: #{cardiovascular_predictor.5} parent=11 // pred_check_branch
        %255 = sbr.rel (%p253) target = $region20
      $region19: #{cardiovascular_predictor.5} parent=11 // pred_region
        _
      $region20: #{cardiovascular_predictor.5} parent=11 // pred_fallthru
        _
      // Predicated region
      $region21: #{cardiovascular_predictor.5} parent=11 // pred_check
        %p256 = pneg %p104
      $region22: #{cardiovascular_predictor.5} parent=11 // pred_check_branch
        %258 = sbr.rel (%p256) target = $region24
      $region23: #{cardiovascular_predictor.5} parent=11 // pred_region
        _
      $region24: #{cardiovascular_predictor.5} parent=11 // pred_fallthru
        _
      // Predicated region
      $region25: #{cardiovascular_predictor.5} parent=11 // pred_check
        %p259 = pneg %p125
      $region26: #{cardiovascular_predictor.5} parent=11 // pred_check_branch
        %261 = sbr.rel (%p259) target = $region28
      $region27: #{cardiovascular_predictor.5} parent=11 // pred_region
        _
      $region28: #{cardiovascular_predictor.5} parent=11 // pred_fallthru
        _
      // Predicated region
      $region29: #{cardiovascular_predictor.5} parent=11 // pred_check
        %p262 = pneg %p146
      $region30: #{cardiovascular_predictor.5} parent=11 // pred_check_branch
        %264 = sbr.rel (%p262) target = $region32
      $region31: #{cardiovascular_predictor.5} parent=11 // pred_region
        _
      $region32: #{cardiovascular_predictor.5} parent=11 // pred_fallthru
        _
      // Predicated region
      $region33: #{cardiovascular_predictor.5} parent=11 // pred_check
        %p265 = pneg %p167
      $region34: #{cardiovascular_predictor.5} parent=11 // pred_check_branch
        %267 = sbr.rel (%p265) target = $region36
      $region35: #{cardiovascular_predictor.5} parent=11 // pred_region
        _
      $region36: #{cardiovascular_predictor.5} parent=11 // pred_fallthru
        _
      // Predicated region
      $region37: #{cardiovascular_predictor.5} parent=11 // pred_check
        %p268 = pneg %p188
      $region38: #{cardiovascular_predictor.5} parent=11 // pred_check_branch
        %270 = sbr.rel (%p268) target = $region40
      $region39: #{cardiovascular_predictor.5} parent=11 // pred_region
        _
      $region40: #{cardiovascular_predictor.5} parent=11 // pred_fallthru
        _
      // Predicated region
      $region41: #{cardiovascular_predictor.5} parent=11 // pred_check
        %p271 = pneg %p209
      $region42: #{cardiovascular_predictor.5} parent=11 // pred_check_branch
        %273 = sbr.rel (%p271) target = $region44
      $region43: #{cardiovascular_predictor.5} parent=11 // pred_region
        _
      $region44: #{cardiovascular_predictor.5} parent=11 // pred_fallthru
        _
    $region12: #{cardiovascular_predictor.5} parent=5 // pred_fallthru
      _
    %p274 = scmp.lt.s32.totalorder %s15, 2
    // Predicated region
    $region45: #{cardiovascular_predictor.5} parent=5 // pred_check
      %p275 = pneg %p274
    $region46: #{cardiovascular_predictor.5} parent=5 // pred_check_branch
      %277 = sbr.rel (%p275) target = $region48
    $region47: #{cardiovascular_predictor.5} parent=5 // pred_region
      // Predicated region
      $region49: #{cardiovascular_predictor.5} parent=47 // pred_check
        %p278 = pneg %p35
      $region50: #{cardiovascular_predictor.5} parent=47 // pred_check_branch
        %280 = sbr.rel (%p278) target = $region52
      $region51: #{cardiovascular_predictor.5} parent=47 // pred_region
        %p281 = scmp.lt.s32.totalorder %s15, 1
        %s282 = scalar_select %p281, %s15, 1
        %s283 = smul.addr %s282, 9
        %s284 = smul.addr %s283, 4
        %s285 = scalar_lea.vmem %s0, %s284
      $region52: #{cardiovascular_predictor.5} parent=47 // pred_fallthru
        _
    $region48: #{cardiovascular_predictor.5} parent=5 // pred_fallthru
      _
    %p286 = scmp.le.s32.totalorder 1, %s15
    %p287 = scmp.lt.s32.totalorder %s15, 3
    %p288 = pnand %p286, %p287
    %p289 = pneg %p288
    // Predicated region
    $region53: #{cardiovascular_predictor.5} parent=5 // pred_check
      _
    $region54: #{cardiovascular_predictor.5} parent=5 // pred_check_branch
      %291 = sbr.rel (%p288) target = $region56
    $region55: #{cardiovascular_predictor.5} parent=5 // pred_region
      %s292 = ssub.s32 %s15, 1
      %p293 = scmp.lt.s32.totalorder %s20, 1
      %s294 = scalar_select %p293, %s20, 1
      %s295 = smul.addr %s294, 9
      %s296 = smul.addr %s295, 4
      %s297 = scalar_lea.vmem %s0, %s296
      %p298 = pneg %p41
      %p299 = pneg %p38
      %p300 = pneg %p62
      %p301 = pneg %p59
      %p302 = pneg %p83
      %p303 = pneg %p80
      %p304 = pneg %p104
      %p305 = pneg %p101
      %p306 = pneg %p125
      %p307 = pneg %p122
      %p308 = pneg %p146
      %p309 = pneg %p143
      %p310 = pneg %p167
      %p311 = pneg %p164
      %p312 = pneg %p188
      %p313 = pneg %p185
      %p314 = pneg %p209
      %p315 = pneg %p206
      %p316 = pneg %p235
      %p317 = pneg %p232
      %p318 = scmp.lt.s32.totalorder %s20, 1
      %s319 = scalar_select %p318, %s20, 1
      %s320 = smul.addr %s319, 3
      %s321 = smul.addr %s320, 8
      %s322 = scalar_lea.vmem %s9, %s321
      %p323 = scmp.lt.s32.totalorder %s20, 1
      %s324 = scalar_select %p323, %s20, 1
      %s325 = smul.addr %s324, 9
      %s326 = smul.addr %s325, 4
      %s327 = scalar_lea.vmem %s0, %s326
      %p328 = scmp.lt.s32.totalorder %s20, 1
      %s329 = scalar_select %p328, %s20, 1
      %s330 = smul.addr %s329, 3
      %s331 = smul.addr %s330, 8
      %s332 = scalar_lea.vmem %s9, %s331
      %v334 = vld [vmem:[%s327] sm:$0xf]
      %v335 = vld [vmem:[%s327 + $0x4] sm:$0xf]
      %v336 = vld [vmem:[%s327 + $0x8] sm:$0xf]
      %v337 = vld [vmem:[%s327 + $0xc] sm:$0xf]
      %v338 = vld [vmem:[%s327 + $0x10] sm:$0xf]
      %v339 = vld [vmem:[%s327 + $0x14] sm:$0xf]
      %v340 = vld [vmem:[%s327 + $0x18] sm:$0xf]
      %v341 = vld [vmem:[%s327 + $0x1c] sm:$0xf]
      %v342 = vld [vmem:[%s327 + $0x20] sm:$0x1]
      %v343 = vld [vmem:[%s1] sm:$0xf]
      %v344 = vld [vmem:[%s1 + $0x4] sm:$0xf]
      %v354 = vunpack.c.l.b16 %v334
      %v355 = vunpack.c.l.b16 %v335
      %v356 = vunpack.c.l.b16 %v336
      %v357 = vunpack.c.l.b16 %v337
      %v358 = vunpack.c.l.b16 %v338
      %v359 = vunpack.c.l.b16 %v339
      %v360 = vunpack.c.l.b16 %v340
      %v361 = vunpack.c.l.b16 %v341
      %v362 = vunpack.c.l.b16 %v342
      %v363 = vpack.c.b16 %v355, %v354
      %v364 = vpack.c.b16 %v357, %v356
      %v365 = vpack.c.b16 %v359, %v358
      %v366 = vpack.c.b16 %v361, %v360
      %v367 = vpack.c.b16 %v362, %v362
      %v370 = vunpack.c.l.b16 %v343
      %v371 = vunpack.c.l.b16 %v344
      %v372 = vpack.c.b16 %v371, %v370
      %vm373 = vcmask 121856
      %v375 = vsel %vm373, %v363, 0
      %v378 = vsel %vm373, %v364, 0
      %v381 = vsel %vm373, %v365, 0
      %v384 = vsel %vm373, %v366, 0
      %v387 = vsel %vm373, %v367, 0
      %vm389 = vcmask 1046528
      %vm390 = vcmask 1047552
      %v391 = vsel %vm389, 4294967295, 65535
      %v392 = vsel %vm390, %v391, 0
      %v394 = vand.u32 %v372, %v392
      %396 = vmatprep.subr.bf16.mxu0 0
      %397 = vmatpush1.bf16.msra.mxu0 %v394
      %398 = vmatprep.subr.bf16.mxu0 0
      %399 = vmatpush1.bf16.msra.mxu0 0
      %400 = vmatprep.subr.bf16.mxu0 0
      %401 = vmatpush1.bf16.msra.mxu0 0
      %402 = vmatprep.subr.bf16.mxu0 0
      %403 = vmatpush1.bf16.msra.mxu0 0
      %404 = vmatprep.subr.bf16.mxu0 0
      %405 = vmatpush1.bf16.msra.mxu0 0
      %406 = vmatprep.subr.bf16.mxu0 0
      %407 = vmatpush1.bf16.msra.mxu0 0
      %408 = vmatprep.subr.bf16.mxu0 0
      %409 = vmatpush1.bf16.msra.mxu0 0
      %410 = vmatprep.subr.bf16.mxu0 0
      %411 = vmatpush1.bf16.msra.mxu0 0
      %412 = vmatprep.subr.bf16.mxu0 0
      %413 = vmatpush1.bf16.msra.mxu0 0
      %414 = vmatprep.subr.bf16.mxu0 0
      %415 = vmatpush1.bf16.msra.mxu0 0
      %416 = vmatprep.subr.bf16.mxu0 0
      %417 = vmatpush1.bf16.msra.mxu0 0
      %418 = vmatprep.subr.bf16.mxu0 0
      %419 = vmatpush1.bf16.msra.mxu0 0
      %420 = vmatprep.subr.bf16.mxu0 0
      %421 = vmatpush1.bf16.msra.mxu0 0
      %422 = vmatprep.subr.bf16.mxu0 0
      %423 = vmatpush1.bf16.msra.mxu0 0
      %424 = vmatprep.subr.bf16.mxu0 0
      %425 = vmatpush1.bf16.msra.mxu0 0
      %426 = vmatprep.subr.bf16.mxu0 0
      %427 = vmatpush1.bf16.msra.mxu0 0
      %428 = vmatprep.mubr.bf16.mxu0 0
      %429 = vmatmul.mubr.bf16.gmra.mrb[0].mxu0 %v375
      %v430 = vpop.f32.mrb[0].mxu0
      %v431 = vadd.f32 0.0, %v430
      %v432 = vpop.f32.mrb[0].mxu0
      %v433 = vpop.f32.mrb[0].mxu0
      %v434 = vadd.f32 0.0, %v433
      %v435 = vpop.f32.mrb[0].mxu0
      %436 = vmatprep.mubr.bf16.mxu0 0
      %437 = vmatmul.mubr.bf16.gmra.mrb[0].mxu0 %v378
      %v438 = vpop.f32.mrb[0].mxu0
      %v439 = vadd.f32 0.0, %v438
      %v440 = vpop.f32.mrb[0].mxu0
      %v441 = vpop.f32.mrb[0].mxu0
      %v442 = vadd.f32 0.0, %v441
      %v443 = vpop.f32.mrb[0].mxu0
      %444 = vmatprep.mubr.bf16.mxu0 0
      %445 = vmatmul.mubr.bf16.gmra.mrb[0].mxu0 %v381
      %v446 = vpop.f32.mrb[0].mxu0
      %v447 = vadd.f32 0.0, %v446
      %v448 = vpop.f32.mrb[0].mxu0
      %v449 = vpop.f32.mrb[0].mxu0
      %v450 = vadd.f32 0.0, %v449
      %v451 = vpop.f32.mrb[0].mxu0
      %452 = vmatprep.mubr.bf16.mxu0 0
      %453 = vmatmul.mubr.bf16.gmra.mrb[0].mxu0 %v384
      %v454 = vpop.f32.mrb[0].mxu0
      %v455 = vadd.f32 0.0, %v454
      %v456 = vpop.f32.mrb[0].mxu0
      %v457 = vpop.f32.mrb[0].mxu0
      %v458 = vadd.f32 0.0, %v457
      %v459 = vpop.f32.mrb[0].mxu0
      %460 = vmatprep.mubr.bf16.mxu0 0
      %461 = vmatmul.mubr.bf16.gmra.mrb[0].mxu0 %v387
      %v462 = vpop.f32.mrb[0].mxu0
      %v463 = vadd.f32 0.0, %v462
      %v464 = vpop.f32.mrb[0].mxu0
      %v465 = vpop.f32.mrb[0].mxu0
      %v466 = vpop.f32.mrb[0].mxu0
      %467 = vdwg.mxu0
      %v468 = vld [vmem:[%s2] sm:$0x1]
      %v470 = vlaneseq
      %v471 = vshrl.u32 %v470, 7
      %v472 = vsub.s32 0, %v471
      %v473 = vrot.slane %v468, %v472
      %v475 = vmul.f32 %v431, %v473
      %v476 = vmul.f32 %v434, %v473
      %v477 = vmul.f32 %v439, %v473
      %v478 = vmul.f32 %v442, %v473
      %v479 = vmul.f32 %v447, %v473
      %v480 = vmul.f32 %v450, %v473
      %v481 = vmul.f32 %v455, %v473
      %v482 = vmul.f32 %v458, %v473
      %v483 = vmul.f32 %v463, %v473
      %v484 = vld [vmem:[%s3] sm:$0x1]
      %v486 = vlaneseq
      %v487 = vshrl.u32 %v486, 7
      %v488 = vsub.s32 0, %v487
      %v489 = vrot.slane %v484, %v488
      %v491 = vadd.f32 %v475, %v489
      %v492 = vadd.f32 %v476, %v489
      %v493 = vadd.f32 %v477, %v489
      %v494 = vadd.f32 %v478, %v489
      %v495 = vadd.f32 %v479, %v489
      %v496 = vadd.f32 %v480, %v489
      %v497 = vadd.f32 %v481, %v489
      %v498 = vadd.f32 %v482, %v489
      %v499 = vadd.f32 %v483, %v489
      %v500 = vmax.f32 %v491, 0.0
      %v501 = vmax.f32 %v492, 0.0
      %v502 = vmax.f32 %v493, 0.0
      %v503 = vmax.f32 %v494, 0.0
      %v504 = vmax.f32 %v495, 0.0
      %v505 = vmax.f32 %v496, 0.0
      %v506 = vmax.f32 %v497, 0.0
      %v507 = vmax.f32 %v498, 0.0
      %v508 = vmax.f32 %v499, 0.0
      %v518 = vrot.slane %v500, 1
      %v519 = vrot.slane %v501, 1
      %v520 = vsel %vm389, %v518, %v519
      %v521 = vrot.slane %v502, 1
      %v522 = vsel %vm389, %v519, %v521
      %v523 = vrot.slane %v503, 1
      %v524 = vsel %vm389, %v521, %v523
      %v525 = vrot.slane %v504, 1
      %v526 = vsel %vm389, %v523, %v525
      %v527 = vrot.slane %v505, 1
      %v528 = vsel %vm389, %v525, %v527
      %v529 = vrot.slane %v506, 1
      %v530 = vsel %vm389, %v527, %v529
      %v531 = vrot.slane %v507, 1
      %v532 = vsel %vm389, %v529, %v531
      %v533 = vrot.slane %v508, 1
      %v534 = vsel %vm389, %v531, %v533
      %v544 = vmax.f32 %v500, %v520
      %v545 = vmax.f32 %v501, %v522
      %v546 = vmax.f32 %v502, %v524
      %v547 = vmax.f32 %v503, %v526
      %v548 = vmax.f32 %v504, %v528
      %v549 = vmax.f32 %v505, %v530
      %v550 = vmax.f32 %v506, %v532
      %v551 = vmax.f32 %v507, %v534
      %v552 = vmax.f32 %v508, %v533
      %v553 = vld [vmem:[%s4] sm:$0xff]
      %v554 = vld [vmem:[%s4 + $0x8] sm:$0xff]
      %v555 = vld [vmem:[%s4 + $0x10] sm:$0xff]
      %v556 = vld [vmem:[%s4 + $0x18] sm:$0xff]
      %v557 = vld [vmem:[%s4 + $0x20] sm:$0x1f]
      %vm558 = vcmask 531456
      %v560 = vsel %vm558, %v553, 0
      %v563 = vsel %vm558, %v554, 0
      %v566 = vsel %vm558, %v555, 0
      %v569 = vsel %vm558, %v556, 0
      %v572 = vsel %vm558, %v557, 0
      %vm574 = vcmask 1040384
      %v576 = vsel %vm574, %v552, 0
      %578 = vmatprep.subr.mxu0 0.0
      %579 = vmatpush1.msra.mxu0 %v544
      %580 = vmatprep.subr.mxu0 0.0
      %581 = vmatpush1.msra.mxu0 %v545
      %582 = vmatprep.subr.mxu0 0.0
      %583 = vmatpush1.msra.mxu0 %v546
      %584 = vmatprep.subr.mxu0 0.0
      %585 = vmatpush1.msra.mxu0 %v547
      %586 = vmatprep.subr.mxu0 0.0
      %587 = vmatpush1.msra.mxu0 %v548
      %588 = vmatprep.subr.mxu0 0.0
      %589 = vmatpush1.msra.mxu0 %v549
      %590 = vmatprep.subr.mxu0 0.0
      %591 = vmatpush1.msra.mxu0 %v550
      %592 = vmatprep.subr.mxu0 0.0
      %593 = vmatpush1.msra.mxu0 %v551
      %594 = vmatprep.subr.mxu0 0.0
      %595 = vmatpush1.msra.mxu0 %v576
      %596 = vmatprep.subr.mxu0 0.0
      %597 = vmatpush1.msra.mxu0 0.0
      %598 = vmatprep.subr.mxu0 0.0
      %599 = vmatpush1.msra.mxu0 0.0
      %600 = vmatprep.subr.mxu0 0.0
      %601 = vmatpush1.msra.mxu0 0.0
      %602 = vmatprep.subr.mxu0 0.0
      %603 = vmatpush1.msra.mxu0 0.0
      %604 = vmatprep.subr.mxu0 0.0
      %605 = vmatpush1.msra.mxu0 0.0
      %606 = vmatprep.subr.mxu0 0.0
      %607 = vmatpush1.msra.mxu0 0.0
      %608 = vmatprep.subr.mxu0 0.0
      %609 = vmatpush1.msra.mxu0 0.0
      %610 = vmatprep.subr.mxu0 0.0
      %611 = vmatpush1.msra.mxu0 0.0
      %612 = vmatprep.subr.mxu0 0.0
      %613 = vmatpush1.msra.mxu0 0.0
      %614 = vmatprep.subr.mxu0 0.0
      %615 = vmatpush1.msra.mxu0 0.0
      %616 = vmatprep.subr.mxu0 0.0
      %617 = vmatpush1.msra.mxu0 0.0
      %618 = vmatprep.subr.mxu0 0.0
      %619 = vmatpush1.msra.mxu0 0.0
      %620 = vmatprep.subr.mxu0 0.0
      %621 = vmatpush1.msra.mxu0 0.0
      %622 = vmatprep.subr.mxu0 0.0
      %623 = vmatpush1.msra.mxu0 0.0
      %624 = vmatprep.subr.mxu0 0.0
      %625 = vmatpush1.msra.mxu0 0.0
      %626 = vmatprep.subr.mxu0 0.0
      %627 = vmatpush1.msra.mxu0 0.0
      %628 = vmatprep.subr.mxu0 0.0
      %629 = vmatpush1.msra.mxu0 0.0
      %630 = vmatprep.subr.mxu0 0.0
      %631 = vmatpush1.msra.mxu0 0.0
      %632 = vmatprep.subr.mxu0 0.0
      %633 = vmatpush1.msra.mxu0 0.0
      %634 = vmatprep.subr.mxu0 0.0
      %635 = vmatpush1.msra.mxu0 0.0
      %636 = vmatprep.subr.mxu0 0.0
      %637 = vmatpush1.msra.mxu0 0.0
      %638 = vmatprep.subr.mxu0 0.0
      %639 = vmatpush1.msra.mxu0 0.0
      %640 = vmatprep.subr.mxu0 0.0
      %641 = vmatpush1.msra.mxu0 0.0
      %642 = vmatprep.mubr.f32.mxu0 0.0
      %643 = vmatmul.mubr.f32.gmra.mrb[0].mxu0 %v560
      %v644 = vpop.f32.mrb[0].mxu0
      %v645 = vadd.f32 0.0, %v644
      %v646 = vpop.f32.mrb[0].mxu0
      %647 = vmatprep.mubr.f32.mxu0 0.0
      %648 = vmatmul.mubr.f32.gmra.mrb[0].mxu0 %v563
      %v649 = vpop.f32.mrb[0].mxu0
      %v650 = vadd.f32 0.0, %v649
      %v651 = vpop.f32.mrb[0].mxu0
      %652 = vmatprep.mubr.f32.mxu0 0.0
      %653 = vmatmul.mubr.f32.gmra.mrb[0].mxu0 %v566
      %v654 = vpop.f32.mrb[0].mxu0
      %v655 = vadd.f32 0.0, %v654
      %v656 = vpop.f32.mrb[0].mxu0
      %657 = vmatprep.mubr.f32.mxu0 0.0
      %658 = vmatmul.mubr.f32.gmra.mrb[0].mxu0 %v569
      %v659 = vpop.f32.mrb[0].mxu0
      %v660 = vadd.f32 0.0, %v659
      %v661 = vpop.f32.mrb[0].mxu0
      %662 = vmatprep.mubr.f32.mxu0 0.0
      %663 = vmatmul.mubr.f32.gmra.mrb[0].mxu0 %v572
      %v664 = vpop.f32.mrb[0].mxu0
      %v665 = vadd.f32 0.0, %v664
      %v666 = vpop.f32.mrb[0].mxu0
      %667 = vdwg.mxu0
      %v668 = vpack.c.bf16 %v650, %v645
      %v669 = vpack.c.bf16 %v660, %v655
      %v670 = vpack.c.bf16 %v665, %v665
      %v671 = vld [vmem:[%s5] sm:$0xf]
      %v672 = vld [vmem:[%s5 + $0x4] sm:$0xf]
      %v673 = vld [vmem:[%s5 + $0x8] sm:$0xf]
      %v674 = vld [vmem:[%s5 + $0xc] sm:$0xf]
      %v675 = vld [vmem:[%s5 + $0x10] sm:$0xf]
      %v676 = vld [vmem:[%s5 + $0x14] sm:$0xf]
      %v677 = vld [vmem:[%s5 + $0x18] sm:$0xf]
      %v678 = vld [vmem:[%s5 + $0x1c] sm:$0xf]
      %s679 = scalar_lea.vmem %s5, 32
      %v680 = vld [vmem:[%s679] sm:$0xf]
      %v681 = vld [vmem:[%s679 + $0x4] sm:$0xf]
      %v682 = vld [vmem:[%s679 + $0x8] sm:$0xf]
      %v683 = vld [vmem:[%s679 + $0xc] sm:$0xf]
      %v684 = vld [vmem:[%s679 + $0x10] sm:$0xf]
      %v685 = vld [vmem:[%s679 + $0x14] sm:$0xf]
      %v686 = vld [vmem:[%s679 + $0x18] sm:$0xf]
      %v687 = vld [vmem:[%s679 + $0x1c] sm:$0xf]
      %vm688 = vsmask.f32 7424
      %v690 = vshrl.u32 %v668, 16
      %v692 = vshll.u32 %v668, 16
      %v694 = vrot.slane %v692, 1
      %v695 = vor.u32 %v690, %v694
      %v697 = vshll.u32 %v669, 16
      %v699 = vrot.slane %v697, 1
      %v700 = vsel %vm688, %v695, %v699
      %v701 = vshrl.u32 %v669, 16
      %v703 = vor.u32 %v701, %v699
      %v705 = vshll.u32 %v670, 16
      %v707 = vrot.slane %v705, 1
      %v708 = vsel %vm688, %v703, %v707
      %v709 = vshrl.u32 %v670, 16
      %v711 = vor.u32 %v709, %v707
      %v720 = vunpack.c.l.b16 %v680
      %v721 = vunpack.c.l.b16 %v681
      %v722 = vunpack.c.l.b16 %v682
      %v723 = vunpack.c.l.b16 %v683
      %v724 = vunpack.c.l.b16 %v684
      %v725 = vunpack.c.l.b16 %v685
      %v726 = vunpack.c.l.b16 %v686
      %v727 = vunpack.c.l.b16 %v687
      %v728 = vpack.c.b16 %v721, %v720
      %v729 = vpack.c.b16 %v723, %v722
      %v730 = vpack.c.b16 %v725, %v724
      %v731 = vpack.c.b16 %v727, %v726
      %vm736 = vcmask 523264
      %v738 = vsel %vm736, %v700, 0
      %v741 = vsel %vm736, %v708, 0
      %v744 = vsel %vm736, %v711, 0
      %746 = vmatprep.subr.bf16.mxu0 0
      %747 = vmatpush1.bf16.msra.mxu0 %v728
      %748 = vmatprep.subr.bf16.mxu0 0
      %749 = vmatpush1.bf16.msra.mxu0 %v729
      %750 = vmatprep.subr.bf16.mxu0 0
      %751 = vmatpush1.bf16.msra.mxu0 %v730
      %752 = vmatprep.subr.bf16.mxu0 0
      %753 = vmatpush1.bf16.msra.mxu0 %v731
      %754 = vmatprep.subr.bf16.mxu0 0
      %755 = vmatpush1.bf16.msra.mxu0 0
      %756 = vmatprep.subr.bf16.mxu0 0
      %757 = vmatpush1.bf16.msra.mxu0 0
      %758 = vmatprep.subr.bf16.mxu0 0
      %759 = vmatpush1.bf16.msra.mxu0 0
      %760 = vmatprep.subr.bf16.mxu0 0
      %761 = vmatpush1.bf16.msra.mxu0 0
      %762 = vmatprep.subr.bf16.mxu0 0
      %763 = vmatpush1.bf16.msra.mxu0 0
      %764 = vmatprep.subr.bf16.mxu0 0
      %765 = vmatpush1.bf16.msra.mxu0 0
      %766 = vmatprep.subr.bf16.mxu0 0
      %767 = vmatpush1.bf16.msra.mxu0 0
      %768 = vmatprep.subr.bf16.mxu0 0
      %769 = vmatpush1.bf16.msra.mxu0 0
      %770 = vmatprep.subr.bf16.mxu0 0
      %771 = vmatpush1.bf16.msra.mxu0 0
      %772 = vmatprep.subr.bf16.mxu0 0
      %773 = vmatpush1.bf16.msra.mxu0 0
      %774 = vmatprep.subr.bf16.mxu0 0
      %775 = vmatpush1.bf16.msra.mxu0 0
      %776 = vmatprep.subr.bf16.mxu0 0
      %777 = vmatpush1.bf16.msra.mxu0 0
      %778 = vmatprep.mubr.bf16.mxu0 0
      %779 = vmatmul.mubr.bf16.gmra.mrb[0].mxu0 %v738
      %v780 = vpop.f32.mrb[0].mxu0
      %v781 = vadd.f32 0.0, %v780
      %v782 = vpop.f32.mrb[0].mxu0
      %v783 = vpop.f32.mrb[0].mxu0
      %v784 = vadd.f32 0.0, %v783
      %v785 = vpop.f32.mrb[0].mxu0
      %786 = vmatprep.mubr.bf16.mxu0 0
      %787 = vmatmul.mubr.bf16.gmra.mrb[0].mxu0 %v741
      %v788 = vpop.f32.mrb[0].mxu0
      %v789 = vadd.f32 0.0, %v788
      %v790 = vpop.f32.mrb[0].mxu0
      %v791 = vpop.f32.mrb[0].mxu0
      %v792 = vadd.f32 0.0, %v791
      %v793 = vpop.f32.mrb[0].mxu0
      %794 = vmatprep.mubr.bf16.mxu0 0
      %795 = vmatmul.mubr.bf16.gmra.mrb[0].mxu0 %v744
      %v796 = vpop.f32.mrb[0].mxu0
      %v797 = vadd.f32 0.0, %v796
      %v798 = vpop.f32.mrb[0].mxu0
      %v799 = vpop.f32.mrb[0].mxu0
      %v800 = vpop.f32.mrb[0].mxu0
      %801 = vdwg.mxu0
      %v810 = vunpack.c.l.b16 %v671
      %v811 = vunpack.c.l.b16 %v672
      %v812 = vunpack.c.l.b16 %v673
      %v813 = vunpack.c.l.b16 %v674
      %v814 = vunpack.c.l.b16 %v675
      %v815 = vunpack.c.l.b16 %v676
      %v816 = vunpack.c.l.b16 %v677
      %v817 = vunpack.c.l.b16 %v678
      %v818 = vpack.c.b16 %v811, %v810
      %v819 = vpack.c.b16 %v813, %v812
      %v820 = vpack.c.b16 %v815, %v814
      %v821 = vpack.c.b16 %v817, %v816
      %v826 = vsel %vm736, %v668, 0
      %v828 = vsel %vm736, %v669, 0
      %v830 = vsel %vm736, %v670, 0
      %832 = vmatprep.subr.bf16.mxu0 0
      %833 = vmatpush1.bf16.msra.mxu0 %v818
      %834 = vmatprep.subr.bf16.mxu0 0
      %835 = vmatpush1.bf16.msra.mxu0 %v819
      %836 = vmatprep.subr.bf16.mxu0 0
      %837 = vmatpush1.bf16.msra.mxu0 %v820
      %838 = vmatprep.subr.bf16.mxu0 0
      %839 = vmatpush1.bf16.msra.mxu0 %v821
      %840 = vmatprep.subr.bf16.mxu0 0
      %841 = vmatpush1.bf16.msra.mxu0 0
      %842 = vmatprep.subr.bf16.mxu0 0
      %843 = vmatpush1.bf16.msra.mxu0 0
      %844 = vmatprep.subr.bf16.mxu0 0
      %845 = vmatpush1.bf16.msra.mxu0 0
      %846 = vmatprep.subr.bf16.mxu0 0
      %847 = vmatpush1.bf16.msra.mxu0 0
      %848 = vmatprep.subr.bf16.mxu0 0
      %849 = vmatpush1.bf16.msra.mxu0 0
      %850 = vmatprep.subr.bf16.mxu0 0
      %851 = vmatpush1.bf16.msra.mxu0 0
      %852 = vmatprep.subr.bf16.mxu0 0
      %853 = vmatpush1.bf16.msra.mxu0 0
      %854 = vmatprep.subr.bf16.mxu0 0
      %855 = vmatpush1.bf16.msra.mxu0 0
      %856 = vmatprep.subr.bf16.mxu0 0
      %857 = vmatpush1.bf16.msra.mxu0 0
      %858 = vmatprep.subr.bf16.mxu0 0
      %859 = vmatpush1.bf16.msra.mxu0 0
      %860 = vmatprep.subr.bf16.mxu0 0
      %861 = vmatpush1.bf16.msra.mxu0 0
      %862 = vmatprep.subr.bf16.mxu0 0
      %863 = vmatpush1.bf16.msra.mxu0 0
      %864 = vmatprep.mubr.bf16.mxu0 0
      %865 = vmatmul.mubr.bf16.gmra.mrb[0].mxu0 %v826
      %v866 = vpop.f32.mrb[0].mxu0
      %v867 = vadd.f32 %v781, %v866
      %v868 = vpop.f32.mrb[0].mxu0
      %v869 = vpop.f32.mrb[0].mxu0
      %v870 = vadd.f32 %v784, %v869
      %v871 = vpop.f32.mrb[0].mxu0
      %872 = vmatprep.mubr.bf16.mxu0 0
      %873 = vmatmul.mubr.bf16.gmra.mrb[0].mxu0 %v828
      %v874 = vpop.f32.mrb[0].mxu0
      %v875 = vadd.f32 %v789, %v874
      %v876 = vpop.f32.mrb[0].mxu0
      %v877 = vpop.f32.mrb[0].mxu0
      %v878 = vadd.f32 %v792, %v877
      %v879 = vpop.f32.mrb[0].mxu0
      %880 = vmatprep.mubr.bf16.mxu0 0
      %881 = vmatmul.mubr.bf16.gmra.mrb[0].mxu0 %v830
      %v882 = vpop.f32.mrb[0].mxu0
      %v883 = vadd.f32 %v797, %v882
      %v884 = vpop.f32.mrb[0].mxu0
      %v885 = vpop.f32.mrb[0].mxu0
      %v886 = vpop.f32.mrb[0].mxu0
      %887 = vdwg.mxu0
      %s888 = scalar_lea.vmem %s5, 64
      %v889 = vld [vmem:[%s888] sm:$0xf]
      %v890 = vld [vmem:[%s888 + $0x4] sm:$0xf]
      %v891 = vld [vmem:[%s888 + $0x8] sm:$0xf]
      %v892 = vld [vmem:[%s888 + $0xc] sm:$0xf]
      %v893 = vld [vmem:[%s888 + $0x10] sm:$0xf]
      %v894 = vld [vmem:[%s888 + $0x14] sm:$0xf]
      %v895 = vld [vmem:[%s888 + $0x18] sm:$0xf]
      %v896 = vld [vmem:[%s888 + $0x1c] sm:$0xf]
      %vm900 = vcmask 1046528
      %v901 = vrot.slane %v668, 1
      %v902 = vrot.slane %v669, 1
      %v903 = vsel %vm900, %v901, %v902
      %v904 = vrot.slane %v670, 1
      %v905 = vsel %vm900, %v902, %v904
      %v914 = vunpack.c.l.b16 %v889
      %v915 = vunpack.c.l.b16 %v890
      %v916 = vunpack.c.l.b16 %v891
      %v917 = vunpack.c.l.b16 %v892
      %v918 = vunpack.c.l.b16 %v893
      %v919 = vunpack.c.l.b16 %v894
      %v920 = vunpack.c.l.b16 %v895
      %v921 = vunpack.c.l.b16 %v896
      %v922 = vpack.c.b16 %v915, %v914
      %v923 = vpack.c.b16 %v917, %v916
      %v924 = vpack.c.b16 %v919, %v918
      %v925 = vpack.c.b16 %v921, %v920
      %v931 = vsel %vm736, %v903, 0
      %v934 = vsel %vm736, %v905, 0
      %v937 = vsel %vm736, %v904, 0
      %939 = vmatprep.subr.bf16.mxu0 0
      %940 = vmatpush1.bf16.msra.mxu0 %v922
      %941 = vmatprep.subr.bf16.mxu0 0
      %942 = vmatpush1.bf16.msra.mxu0 %v923
      %943 = vmatprep.subr.bf16.mxu0 0
      %944 = vmatpush1.bf16.msra.mxu0 %v924
      %945 = vmatprep.subr.bf16.mxu0 0
      %946 = vmatpush1.bf16.msra.mxu0 %v925
      %947 = vmatprep.subr.bf16.mxu0 0
      %948 = vmatpush1.bf16.msra.mxu0 0
      %949 = vmatprep.subr.bf16.mxu0 0
      %950 = vmatpush1.bf16.msra.mxu0 0
      %951 = vmatprep.subr.bf16.mxu0 0
      %952 = vmatpush1.bf16.msra.mxu0 0
      %953 = vmatprep.subr.bf16.mxu0 0
      %954 = vmatpush1.bf16.msra.mxu0 0
      %955 = vmatprep.subr.bf16.mxu0 0
      %956 = vmatpush1.bf16.msra.mxu0 0
      %957 = vmatprep.subr.bf16.mxu0 0
      %958 = vmatpush1.bf16.msra.mxu0 0
      %959 = vmatprep.subr.bf16.mxu0 0
      %960 = vmatpush1.bf16.msra.mxu0 0
      %961 = vmatprep.subr.bf16.mxu0 0
      %962 = vmatpush1.bf16.msra.mxu0 0
      %963 = vmatprep.subr.bf16.mxu0 0
      %964 = vmatpush1.bf16.msra.mxu0 0
      %965 = vmatprep.subr.bf16.mxu0 0
      %966 = vmatpush1.bf16.msra.mxu0 0
      %967 = vmatprep.subr.bf16.mxu0 0
      %968 = vmatpush1.bf16.msra.mxu0 0
      %969 = vmatprep.subr.bf16.mxu0 0
      %970 = vmatpush1.bf16.msra.mxu0 0
      %971 = vmatprep.mubr.bf16.mxu0 0
      %972 = vmatmul.mubr.bf16.gmra.mrb[0].mxu0 %v931
      %v973 = vpop.f32.mrb[0].mxu0
      %v974 = vadd.f32 0.0, %v973
      %v975 = vpop.f32.mrb[0].mxu0
      %v976 = vpop.f32.mrb[0].mxu0
      %v977 = vadd.f32 0.0, %v976
      %v978 = vpop.f32.mrb[0].mxu0
      %979 = vmatprep.mubr.bf16.mxu0 0
      %980 = vmatmul.mubr.bf16.gmra.mrb[0].mxu0 %v934
      %v981 = vpop.f32.mrb[0].mxu0
      %v982 = vadd.f32 0.0, %v981
      %v983 = vpop.f32.mrb[0].mxu0
      %v984 = vpop.f32.mrb[0].mxu0
      %v985 = vadd.f32 0.0, %v984
      %v986 = vpop.f32.mrb[0].mxu0
      %987 = vmatprep.mubr.bf16.mxu0 0
      %988 = vmatmul.mubr.bf16.gmra.mrb[0].mxu0 %v937
      %v989 = vpop.f32.mrb[0].mxu0
      %v990 = vadd.f32 0.0, %v989
      %v991 = vpop.f32.mrb[0].mxu0
      %v992 = vpop.f32.mrb[0].mxu0
      %v993 = vpop.f32.mrb[0].mxu0
      %994 = vdwg.mxu0
      %v995 = vadd.f32 %v867, %v974
      %v996 = vadd.f32 %v870, %v977
      %v997 = vadd.f32 %v875, %v982
      %v998 = vadd.f32 %v878, %v985
      %v999 = vadd.f32 %v883, %v990
      %v1000 = vld [vmem:[%s6] sm:$0x1]
      %v1002 = vlaneseq
      %v1003 = vshrl.u32 %v1002, 7
      %v1004 = vsub.s32 0, %v1003
      %v1005 = vrot.slane %v1000, %v1004
      %v1007 = vmul.f32 %v995, %v1005
      %v1008 = vmul.f32 %v996, %v1005
      %v1009 = vmul.f32 %v997, %v1005
      %v1010 = vmul.f32 %v998, %v1005
      %v1011 = vmul.f32 %v999, %v1005
      %v1012 = vld [vmem:[%s7] sm:$0x1]
      %v1014 = vlaneseq
      %v1015 = vshrl.u32 %v1014, 7
      %v1016 = vsub.s32 0, %v1015
      %v1017 = vrot.slane %v1012, %v1016
      %v1019 = vadd.f32 %v1007, %v1017
      %v1020 = vadd.f32 %v1008, %v1017
      %v1021 = vadd.f32 %v1009, %v1017
      %v1022 = vadd.f32 %v1010, %v1017
      %v1023 = vadd.f32 %v1011, %v1017
      %v1024 = vmax.f32 %v1019, 0.0
      %v1025 = vmax.f32 %v1020, 0.0
      %v1026 = vmax.f32 %v1021, 0.0
      %v1027 = vmax.f32 %v1022, 0.0
      %v1028 = vmax.f32 %v1023, 0.0
      %v1034 = vrot.slane %v1024, 1
      %v1035 = vrot.slane %v1025, 1
      %v1036 = vsel %vm389, %v1034, %v1035
      %v1037 = vrot.slane %v1026, 1
      %v1038 = vsel %vm389, %v1035, %v1037
      %v1039 = vrot.slane %v1027, 1
      %v1040 = vsel %vm389, %v1037, %v1039
      %v1041 = vrot.slane %v1028, 1
      %v1042 = vsel %vm389, %v1039, %v1041
      %v1048 = vmax.f32 %v1024, %v1036
      %v1049 = vmax.f32 %v1025, %v1038
      %v1050 = vmax.f32 %v1026, %v1040
      %v1051 = vmax.f32 %v1027, %v1042
      %v1052 = vmax.f32 %v1028, %v1041
      %v1053 = vld [vmem:[%s8] sm:$0xff]
      %v1054 = vld [vmem:[%s8 + $0x8] sm:$0xff]
      %v1055 = vld [vmem:[%s8 + $0x10] sm:$0x1]
      %vm1056 = vcmask 269312
      %v1058 = vsel %vm1056, %v1053, 0
      %v1061 = vsel %vm1056, %v1054, 0
      %v1064 = vsel %vm1056, %v1055, 0
      %v1067 = vsel %vm574, %v1052, 0
      %1069 = vmatprep.subr.mxu0 0.0
      %1070 = vmatpush1.msra.mxu0 %v1048
      %1071 = vmatprep.subr.mxu0 0.0
      %1072 = vmatpush1.msra.mxu0 %v1049
      %1073 = vmatprep.subr.mxu0 0.0
      %1074 = vmatpush1.msra.mxu0 %v1050
      %1075 = vmatprep.subr.mxu0 0.0
      %1076 = vmatpush1.msra.mxu0 %v1051
      %1077 = vmatprep.subr.mxu0 0.0
      %1078 = vmatpush1.msra.mxu0 %v1067
      %1079 = vmatprep.subr.mxu0 0.0
      %1080 = vmatpush1.msra.mxu0 0.0
      %1081 = vmatprep.subr.mxu0 0.0
      %1082 = vmatpush1.msra.mxu0 0.0
      %1083 = vmatprep.subr.mxu0 0.0
      %1084 = vmatpush1.msra.mxu0 0.0
      %1085 = vmatprep.subr.mxu0 0.0
      %1086 = vmatpush1.msra.mxu0 0.0
      %1087 = vmatprep.subr.mxu0 0.0
      %1088 = vmatpush1.msra.mxu0 0.0
      %1089 = vmatprep.subr.mxu0 0.0
      %1090 = vmatpush1.msra.mxu0 0.0
      %1091 = vmatprep.subr.mxu0 0.0
      %1092 = vmatpush1.msra.mxu0 0.0
      %1093 = vmatprep.subr.mxu0 0.0
      %1094 = vmatpush1.msra.mxu0 0.0
      %1095 = vmatprep.subr.mxu0 0.0
      %1096 = vmatpush1.msra.mxu0 0.0
      %1097 = vmatprep.subr.mxu0 0.0
      %1098 = vmatpush1.msra.mxu0 0.0
      %1099 = vmatprep.subr.mxu0 0.0
      %1100 = vmatpush1.msra.mxu0 0.0
      %1101 = vmatprep.subr.mxu0 0.0
      %1102 = vmatpush1.msra.mxu0 0.0
      %1103 = vmatprep.subr.mxu0 0.0
      %1104 = vmatpush1.msra.mxu0 0.0
      %1105 = vmatprep.subr.mxu0 0.0
      %1106 = vmatpush1.msra.mxu0 0.0
      %1107 = vmatprep.subr.mxu0 0.0
      %1108 = vmatpush1.msra.mxu0 0.0
      %1109 = vmatprep.subr.mxu0 0.0
      %1110 = vmatpush1.msra.mxu0 0.0
      %1111 = vmatprep.subr.mxu0 0.0
      %1112 = vmatpush1.msra.mxu0 0.0
      %1113 = vmatprep.subr.mxu0 0.0
      %1114 = vmatpush1.msra.mxu0 0.0
      %1115 = vmatprep.subr.mxu0 0.0
      %1116 = vmatpush1.msra.mxu0 0.0
      %1117 = vmatprep.subr.mxu0 0.0
      %1118 = vmatpush1.msra.mxu0 0.0
      %1119 = vmatprep.subr.mxu0 0.0
      %1120 = vmatpush1.msra.mxu0 0.0
      %1121 = vmatprep.subr.mxu0 0.0
      %1122 = vmatpush1.msra.mxu0 0.0
      %1123 = vmatprep.subr.mxu0 0.0
      %1124 = vmatpush1.msra.mxu0 0.0
      %1125 = vmatprep.subr.mxu0 0.0
      %1126 = vmatpush1.msra.mxu0 0.0
      %1127 = vmatprep.subr.mxu0 0.0
      %1128 = vmatpush1.msra.mxu0 0.0
      %1129 = vmatprep.subr.mxu0 0.0
      %1130 = vmatpush1.msra.mxu0 0.0
      %1131 = vmatprep.subr.mxu0 0.0
      %1132 = vmatpush1.msra.mxu0 0.0
      %1133 = vmatprep.mubr.f32.mxu0 0.0
      %1134 = vmatmul.mubr.f32.gmra.mrb[0].mxu0 %v1058
      %v1135 = vpop.f32.mrb[0].mxu0
      %v1136 = vadd.f32 0.0, %v1135
      %v1137 = vpop.f32.mrb[0].mxu0
      %1138 = vmatprep.mubr.f32.mxu0 0.0
      %1139 = vmatmul.mubr.f32.gmra.mrb[0].mxu0 %v1061
      %v1140 = vpop.f32.mrb[0].mxu0
      %v1141 = vadd.f32 0.0, %v1140
      %v1142 = vpop.f32.mrb[0].mxu0
      %1143 = vmatprep.mubr.f32.mxu0 0.0
      %1144 = vmatmul.mubr.f32.gmra.mrb[0].mxu0 %v1064
      %v1145 = vpop.f32.mrb[0].mxu0
      %v1146 = vadd.f32 0.0, %v1145
      %v1147 = vpop.f32.mrb[0].mxu0
      %1148 = vdwg.mxu0
      %1149 = vst [vmem:[%s332] sm:$0xff] %v1136
      %1150 = vst [vmem:[%s332 + $0x8] sm:$0xff] %v1141
      %1151 = vst [vmem:[%s332 + $0x10] sm:$0x1] %v1146
      %p1152 = scmp.lt.s32.totalorder %s20, 1
      %s1153 = scalar_select %p1152, %s20, 1
      %s1154 = smul.addr %s1153, 3
      %s1155 = smul.addr %s1154, 8
      %s1156 = scalar_lea.vmem %s9, %s1155
      // Predicated region
      $region57: #{cardiovascular_predictor.5} parent=55 // pred_check
        %p1157 = pneg %p232
      $region58: #{cardiovascular_predictor.5} parent=55 // pred_check_branch
        %1159 = sbr.rel (%p1157) target = $region60
      $region59: #{cardiovascular_predictor.5} parent=55 // pred_region
        _
      $region60: #{cardiovascular_predictor.5} parent=55 // pred_fallthru
        _
    $region56: #{cardiovascular_predictor.5} parent=5 // pred_fallthru
      _
    %p1160 = scmp.le.s32.totalorder 2, %s15
    // Predicated region
    $region61: #{cardiovascular_predictor.5} parent=5 // pred_check
      %p1161 = pneg %p1160
    $region62: #{cardiovascular_predictor.5} parent=5 // pred_check_branch
      %1163 = sbr.rel (%p1161) target = $region64
    $region63: #{cardiovascular_predictor.5} parent=5 // pred_region
      %s1164 = ssub.s32 %s15, 2
      // Predicated region
      $region65: #{cardiovascular_predictor.5} parent=63 // pred_check
        %p1165 = pneg %p238
      $region66: #{cardiovascular_predictor.5} parent=63 // pred_check_branch
        %1167 = sbr.rel (%p1165) target = $region68
      $region67: #{cardiovascular_predictor.5} parent=63 // pred_region
        %p1168 = scmp.lt.s32.totalorder %s21, 1
        %s1169 = scalar_select %p1168, %s21, 1
        %s1170 = smul.addr %s1169, 3
        %s1171 = smul.addr %s1170, 8
        %s1172 = scalar_lea.vmem %s9, %s1171
      $region68: #{cardiovascular_predictor.5} parent=63 // pred_fallthru
        _
    $region64: #{cardiovascular_predictor.5} parent=5 // pred_fallthru
      _
  $region6: #{cardiovascular_predictor.5} parent=0 // loop_footer
    %s19 = sadd.s32 1, %s15
  $region7: #{cardiovascular_predictor.5} parent=0 // loop_footer_branch
    %14 = sbr.rel target = $region3
  $region8: #{cardiovascular_predictor.5} parent=0 // loop_exit
    _

// kernel: cardiovascular_predictor.9
$region0: #{cardiovascular_predictor.9}
  #allocation0 [shape = 'u32[]', space=smem, size = 0x4, offset = 0x4, fixed_abs, tag = 'smem constant byte address 0x4 - core index']
  #allocation1 [shape = 'u32[144,128]{1,0:T(1,128)}', space=vmem, size = 0x12000, scoped, tag = 'internal scratch']
  #allocation2 [shape = 'f32[1,1]{1,0:T(1,128)S(1)}', space=vmem, size = 0x200, scoped, tag = 'scoped memory for cardiovascular_predictor.9']
  %s0 = inlined_call_operand.vmem [shape: f32[2,128], index: 0, kind: input, shape index: {}]
  %s1 = inlined_call_operand.vmem [shape: f32[2,128], index: 1, kind: input, shape index: {}]
  %s2 = inlined_call_operand.vmem [shape: f32[2,1], index: 2, kind: input, shape index: {}]
  %s3 = inlined_call_operand.vmem [shape: bf16[128,128], index: 3, kind: input, shape index: {}]
  %s4 = inlined_call_operand.vmem [shape: bf16[128,128], index: 4, kind: input, shape index: {}]
  %s5 = inlined_call_operand.vmem [shape: f32[1,128], index: 5, kind: input, shape index: {}]
  %s6 = inlined_call_operand.vmem [shape: f32[1,128], index: 6, kind: input, shape index: {}]
  %s7 = inlined_call_operand.vmem [shape: bf16[128,64], index: 7, kind: input, shape index: {}]
  %s8 = inlined_call_operand.vmem [shape: f32[1,64], index: 8, kind: input, shape index: {}]
  %s9 = inlined_call_operand.vmem [shape: bf16[64,1], index: 9, kind: input, shape index: {}]
  %s10 = inlined_call_operand.<no memory space> [shape: f32[1,1], index: 10, kind: input, shape index: {}]
  %s11 = inlined_call_operand.vmem [shape: f32[2,1], index: 11, kind: output, shape index: {}]
  %s12 = sld [smem:[#allocation0]]
  $region54: #{cardiovascular_predictor.9} parent=0
    _
  %s14 = ssub.s32 1, %s12
  %s15 = scalar_select 0, %s14, %s12
  %v16 = vstv %s10
  %17 = vst [vmem:[#allocation2] sm:$0x1] %v16
  // Predicated region
  $region2: #{cardiovascular_predictor.9} parent=0 // pred_check
    _
  $region3: #{cardiovascular_predictor.9} parent=0 // pred_check_branch
    %19 = sbr.rel (0) target = $region5
  $region4: #{cardiovascular_predictor.9} parent=0 // pred_region
    _
  $region5: #{cardiovascular_predictor.9} parent=0 // pred_fallthru
    _
  // Predicated region
  $region6: #{cardiovascular_predictor.9} parent=0 // pred_check
    _
  $region7: #{cardiovascular_predictor.9} parent=0 // pred_check_branch
    %21 = sbr.rel (0) target = $region9
  $region8: #{cardiovascular_predictor.9} parent=0 // pred_region
    _
  $region9: #{cardiovascular_predictor.9} parent=0 // pred_fallthru
    _
  // Predicated region
  $region10: #{cardiovascular_predictor.9} parent=0 // pred_check
    _
  $region11: #{cardiovascular_predictor.9} parent=0 // pred_check_branch
    %23 = sbr.rel (0) target = $region13
  $region12: #{cardiovascular_predictor.9} parent=0 // pred_region
    _
  $region13: #{cardiovascular_predictor.9} parent=0 // pred_fallthru
    _
  // Predicated region
  $region14: #{cardiovascular_predictor.9} parent=0 // pred_check
    _
  $region15: #{cardiovascular_predictor.9} parent=0 // pred_check_branch
    %25 = sbr.rel (0) target = $region17
  $region16: #{cardiovascular_predictor.9} parent=0 // pred_region
    _
  $region17: #{cardiovascular_predictor.9} parent=0 // pred_fallthru
    _
  // Predicated region
  $region18: #{cardiovascular_predictor.9} parent=0 // pred_check
    _
  $region19: #{cardiovascular_predictor.9} parent=0 // pred_check_branch
    %27 = sbr.rel (0) target = $region21
  $region20: #{cardiovascular_predictor.9} parent=0 // pred_region
    _
  $region21: #{cardiovascular_predictor.9} parent=0 // pred_fallthru
    _
  // Predicated region
  $region22: #{cardiovascular_predictor.9} parent=0 // pred_check
    _
  $region23: #{cardiovascular_predictor.9} parent=0 // pred_check_branch
    %29 = sbr.rel (0) target = $region25
  $region24: #{cardiovascular_predictor.9} parent=0 // pred_region
    _
  $region25: #{cardiovascular_predictor.9} parent=0 // pred_fallthru
    _
  // Predicated region
  $region26: #{cardiovascular_predictor.9} parent=0 // pred_check
    _
  $region27: #{cardiovascular_predictor.9} parent=0 // pred_check_branch
    %31 = sbr.rel (0) target = $region29
  $region28: #{cardiovascular_predictor.9} parent=0 // pred_region
    _
  $region29: #{cardiovascular_predictor.9} parent=0 // pred_fallthru
    _
  // Predicated region
  $region30: #{cardiovascular_predictor.9} parent=0 // pred_check
    _
  $region31: #{cardiovascular_predictor.9} parent=0 // pred_check_branch
    %33 = sbr.rel (0) target = $region33
  $region32: #{cardiovascular_predictor.9} parent=0 // pred_region
    _
  $region33: #{cardiovascular_predictor.9} parent=0 // pred_fallthru
    _
  // Predicated region
  $region34: #{cardiovascular_predictor.9} parent=0 // pred_check
    _
  $region35: #{cardiovascular_predictor.9} parent=0 // pred_check_branch
    %35 = sbr.rel (0) target = $region37
  $region36: #{cardiovascular_predictor.9} parent=0 // pred_region
    _
  $region37: #{cardiovascular_predictor.9} parent=0 // pred_fallthru
    _
  // Predicated region
  $region38: #{cardiovascular_predictor.9} parent=0 // pred_check
    _
  $region39: #{cardiovascular_predictor.9} parent=0 // pred_check_branch
    %37 = sbr.rel (0) target = $region41
  $region40: #{cardiovascular_predictor.9} parent=0 // pred_region
    _
  $region41: #{cardiovascular_predictor.9} parent=0 // pred_fallthru
    _
  // Predicated region
  $region42: #{cardiovascular_predictor.9} parent=0 // pred_check
    _
  $region43: #{cardiovascular_predictor.9} parent=0 // pred_check_branch
    %39 = sbr.rel (0) target = $region45
  $region44: #{cardiovascular_predictor.9} parent=0 // pred_region
    _
  $region45: #{cardiovascular_predictor.9} parent=0 // pred_fallthru
    _
  %v41 = vld [vmem:[%s0] sm:$0x3]
  %v42 = vpack.c.bf16 %v41, %v41
  %v43 = vld [vmem:[%s1] sm:$0x3]
  %v44 = vpack.c.bf16 %v43, %v43
  %v45 = vld [vmem:[%s2] sm:$0x3]
  %v46 = vld [vmem:[%s3] sm:$0xf]
  %v47 = vld [vmem:[%s3 + $0x4] sm:$0xf]
  %v48 = vld [vmem:[%s3 + $0x8] sm:$0xf]
  %v49 = vld [vmem:[%s3 + $0xc] sm:$0xf]
  %v50 = vld [vmem:[%s3 + $0x10] sm:$0xf]
  %v51 = vld [vmem:[%s3 + $0x14] sm:$0xf]
  %v52 = vld [vmem:[%s3 + $0x18] sm:$0xf]
  %v53 = vld [vmem:[%s3 + $0x1c] sm:$0xf]
  %v54 = vld [vmem:[%s3 + $0x20] sm:$0xf]
  %v55 = vld [vmem:[%s3 + $0x24] sm:$0xf]
  %v56 = vld [vmem:[%s3 + $0x28] sm:$0xf]
  %v57 = vld [vmem:[%s3 + $0x2c] sm:$0xf]
  %v58 = vld [vmem:[%s3 + $0x30] sm:$0xf]
  %v59 = vld [vmem:[%s3 + $0x34] sm:$0xf]
  %v60 = vld [vmem:[%s3 + $0x38] sm:$0xf]
  %v61 = vld [vmem:[%s3 + $0x3c] sm:$0xf]
  %v62 = vld [vmem:[%s4] sm:$0xf]
  %v63 = vld [vmem:[%s4 + $0x4] sm:$0xf]
  %v64 = vld [vmem:[%s4 + $0x8] sm:$0xf]
  %v65 = vld [vmem:[%s4 + $0xc] sm:$0xf]
  %v66 = vld [vmem:[%s4 + $0x10] sm:$0xf]
  %v67 = vld [vmem:[%s4 + $0x14] sm:$0xf]
  %v68 = vld [vmem:[%s4 + $0x18] sm:$0xf]
  %v69 = vld [vmem:[%s4 + $0x1c] sm:$0xf]
  %v70 = vld [vmem:[%s4 + $0x20] sm:$0xf]
  %v71 = vld [vmem:[%s4 + $0x24] sm:$0xf]
  %v72 = vld [vmem:[%s4 + $0x28] sm:$0xf]
  %v73 = vld [vmem:[%s4 + $0x2c] sm:$0xf]
  %v74 = vld [vmem:[%s4 + $0x30] sm:$0xf]
  %v75 = vld [vmem:[%s4 + $0x34] sm:$0xf]
  %v76 = vld [vmem:[%s4 + $0x38] sm:$0xf]
  %v77 = vld [vmem:[%s4 + $0x3c] sm:$0xf]
  %v94 = vunpack.c.l.b16 %v62
  %v95 = vunpack.c.l.b16 %v63
  %v96 = vunpack.c.l.b16 %v64
  %v97 = vunpack.c.l.b16 %v65
  %v98 = vunpack.c.l.b16 %v66
  %v99 = vunpack.c.l.b16 %v67
  %v100 = vunpack.c.l.b16 %v68
  %v101 = vunpack.c.l.b16 %v69
  %v102 = vunpack.c.l.b16 %v70
  %v103 = vunpack.c.l.b16 %v71
  %v104 = vunpack.c.l.b16 %v72
  %v105 = vunpack.c.l.b16 %v73
  %v106 = vunpack.c.l.b16 %v74
  %v107 = vunpack.c.l.b16 %v75
  %v108 = vunpack.c.l.b16 %v76
  %v109 = vunpack.c.l.b16 %v77
  %v110 = vpack.c.b16 %v95, %v94
  %v111 = vpack.c.b16 %v97, %v96
  %v112 = vpack.c.b16 %v99, %v98
  %v113 = vpack.c.b16 %v101, %v100
  %v114 = vpack.c.b16 %v103, %v102
  %v115 = vpack.c.b16 %v105, %v104
  %v116 = vpack.c.b16 %v107, %v106
  %v117 = vpack.c.b16 %v109, %v108
  %126 = vmatprep.subr.bf16.mxu0 0
  %127 = vmatpush1.bf16.msra.mxu0 %v110
  %128 = vmatprep.subr.bf16.mxu0 0
  %129 = vmatpush1.bf16.msra.mxu0 %v111
  %130 = vmatprep.subr.bf16.mxu0 0
  %131 = vmatpush1.bf16.msra.mxu0 %v112
  %132 = vmatprep.subr.bf16.mxu0 0
  %133 = vmatpush1.bf16.msra.mxu0 %v113
  %134 = vmatprep.subr.bf16.mxu0 0
  %135 = vmatpush1.bf16.msra.mxu0 %v114
  %136 = vmatprep.subr.bf16.mxu0 0
  %137 = vmatpush1.bf16.msra.mxu0 %v115
  %138 = vmatprep.subr.bf16.mxu0 0
  %139 = vmatpush1.bf16.msra.mxu0 %v116
  %140 = vmatprep.subr.bf16.mxu0 0
  %141 = vmatpush1.bf16.msra.mxu0 %v117
  %142 = vmatprep.subr.bf16.mxu0 0
  %143 = vmatpush1.bf16.msra.mxu0 0
  %144 = vmatprep.subr.bf16.mxu0 0
  %145 = vmatpush1.bf16.msra.mxu0 0
  %146 = vmatprep.subr.bf16.mxu0 0
  %147 = vmatpush1.bf16.msra.mxu0 0
  %148 = vmatprep.subr.bf16.mxu0 0
  %149 = vmatpush1.bf16.msra.mxu0 0
  %150 = vmatprep.subr.bf16.mxu0 0
  %151 = vmatpush1.bf16.msra.mxu0 0
  %152 = vmatprep.subr.bf16.mxu0 0
  %153 = vmatpush1.bf16.msra.mxu0 0
  %154 = vmatprep.subr.bf16.mxu0 0
  %155 = vmatpush1.bf16.msra.mxu0 0
  %156 = vmatprep.subr.bf16.mxu0 0
  %157 = vmatpush1.bf16.msra.mxu0 0
  %158 = vmatprep.mubr.bf16.mxu0 0
  %159 = vmatmul.mubr.bf16.gmra.mrb[0].mxu0 %v44
  %v160 = vpop.f32.mrb[0].mxu0
  %v161 = vadd.f32 0.0, %v160
  %v162 = vpop.f32.mrb[0].mxu0
  %v163 = vpop.f32.mrb[0].mxu0
  %v164 = vpop.f32.mrb[0].mxu0
  %165 = vdwg.mxu0
  %v182 = vunpack.c.l.b16 %v46
  %v183 = vunpack.c.l.b16 %v47
  %v184 = vunpack.c.l.b16 %v48
  %v185 = vunpack.c.l.b16 %v49
  %v186 = vunpack.c.l.b16 %v50
  %v187 = vunpack.c.l.b16 %v51
  %v188 = vunpack.c.l.b16 %v52
  %v189 = vunpack.c.l.b16 %v53
  %v190 = vunpack.c.l.b16 %v54
  %v191 = vunpack.c.l.b16 %v55
  %v192 = vunpack.c.l.b16 %v56
  %v193 = vunpack.c.l.b16 %v57
  %v194 = vunpack.c.l.b16 %v58
  %v195 = vunpack.c.l.b16 %v59
  %v196 = vunpack.c.l.b16 %v60
  %v197 = vunpack.c.l.b16 %v61
  %v198 = vpack.c.b16 %v183, %v182
  %v199 = vpack.c.b16 %v185, %v184
  %v200 = vpack.c.b16 %v187, %v186
  %v201 = vpack.c.b16 %v189, %v188
  %v202 = vpack.c.b16 %v191, %v190
  %v203 = vpack.c.b16 %v193, %v192
  %v204 = vpack.c.b16 %v195, %v194
  %v205 = vpack.c.b16 %v197, %v196
  %214 = vmatprep.subr.bf16.mxu0 0
  %215 = vmatpush1.bf16.msra.mxu0 %v198
  %216 = vmatprep.subr.bf16.mxu0 0
  %217 = vmatpush1.bf16.msra.mxu0 %v199
  %218 = vmatprep.subr.bf16.mxu0 0
  %219 = vmatpush1.bf16.msra.mxu0 %v200
  %220 = vmatprep.subr.bf16.mxu0 0
  %221 = vmatpush1.bf16.msra.mxu0 %v201
  %222 = vmatprep.subr.bf16.mxu0 0
  %223 = vmatpush1.bf16.msra.mxu0 %v202
  %224 = vmatprep.subr.bf16.mxu0 0
  %225 = vmatpush1.bf16.msra.mxu0 %v203
  %226 = vmatprep.subr.bf16.mxu0 0
  %227 = vmatpush1.bf16.msra.mxu0 %v204
  %228 = vmatprep.subr.bf16.mxu0 0
  %229 = vmatpush1.bf16.msra.mxu0 %v205
  %230 = vmatprep.subr.bf16.mxu0 0
  %231 = vmatpush1.bf16.msra.mxu0 0
  %232 = vmatprep.subr.bf16.mxu0 0
  %233 = vmatpush1.bf16.msra.mxu0 0
  %234 = vmatprep.subr.bf16.mxu0 0
  %235 = vmatpush1.bf16.msra.mxu0 0
  %236 = vmatprep.subr.bf16.mxu0 0
  %237 = vmatpush1.bf16.msra.mxu0 0
  %238 = vmatprep.subr.bf16.mxu0 0
  %239 = vmatpush1.bf16.msra.mxu0 0
  %240 = vmatprep.subr.bf16.mxu0 0
  %241 = vmatpush1.bf16.msra.mxu0 0
  %242 = vmatprep.subr.bf16.mxu0 0
  %243 = vmatpush1.bf16.msra.mxu0 0
  %244 = vmatprep.subr.bf16.mxu0 0
  %245 = vmatpush1.bf16.msra.mxu0 0
  %246 = vmatprep.mubr.bf16.mxu0 0
  %247 = vmatmul.mubr.bf16.gmra.mrb[0].mxu0 %v42
  %v248 = vpop.f32.mrb[0].mxu0
  %v249 = vadd.f32 %v161, %v248
  %v250 = vpop.f32.mrb[0].mxu0
  %v251 = vpop.f32.mrb[0].mxu0
  %v252 = vpop.f32.mrb[0].mxu0
  %253 = vdwg.mxu0
  %v254 = vld [vmem:[%s5] sm:$0x1]
  %256 = vset.pattern.permute.xlu0 0
  %257 = vperm.xlu0 %256, %v45
  %v258 = vpop.permute.xlu0 %257
  %v261 = vlaneseq
  %v262 = vshrl.u32 %v261, 7
  %v263 = vsub.s32 0, %v262
  %v264 = vrot.slane %v254, %v263
  %v266 = vmul.f32 %v258, %v264
  %v267 = vadd.f32 %v249, %v266
  %v268 = vld [vmem:[%s6] sm:$0x1]
  %v270 = vlaneseq
  %v271 = vshrl.u32 %v270, 7
  %v272 = vsub.s32 0, %v271
  %v273 = vrot.slane %v268, %v272
  %v275 = vadd.f32 %v267, %v273
  %v276 = vmax.f32 %v275, 0.0
  %v277 = vpack.c.bf16 %v276, %v276
  %v278 = vld [vmem:[%s7] sm:$0xf]
  %v279 = vld [vmem:[%s7 + $0x4] sm:$0xf]
  %v280 = vld [vmem:[%s7 + $0x8] sm:$0xf]
  %v281 = vld [vmem:[%s7 + $0xc] sm:$0xf]
  %v282 = vld [vmem:[%s7 + $0x10] sm:$0xf]
  %v283 = vld [vmem:[%s7 + $0x14] sm:$0xf]
  %v284 = vld [vmem:[%s7 + $0x18] sm:$0xf]
  %v285 = vld [vmem:[%s7 + $0x1c] sm:$0xf]
  %v286 = vld [vmem:[%s7 + $0x20] sm:$0xf]
  %v287 = vld [vmem:[%s7 + $0x24] sm:$0xf]
  %v288 = vld [vmem:[%s7 + $0x28] sm:$0xf]
  %v289 = vld [vmem:[%s7 + $0x2c] sm:$0xf]
  %v290 = vld [vmem:[%s7 + $0x30] sm:$0xf]
  %v291 = vld [vmem:[%s7 + $0x34] sm:$0xf]
  %v292 = vld [vmem:[%s7 + $0x38] sm:$0xf]
  %v293 = vld [vmem:[%s7 + $0x3c] sm:$0xf]
  %v294 = vld [vmem:[%s8] sm:$0x1]
  %v296 = vlaneseq
  %v297 = vshrl.u32 %v296, 7
  %v298 = vsub.s32 0, %v297
  %v299 = vrot.slane %v294, %v298
  %v317 = vunpack.c.l.b16 %v278
  %v318 = vunpack.c.l.b16 %v279
  %v319 = vunpack.c.l.b16 %v280
  %v320 = vunpack.c.l.b16 %v281
  %v321 = vunpack.c.l.b16 %v282
  %v322 = vunpack.c.l.b16 %v283
  %v323 = vunpack.c.l.b16 %v284
  %v324 = vunpack.c.l.b16 %v285
  %v325 = vunpack.c.l.b16 %v286
  %v326 = vunpack.c.l.b16 %v287
  %v327 = vunpack.c.l.b16 %v288
  %v328 = vunpack.c.l.b16 %v289
  %v329 = vunpack.c.l.b16 %v290
  %v330 = vunpack.c.l.b16 %v291
  %v331 = vunpack.c.l.b16 %v292
  %v332 = vunpack.c.l.b16 %v293
  %v333 = vpack.c.b16 %v318, %v317
  %v334 = vpack.c.b16 %v320, %v319
  %v335 = vpack.c.b16 %v322, %v321
  %v336 = vpack.c.b16 %v324, %v323
  %v337 = vpack.c.b16 %v326, %v325
  %v338 = vpack.c.b16 %v328, %v327
  %v339 = vpack.c.b16 %v330, %v329
  %v340 = vpack.c.b16 %v332, %v331
  %349 = vmatprep.subr.bf16.mxu0 0
  %350 = vmatpush1.bf16.msra.mxu0 %v333
  %351 = vmatprep.subr.bf16.mxu0 0
  %352 = vmatpush1.bf16.msra.mxu0 %v334
  %353 = vmatprep.subr.bf16.mxu0 0
  %354 = vmatpush1.bf16.msra.mxu0 %v335
  %355 = vmatprep.subr.bf16.mxu0 0
  %356 = vmatpush1.bf16.msra.mxu0 %v336
  %357 = vmatprep.subr.bf16.mxu0 0
  %358 = vmatpush1.bf16.msra.mxu0 %v337
  %359 = vmatprep.subr.bf16.mxu0 0
  %360 = vmatpush1.bf16.msra.mxu0 %v338
  %361 = vmatprep.subr.bf16.mxu0 0
  %362 = vmatpush1.bf16.msra.mxu0 %v339
  %363 = vmatprep.subr.bf16.mxu0 0
  %364 = vmatpush1.bf16.msra.mxu0 %v340
  %365 = vmatprep.subr.bf16.mxu0 0
  %366 = vmatpush1.bf16.msra.mxu0 0
  %367 = vmatprep.subr.bf16.mxu0 0
  %368 = vmatpush1.bf16.msra.mxu0 0
  %369 = vmatprep.subr.bf16.mxu0 0
  %370 = vmatpush1.bf16.msra.mxu0 0
  %371 = vmatprep.subr.bf16.mxu0 0
  %372 = vmatpush1.bf16.msra.mxu0 0
  %373 = vmatprep.subr.bf16.mxu0 0
  %374 = vmatpush1.bf16.msra.mxu0 0
  %375 = vmatprep.subr.bf16.mxu0 0
  %376 = vmatpush1.bf16.msra.mxu0 0
  %377 = vmatprep.subr.bf16.mxu0 0
  %378 = vmatpush1.bf16.msra.mxu0 0
  %379 = vmatprep.subr.bf16.mxu0 0
  %380 = vmatpush1.bf16.msra.mxu0 0
  %381 = vmatprep.mubr.bf16.mxu0 0
  %382 = vmatmul.mubr.bf16.gmra.mrb[0].mxu0 %v277
  %v383 = vpop.f32.mrb[0].mxu0
  %v384 = vadd.f32 %v299, %v383
  %v385 = vpop.f32.mrb[0].mxu0
  %v386 = vpop.f32.mrb[0].mxu0
  %v387 = vpop.f32.mrb[0].mxu0
  %388 = vdwg.mxu0
  %v389 = vmax.f32 %v384, 0.0
  %v390 = vpack.c.bf16 %v389, %v389
  %v391 = vld [vmem:[%s9] sm:$0xf]
  %v392 = vld [vmem:[%s9 + $0x4] sm:$0xf]
  %v393 = vld [vmem:[%s9 + $0x8] sm:$0xf]
  %v394 = vld [vmem:[%s9 + $0xc] sm:$0xf]
  %v395 = vld [vmem:[%s9 + $0x10] sm:$0xf]
  %v396 = vld [vmem:[%s9 + $0x14] sm:$0xf]
  %v397 = vld [vmem:[%s9 + $0x18] sm:$0xf]
  %v398 = vld [vmem:[%s9 + $0x1c] sm:$0xf]
  %v399 = vld [vmem:[#allocation2] sm:$0x1]
  %v401 = vlaneseq
  %v402 = vshrl.u32 %v401, 7
  %v403 = vsub.s32 0, %v402
  %v404 = vrot.slane %v399, %v403
  %v414 = vunpack.c.l.b16 %v391
  %v415 = vunpack.c.l.b16 %v392
  %v416 = vunpack.c.l.b16 %v393
  %v417 = vunpack.c.l.b16 %v394
  %v418 = vunpack.c.l.b16 %v395
  %v419 = vunpack.c.l.b16 %v396
  %v420 = vunpack.c.l.b16 %v397
  %v421 = vunpack.c.l.b16 %v398
  %v422 = vpack.c.b16 %v415, %v414
  %v423 = vpack.c.b16 %v417, %v416
  %v424 = vpack.c.b16 %v419, %v418
  %v425 = vpack.c.b16 %v421, %v420
  %vm430 = vcmask 523264
  %v432 = vsel %vm430, %v390, 0
  %434 = vmatprep.subr.bf16.mxu0 0
  %435 = vmatpush1.bf16.msra.mxu0 %v422
  %436 = vmatprep.subr.bf16.mxu0 0
  %437 = vmatpush1.bf16.msra.mxu0 %v423
  %438 = vmatprep.subr.bf16.mxu0 0
  %439 = vmatpush1.bf16.msra.mxu0 %v424
  %440 = vmatprep.subr.bf16.mxu0 0
  %441 = vmatpush1.bf16.msra.mxu0 %v425
  %442 = vmatprep.subr.bf16.mxu0 0
  %443 = vmatpush1.bf16.msra.mxu0 0
  %444 = vmatprep.subr.bf16.mxu0 0
  %445 = vmatpush1.bf16.msra.mxu0 0
  %446 = vmatprep.subr.bf16.mxu0 0
  %447 = vmatpush1.bf16.msra.mxu0 0
  %448 = vmatprep.subr.bf16.mxu0 0
  %449 = vmatpush1.bf16.msra.mxu0 0
  %450 = vmatprep.subr.bf16.mxu0 0
  %451 = vmatpush1.bf16.msra.mxu0 0
  %452 = vmatprep.subr.bf16.mxu0 0
  %453 = vmatpush1.bf16.msra.mxu0 0
  %454 = vmatprep.subr.bf16.mxu0 0
  %455 = vmatpush1.bf16.msra.mxu0 0
  %456 = vmatprep.subr.bf16.mxu0 0
  %457 = vmatpush1.bf16.msra.mxu0 0
  %458 = vmatprep.subr.bf16.mxu0 0
  %459 = vmatpush1.bf16.msra.mxu0 0
  %460 = vmatprep.subr.bf16.mxu0 0
  %461 = vmatpush1.bf16.msra.mxu0 0
  %462 = vmatprep.subr.bf16.mxu0 0
  %463 = vmatpush1.bf16.msra.mxu0 0
  %464 = vmatprep.subr.bf16.mxu0 0
  %465 = vmatpush1.bf16.msra.mxu0 0
  %466 = vmatprep.mubr.bf16.mxu0 0
  %467 = vmatmul.mubr.bf16.gmra.mrb[0].mxu0 %v432
  %v468 = vpop.f32.mrb[0].mxu0
  %v469 = vadd.f32 %v404, %v468
  %v470 = vpop.f32.mrb[0].mxu0
  %v471 = vpop.f32.mrb[0].mxu0
  %v472 = vpop.f32.mrb[0].mxu0
  %473 = vdwg.mxu0
  %vm474 = vcmask 1024
  %475 = vst.msk [vmem:[%s11] sm:$0x3] %vm474, %v469
  // Predicated region
  $region46: #{cardiovascular_predictor.9} parent=0 // pred_check
    _
  $region47: #{cardiovascular_predictor.9} parent=0 // pred_check_branch
    %477 = sbr.rel (0) target = $region49
  $region48: #{cardiovascular_predictor.9} parent=0 // pred_region
    _
  $region49: #{cardiovascular_predictor.9} parent=0 // pred_fallthru
    _
  // Predicated region
  $region50: #{cardiovascular_predictor.9} parent=0 // pred_check
    _
  $region51: #{cardiovascular_predictor.9} parent=0 // pred_check_branch
    %479 = sbr.rel (0) target = $region53
  $region52: #{cardiovascular_predictor.9} parent=0 // pred_region
    _
  $region53: #{cardiovascular_predictor.9} parent=0 // pred_fallthru
    _

// kernel: cardiovascular_predictor.8
$region0: #{cardiovascular_predictor.8}
  #allocation0 [shape = 'u32[]', space=smem, size = 0x4, offset = 0x4, fixed_abs, tag = 'smem constant byte address 0x4 - core index']
  #allocation1 [shape = 'u32[144,128]{1,0:T(1,128)}', space=vmem, size = 0x12000, scoped, tag = 'internal scratch']
  %s0 = inlined_call_operand.vmem [shape: f32[2,17,128], index: 0, kind: input, shape index: {}]
  %s1 = inlined_call_operand.vmem [shape: f32[2,17,128], index: 1, kind: input, shape index: {}]
  %s2 = inlined_call_operand.vmem [shape: bf16[2,128,64], index: 2, kind: input, shape index: {}]
  %s3 = inlined_call_operand.vmem [shape: bf16[2,128,64], index: 3, kind: input, shape index: {}]
  %s4 = inlined_call_operand.vmem [shape: bf16[2,128,64], index: 4, kind: input, shape index: {}]
  %s5 = inlined_call_operand.vmem [shape: f32[2,1,64], index: 5, kind: input, shape index: {}]
  %s6 = inlined_call_operand.vmem [shape: f32[2,1,64], index: 6, kind: input, shape index: {}]
  %s7 = inlined_call_operand.vmem [shape: f32[2,1,64], index: 7, kind: input, shape index: {}]
  %s8 = inlined_call_operand.vmem [shape: bf16[2,64,128], index: 8, kind: input, shape index: {}]
  %s9 = inlined_call_operand.vmem [shape: f32[1,128], index: 9, kind: input, shape index: {}]
  %s10 = inlined_call_operand.vmem [shape: bf16[2,128,64], index: 10, kind: input, shape index: {}]
  %s11 = inlined_call_operand.vmem [shape: bf16[2,128,64], index: 11, kind: input, shape index: {}]
  %s12 = inlined_call_operand.vmem [shape: bf16[2,128,64], index: 12, kind: input, shape index: {}]
  %s13 = inlined_call_operand.vmem [shape: f32[2,1,64], index: 13, kind: input, shape index: {}]
  %s14 = inlined_call_operand.vmem [shape: f32[2,1,64], index: 14, kind: input, shape index: {}]
  %s15 = inlined_call_operand.vmem [shape: f32[2,1,64], index: 15, kind: input, shape index: {}]
  %s16 = inlined_call_operand.vmem [shape: bf16[2,64,128], index: 16, kind: input, shape index: {}]
  %s17 = inlined_call_operand.vmem [shape: f32[1,128], index: 17, kind: input, shape index: {}]
  %s18 = inlined_call_operand.vmem [shape: f32[1,128], index: 18, kind: input, shape index: {}]
  %s19 = inlined_call_operand.vmem [shape: f32[1,128], index: 19, kind: input, shape index: {}]
  %s20 = inlined_call_operand.vmem [shape: f32[1,128], index: 20, kind: input, shape index: {}]
  %s21 = inlined_call_operand.vmem [shape: f32[1,128], index: 21, kind: input, shape index: {}]
  %s22 = inlined_call_operand.hbm [shape: f32[2,17,128], index: 22, kind: output, shape index: {0}]
  %s23 = inlined_call_operand.vmem [shape: f32[2,1,128], index: 23, kind: output, shape index: {1}]
  %24 = xla_tuple %s22, %s23
  %s25 = sld [smem:[#allocation0]]
  $region129: #{cardiovascular_predictor.8} parent=0
    _
  %s27 = ssub.s32 1, %s25
  %s28 = scalar_select 0, %s27, %s25
  $region1: #{cardiovascular_predictor.8} parent=0
    #allocation2 [shape = 'u8[24576]{0}', space=vmem, size = 0x6000, scoped, tag = 'output window, operand 0']
    #allocation3 [shape = 's32[2]{0}', space=sflag, size = 0x8, scoped, tag = 'scoped memory for cardiovascular_predictor.8']
    %29 = vsyncpa [#allocation3], 0
    %s30 = scalar_lea.sflag [#allocation3], 1
    %31 = vsyncpa %s30, 0
    loop: start=0, step=1, limit=4
    $region2: #{cardiovascular_predictor.8} parent=1 // loop_pre_header
      _
    $region3: #{cardiovascular_predictor.8} parent=1 // loop_header
      %s33 = sphi 0, %s37
      %p34 = scmp.ge.s32.totalorder %s33, 4
      %s43 = sphi 0, %s45
      %s46 = sphi 0, %s43
      %s47 = sphi 0, %s46
      %s63 = sphi 0, %s47
      %s69 = sphi 0, %s71
      %s72 = sphi 0, %s69
      %s73 = sphi 0, %s72
      %s89 = sphi 0, %s73
      %s93 = sphi 0, %s93
      %s95 = sphi 0, %s93
      %s96 = sphi 0, %s95
      %s110 = sphi 0, %s96
      %s114 = sphi 0, %s114
      %s116 = sphi 0, %s114
      %s117 = sphi 0, %s116
      %s131 = sphi 0, %s117
      %s135 = sphi 0, %s135
      %s137 = sphi 0, %s135
      %s138 = sphi 0, %s137
      %s152 = sphi 0, %s138
      %s156 = sphi 0, %s156
      %s158 = sphi 0, %s156
      %s159 = sphi 0, %s158
      %s173 = sphi 0, %s159
      %s177 = sphi 0, %s177
      %s179 = sphi 0, %s177
      %s180 = sphi 0, %s179
      %s194 = sphi 0, %s180
      %s198 = sphi 0, %s198
      %s200 = sphi 0, %s198
      %s201 = sphi 0, %s200
      %s215 = sphi 0, %s201
      %s219 = sphi 0, %s219
      %s221 = sphi 0, %s219
      %s222 = sphi 0, %s221
      %s236 = sphi 0, %s222
      %s240 = sphi 0, %s240
      %s242 = sphi 0, %s240
      %s243 = sphi 0, %s242
      %s257 = sphi 0, %s243
      %s261 = sphi 0, %s261
      %s263 = sphi 0, %s261
      %s264 = sphi 0, %s263
      %s278 = sphi 0, %s264
      %s282 = sphi 0, %s282
      %s284 = sphi 0, %s282
      %s285 = sphi 0, %s284
      %s299 = sphi 0, %s285
      %s303 = sphi 0, %s303
      %s305 = sphi 0, %s303
      %s306 = sphi 0, %s305
      %s320 = sphi 0, %s306
      %s324 = sphi 0, %s324
      %s326 = sphi 0, %s324
      %s327 = sphi 0, %s326
      %s341 = sphi 0, %s327
      %s345 = sphi 0, %s345
      %s347 = sphi 0, %s345
      %s348 = sphi 0, %s347
      %s362 = sphi 0, %s348
      %s366 = sphi 0, %s366
      %s368 = sphi 0, %s366
      %s369 = sphi 0, %s368
      %s383 = sphi 0, %s369
      %s387 = sphi 0, %s387
      %s389 = sphi 0, %s387
      %s390 = sphi 0, %s389
      %s404 = sphi 0, %s390
      %s408 = sphi 0, %s408
      %s410 = sphi 0, %s408
      %s411 = sphi 0, %s410
      %s425 = sphi 0, %s411
      %s429 = sphi 0, %s429
      %s431 = sphi 0, %s429
      %s432 = sphi 0, %s431
      %s446 = sphi 0, %s432
      %s450 = sphi 0, %s450
      %s452 = sphi 0, %s450
      %s453 = sphi 0, %s452
      %s467 = sphi 0, %s453
      %s471 = sphi 0, %s471
      %s473 = sphi 0, %s471
      %s474 = sphi 0, %s473
      %s488 = sphi 0, %s474
      %s492 = sphi 0, %s492
      %s494 = sphi 0, %s492
      %s495 = sphi 0, %s494
      %s509 = sphi 0, %s495
      %s515 = sphi 0, %s517
      %s518 = sphi 0, %s515
      %s519 = sphi 0, %s518
      %s535 = sphi 0, %s519
      %s541 = sphi 0, %s543
      %s544 = sphi 0, %s541
      %s545 = sphi 0, %s544
      %s561 = sphi 0, %s545
    $region4: #{cardiovascular_predictor.8} parent=1 // loop_header_branch
      %36 = sbr.rel (%p34) target = $region8
    $region5: #{cardiovascular_predictor.8} parent=1 // loop_body
      %s38 = ssub.s32 %s33, 1
      %s39 = ssub.s32 %s33, 2
      %s40 = sadd.s32 %s33, 1
      %s41 = ssub.s32 %s33, %s40
      %p42 = scmp.eq.s32.totalorder %s41, 0
      %s44 = sadd.s32 %s43, 1
      %s45 = scalar_select %p42, %s43, %s44
      %p48 = pneg %p42
      %p49 = scmp.eq.s32.totalorder %s33, 1
      %p50 = por %p48, %p49
      %p51 = scmp.ne.s32.totalorder %s43, %s46
      %p52 = scmp.eq.s32.totalorder %s33, 0
      %p53 = por %p51, %p52
      %p54 = scmp.ne.s32.totalorder %s43, %s46
      %p55 = scmp.eq.s32.totalorder %s38, 1
      %p56 = por %p54, %p55
      %p57 = scmp.ne.s32.totalorder %s46, %s47
      %p58 = scmp.eq.s32.totalorder %s38, 0
      %p59 = por %p57, %p58
      %p60 = scmp.ne.s32.totalorder %s46, %s47
      %p61 = scmp.eq.s32.totalorder %s39, 1
      %p62 = por %p60, %p61
      %p64 = scmp.ne.s32.totalorder %s47, %s63
      %p65 = scmp.eq.s32.totalorder %s39, 0
      %p66 = por %p64, %p65
      %s67 = ssub.s32 %s33, %s40
      %p68 = scmp.eq.s32.totalorder %s67, 0
      %s70 = sadd.s32 %s69, 1
      %s71 = scalar_select %p68, %s69, %s70
      %p74 = pneg %p68
      %p75 = scmp.eq.s32.totalorder %s33, 1
      %p76 = por %p74, %p75
      %p77 = scmp.ne.s32.totalorder %s69, %s72
      %p78 = scmp.eq.s32.totalorder %s33, 0
      %p79 = por %p77, %p78
      %p80 = scmp.ne.s32.totalorder %s69, %s72
      %p81 = scmp.eq.s32.totalorder %s38, 1
      %p82 = por %p80, %p81
      %p83 = scmp.ne.s32.totalorder %s72, %s73
      %p84 = scmp.eq.s32.totalorder %s38, 0
      %p85 = por %p83, %p84
      %p86 = scmp.ne.s32.totalorder %s72, %s73
      %p87 = scmp.eq.s32.totalorder %s39, 1
      %p88 = por %p86, %p87
      %p90 = scmp.ne.s32.totalorder %s73, %s89
      %p91 = scmp.eq.s32.totalorder %s39, 0
      %p92 = por %p90, %p91
      %s94 = sadd.s32 %s93, 1
      %p97 = scmp.eq.s32.totalorder %s33, 1
      %p98 = scmp.ne.s32.totalorder %s93, %s95
      %p99 = scmp.eq.s32.totalorder %s33, 0
      %p100 = por %p98, %p99
      %p101 = scmp.ne.s32.totalorder %s93, %s95
      %p102 = scmp.eq.s32.totalorder %s38, 1
      %p103 = por %p101, %p102
      %p104 = scmp.ne.s32.totalorder %s95, %s96
      %p105 = scmp.eq.s32.totalorder %s38, 0
      %p106 = por %p104, %p105
      %p107 = scmp.ne.s32.totalorder %s95, %s96
      %p108 = scmp.eq.s32.totalorder %s39, 1
      %p109 = por %p107, %p108
      %p111 = scmp.ne.s32.totalorder %s96, %s110
      %p112 = scmp.eq.s32.totalorder %s39, 0
      %p113 = por %p111, %p112
      %s115 = sadd.s32 %s114, 1
      %p118 = scmp.eq.s32.totalorder %s33, 1
      %p119 = scmp.ne.s32.totalorder %s114, %s116
      %p120 = scmp.eq.s32.totalorder %s33, 0
      %p121 = por %p119, %p120
      %p122 = scmp.ne.s32.totalorder %s114, %s116
      %p123 = scmp.eq.s32.totalorder %s38, 1
      %p124 = por %p122, %p123
      %p125 = scmp.ne.s32.totalorder %s116, %s117
      %p126 = scmp.eq.s32.totalorder %s38, 0
      %p127 = por %p125, %p126
      %p128 = scmp.ne.s32.totalorder %s116, %s117
      %p129 = scmp.eq.s32.totalorder %s39, 1
      %p130 = por %p128, %p129
      %p132 = scmp.ne.s32.totalorder %s117, %s131
      %p133 = scmp.eq.s32.totalorder %s39, 0
      %p134 = por %p132, %p133
      %s136 = sadd.s32 %s135, 1
      %p139 = scmp.eq.s32.totalorder %s33, 1
      %p140 = scmp.ne.s32.totalorder %s135, %s137
      %p141 = scmp.eq.s32.totalorder %s33, 0
      %p142 = por %p140, %p141
      %p143 = scmp.ne.s32.totalorder %s135, %s137
      %p144 = scmp.eq.s32.totalorder %s38, 1
      %p145 = por %p143, %p144
      %p146 = scmp.ne.s32.totalorder %s137, %s138
      %p147 = scmp.eq.s32.totalorder %s38, 0
      %p148 = por %p146, %p147
      %p149 = scmp.ne.s32.totalorder %s137, %s138
      %p150 = scmp.eq.s32.totalorder %s39, 1
      %p151 = por %p149, %p150
      %p153 = scmp.ne.s32.totalorder %s138, %s152
      %p154 = scmp.eq.s32.totalorder %s39, 0
      %p155 = por %p153, %p154
      %s157 = sadd.s32 %s156, 1
      %p160 = scmp.eq.s32.totalorder %s33, 1
      %p161 = scmp.ne.s32.totalorder %s156, %s158
      %p162 = scmp.eq.s32.totalorder %s33, 0
      %p163 = por %p161, %p162
      %p164 = scmp.ne.s32.totalorder %s156, %s158
      %p165 = scmp.eq.s32.totalorder %s38, 1
      %p166 = por %p164, %p165
      %p167 = scmp.ne.s32.totalorder %s158, %s159
      %p168 = scmp.eq.s32.totalorder %s38, 0
      %p169 = por %p167, %p168
      %p170 = scmp.ne.s32.totalorder %s158, %s159
      %p171 = scmp.eq.s32.totalorder %s39, 1
      %p172 = por %p170, %p171
      %p174 = scmp.ne.s32.totalorder %s159, %s173
      %p175 = scmp.eq.s32.totalorder %s39, 0
      %p176 = por %p174, %p175
      %s178 = sadd.s32 %s177, 1
      %p181 = scmp.eq.s32.totalorder %s33, 1
      %p182 = scmp.ne.s32.totalorder %s177, %s179
      %p183 = scmp.eq.s32.totalorder %s33, 0
      %p184 = por %p182, %p183
      %p185 = scmp.ne.s32.totalorder %s177, %s179
      %p186 = scmp.eq.s32.totalorder %s38, 1
      %p187 = por %p185, %p186
      %p188 = scmp.ne.s32.totalorder %s179, %s180
      %p189 = scmp.eq.s32.totalorder %s38, 0
      %p190 = por %p188, %p189
      %p191 = scmp.ne.s32.totalorder %s179, %s180
      %p192 = scmp.eq.s32.totalorder %s39, 1
      %p193 = por %p191, %p192
      %p195 = scmp.ne.s32.totalorder %s180, %s194
      %p196 = scmp.eq.s32.totalorder %s39, 0
      %p197 = por %p195, %p196
      %s199 = sadd.s32 %s198, 1
      %p202 = scmp.eq.s32.totalorder %s33, 1
      %p203 = scmp.ne.s32.totalorder %s198, %s200
      %p204 = scmp.eq.s32.totalorder %s33, 0
      %p205 = por %p203, %p204
      %p206 = scmp.ne.s32.totalorder %s198, %s200
      %p207 = scmp.eq.s32.totalorder %s38, 1
      %p208 = por %p206, %p207
      %p209 = scmp.ne.s32.totalorder %s200, %s201
      %p210 = scmp.eq.s32.totalorder %s38, 0
      %p211 = por %p209, %p210
      %p212 = scmp.ne.s32.totalorder %s200, %s201
      %p213 = scmp.eq.s32.totalorder %s39, 1
      %p214 = por %p212, %p213
      %p216 = scmp.ne.s32.totalorder %s201, %s215
      %p217 = scmp.eq.s32.totalorder %s39, 0
      %p218 = por %p216, %p217
      %s220 = sadd.s32 %s219, 1
      %p223 = scmp.eq.s32.totalorder %s33, 1
      %p224 = scmp.ne.s32.totalorder %s219, %s221
      %p225 = scmp.eq.s32.totalorder %s33, 0
      %p226 = por %p224, %p225
      %p227 = scmp.ne.s32.totalorder %s219, %s221
      %p228 = scmp.eq.s32.totalorder %s38, 1
      %p229 = por %p227, %p228
      %p230 = scmp.ne.s32.totalorder %s221, %s222
      %p231 = scmp.eq.s32.totalorder %s38, 0
      %p232 = por %p230, %p231
      %p233 = scmp.ne.s32.totalorder %s221, %s222
      %p234 = scmp.eq.s32.totalorder %s39, 1
      %p235 = por %p233, %p234
      %p237 = scmp.ne.s32.totalorder %s222, %s236
      %p238 = scmp.eq.s32.totalorder %s39, 0
      %p239 = por %p237, %p238
      %s241 = sadd.s32 %s240, 1
      %p244 = scmp.eq.s32.totalorder %s33, 1
      %p245 = scmp.ne.s32.totalorder %s240, %s242
      %p246 = scmp.eq.s32.totalorder %s33, 0
      %p247 = por %p245, %p246
      %p248 = scmp.ne.s32.totalorder %s240, %s242
      %p249 = scmp.eq.s32.totalorder %s38, 1
      %p250 = por %p248, %p249
      %p251 = scmp.ne.s32.totalorder %s242, %s243
      %p252 = scmp.eq.s32.totalorder %s38, 0
      %p253 = por %p251, %p252
      %p254 = scmp.ne.s32.totalorder %s242, %s243
      %p255 = scmp.eq.s32.totalorder %s39, 1
      %p256 = por %p254, %p255
      %p258 = scmp.ne.s32.totalorder %s243, %s257
      %p259 = scmp.eq.s32.totalorder %s39, 0
      %p260 = por %p258, %p259
      %s262 = sadd.s32 %s261, 1
      %p265 = scmp.eq.s32.totalorder %s33, 1
      %p266 = scmp.ne.s32.totalorder %s261, %s263
      %p267 = scmp.eq.s32.totalorder %s33, 0
      %p268 = por %p266, %p267
      %p269 = scmp.ne.s32.totalorder %s261, %s263
      %p270 = scmp.eq.s32.totalorder %s38, 1
      %p271 = por %p269, %p270
      %p272 = scmp.ne.s32.totalorder %s263, %s264
      %p273 = scmp.eq.s32.totalorder %s38, 0
      %p274 = por %p272, %p273
      %p275 = scmp.ne.s32.totalorder %s263, %s264
      %p276 = scmp.eq.s32.totalorder %s39, 1
      %p277 = por %p275, %p276
      %p279 = scmp.ne.s32.totalorder %s264, %s278
      %p280 = scmp.eq.s32.totalorder %s39, 0
      %p281 = por %p279, %p280
      %s283 = sadd.s32 %s282, 1
      %p286 = scmp.eq.s32.totalorder %s33, 1
      %p287 = scmp.ne.s32.totalorder %s282, %s284
      %p288 = scmp.eq.s32.totalorder %s33, 0
      %p289 = por %p287, %p288
      %p290 = scmp.ne.s32.totalorder %s282, %s284
      %p291 = scmp.eq.s32.totalorder %s38, 1
      %p292 = por %p290, %p291
      %p293 = scmp.ne.s32.totalorder %s284, %s285
      %p294 = scmp.eq.s32.totalorder %s38, 0
      %p295 = por %p293, %p294
      %p296 = scmp.ne.s32.totalorder %s284, %s285
      %p297 = scmp.eq.s32.totalorder %s39, 1
      %p298 = por %p296, %p297
      %p300 = scmp.ne.s32.totalorder %s285, %s299
      %p301 = scmp.eq.s32.totalorder %s39, 0
      %p302 = por %p300, %p301
      %s304 = sadd.s32 %s303, 1
      %p307 = scmp.eq.s32.totalorder %s33, 1
      %p308 = scmp.ne.s32.totalorder %s303, %s305
      %p309 = scmp.eq.s32.totalorder %s33, 0
      %p310 = por %p308, %p309
      %p311 = scmp.ne.s32.totalorder %s303, %s305
      %p312 = scmp.eq.s32.totalorder %s38, 1
      %p313 = por %p311, %p312
      %p314 = scmp.ne.s32.totalorder %s305, %s306
      %p315 = scmp.eq.s32.totalorder %s38, 0
      %p316 = por %p314, %p315
      %p317 = scmp.ne.s32.totalorder %s305, %s306
      %p318 = scmp.eq.s32.totalorder %s39, 1
      %p319 = por %p317, %p318
      %p321 = scmp.ne.s32.totalorder %s306, %s320
      %p322 = scmp.eq.s32.totalorder %s39, 0
      %p323 = por %p321, %p322
      %s325 = sadd.s32 %s324, 1
      %p328 = scmp.eq.s32.totalorder %s33, 1
      %p329 = scmp.ne.s32.totalorder %s324, %s326
      %p330 = scmp.eq.s32.totalorder %s33, 0
      %p331 = por %p329, %p330
      %p332 = scmp.ne.s32.totalorder %s324, %s326
      %p333 = scmp.eq.s32.totalorder %s38, 1
      %p334 = por %p332, %p333
      %p335 = scmp.ne.s32.totalorder %s326, %s327
      %p336 = scmp.eq.s32.totalorder %s38, 0
      %p337 = por %p335, %p336
      %p338 = scmp.ne.s32.totalorder %s326, %s327
      %p339 = scmp.eq.s32.totalorder %s39, 1
      %p340 = por %p338, %p339
      %p342 = scmp.ne.s32.totalorder %s327, %s341
      %p343 = scmp.eq.s32.totalorder %s39, 0
      %p344 = por %p342, %p343
      %s346 = sadd.s32 %s345, 1
      %p349 = scmp.eq.s32.totalorder %s33, 1
      %p350 = scmp.ne.s32.totalorder %s345, %s347
      %p351 = scmp.eq.s32.totalorder %s33, 0
      %p352 = por %p350, %p351
      %p353 = scmp.ne.s32.totalorder %s345, %s347
      %p354 = scmp.eq.s32.totalorder %s38, 1
      %p355 = por %p353, %p354
      %p356 = scmp.ne.s32.totalorder %s347, %s348
      %p357 = scmp.eq.s32.totalorder %s38, 0
      %p358 = por %p356, %p357
      %p359 = scmp.ne.s32.totalorder %s347, %s348
      %p360 = scmp.eq.s32.totalorder %s39, 1
      %p361 = por %p359, %p360
      %p363 = scmp.ne.s32.totalorder %s348, %s362
      %p364 = scmp.eq.s32.totalorder %s39, 0
      %p365 = por %p363, %p364
      %s367 = sadd.s32 %s366, 1
      %p370 = scmp.eq.s32.totalorder %s33, 1
      %p371 = scmp.ne.s32.totalorder %s366, %s368
      %p372 = scmp.eq.s32.totalorder %s33, 0
      %p373 = por %p371, %p372
      %p374 = scmp.ne.s32.totalorder %s366, %s368
      %p375 = scmp.eq.s32.totalorder %s38, 1
      %p376 = por %p374, %p375
      %p377 = scmp.ne.s32.totalorder %s368, %s369
      %p378 = scmp.eq.s32.totalorder %s38, 0
      %p379 = por %p377, %p378
      %p380 = scmp.ne.s32.totalorder %s368, %s369
      %p381 = scmp.eq.s32.totalorder %s39, 1
      %p382 = por %p380, %p381
      %p384 = scmp.ne.s32.totalorder %s369, %s383
      %p385 = scmp.eq.s32.totalorder %s39, 0
      %p386 = por %p384, %p385
      %s388 = sadd.s32 %s387, 1
      %p391 = scmp.eq.s32.totalorder %s33, 1
      %p392 = scmp.ne.s32.totalorder %s387, %s389
      %p393 = scmp.eq.s32.totalorder %s33, 0
      %p394 = por %p392, %p393
      %p395 = scmp.ne.s32.totalorder %s387, %s389
      %p396 = scmp.eq.s32.totalorder %s38, 1
      %p397 = por %p395, %p396
      %p398 = scmp.ne.s32.totalorder %s389, %s390
      %p399 = scmp.eq.s32.totalorder %s38, 0
      %p400 = por %p398, %p399
      %p401 = scmp.ne.s32.totalorder %s389, %s390
      %p402 = scmp.eq.s32.totalorder %s39, 1
      %p403 = por %p401, %p402
      %p405 = scmp.ne.s32.totalorder %s390, %s404
      %p406 = scmp.eq.s32.totalorder %s39, 0
      %p407 = por %p405, %p406
      %s409 = sadd.s32 %s408, 1
      %p412 = scmp.eq.s32.totalorder %s33, 1
      %p413 = scmp.ne.s32.totalorder %s408, %s410
      %p414 = scmp.eq.s32.totalorder %s33, 0
      %p415 = por %p413, %p414
      %p416 = scmp.ne.s32.totalorder %s408, %s410
      %p417 = scmp.eq.s32.totalorder %s38, 1
      %p418 = por %p416, %p417
      %p419 = scmp.ne.s32.totalorder %s410, %s411
      %p420 = scmp.eq.s32.totalorder %s38, 0
      %p421 = por %p419, %p420
      %p422 = scmp.ne.s32.totalorder %s410, %s411
      %p423 = scmp.eq.s32.totalorder %s39, 1
      %p424 = por %p422, %p423
      %p426 = scmp.ne.s32.totalorder %s411, %s425
      %p427 = scmp.eq.s32.totalorder %s39, 0
      %p428 = por %p426, %p427
      %s430 = sadd.s32 %s429, 1
      %p433 = scmp.eq.s32.totalorder %s33, 1
      %p434 = scmp.ne.s32.totalorder %s429, %s431
      %p435 = scmp.eq.s32.totalorder %s33, 0
      %p436 = por %p434, %p435
      %p437 = scmp.ne.s32.totalorder %s429, %s431
      %p438 = scmp.eq.s32.totalorder %s38, 1
      %p439 = por %p437, %p438
      %p440 = scmp.ne.s32.totalorder %s431, %s432
      %p441 = scmp.eq.s32.totalorder %s38, 0
      %p442 = por %p440, %p441
      %p443 = scmp.ne.s32.totalorder %s431, %s432
      %p444 = scmp.eq.s32.totalorder %s39, 1
      %p445 = por %p443, %p444
      %p447 = scmp.ne.s32.totalorder %s432, %s446
      %p448 = scmp.eq.s32.totalorder %s39, 0
      %p449 = por %p447, %p448
      %s451 = sadd.s32 %s450, 1
      %p454 = scmp.eq.s32.totalorder %s33, 1
      %p455 = scmp.ne.s32.totalorder %s450, %s452
      %p456 = scmp.eq.s32.totalorder %s33, 0
      %p457 = por %p455, %p456
      %p458 = scmp.ne.s32.totalorder %s450, %s452
      %p459 = scmp.eq.s32.totalorder %s38, 1
      %p460 = por %p458, %p459
      %p461 = scmp.ne.s32.totalorder %s452, %s453
      %p462 = scmp.eq.s32.totalorder %s38, 0
      %p463 = por %p461, %p462
      %p464 = scmp.ne.s32.totalorder %s452, %s453
      %p465 = scmp.eq.s32.totalorder %s39, 1
      %p466 = por %p464, %p465
      %p468 = scmp.ne.s32.totalorder %s453, %s467
      %p469 = scmp.eq.s32.totalorder %s39, 0
      %p470 = por %p468, %p469
      %s472 = sadd.s32 %s471, 1
      %p475 = scmp.eq.s32.totalorder %s33, 1
      %p476 = scmp.ne.s32.totalorder %s471, %s473
      %p477 = scmp.eq.s32.totalorder %s33, 0
      %p478 = por %p476, %p477
      %p479 = scmp.ne.s32.totalorder %s471, %s473
      %p480 = scmp.eq.s32.totalorder %s38, 1
      %p481 = por %p479, %p480
      %p482 = scmp.ne.s32.totalorder %s473, %s474
      %p483 = scmp.eq.s32.totalorder %s38, 0
      %p484 = por %p482, %p483
      %p485 = scmp.ne.s32.totalorder %s473, %s474
      %p486 = scmp.eq.s32.totalorder %s39, 1
      %p487 = por %p485, %p486
      %p489 = scmp.ne.s32.totalorder %s474, %s488
      %p490 = scmp.eq.s32.totalorder %s39, 0
      %p491 = por %p489, %p490
      %s493 = sadd.s32 %s492, 1
      %p496 = scmp.eq.s32.totalorder %s33, 1
      %p497 = scmp.ne.s32.totalorder %s492, %s494
      %p498 = scmp.eq.s32.totalorder %s33, 0
      %p499 = por %p497, %p498
      %p500 = scmp.ne.s32.totalorder %s492, %s494
      %p501 = scmp.eq.s32.totalorder %s38, 1
      %p502 = por %p500, %p501
      %p503 = scmp.ne.s32.totalorder %s494, %s495
      %p504 = scmp.eq.s32.totalorder %s38, 0
      %p505 = por %p503, %p504
      %p506 = scmp.ne.s32.totalorder %s494, %s495
      %p507 = scmp.eq.s32.totalorder %s39, 1
      %p508 = por %p506, %p507
      %p510 = scmp.ne.s32.totalorder %s495, %s509
      %p511 = scmp.eq.s32.totalorder %s39, 0
      %p512 = por %p510, %p511
      %s513 = ssub.s32 %s33, %s40
      %p514 = scmp.eq.s32.totalorder %s513, 0
      %s516 = sadd.s32 %s515, 1
      %s517 = scalar_select %p514, %s515, %s516
      %p520 = pneg %p514
      %p521 = scmp.eq.s32.totalorder %s33, 1
      %p522 = por %p520, %p521
      %p523 = scmp.ne.s32.totalorder %s515, %s518
      %p524 = scmp.eq.s32.totalorder %s33, 0
      %p525 = por %p523, %p524
      %p526 = scmp.ne.s32.totalorder %s515, %s518
      %p527 = scmp.eq.s32.totalorder %s38, 1
      %p528 = por %p526, %p527
      %p529 = scmp.ne.s32.totalorder %s518, %s519
      %p530 = scmp.eq.s32.totalorder %s38, 0
      %p531 = por %p529, %p530
      %p532 = scmp.ne.s32.totalorder %s518, %s519
      %p533 = scmp.eq.s32.totalorder %s39, 1
      %p534 = por %p532, %p533
      %p536 = scmp.ne.s32.totalorder %s519, %s535
      %p537 = scmp.eq.s32.totalorder %s39, 0
      %p538 = por %p536, %p537
      %s539 = ssub.s32 %s33, %s40
      %p540 = scmp.eq.s32.totalorder %s539, 0
      %s542 = sadd.s32 %s541, 1
      %s543 = scalar_select %p540, %s541, %s542
      %p546 = pneg %p540
      %p547 = scmp.eq.s32.totalorder %s33, 1
      %p548 = por %p546, %p547
      %p549 = scmp.ne.s32.totalorder %s541, %s544
      %p550 = scmp.eq.s32.totalorder %s33, 0
      %p551 = por %p549, %p550
      %p552 = scmp.ne.s32.totalorder %s541, %s544
      %p553 = scmp.eq.s32.totalorder %s38, 1
      %p554 = por %p552, %p553
      %p555 = scmp.ne.s32.totalorder %s544, %s545
      %p556 = scmp.eq.s32.totalorder %s38, 0
      %p557 = por %p555, %p556
      %p558 = scmp.ne.s32.totalorder %s544, %s545
      %p559 = scmp.eq.s32.totalorder %s39, 1
      %p560 = por %p558, %p559
      %p562 = scmp.ne.s32.totalorder %s545, %s561
      %p563 = scmp.eq.s32.totalorder %s39, 0
      %p564 = por %p562, %p563
      %p565 = scmp.le.s32.totalorder 1, %s33
      %p566 = scmp.lt.s32.totalorder %s33, 3
      %p567 = pnand %p565, %p566
      %p568 = pneg %p567
      // Predicated region
      $region9: #{cardiovascular_predictor.8} parent=5 // pred_check
        _
      $region10: #{cardiovascular_predictor.8} parent=5 // pred_check_branch
        %570 = sbr.rel (%p567) target = $region12
      $region11: #{cardiovascular_predictor.8} parent=5 // pred_region
        %s571 = ssub.s32 %s33, 1
        // Predicated region
        $region13: #{cardiovascular_predictor.8} parent=11 // pred_check
          %p572 = pneg %p106
        $region14: #{cardiovascular_predictor.8} parent=11 // pred_check_branch
          %574 = sbr.rel (%p572) target = $region16
        $region15: #{cardiovascular_predictor.8} parent=11 // pred_region
          _
        $region16: #{cardiovascular_predictor.8} parent=11 // pred_fallthru
          _
        // Predicated region
        $region17: #{cardiovascular_predictor.8} parent=11 // pred_check
          %p575 = pneg %p127
        $region18: #{cardiovascular_predictor.8} parent=11 // pred_check_branch
          %577 = sbr.rel (%p575) target = $region20
        $region19: #{cardiovascular_predictor.8} parent=11 // pred_region
          _
        $region20: #{cardiovascular_predictor.8} parent=11 // pred_fallthru
          _
        // Predicated region
        $region21: #{cardiovascular_predictor.8} parent=11 // pred_check
          %p578 = pneg %p148
        $region22: #{cardiovascular_predictor.8} parent=11 // pred_check_branch
          %580 = sbr.rel (%p578) target = $region24
        $region23: #{cardiovascular_predictor.8} parent=11 // pred_region
          _
        $region24: #{cardiovascular_predictor.8} parent=11 // pred_fallthru
          _
        // Predicated region
        $region25: #{cardiovascular_predictor.8} parent=11 // pred_check
          %p581 = pneg %p169
        $region26: #{cardiovascular_predictor.8} parent=11 // pred_check_branch
          %583 = sbr.rel (%p581) target = $region28
        $region27: #{cardiovascular_predictor.8} parent=11 // pred_region
          _
        $region28: #{cardiovascular_predictor.8} parent=11 // pred_fallthru
          _
        // Predicated region
        $region29: #{cardiovascular_predictor.8} parent=11 // pred_check
          %p584 = pneg %p190
        $region30: #{cardiovascular_predictor.8} parent=11 // pred_check_branch
          %586 = sbr.rel (%p584) target = $region32
        $region31: #{cardiovascular_predictor.8} parent=11 // pred_region
          _
        $region32: #{cardiovascular_predictor.8} parent=11 // pred_fallthru
          _
        // Predicated region
        $region33: #{cardiovascular_predictor.8} parent=11 // pred_check
          %p587 = pneg %p211
        $region34: #{cardiovascular_predictor.8} parent=11 // pred_check_branch
          %589 = sbr.rel (%p587) target = $region36
        $region35: #{cardiovascular_predictor.8} parent=11 // pred_region
          _
        $region36: #{cardiovascular_predictor.8} parent=11 // pred_fallthru
          _
        // Predicated region
        $region37: #{cardiovascular_predictor.8} parent=11 // pred_check
          %p590 = pneg %p232
        $region38: #{cardiovascular_predictor.8} parent=11 // pred_check_branch
          %592 = sbr.rel (%p590) target = $region40
        $region39: #{cardiovascular_predictor.8} parent=11 // pred_region
          _
        $region40: #{cardiovascular_predictor.8} parent=11 // pred_fallthru
          _
        // Predicated region
        $region41: #{cardiovascular_predictor.8} parent=11 // pred_check
          %p593 = pneg %p253
        $region42: #{cardiovascular_predictor.8} parent=11 // pred_check_branch
          %595 = sbr.rel (%p593) target = $region44
        $region43: #{cardiovascular_predictor.8} parent=11 // pred_region
          _
        $region44: #{cardiovascular_predictor.8} parent=11 // pred_fallthru
          _
        // Predicated region
        $region45: #{cardiovascular_predictor.8} parent=11 // pred_check
          %p596 = pneg %p274
        $region46: #{cardiovascular_predictor.8} parent=11 // pred_check_branch
          %598 = sbr.rel (%p596) target = $region48
        $region47: #{cardiovascular_predictor.8} parent=11 // pred_region
          _
        $region48: #{cardiovascular_predictor.8} parent=11 // pred_fallthru
          _
        // Predicated region
        $region49: #{cardiovascular_predictor.8} parent=11 // pred_check
          %p599 = pneg %p295
        $region50: #{cardiovascular_predictor.8} parent=11 // pred_check_branch
          %601 = sbr.rel (%p599) target = $region52
        $region51: #{cardiovascular_predictor.8} parent=11 // pred_region
          _
        $region52: #{cardiovascular_predictor.8} parent=11 // pred_fallthru
          _
        // Predicated region
        $region53: #{cardiovascular_predictor.8} parent=11 // pred_check
          %p602 = pneg %p316
        $region54: #{cardiovascular_predictor.8} parent=11 // pred_check_branch
          %604 = sbr.rel (%p602) target = $region56
        $region55: #{cardiovascular_predictor.8} parent=11 // pred_region
          _
        $region56: #{cardiovascular_predictor.8} parent=11 // pred_fallthru
          _
        // Predicated region
        $region57: #{cardiovascular_predictor.8} parent=11 // pred_check
          %p605 = pneg %p337
        $region58: #{cardiovascular_predictor.8} parent=11 // pred_check_branch
          %607 = sbr.rel (%p605) target = $region60
        $region59: #{cardiovascular_predictor.8} parent=11 // pred_region
          _
        $region60: #{cardiovascular_predictor.8} parent=11 // pred_fallthru
          _
        // Predicated region
        $region61: #{cardiovascular_predictor.8} parent=11 // pred_check
          %p608 = pneg %p358
        $region62: #{cardiovascular_predictor.8} parent=11 // pred_check_branch
          %610 = sbr.rel (%p608) target = $region64
        $region63: #{cardiovascular_predictor.8} parent=11 // pred_region
          _
        $region64: #{cardiovascular_predictor.8} parent=11 // pred_fallthru
          _
        // Predicated region
        $region65: #{cardiovascular_predictor.8} parent=11 // pred_check
          %p611 = pneg %p379
        $region66: #{cardiovascular_predictor.8} parent=11 // pred_check_branch
          %613 = sbr.rel (%p611) target = $region68
        $region67: #{cardiovascular_predictor.8} parent=11 // pred_region
          _
        $region68: #{cardiovascular_predictor.8} parent=11 // pred_fallthru
          _
        // Predicated region
        $region69: #{cardiovascular_predictor.8} parent=11 // pred_check
          %p614 = pneg %p400
        $region70: #{cardiovascular_predictor.8} parent=11 // pred_check_branch
          %616 = sbr.rel (%p614) target = $region72
        $region71: #{cardiovascular_predictor.8} parent=11 // pred_region
          _
        $region72: #{cardiovascular_predictor.8} parent=11 // pred_fallthru
          _
        // Predicated region
        $region73: #{cardiovascular_predictor.8} parent=11 // pred_check
          %p617 = pneg %p421
        $region74: #{cardiovascular_predictor.8} parent=11 // pred_check_branch
          %619 = sbr.rel (%p617) target = $region76
        $region75: #{cardiovascular_predictor.8} parent=11 // pred_region
          _
        $region76: #{cardiovascular_predictor.8} parent=11 // pred_fallthru
          _
        // Predicated region
        $region77: #{cardiovascular_predictor.8} parent=11 // pred_check
          %p620 = pneg %p442
        $region78: #{cardiovascular_predictor.8} parent=11 // pred_check_branch
          %622 = sbr.rel (%p620) target = $region80
        $region79: #{cardiovascular_predictor.8} parent=11 // pred_region
          _
        $region80: #{cardiovascular_predictor.8} parent=11 // pred_fallthru
          _
        // Predicated region
        $region81: #{cardiovascular_predictor.8} parent=11 // pred_check
          %p623 = pneg %p463
        $region82: #{cardiovascular_predictor.8} parent=11 // pred_check_branch
          %625 = sbr.rel (%p623) target = $region84
        $region83: #{cardiovascular_predictor.8} parent=11 // pred_region
          _
        $region84: #{cardiovascular_predictor.8} parent=11 // pred_fallthru
          _
        // Predicated region
        $region85: #{cardiovascular_predictor.8} parent=11 // pred_check
          %p626 = pneg %p484
        $region86: #{cardiovascular_predictor.8} parent=11 // pred_check_branch
          %628 = sbr.rel (%p626) target = $region88
        $region87: #{cardiovascular_predictor.8} parent=11 // pred_region
          _
        $region88: #{cardiovascular_predictor.8} parent=11 // pred_fallthru
          _
        // Predicated region
        $region89: #{cardiovascular_predictor.8} parent=11 // pred_check
          %p629 = pneg %p505
        $region90: #{cardiovascular_predictor.8} parent=11 // pred_check_branch
          %631 = sbr.rel (%p629) target = $region92
        $region91: #{cardiovascular_predictor.8} parent=11 // pred_region
          _
        $region92: #{cardiovascular_predictor.8} parent=11 // pred_fallthru
          _
      $region12: #{cardiovascular_predictor.8} parent=5 // pred_fallthru
        _
      %p632 = scmp.lt.s32.totalorder %s33, 2
      // Predicated region
      $region93: #{cardiovascular_predictor.8} parent=5 // pred_check
        %p633 = pneg %p632
      $region94: #{cardiovascular_predictor.8} parent=5 // pred_check_branch
        %635 = sbr.rel (%p633) target = $region96
      $region95: #{cardiovascular_predictor.8} parent=5 // pred_region
        // Predicated region
        $region97: #{cardiovascular_predictor.8} parent=95 // pred_check
          %p636 = pneg %p53
        $region98: #{cardiovascular_predictor.8} parent=95 // pred_check_branch
          %638 = sbr.rel (%p636) target = $region100
        $region99: #{cardiovascular_predictor.8} parent=95 // pred_region
          %p639 = scmp.lt.s32.totalorder %s33, 1
          %s640 = scalar_select %p639, %s33, 1
          %s641 = smul.addr %s640, 3
          %s642 = smul.addr %s641, 8
          %s643 = scalar_lea.vmem %s0, %s642
        $region100: #{cardiovascular_predictor.8} parent=95 // pred_fallthru
          _
        // Predicated region
        $region101: #{cardiovascular_predictor.8} parent=95 // pred_check
          %p644 = pneg %p79
        $region102: #{cardiovascular_predictor.8} parent=95 // pred_check_branch
          %646 = sbr.rel (%p644) target = $region104
        $region103: #{cardiovascular_predictor.8} parent=95 // pred_region
          %p647 = scmp.lt.s32.totalorder %s33, 1
          %s648 = scalar_select %p647, %s33, 1
          %s649 = smul.addr %s648, 3
          %s650 = smul.addr %s649, 8
          %s651 = scalar_lea.vmem %s1, %s650
        $region104: #{cardiovascular_predictor.8} parent=95 // pred_fallthru
          _
      $region96: #{cardiovascular_predictor.8} parent=5 // pred_fallthru
        _
      %p652 = scmp.le.s32.totalorder 1, %s33
      %p653 = scmp.lt.s32.totalorder %s33, 3
      %p654 = pnand %p652, %p653
      %p655 = pneg %p654
      // Predicated region
      $region105: #{cardiovascular_predictor.8} parent=5 // pred_check
        _
      $region106: #{cardiovascular_predictor.8} parent=5 // pred_check_branch
        %657 = sbr.rel (%p654) target = $region108
      $region107: #{cardiovascular_predictor.8} parent=5 // pred_region
        %s658 = ssub.s32 %s33, 1
        %p659 = scmp.lt.s32.totalorder %s38, 1
        %s660 = scalar_select %p659, %s38, 1
        %s661 = smul.addr %s660, 3
        %s662 = smul.addr %s661, 8
        %s663 = scalar_lea.vmem %s0, %s662
        %p664 = pneg %p59
        %p665 = pneg %p56
        %p666 = scmp.lt.s32.totalorder %s38, 1
        %s667 = scalar_select %p666, %s38, 1
        %s668 = smul.addr %s667, 3
        %s669 = smul.addr %s668, 8
        %s670 = scalar_lea.vmem %s1, %s669
        %p671 = pneg %p85
        %p672 = pneg %p82
        %p673 = pneg %p106
        %p674 = pneg %p103
        %p675 = pneg %p127
        %p676 = pneg %p124
        %p677 = pneg %p148
        %p678 = pneg %p145
        %p679 = pneg %p169
        %p680 = pneg %p166
        %p681 = pneg %p190
        %p682 = pneg %p187
        %p683 = pneg %p211
        %p684 = pneg %p208
        %p685 = pneg %p232
        %p686 = pneg %p229
        %p687 = pneg %p253
        %p688 = pneg %p250
        %p689 = pneg %p274
        %p690 = pneg %p271
        %p691 = pneg %p295
        %p692 = pneg %p292
        %p693 = pneg %p316
        %p694 = pneg %p313
        %p695 = pneg %p337
        %p696 = pneg %p334
        %p697 = pneg %p358
        %p698 = pneg %p355
        %p699 = pneg %p379
        %p700 = pneg %p376
        %p701 = pneg %p400
        %p702 = pneg %p397
        %p703 = pneg %p421
        %p704 = pneg %p418
        %p705 = pneg %p442
        %p706 = pneg %p439
        %p707 = pneg %p463
        %p708 = pneg %p460
        %p709 = pneg %p484
        %p710 = pneg %p481
        %p711 = pneg %p505
        %p712 = pneg %p502
        %p713 = pneg %p531
        %p714 = pneg %p528
        %s715 = sand.u32 %s518, 1
        %s716 = scalar_lea.sflag [#allocation3], %s715
        %s717 = sand.u32 %s518, 1
        %s718 = smul.addr %s717, 24
        %s719 = scalar_lea.vmem [#allocation2], %s718
        %p720 = pneg %p557
        %p721 = pneg %p554
        %p722 = scmp.lt.s32.totalorder %s38, 1
        %s723 = scalar_select %p722, %s38, 1
        %s724 = scalar_lea.vmem %s23, %s723
        %p725 = scmp.lt.s32.totalorder %s38, 1
        %s726 = scalar_select %p725, %s38, 1
        %s727 = smul.addr %s726, 3
        %s728 = smul.addr %s727, 8
        %s729 = scalar_lea.vmem %s0, %s728
        %p730 = scmp.lt.s32.totalorder %s38, 1
        %s731 = scalar_select %p730, %s38, 1
        %s732 = smul.addr %s731, 3
        %s733 = smul.addr %s732, 8
        %s734 = scalar_lea.vmem %s1, %s733
        %p735 = scmp.lt.s32.totalorder %s38, 1
        %s736 = scalar_select %p735, %s38, 1
        %s737 = scalar_lea.vmem %s23, %s736
        %v739 = vld [vmem:[%s729] sm:$0xff]
        %v740 = vld [vmem:[%s729 + $0x8] sm:$0xff]
        %v741 = vld [vmem:[%s729 + $0x10] sm:$0x1]
        %v742 = vld [vmem:[%s734] sm:$0xff]
        %v743 = vld [vmem:[%s734 + $0x8] sm:$0xff]
        %v744 = vld [vmem:[%s734 + $0x10] sm:$0x1]
        %v745 = vpack.c.bf16 %v740, %v739
        %v746 = vpack.c.bf16 %v741, %v741
        %v747 = vld [vmem:[%s2] sm:$0xf]
        %v748 = vld [vmem:[%s2 + $0x4] sm:$0xf]
        %v749 = vld [vmem:[%s2 + $0x8] sm:$0xf]
        %v750 = vld [vmem:[%s2 + $0xc] sm:$0xf]
        %v751 = vld [vmem:[%s2 + $0x10] sm:$0xf]
        %v752 = vld [vmem:[%s2 + $0x14] sm:$0xf]
        %v753 = vld [vmem:[%s2 + $0x18] sm:$0xf]
        %v754 = vld [vmem:[%s2 + $0x1c] sm:$0xf]
        %v755 = vld [vmem:[%s2 + $0x20] sm:$0xf]
        %v756 = vld [vmem:[%s2 + $0x24] sm:$0xf]
        %v757 = vld [vmem:[%s2 + $0x28] sm:$0xf]
        %v758 = vld [vmem:[%s2 + $0x2c] sm:$0xf]
        %v759 = vld [vmem:[%s2 + $0x30] sm:$0xf]
        %v760 = vld [vmem:[%s2 + $0x34] sm:$0xf]
        %v761 = vld [vmem:[%s2 + $0x38] sm:$0xf]
        %v762 = vld [vmem:[%s2 + $0x3c] sm:$0xf]
        %v763 = vld [vmem:[%s5] sm:$0x1]
        %v765 = vlaneseq
        %v766 = vshrl.u32 %v765, 7
        %v767 = vsub.s32 0, %v766
        %v768 = vrot.slane %v763, %v767
        %v786 = vunpack.c.l.b16 %v747
        %v787 = vunpack.c.l.b16 %v748
        %v788 = vunpack.c.l.b16 %v749
        %v789 = vunpack.c.l.b16 %v750
        %v790 = vunpack.c.l.b16 %v751
        %v791 = vunpack.c.l.b16 %v752
        %v792 = vunpack.c.l.b16 %v753
        %v793 = vunpack.c.l.b16 %v754
        %v794 = vunpack.c.l.b16 %v755
        %v795 = vunpack.c.l.b16 %v756
        %v796 = vunpack.c.l.b16 %v757
        %v797 = vunpack.c.l.b16 %v758
        %v798 = vunpack.c.l.b16 %v759
        %v799 = vunpack.c.l.b16 %v760
        %v800 = vunpack.c.l.b16 %v761
        %v801 = vunpack.c.l.b16 %v762
        %v802 = vpack.c.b16 %v787, %v786
        %v803 = vpack.c.b16 %v789, %v788
        %v804 = vpack.c.b16 %v791, %v790
        %v805 = vpack.c.b16 %v793, %v792
        %v806 = vpack.c.b16 %v795, %v794
        %v807 = vpack.c.b16 %v797, %v796
        %v808 = vpack.c.b16 %v799, %v798
        %v809 = vpack.c.b16 %v801, %v800
        %818 = vmatprep.subr.bf16.mxu0 0
        %819 = vmatpush1.bf16.msra.mxu0 %v802
        %820 = vmatprep.subr.bf16.mxu0 0
        %821 = vmatpush1.bf16.msra.mxu0 %v803
        %822 = vmatprep.subr.bf16.mxu0 0
        %823 = vmatpush1.bf16.msra.mxu0 %v804
        %824 = vmatprep.subr.bf16.mxu0 0
        %825 = vmatpush1.bf16.msra.mxu0 %v805
        %826 = vmatprep.subr.bf16.mxu0 0
        %827 = vmatpush1.bf16.msra.mxu0 %v806
        %828 = vmatprep.subr.bf16.mxu0 0
        %829 = vmatpush1.bf16.msra.mxu0 %v807
        %830 = vmatprep.subr.bf16.mxu0 0
        %831 = vmatpush1.bf16.msra.mxu0 %v808
        %832 = vmatprep.subr.bf16.mxu0 0
        %833 = vmatpush1.bf16.msra.mxu0 %v809
        %834 = vmatprep.subr.bf16.mxu0 0
        %835 = vmatpush1.bf16.msra.mxu0 0
        %836 = vmatprep.subr.bf16.mxu0 0
        %837 = vmatpush1.bf16.msra.mxu0 0
        %838 = vmatprep.subr.bf16.mxu0 0
        %839 = vmatpush1.bf16.msra.mxu0 0
        %840 = vmatprep.subr.bf16.mxu0 0
        %841 = vmatpush1.bf16.msra.mxu0 0
        %842 = vmatprep.subr.bf16.mxu0 0
        %843 = vmatpush1.bf16.msra.mxu0 0
        %844 = vmatprep.subr.bf16.mxu0 0
        %845 = vmatpush1.bf16.msra.mxu0 0
        %846 = vmatprep.subr.bf16.mxu0 0
        %847 = vmatpush1.bf16.msra.mxu0 0
        %848 = vmatprep.subr.bf16.mxu0 0
        %849 = vmatpush1.bf16.msra.mxu0 0
        %850 = vmatprep.mubr.bf16.mxu0 0
        %851 = vmatmul.mubr.bf16.gmra.mrb[0].mxu0 %v745
        %v852 = vpop.f32.mrb[0].mxu0
        %v853 = vadd.f32 %v768, %v852
        %v854 = vpop.f32.mrb[0].mxu0
        %v855 = vpop.f32.mrb[0].mxu0
        %v856 = vadd.f32 %v768, %v855
        %v857 = vpop.f32.mrb[0].mxu0
        %858 = vmatprep.mubr.bf16.mxu0 0
        %859 = vmatmul.mubr.bf16.gmra.mrb[0].mxu0 %v746
        %v860 = vpop.f32.mrb[0].mxu0
        %v861 = vadd.f32 %v768, %v860
        %v862 = vpop.f32.mrb[0].mxu0
        %v863 = vpop.f32.mrb[0].mxu0
        %v864 = vpop.f32.mrb[0].mxu0
        %865 = vdwg.mxu0
        %v866 = vld [vmem:[%s3] sm:$0xf]
        %v867 = vld [vmem:[%s3 + $0x4] sm:$0xf]
        %v868 = vld [vmem:[%s3 + $0x8] sm:$0xf]
        %v869 = vld [vmem:[%s3 + $0xc] sm:$0xf]
        %v870 = vld [vmem:[%s3 + $0x10] sm:$0xf]
        %v871 = vld [vmem:[%s3 + $0x14] sm:$0xf]
        %v872 = vld [vmem:[%s3 + $0x18] sm:$0xf]
        %v873 = vld [vmem:[%s3 + $0x1c] sm:$0xf]
        %v874 = vld [vmem:[%s3 + $0x20] sm:$0xf]
        %v875 = vld [vmem:[%s3 + $0x24] sm:$0xf]
        %v876 = vld [vmem:[%s3 + $0x28] sm:$0xf]
        %v877 = vld [vmem:[%s3 + $0x2c] sm:$0xf]
        %v878 = vld [vmem:[%s3 + $0x30] sm:$0xf]
        %v879 = vld [vmem:[%s3 + $0x34] sm:$0xf]
        %v880 = vld [vmem:[%s3 + $0x38] sm:$0xf]
        %v881 = vld [vmem:[%s3 + $0x3c] sm:$0xf]
        %v882 = vld [vmem:[%s6] sm:$0x1]
        %v884 = vlaneseq
        %v885 = vshrl.u32 %v884, 7
        %v886 = vsub.s32 0, %v885
        %v887 = vrot.slane %v882, %v886
        %v905 = vunpack.c.l.b16 %v866
        %v906 = vunpack.c.l.b16 %v867
        %v907 = vunpack.c.l.b16 %v868
        %v908 = vunpack.c.l.b16 %v869
        %v909 = vunpack.c.l.b16 %v870
        %v910 = vunpack.c.l.b16 %v871
        %v911 = vunpack.c.l.b16 %v872
        %v912 = vunpack.c.l.b16 %v873
        %v913 = vunpack.c.l.b16 %v874
        %v914 = vunpack.c.l.b16 %v875
        %v915 = vunpack.c.l.b16 %v876
        %v916 = vunpack.c.l.b16 %v877
        %v917 = vunpack.c.l.b16 %v878
        %v918 = vunpack.c.l.b16 %v879
        %v919 = vunpack.c.l.b16 %v880
        %v920 = vunpack.c.l.b16 %v881
        %v921 = vpack.c.b16 %v906, %v905
        %v922 = vpack.c.b16 %v908, %v907
        %v923 = vpack.c.b16 %v910, %v909
        %v924 = vpack.c.b16 %v912, %v911
        %v925 = vpack.c.b16 %v914, %v913
        %v926 = vpack.c.b16 %v916, %v915
        %v927 = vpack.c.b16 %v918, %v917
        %v928 = vpack.c.b16 %v920, %v919
        %937 = vmatprep.subr.bf16.mxu0 0
        %938 = vmatpush1.bf16.msra.mxu0 %v921
        %939 = vmatprep.subr.bf16.mxu0 0
        %940 = vmatpush1.bf16.msra.mxu0 %v922
        %941 = vmatprep.subr.bf16.mxu0 0
        %942 = vmatpush1.bf16.msra.mxu0 %v923
        %943 = vmatprep.subr.bf16.mxu0 0
        %944 = vmatpush1.bf16.msra.mxu0 %v924
        %945 = vmatprep.subr.bf16.mxu0 0
        %946 = vmatpush1.bf16.msra.mxu0 %v925
        %947 = vmatprep.subr.bf16.mxu0 0
        %948 = vmatpush1.bf16.msra.mxu0 %v926
        %949 = vmatprep.subr.bf16.mxu0 0
        %950 = vmatpush1.bf16.msra.mxu0 %v927
        %951 = vmatprep.subr.bf16.mxu0 0
        %952 = vmatpush1.bf16.msra.mxu0 %v928
        %953 = vmatprep.subr.bf16.mxu0 0
        %954 = vmatpush1.bf16.msra.mxu0 0
        %955 = vmatprep.subr.bf16.mxu0 0
        %956 = vmatpush1.bf16.msra.mxu0 0
        %957 = vmatprep.subr.bf16.mxu0 0
        %958 = vmatpush1.bf16.msra.mxu0 0
        %959 = vmatprep.subr.bf16.mxu0 0
        %960 = vmatpush1.bf16.msra.mxu0 0
        %961 = vmatprep.subr.bf16.mxu0 0
        %962 = vmatpush1.bf16.msra.mxu0 0
        %963 = vmatprep.subr.bf16.mxu0 0
        %964 = vmatpush1.bf16.msra.mxu0 0
        %965 = vmatprep.subr.bf16.mxu0 0
        %966 = vmatpush1.bf16.msra.mxu0 0
        %967 = vmatprep.subr.bf16.mxu0 0
        %968 = vmatpush1.bf16.msra.mxu0 0
        %969 = vmatprep.mubr.bf16.mxu0 0
        %970 = vmatmul.mubr.bf16.gmra.mrb[0].mxu0 %v745
        %v971 = vpop.f32.mrb[0].mxu0
        %v972 = vadd.f32 %v887, %v971
        %v973 = vpop.f32.mrb[0].mxu0
        %v974 = vpop.f32.mrb[0].mxu0
        %v975 = vadd.f32 %v887, %v974
        %v976 = vpop.f32.mrb[0].mxu0
        %977 = vmatprep.mubr.bf16.mxu0 0
        %978 = vmatmul.mubr.bf16.gmra.mrb[0].mxu0 %v746
        %v979 = vpop.f32.mrb[0].mxu0
        %v980 = vadd.f32 %v887, %v979
        %v981 = vpop.f32.mrb[0].mxu0
        %v982 = vpop.f32.mrb[0].mxu0
        %v983 = vpop.f32.mrb[0].mxu0
        %984 = vdwg.mxu0
        %v985 = vld [vmem:[%s4] sm:$0xf]
        %v986 = vld [vmem:[%s4 + $0x4] sm:$0xf]
        %v987 = vld [vmem:[%s4 + $0x8] sm:$0xf]
        %v988 = vld [vmem:[%s4 + $0xc] sm:$0xf]
        %v989 = vld [vmem:[%s4 + $0x10] sm:$0xf]
        %v990 = vld [vmem:[%s4 + $0x14] sm:$0xf]
        %v991 = vld [vmem:[%s4 + $0x18] sm:$0xf]
        %v992 = vld [vmem:[%s4 + $0x1c] sm:$0xf]
        %v993 = vld [vmem:[%s4 + $0x20] sm:$0xf]
        %v994 = vld [vmem:[%s4 + $0x24] sm:$0xf]
        %v995 = vld [vmem:[%s4 + $0x28] sm:$0xf]
        %v996 = vld [vmem:[%s4 + $0x2c] sm:$0xf]
        %v997 = vld [vmem:[%s4 + $0x30] sm:$0xf]
        %v998 = vld [vmem:[%s4 + $0x34] sm:$0xf]
        %v999 = vld [vmem:[%s4 + $0x38] sm:$0xf]
        %v1000 = vld [vmem:[%s4 + $0x3c] sm:$0xf]
        %v1001 = vld [vmem:[%s7] sm:$0x1]
        %v1003 = vlaneseq
        %v1004 = vshrl.u32 %v1003, 7
        %v1005 = vsub.s32 0, %v1004
        %v1006 = vrot.slane %v1001, %v1005
        %v1024 = vunpack.c.l.b16 %v985
        %v1025 = vunpack.c.l.b16 %v986
        %v1026 = vunpack.c.l.b16 %v987
        %v1027 = vunpack.c.l.b16 %v988
        %v1028 = vunpack.c.l.b16 %v989
        %v1029 = vunpack.c.l.b16 %v990
        %v1030 = vunpack.c.l.b16 %v991
        %v1031 = vunpack.c.l.b16 %v992
        %v1032 = vunpack.c.l.b16 %v993
        %v1033 = vunpack.c.l.b16 %v994
        %v1034 = vunpack.c.l.b16 %v995
        %v1035 = vunpack.c.l.b16 %v996
        %v1036 = vunpack.c.l.b16 %v997
        %v1037 = vunpack.c.l.b16 %v998
        %v1038 = vunpack.c.l.b16 %v999
        %v1039 = vunpack.c.l.b16 %v1000
        %v1040 = vpack.c.b16 %v1025, %v1024
        %v1041 = vpack.c.b16 %v1027, %v1026
        %v1042 = vpack.c.b16 %v1029, %v1028
        %v1043 = vpack.c.b16 %v1031, %v1030
        %v1044 = vpack.c.b16 %v1033, %v1032
        %v1045 = vpack.c.b16 %v1035, %v1034
        %v1046 = vpack.c.b16 %v1037, %v1036
        %v1047 = vpack.c.b16 %v1039, %v1038
        %1056 = vmatprep.subr.bf16.mxu0 0
        %1057 = vmatpush1.bf16.msra.mxu0 %v1040
        %1058 = vmatprep.subr.bf16.mxu0 0
        %1059 = vmatpush1.bf16.msra.mxu0 %v1041
        %1060 = vmatprep.subr.bf16.mxu0 0
        %1061 = vmatpush1.bf16.msra.mxu0 %v1042
        %1062 = vmatprep.subr.bf16.mxu0 0
        %1063 = vmatpush1.bf16.msra.mxu0 %v1043
        %1064 = vmatprep.subr.bf16.mxu0 0
        %1065 = vmatpush1.bf16.msra.mxu0 %v1044
        %1066 = vmatprep.subr.bf16.mxu0 0
        %1067 = vmatpush1.bf16.msra.mxu0 %v1045
        %1068 = vmatprep.subr.bf16.mxu0 0
        %1069 = vmatpush1.bf16.msra.mxu0 %v1046
        %1070 = vmatprep.subr.bf16.mxu0 0
        %1071 = vmatpush1.bf16.msra.mxu0 %v1047
        %1072 = vmatprep.subr.bf16.mxu0 0
        %1073 = vmatpush1.bf16.msra.mxu0 0
        %1074 = vmatprep.subr.bf16.mxu0 0
        %1075 = vmatpush1.bf16.msra.mxu0 0
        %1076 = vmatprep.subr.bf16.mxu0 0
        %1077 = vmatpush1.bf16.msra.mxu0 0
        %1078 = vmatprep.subr.bf16.mxu0 0
        %1079 = vmatpush1.bf16.msra.mxu0 0
        %1080 = vmatprep.subr.bf16.mxu0 0
        %1081 = vmatpush1.bf16.msra.mxu0 0
        %1082 = vmatprep.subr.bf16.mxu0 0
        %1083 = vmatpush1.bf16.msra.mxu0 0
        %1084 = vmatprep.subr.bf16.mxu0 0
        %1085 = vmatpush1.bf16.msra.mxu0 0
        %1086 = vmatprep.subr.bf16.mxu0 0
        %1087 = vmatpush1.bf16.msra.mxu0 0
        %1088 = vmatprep.mubr.bf16.mxu0 0
        %1089 = vmatmul.mubr.bf16.gmra.mrb[0].mxu0 %v745
        %v1090 = vpop.f32.mrb[0].mxu0
        %v1091 = vadd.f32 %v1006, %v1090
        %v1092 = vpop.f32.mrb[0].mxu0
        %v1093 = vpop.f32.mrb[0].mxu0
        %v1094 = vadd.f32 %v1006, %v1093
        %v1095 = vpop.f32.mrb[0].mxu0
        %1096 = vmatprep.mubr.bf16.mxu0 0
        %1097 = vmatmul.mubr.bf16.gmra.mrb[0].mxu0 %v746
        %v1098 = vpop.f32.mrb[0].mxu0
        %v1099 = vadd.f32 %v1006, %v1098
        %v1100 = vpop.f32.mrb[0].mxu0
        %v1101 = vpop.f32.mrb[0].mxu0
        %v1102 = vpop.f32.mrb[0].mxu0
        %1103 = vdwg.mxu0
        %v1104 = vmul.f32 %v853, 0.125
        %v1105 = vmul.f32 %v856, 0.125
        %v1106 = vmul.f32 %v861, 0.125
        %v1107 = vpack.c.bf16 %v1105, %v1104
        %v1108 = vpack.c.bf16 %v1106, %v1106
        %v1109 = vpack.c.bf16 %v975, %v972
        %v1110 = vpack.c.bf16 %v980, %v980
        %vm1111 = vcmask 523264
        %v1113 = vsel %vm1111, %v1107, 0
        %v1116 = vsel %vm1111, %v1108, 0
        %v1119 = vsel %vm1111, %v1109, 0
        %v1122 = vsel %vm1111, %v1110, 0
        %1124 = vmatprep.subr.bf16.mxu0 0
        %1125 = vmatpush1.bf16.xpose.msra.mxu0 %v1119
        %1126 = vmatprep.subr.bf16.mxu0 0
        %1127 = vmatpush1.bf16.xpose.msra.mxu0 %v1122
        %1128 = vmatprep.subr.bf16.mxu0 0
        %1129 = vmatpush1.bf16.xpose.msra.mxu0 0
        %1130 = vmatprep.subr.bf16.mxu0 0
        %1131 = vmatpush1.bf16.xpose.msra.mxu0 0
        %1132 = vmatprep.subr.bf16.mxu0 0
        %1133 = vmatpush1.bf16.xpose.msra.mxu0 0
        %1134 = vmatprep.subr.bf16.mxu0 0
        %1135 = vmatpush1.bf16.xpose.msra.mxu0 0
        %1136 = vmatprep.subr.bf16.mxu0 0
        %1137 = vmatpush1.bf16.xpose.msra.mxu0 0
        %1138 = vmatprep.subr.bf16.mxu0 0
        %1139 = vmatpush1.bf16.xpose.msra.mxu0 0
        %1140 = vmatprep.subr.bf16.mxu0 0
        %1141 = vmatpush1.bf16.xpose.msra.mxu0 0
        %1142 = vmatprep.subr.bf16.mxu0 0
        %1143 = vmatpush1.bf16.xpose.msra.mxu0 0
        %1144 = vmatprep.subr.bf16.mxu0 0
        %1145 = vmatpush1.bf16.xpose.msra.mxu0 0
        %1146 = vmatprep.subr.bf16.mxu0 0
        %1147 = vmatpush1.bf16.xpose.msra.mxu0 0
        %1148 = vmatprep.subr.bf16.mxu0 0
        %1149 = vmatpush1.bf16.xpose.msra.mxu0 0
        %1150 = vmatprep.subr.bf16.mxu0 0
        %1151 = vmatpush1.bf16.xpose.msra.mxu0 0
        %1152 = vmatprep.subr.bf16.mxu0 0
        %1153 = vmatpush1.bf16.xpose.msra.mxu0 0
        %1154 = vmatprep.subr.bf16.mxu0 0
        %1155 = vmatpush1.bf16.xpose.msra.mxu0 0
        %1156 = vmatprep.mubr.bf16.mxu0 0
        %1157 = vmatmul.mubr.bf16.gmra.mrb[0].mxu0 %v1113
        %v1158 = vpop.f32.mrb[0].mxu0
        %v1159 = vadd.f32 0.0, %v1158
        %v1160 = vpop.f32.mrb[0].mxu0
        %v1161 = vpop.f32.mrb[0].mxu0
        %v1162 = vadd.f32 0.0, %v1161
        %v1163 = vpop.f32.mrb[0].mxu0
        %1164 = vmatprep.mubr.bf16.mxu0 0
        %1165 = vmatmul.mubr.bf16.gmra.mrb[0].mxu0 %v1116
        %v1166 = vpop.f32.mrb[0].mxu0
        %v1167 = vadd.f32 0.0, %v1166
        %v1168 = vpop.f32.mrb[0].mxu0
        %v1169 = vpop.f32.mrb[0].mxu0
        %v1170 = vpop.f32.mrb[0].mxu0
        %1171 = vdwg.mxu0
        %vm1172 = vcmask 138240
        %v1173 = vsel %vm1172, %v1159, -inf
        %1174 = vmax.xlane.f32.xlu0 %v1173
        %v1175 = vpop.xlane.xlu0 %1174
        %v1176 = vsel %vm1172, %v1162, -inf
        %1177 = vmax.xlane.f32.xlu0 %v1176
        %v1178 = vpop.xlane.xlu0 %1177
        %vm1179 = vcmask 131072
        %v1180 = vsel %vm1179, %v1167, -inf
        %1181 = vmax.xlane.f32.xlu0 %v1180
        %v1182 = vpop.xlane.xlu0 %1181
        %v1183 = vsub.f32 %v1159, %v1175
        %v1184 = vsub.f32 %v1162, %v1178
        %v1185 = vsub.f32 %v1167, %v1182
        %v1186 = vmul.f32 %v1183, 1.442695
        %v1187 = vpow.pop %v1186
        %v1188 = vmul.f32 %v1184, 1.442695
        %v1189 = vpow.pop %v1188
        %v1190 = vmul.f32 %v1185, 1.442695
        %v1191 = vpow.pop %v1190
        %v1192 = vsel %vm1172, %v1187, 0.0
        %1193 = vadd.xlane.f32.xlu0 %v1192
        %v1194 = vpop.xlane.xlu0 %1193
        %v1195 = vsel %vm1172, %v1189, 0.0
        %1196 = vadd.xlane.f32.xlu0 %v1195
        %v1197 = vpop.xlane.xlu0 %1196
        %v1198 = vsel %vm1179, %v1191, 0.0
        %1199 = vadd.xlane.f32.xlu0 %v1198
        %v1200 = vpop.xlane.xlu0 %1199
        %v1201 = vrcp.pop %v1194
        %v1202 = vrcp.pop %v1197
        %v1203 = vrcp.pop %v1200
        %v1204 = vmul.f32 %v1187, %v1201
        %v1205 = vmul.f32 %v1189, %v1202
        %v1206 = vmul.f32 %v1191, %v1203
        %v1207 = vpack.c.bf16 %v1205, %v1204
        %v1208 = vpack.c.bf16 %v1206, %v1206
        %v1209 = vpack.c.bf16 %v1094, %v1091
        %v1210 = vpack.c.bf16 %v1099, %v1099
        %v1212 = vsel %vm1172, %v1207, 0
        %v1215 = vsel %vm1172, %v1208, 0
        %vm1217 = vcmask 1040384
        %v1218 = vsel 0, 4294967295, 65535
        %v1219 = vsel %vm1217, %v1218, 0
        %v1221 = vand.u32 %v1210, %v1219
        %1223 = vmatprep.subr.bf16.mxu0 0
        %1224 = vmatpush1.bf16.msra.mxu0 %v1209
        %1225 = vmatprep.subr.bf16.mxu0 0
        %1226 = vmatpush1.bf16.msra.mxu0 %v1221
        %1227 = vmatprep.subr.bf16.mxu0 0
        %1228 = vmatpush1.bf16.msra.mxu0 0
        %1229 = vmatprep.subr.bf16.mxu0 0
        %1230 = vmatpush1.bf16.msra.mxu0 0
        %1231 = vmatprep.subr.bf16.mxu0 0
        %1232 = vmatpush1.bf16.msra.mxu0 0
        %1233 = vmatprep.subr.bf16.mxu0 0
        %1234 = vmatpush1.bf16.msra.mxu0 0
        %1235 = vmatprep.subr.bf16.mxu0 0
        %1236 = vmatpush1.bf16.msra.mxu0 0
        %1237 = vmatprep.subr.bf16.mxu0 0
        %1238 = vmatpush1.bf16.msra.mxu0 0
        %1239 = vmatprep.subr.bf16.mxu0 0
        %1240 = vmatpush1.bf16.msra.mxu0 0
        %1241 = vmatprep.subr.bf16.mxu0 0
        %1242 = vmatpush1.bf16.msra.mxu0 0
        %1243 = vmatprep.subr.bf16.mxu0 0
        %1244 = vmatpush1.bf16.msra.mxu0 0
        %1245 = vmatprep.subr.bf16.mxu0 0
        %1246 = vmatpush1.bf16.msra.mxu0 0
        %1247 = vmatprep.subr.bf16.mxu0 0
        %1248 = vmatpush1.bf16.msra.mxu0 0
        %1249 = vmatprep.subr.bf16.mxu0 0
        %1250 = vmatpush1.bf16.msra.mxu0 0
        %1251 = vmatprep.subr.bf16.mxu0 0
        %1252 = vmatpush1.bf16.msra.mxu0 0
        %1253 = vmatprep.subr.bf16.mxu0 0
        %1254 = vmatpush1.bf16.msra.mxu0 0
        %1255 = vmatprep.mubr.bf16.mxu0 0
        %1256 = vmatmul.mubr.bf16.gmra.mrb[0].mxu0 %v1212
        %v1257 = vpop.f32.mrb[0].mxu0
        %v1258 = vadd.f32 0.0, %v1257
        %v1259 = vpop.f32.mrb[0].mxu0
        %v1260 = vpop.f32.mrb[0].mxu0
        %v1261 = vadd.f32 0.0, %v1260
        %v1262 = vpop.f32.mrb[0].mxu0
        %1263 = vmatprep.mubr.bf16.mxu0 0
        %1264 = vmatmul.mubr.bf16.gmra.mrb[0].mxu0 %v1215
        %v1265 = vpop.f32.mrb[0].mxu0
        %v1266 = vadd.f32 0.0, %v1265
        %v1267 = vpop.f32.mrb[0].mxu0
        %v1268 = vpop.f32.mrb[0].mxu0
        %v1269 = vpop.f32.mrb[0].mxu0
        %1270 = vdwg.mxu0
        %v1271 = vpack.c.bf16 %v1261, %v1258
        %v1272 = vpack.c.bf16 %v1266, %v1266
        %v1273 = vld [vmem:[%s8] sm:$0xf]
        %v1274 = vld [vmem:[%s8 + $0x4] sm:$0xf]
        %v1275 = vld [vmem:[%s8 + $0x8] sm:$0xf]
        %v1276 = vld [vmem:[%s8 + $0xc] sm:$0xf]
        %v1277 = vld [vmem:[%s8 + $0x10] sm:$0xf]
        %v1278 = vld [vmem:[%s8 + $0x14] sm:$0xf]
        %v1279 = vld [vmem:[%s8 + $0x18] sm:$0xf]
        %v1280 = vld [vmem:[%s8 + $0x1c] sm:$0xf]
        %s1281 = scalar_lea.vmem %s2, 64
        %v1282 = vld [vmem:[%s1281] sm:$0xf]
        %v1283 = vld [vmem:[%s1281 + $0x4] sm:$0xf]
        %v1284 = vld [vmem:[%s1281 + $0x8] sm:$0xf]
        %v1285 = vld [vmem:[%s1281 + $0xc] sm:$0xf]
        %v1286 = vld [vmem:[%s1281 + $0x10] sm:$0xf]
        %v1287 = vld [vmem:[%s1281 + $0x14] sm:$0xf]
        %v1288 = vld [vmem:[%s1281 + $0x18] sm:$0xf]
        %v1289 = vld [vmem:[%s1281 + $0x1c] sm:$0xf]
        %v1290 = vld [vmem:[%s1281 + $0x20] sm:$0xf]
        %v1291 = vld [vmem:[%s1281 + $0x24] sm:$0xf]
        %v1292 = vld [vmem:[%s1281 + $0x28] sm:$0xf]
        %v1293 = vld [vmem:[%s1281 + $0x2c] sm:$0xf]
        %v1294 = vld [vmem:[%s1281 + $0x30] sm:$0xf]
        %v1295 = vld [vmem:[%s1281 + $0x34] sm:$0xf]
        %v1296 = vld [vmem:[%s1281 + $0x38] sm:$0xf]
        %v1297 = vld [vmem:[%s1281 + $0x3c] sm:$0xf]
        %s1298 = scalar_lea.vmem %s5, 1
        %v1299 = vld [vmem:[%s1298] sm:$0x1]
        %v1301 = vlaneseq
        %v1302 = vshrl.u32 %v1301, 7
        %v1303 = vsub.s32 0, %v1302
        %v1304 = vrot.slane %v1299, %v1303
        %v1322 = vunpack.c.l.b16 %v1282
        %v1323 = vunpack.c.l.b16 %v1283
        %v1324 = vunpack.c.l.b16 %v1284
        %v1325 = vunpack.c.l.b16 %v1285
        %v1326 = vunpack.c.l.b16 %v1286
        %v1327 = vunpack.c.l.b16 %v1287
        %v1328 = vunpack.c.l.b16 %v1288
        %v1329 = vunpack.c.l.b16 %v1289
        %v1330 = vunpack.c.l.b16 %v1290
        %v1331 = vunpack.c.l.b16 %v1291
        %v1332 = vunpack.c.l.b16 %v1292
        %v1333 = vunpack.c.l.b16 %v1293
        %v1334 = vunpack.c.l.b16 %v1294
        %v1335 = vunpack.c.l.b16 %v1295
        %v1336 = vunpack.c.l.b16 %v1296
        %v1337 = vunpack.c.l.b16 %v1297
        %v1338 = vpack.c.b16 %v1323, %v1322
        %v1339 = vpack.c.b16 %v1325, %v1324
        %v1340 = vpack.c.b16 %v1327, %v1326
        %v1341 = vpack.c.b16 %v1329, %v1328
        %v1342 = vpack.c.b16 %v1331, %v1330
        %v1343 = vpack.c.b16 %v1333, %v1332
        %v1344 = vpack.c.b16 %v1335, %v1334
        %v1345 = vpack.c.b16 %v1337, %v1336
        %1354 = vmatprep.subr.bf16.mxu0 0
        %1355 = vmatpush1.bf16.msra.mxu0 %v1338
        %1356 = vmatprep.subr.bf16.mxu0 0
        %1357 = vmatpush1.bf16.msra.mxu0 %v1339
        %1358 = vmatprep.subr.bf16.mxu0 0
        %1359 = vmatpush1.bf16.msra.mxu0 %v1340
        %1360 = vmatprep.subr.bf16.mxu0 0
        %1361 = vmatpush1.bf16.msra.mxu0 %v1341
        %1362 = vmatprep.subr.bf16.mxu0 0
        %1363 = vmatpush1.bf16.msra.mxu0 %v1342
        %1364 = vmatprep.subr.bf16.mxu0 0
        %1365 = vmatpush1.bf16.msra.mxu0 %v1343
        %1366 = vmatprep.subr.bf16.mxu0 0
        %1367 = vmatpush1.bf16.msra.mxu0 %v1344
        %1368 = vmatprep.subr.bf16.mxu0 0
        %1369 = vmatpush1.bf16.msra.mxu0 %v1345
        %1370 = vmatprep.subr.bf16.mxu0 0
        %1371 = vmatpush1.bf16.msra.mxu0 0
        %1372 = vmatprep.subr.bf16.mxu0 0
        %1373 = vmatpush1.bf16.msra.mxu0 0
        %1374 = vmatprep.subr.bf16.mxu0 0
        %1375 = vmatpush1.bf16.msra.mxu0 0
        %1376 = vmatprep.subr.bf16.mxu0 0
        %1377 = vmatpush1.bf16.msra.mxu0 0
        %1378 = vmatprep.subr.bf16.mxu0 0
        %1379 = vmatpush1.bf16.msra.mxu0 0
        %1380 = vmatprep.subr.bf16.mxu0 0
        %1381 = vmatpush1.bf16.msra.mxu0 0
        %1382 = vmatprep.subr.bf16.mxu0 0
        %1383 = vmatpush1.bf16.msra.mxu0 0
        %1384 = vmatprep.subr.bf16.mxu0 0
        %1385 = vmatpush1.bf16.msra.mxu0 0
        %1386 = vmatprep.mubr.bf16.mxu0 0
        %1387 = vmatmul.mubr.bf16.gmra.mrb[0].mxu0 %v745
        %v1388 = vpop.f32.mrb[0].mxu0
        %v1389 = vadd.f32 %v1304, %v1388
        %v1390 = vpop.f32.mrb[0].mxu0
        %v1391 = vpop.f32.mrb[0].mxu0
        %v1392 = vadd.f32 %v1304, %v1391
        %v1393 = vpop.f32.mrb[0].mxu0
        %1394 = vmatprep.mubr.bf16.mxu0 0
        %1395 = vmatmul.mubr.bf16.gmra.mrb[0].mxu0 %v746
        %v1396 = vpop.f32.mrb[0].mxu0
        %v1397 = vadd.f32 %v1304, %v1396
        %v1398 = vpop.f32.mrb[0].mxu0
        %v1399 = vpop.f32.mrb[0].mxu0
        %v1400 = vpop.f32.mrb[0].mxu0
        %1401 = vdwg.mxu0
        %s1402 = scalar_lea.vmem %s3, 64
        %v1403 = vld [vmem:[%s1402] sm:$0xf]
        %v1404 = vld [vmem:[%s1402 + $0x4] sm:$0xf]
        %v1405 = vld [vmem:[%s1402 + $0x8] sm:$0xf]
        %v1406 = vld [vmem:[%s1402 + $0xc] sm:$0xf]
        %v1407 = vld [vmem:[%s1402 + $0x10] sm:$0xf]
        %v1408 = vld [vmem:[%s1402 + $0x14] sm:$0xf]
        %v1409 = vld [vmem:[%s1402 + $0x18] sm:$0xf]
        %v1410 = vld [vmem:[%s1402 + $0x1c] sm:$0xf]
        %v1411 = vld [vmem:[%s1402 + $0x20] sm:$0xf]
        %v1412 = vld [vmem:[%s1402 + $0x24] sm:$0xf]
        %v1413 = vld [vmem:[%s1402 + $0x28] sm:$0xf]
        %v1414 = vld [vmem:[%s1402 + $0x2c] sm:$0xf]
        %v1415 = vld [vmem:[%s1402 + $0x30] sm:$0xf]
        %v1416 = vld [vmem:[%s1402 + $0x34] sm:$0xf]
        %v1417 = vld [vmem:[%s1402 + $0x38] sm:$0xf]
        %v1418 = vld [vmem:[%s1402 + $0x3c] sm:$0xf]
        %s1419 = scalar_lea.vmem %s6, 1
        %v1420 = vld [vmem:[%s1419] sm:$0x1]
        %v1422 = vlaneseq
        %v1423 = vshrl.u32 %v1422, 7
        %v1424 = vsub.s32 0, %v1423
        %v1425 = vrot.slane %v1420, %v1424
        %v1443 = vunpack.c.l.b16 %v1403
        %v1444 = vunpack.c.l.b16 %v1404
        %v1445 = vunpack.c.l.b16 %v1405
        %v1446 = vunpack.c.l.b16 %v1406
        %v1447 = vunpack.c.l.b16 %v1407
        %v1448 = vunpack.c.l.b16 %v1408
        %v1449 = vunpack.c.l.b16 %v1409
        %v1450 = vunpack.c.l.b16 %v1410
        %v1451 = vunpack.c.l.b16 %v1411
        %v1452 = vunpack.c.l.b16 %v1412
        %v1453 = vunpack.c.l.b16 %v1413
        %v1454 = vunpack.c.l.b16 %v1414
        %v1455 = vunpack.c.l.b16 %v1415
        %v1456 = vunpack.c.l.b16 %v1416
        %v1457 = vunpack.c.l.b16 %v1417
        %v1458 = vunpack.c.l.b16 %v1418
        %v1459 = vpack.c.b16 %v1444, %v1443
        %v1460 = vpack.c.b16 %v1446, %v1445
        %v1461 = vpack.c.b16 %v1448, %v1447
        %v1462 = vpack.c.b16 %v1450, %v1449
        %v1463 = vpack.c.b16 %v1452, %v1451
        %v1464 = vpack.c.b16 %v1454, %v1453
        %v1465 = vpack.c.b16 %v1456, %v1455
        %v1466 = vpack.c.b16 %v1458, %v1457
        %1475 = vmatprep.subr.bf16.mxu0 0
        %1476 = vmatpush1.bf16.msra.mxu0 %v1459
        %1477 = vmatprep.subr.bf16.mxu0 0
        %1478 = vmatpush1.bf16.msra.mxu0 %v1460
        %1479 = vmatprep.subr.bf16.mxu0 0
        %1480 = vmatpush1.bf16.msra.mxu0 %v1461
        %1481 = vmatprep.subr.bf16.mxu0 0
        %1482 = vmatpush1.bf16.msra.mxu0 %v1462
        %1483 = vmatprep.subr.bf16.mxu0 0
        %1484 = vmatpush1.bf16.msra.mxu0 %v1463
        %1485 = vmatprep.subr.bf16.mxu0 0
        %1486 = vmatpush1.bf16.msra.mxu0 %v1464
        %1487 = vmatprep.subr.bf16.mxu0 0
        %1488 = vmatpush1.bf16.msra.mxu0 %v1465
        %1489 = vmatprep.subr.bf16.mxu0 0
        %1490 = vmatpush1.bf16.msra.mxu0 %v1466
        %1491 = vmatprep.subr.bf16.mxu0 0
        %1492 = vmatpush1.bf16.msra.mxu0 0
        %1493 = vmatprep.subr.bf16.mxu0 0
        %1494 = vmatpush1.bf16.msra.mxu0 0
        %1495 = vmatprep.subr.bf16.mxu0 0
        %1496 = vmatpush1.bf16.msra.mxu0 0
        %1497 = vmatprep.subr.bf16.mxu0 0
        %1498 = vmatpush1.bf16.msra.mxu0 0
        %1499 = vmatprep.subr.bf16.mxu0 0
        %1500 = vmatpush1.bf16.msra.mxu0 0
        %1501 = vmatprep.subr.bf16.mxu0 0
        %1502 = vmatpush1.bf16.msra.mxu0 0
        %1503 = vmatprep.subr.bf16.mxu0 0
        %1504 = vmatpush1.bf16.msra.mxu0 0
        %1505 = vmatprep.subr.bf16.mxu0 0
        %1506 = vmatpush1.bf16.msra.mxu0 0
        %1507 = vmatprep.mubr.bf16.mxu0 0
        %1508 = vmatmul.mubr.bf16.gmra.mrb[0].mxu0 %v745
        %v1509 = vpop.f32.mrb[0].mxu0
        %v1510 = vadd.f32 %v1425, %v1509
        %v1511 = vpop.f32.mrb[0].mxu0
        %v1512 = vpop.f32.mrb[0].mxu0
        %v1513 = vadd.f32 %v1425, %v1512
        %v1514 = vpop.f32.mrb[0].mxu0
        %1515 = vmatprep.mubr.bf16.mxu0 0
        %1516 = vmatmul.mubr.bf16.gmra.mrb[0].mxu0 %v746
        %v1517 = vpop.f32.mrb[0].mxu0
        %v1518 = vadd.f32 %v1425, %v1517
        %v1519 = vpop.f32.mrb[0].mxu0
        %v1520 = vpop.f32.mrb[0].mxu0
        %v1521 = vpop.f32.mrb[0].mxu0
        %1522 = vdwg.mxu0
        %s1523 = scalar_lea.vmem %s4, 64
        %v1524 = vld [vmem:[%s1523] sm:$0xf]
        %v1525 = vld [vmem:[%s1523 + $0x4] sm:$0xf]
        %v1526 = vld [vmem:[%s1523 + $0x8] sm:$0xf]
        %v1527 = vld [vmem:[%s1523 + $0xc] sm:$0xf]
        %v1528 = vld [vmem:[%s1523 + $0x10] sm:$0xf]
        %v1529 = vld [vmem:[%s1523 + $0x14] sm:$0xf]
        %v1530 = vld [vmem:[%s1523 + $0x18] sm:$0xf]
        %v1531 = vld [vmem:[%s1523 + $0x1c] sm:$0xf]
        %v1532 = vld [vmem:[%s1523 + $0x20] sm:$0xf]
        %v1533 = vld [vmem:[%s1523 + $0x24] sm:$0xf]
        %v1534 = vld [vmem:[%s1523 + $0x28] sm:$0xf]
        %v1535 = vld [vmem:[%s1523 + $0x2c] sm:$0xf]
        %v1536 = vld [vmem:[%s1523 + $0x30] sm:$0xf]
        %v1537 = vld [vmem:[%s1523 + $0x34] sm:$0xf]
        %v1538 = vld [vmem:[%s1523 + $0x38] sm:$0xf]
        %v1539 = vld [vmem:[%s1523 + $0x3c] sm:$0xf]
        %s1540 = scalar_lea.vmem %s7, 1
        %v1541 = vld [vmem:[%s1540] sm:$0x1]
        %v1543 = vlaneseq
        %v1544 = vshrl.u32 %v1543, 7
        %v1545 = vsub.s32 0, %v1544
        %v1546 = vrot.slane %v1541, %v1545
        %v1564 = vunpack.c.l.b16 %v1524
        %v1565 = vunpack.c.l.b16 %v1525
        %v1566 = vunpack.c.l.b16 %v1526
        %v1567 = vunpack.c.l.b16 %v1527
        %v1568 = vunpack.c.l.b16 %v1528
        %v1569 = vunpack.c.l.b16 %v1529
        %v1570 = vunpack.c.l.b16 %v1530
        %v1571 = vunpack.c.l.b16 %v1531
        %v1572 = vunpack.c.l.b16 %v1532
        %v1573 = vunpack.c.l.b16 %v1533
        %v1574 = vunpack.c.l.b16 %v1534
        %v1575 = vunpack.c.l.b16 %v1535
        %v1576 = vunpack.c.l.b16 %v1536
        %v1577 = vunpack.c.l.b16 %v1537
        %v1578 = vunpack.c.l.b16 %v1538
        %v1579 = vunpack.c.l.b16 %v1539
        %v1580 = vpack.c.b16 %v1565, %v1564
        %v1581 = vpack.c.b16 %v1567, %v1566
        %v1582 = vpack.c.b16 %v1569, %v1568
        %v1583 = vpack.c.b16 %v1571, %v1570
        %v1584 = vpack.c.b16 %v1573, %v1572
        %v1585 = vpack.c.b16 %v1575, %v1574
        %v1586 = vpack.c.b16 %v1577, %v1576
        %v1587 = vpack.c.b16 %v1579, %v1578
        %1596 = vmatprep.subr.bf16.mxu0 0
        %1597 = vmatpush1.bf16.msra.mxu0 %v1580
        %1598 = vmatprep.subr.bf16.mxu0 0
        %1599 = vmatpush1.bf16.msra.mxu0 %v1581
        %1600 = vmatprep.subr.bf16.mxu0 0
        %1601 = vmatpush1.bf16.msra.mxu0 %v1582
        %1602 = vmatprep.subr.bf16.mxu0 0
        %1603 = vmatpush1.bf16.msra.mxu0 %v1583
        %1604 = vmatprep.subr.bf16.mxu0 0
        %1605 = vmatpush1.bf16.msra.mxu0 %v1584
        %1606 = vmatprep.subr.bf16.mxu0 0
        %1607 = vmatpush1.bf16.msra.mxu0 %v1585
        %1608 = vmatprep.subr.bf16.mxu0 0
        %1609 = vmatpush1.bf16.msra.mxu0 %v1586
        %1610 = vmatprep.subr.bf16.mxu0 0
        %1611 = vmatpush1.bf16.msra.mxu0 %v1587
        %1612 = vmatprep.subr.bf16.mxu0 0
        %1613 = vmatpush1.bf16.msra.mxu0 0
        %1614 = vmatprep.subr.bf16.mxu0 0
        %1615 = vmatpush1.bf16.msra.mxu0 0
        %1616 = vmatprep.subr.bf16.mxu0 0
        %1617 = vmatpush1.bf16.msra.mxu0 0
        %1618 = vmatprep.subr.bf16.mxu0 0
        %1619 = vmatpush1.bf16.msra.mxu0 0
        %1620 = vmatprep.subr.bf16.mxu0 0
        %1621 = vmatpush1.bf16.msra.mxu0 0
        %1622 = vmatprep.subr.bf16.mxu0 0
        %1623 = vmatpush1.bf16.msra.mxu0 0
        %1624 = vmatprep.subr.bf16.mxu0 0
        %1625 = vmatpush1.bf16.msra.mxu0 0
        %1626 = vmatprep.subr.bf16.mxu0 0
        %1627 = vmatpush1.bf16.msra.mxu0 0
        %1628 = vmatprep.mubr.bf16.mxu0 0
        %1629 = vmatmul.mubr.bf16.gmra.mrb[0].mxu0 %v745
        %v1630 = vpop.f32.mrb[0].mxu0
        %v1631 = vadd.f32 %v1546, %v1630
        %v1632 = vpop.f32.mrb[0].mxu0
        %v1633 = vpop.f32.mrb[0].mxu0
        %v1634 = vadd.f32 %v1546, %v1633
        %v1635 = vpop.f32.mrb[0].mxu0
        %1636 = vmatprep.mubr.bf16.mxu0 0
        %1637 = vmatmul.mubr.bf16.gmra.mrb[0].mxu0 %v746
        %v1638 = vpop.f32.mrb[0].mxu0
        %v1639 = vadd.f32 %v1546, %v1638
        %v1640 = vpop.f32.mrb[0].mxu0
        %v1641 = vpop.f32.mrb[0].mxu0
        %v1642 = vpop.f32.mrb[0].mxu0
        %1643 = vdwg.mxu0
        %v1644 = vmul.f32 %v1389, 0.125
        %v1645 = vmul.f32 %v1392, 0.125
        %v1646 = vmul.f32 %v1397, 0.125
        %v1647 = vpack.c.bf16 %v1645, %v1644
        %v1648 = vpack.c.bf16 %v1646, %v1646
        %v1649 = vpack.c.bf16 %v1513, %v1510
        %v1650 = vpack.c.bf16 %v1518, %v1518
        %v1652 = vsel %vm1111, %v1647, 0
        %v1655 = vsel %vm1111, %v1648, 0
        %v1658 = vsel %vm1111, %v1649, 0
        %v1661 = vsel %vm1111, %v1650, 0
        %1663 = vmatprep.subr.bf16.mxu0 0
        %1664 = vmatpush1.bf16.xpose.msra.mxu0 %v1658
        %1665 = vmatprep.subr.bf16.mxu0 0
        %1666 = vmatpush1.bf16.xpose.msra.mxu0 %v1661
        %1667 = vmatprep.subr.bf16.mxu0 0
        %1668 = vmatpush1.bf16.xpose.msra.mxu0 0
        %1669 = vmatprep.subr.bf16.mxu0 0
        %1670 = vmatpush1.bf16.xpose.msra.mxu0 0
        %1671 = vmatprep.subr.bf16.mxu0 0
        %1672 = vmatpush1.bf16.xpose.msra.mxu0 0
        %1673 = vmatprep.subr.bf16.mxu0 0
        %1674 = vmatpush1.bf16.xpose.msra.mxu0 0
        %1675 = vmatprep.subr.bf16.mxu0 0
        %1676 = vmatpush1.bf16.xpose.msra.mxu0 0
        %1677 = vmatprep.subr.bf16.mxu0 0
        %1678 = vmatpush1.bf16.xpose.msra.mxu0 0
        %1679 = vmatprep.subr.bf16.mxu0 0
        %1680 = vmatpush1.bf16.xpose.msra.mxu0 0
        %1681 = vmatprep.subr.bf16.mxu0 0
        %1682 = vmatpush1.bf16.xpose.msra.mxu0 0
        %1683 = vmatprep.subr.bf16.mxu0 0
        %1684 = vmatpush1.bf16.xpose.msra.mxu0 0
        %1685 = vmatprep.subr.bf16.mxu0 0
        %1686 = vmatpush1.bf16.xpose.msra.mxu0 0
        %1687 = vmatprep.subr.bf16.mxu0 0
        %1688 = vmatpush1.bf16.xpose.msra.mxu0 0
        %1689 = vmatprep.subr.bf16.mxu0 0
        %1690 = vmatpush1.bf16.xpose.msra.mxu0 0
        %1691 = vmatprep.subr.bf16.mxu0 0
        %1692 = vmatpush1.bf16.xpose.msra.mxu0 0
        %1693 = vmatprep.subr.bf16.mxu0 0
        %1694 = vmatpush1.bf16.xpose.msra.mxu0 0
        %1695 = vmatprep.mubr.bf16.mxu0 0
        %1696 = vmatmul.mubr.bf16.gmra.mrb[0].mxu0 %v1652
        %v1697 = vpop.f32.mrb[0].mxu0
        %v1698 = vadd.f32 0.0, %v1697
        %v1699 = vpop.f32.mrb[0].mxu0
        %v1700 = vpop.f32.mrb[0].mxu0
        %v1701 = vadd.f32 0.0, %v1700
        %v1702 = vpop.f32.mrb[0].mxu0
        %1703 = vmatprep.mubr.bf16.mxu0 0
        %1704 = vmatmul.mubr.bf16.gmra.mrb[0].mxu0 %v1655
        %v1705 = vpop.f32.mrb[0].mxu0
        %v1706 = vadd.f32 0.0, %v1705
        %v1707 = vpop.f32.mrb[0].mxu0
        %v1708 = vpop.f32.mrb[0].mxu0
        %v1709 = vpop.f32.mrb[0].mxu0
        %1710 = vdwg.mxu0
        %v1711 = vsel %vm1172, %v1698, -inf
        %1712 = vmax.xlane.f32.xlu0 %v1711
        %v1713 = vpop.xlane.xlu0 %1712
        %v1714 = vsel %vm1172, %v1701, -inf
        %1715 = vmax.xlane.f32.xlu0 %v1714
        %v1716 = vpop.xlane.xlu0 %1715
        %v1717 = vsel %vm1179, %v1706, -inf
        %1718 = vmax.xlane.f32.xlu0 %v1717
        %v1719 = vpop.xlane.xlu0 %1718
        %v1720 = vsub.f32 %v1698, %v1713
        %v1721 = vsub.f32 %v1701, %v1716
        %v1722 = vsub.f32 %v1706, %v1719
        %v1723 = vmul.f32 %v1720, 1.442695
        %v1724 = vpow.pop %v1723
        %v1725 = vmul.f32 %v1721, 1.442695
        %v1726 = vpow.pop %v1725
        %v1727 = vmul.f32 %v1722, 1.442695
        %v1728 = vpow.pop %v1727
        %v1729 = vsel %vm1172, %v1724, 0.0
        %1730 = vadd.xlane.f32.xlu0 %v1729
        %v1731 = vpop.xlane.xlu0 %1730
        %v1732 = vsel %vm1172, %v1726, 0.0
        %1733 = vadd.xlane.f32.xlu0 %v1732
        %v1734 = vpop.xlane.xlu0 %1733
        %v1735 = vsel %vm1179, %v1728, 0.0
        %1736 = vadd.xlane.f32.xlu0 %v1735
        %v1737 = vpop.xlane.xlu0 %1736
        %v1738 = vrcp.pop %v1731
        %v1739 = vrcp.pop %v1734
        %v1740 = vrcp.pop %v1737
        %v1741 = vmul.f32 %v1724, %v1738
        %v1742 = vmul.f32 %v1726, %v1739
        %v1743 = vmul.f32 %v1728, %v1740
        %v1744 = vpack.c.bf16 %v1742, %v1741
        %v1745 = vpack.c.bf16 %v1743, %v1743
        %v1746 = vpack.c.bf16 %v1634, %v1631
        %v1747 = vpack.c.bf16 %v1639, %v1639
        %v1749 = vsel %vm1172, %v1744, 0
        %v1752 = vsel %vm1172, %v1745, 0
        %v1755 = vand.u32 %v1747, %v1219
        %1757 = vmatprep.subr.bf16.mxu0 0
        %1758 = vmatpush1.bf16.msra.mxu0 %v1746
        %1759 = vmatprep.subr.bf16.mxu0 0
        %1760 = vmatpush1.bf16.msra.mxu0 %v1755
        %1761 = vmatprep.subr.bf16.mxu0 0
        %1762 = vmatpush1.bf16.msra.mxu0 0
        %1763 = vmatprep.subr.bf16.mxu0 0
        %1764 = vmatpush1.bf16.msra.mxu0 0
        %1765 = vmatprep.subr.bf16.mxu0 0
        %1766 = vmatpush1.bf16.msra.mxu0 0
        %1767 = vmatprep.subr.bf16.mxu0 0
        %1768 = vmatpush1.bf16.msra.mxu0 0
        %1769 = vmatprep.subr.bf16.mxu0 0
        %1770 = vmatpush1.bf16.msra.mxu0 0
        %1771 = vmatprep.subr.bf16.mxu0 0
        %1772 = vmatpush1.bf16.msra.mxu0 0
        %1773 = vmatprep.subr.bf16.mxu0 0
        %1774 = vmatpush1.bf16.msra.mxu0 0
        %1775 = vmatprep.subr.bf16.mxu0 0
        %1776 = vmatpush1.bf16.msra.mxu0 0
        %1777 = vmatprep.subr.bf16.mxu0 0
        %1778 = vmatpush1.bf16.msra.mxu0 0
        %1779 = vmatprep.subr.bf16.mxu0 0
        %1780 = vmatpush1.bf16.msra.mxu0 0
        %1781 = vmatprep.subr.bf16.mxu0 0
        %1782 = vmatpush1.bf16.msra.mxu0 0
        %1783 = vmatprep.subr.bf16.mxu0 0
        %1784 = vmatpush1.bf16.msra.mxu0 0
        %1785 = vmatprep.subr.bf16.mxu0 0
        %1786 = vmatpush1.bf16.msra.mxu0 0
        %1787 = vmatprep.subr.bf16.mxu0 0
        %1788 = vmatpush1.bf16.msra.mxu0 0
        %1789 = vmatprep.mubr.bf16.mxu0 0
        %1790 = vmatmul.mubr.bf16.gmra.mrb[0].mxu0 %v1749
        %v1791 = vpop.f32.mrb[0].mxu0
        %v1792 = vadd.f32 0.0, %v1791
        %v1793 = vpop.f32.mrb[0].mxu0
        %v1794 = vpop.f32.mrb[0].mxu0
        %v1795 = vadd.f32 0.0, %v1794
        %v1796 = vpop.f32.mrb[0].mxu0
        %1797 = vmatprep.mubr.bf16.mxu0 0
        %1798 = vmatmul.mubr.bf16.gmra.mrb[0].mxu0 %v1752
        %v1799 = vpop.f32.mrb[0].mxu0
        %v1800 = vadd.f32 0.0, %v1799
        %v1801 = vpop.f32.mrb[0].mxu0
        %v1802 = vpop.f32.mrb[0].mxu0
        %v1803 = vpop.f32.mrb[0].mxu0
        %1804 = vdwg.mxu0
        %v1805 = vpack.c.bf16 %v1795, %v1792
        %v1806 = vpack.c.bf16 %v1800, %v1800
        %s1807 = scalar_lea.vmem %s8, 32
        %v1808 = vld [vmem:[%s1807] sm:$0xf]
        %v1809 = vld [vmem:[%s1807 + $0x4] sm:$0xf]
        %v1810 = vld [vmem:[%s1807 + $0x8] sm:$0xf]
        %v1811 = vld [vmem:[%s1807 + $0xc] sm:$0xf]
        %v1812 = vld [vmem:[%s1807 + $0x10] sm:$0xf]
        %v1813 = vld [vmem:[%s1807 + $0x14] sm:$0xf]
        %v1814 = vld [vmem:[%s1807 + $0x18] sm:$0xf]
        %v1815 = vld [vmem:[%s1807 + $0x1c] sm:$0xf]
        %v1824 = vunpack.c.l.b16 %v1808
        %v1825 = vunpack.c.l.b16 %v1809
        %v1826 = vunpack.c.l.b16 %v1810
        %v1827 = vunpack.c.l.b16 %v1811
        %v1828 = vunpack.c.l.b16 %v1812
        %v1829 = vunpack.c.l.b16 %v1813
        %v1830 = vunpack.c.l.b16 %v1814
        %v1831 = vunpack.c.l.b16 %v1815
        %v1832 = vpack.c.b16 %v1825, %v1824
        %v1833 = vpack.c.b16 %v1827, %v1826
        %v1834 = vpack.c.b16 %v1829, %v1828
        %v1835 = vpack.c.b16 %v1831, %v1830
        %v1841 = vsel %vm1111, %v1805, 0
        %v1844 = vsel %vm1111, %v1806, 0
        %1846 = vmatprep.subr.bf16.mxu0 0
        %1847 = vmatpush1.bf16.msra.mxu0 %v1832
        %1848 = vmatprep.subr.bf16.mxu0 0
        %1849 = vmatpush1.bf16.msra.mxu0 %v1833
        %1850 = vmatprep.subr.bf16.mxu0 0
        %1851 = vmatpush1.bf16.msra.mxu0 %v1834
        %1852 = vmatprep.subr.bf16.mxu0 0
        %1853 = vmatpush1.bf16.msra.mxu0 %v1835
        %1854 = vmatprep.subr.bf16.mxu0 0
        %1855 = vmatpush1.bf16.msra.mxu0 0
        %1856 = vmatprep.subr.bf16.mxu0 0
        %1857 = vmatpush1.bf16.msra.mxu0 0
        %1858 = vmatprep.subr.bf16.mxu0 0
        %1859 = vmatpush1.bf16.msra.mxu0 0
        %1860 = vmatprep.subr.bf16.mxu0 0
        %1861 = vmatpush1.bf16.msra.mxu0 0
        %1862 = vmatprep.subr.bf16.mxu0 0
        %1863 = vmatpush1.bf16.msra.mxu0 0
        %1864 = vmatprep.subr.bf16.mxu0 0
        %1865 = vmatpush1.bf16.msra.mxu0 0
        %1866 = vmatprep.subr.bf16.mxu0 0
        %1867 = vmatpush1.bf16.msra.mxu0 0
        %1868 = vmatprep.subr.bf16.mxu0 0
        %1869 = vmatpush1.bf16.msra.mxu0 0
        %1870 = vmatprep.subr.bf16.mxu0 0
        %1871 = vmatpush1.bf16.msra.mxu0 0
        %1872 = vmatprep.subr.bf16.mxu0 0
        %1873 = vmatpush1.bf16.msra.mxu0 0
        %1874 = vmatprep.subr.bf16.mxu0 0
        %1875 = vmatpush1.bf16.msra.mxu0 0
        %1876 = vmatprep.subr.bf16.mxu0 0
        %1877 = vmatpush1.bf16.msra.mxu0 0
        %1878 = vmatprep.mubr.bf16.mxu0 0
        %1879 = vmatmul.mubr.bf16.gmra.mrb[0].mxu0 %v1841
        %v1880 = vpop.f32.mrb[0].mxu0
        %v1881 = vadd.f32 0.0, %v1880
        %v1882 = vpop.f32.mrb[0].mxu0
        %v1883 = vpop.f32.mrb[0].mxu0
        %v1884 = vadd.f32 0.0, %v1883
        %v1885 = vpop.f32.mrb[0].mxu0
        %1886 = vmatprep.mubr.bf16.mxu0 0
        %1887 = vmatmul.mubr.bf16.gmra.mrb[0].mxu0 %v1844
        %v1888 = vpop.f32.mrb[0].mxu0
        %v1889 = vadd.f32 0.0, %v1888
        %v1890 = vpop.f32.mrb[0].mxu0
        %v1891 = vpop.f32.mrb[0].mxu0
        %v1892 = vpop.f32.mrb[0].mxu0
        %1893 = vdwg.mxu0
        %v1902 = vunpack.c.l.b16 %v1273
        %v1903 = vunpack.c.l.b16 %v1274
        %v1904 = vunpack.c.l.b16 %v1275
        %v1905 = vunpack.c.l.b16 %v1276
        %v1906 = vunpack.c.l.b16 %v1277
        %v1907 = vunpack.c.l.b16 %v1278
        %v1908 = vunpack.c.l.b16 %v1279
        %v1909 = vunpack.c.l.b16 %v1280
        %v1910 = vpack.c.b16 %v1903, %v1902
        %v1911 = vpack.c.b16 %v1905, %v1904
        %v1912 = vpack.c.b16 %v1907, %v1906
        %v1913 = vpack.c.b16 %v1909, %v1908
        %v1919 = vsel %vm1111, %v1271, 0
        %v1922 = vsel %vm1111, %v1272, 0
        %1924 = vmatprep.subr.bf16.mxu0 0
        %1925 = vmatpush1.bf16.msra.mxu0 %v1910
        %1926 = vmatprep.subr.bf16.mxu0 0
        %1927 = vmatpush1.bf16.msra.mxu0 %v1911
        %1928 = vmatprep.subr.bf16.mxu0 0
        %1929 = vmatpush1.bf16.msra.mxu0 %v1912
        %1930 = vmatprep.subr.bf16.mxu0 0
        %1931 = vmatpush1.bf16.msra.mxu0 %v1913
        %1932 = vmatprep.subr.bf16.mxu0 0
        %1933 = vmatpush1.bf16.msra.mxu0 0
        %1934 = vmatprep.subr.bf16.mxu0 0
        %1935 = vmatpush1.bf16.msra.mxu0 0
        %1936 = vmatprep.subr.bf16.mxu0 0
        %1937 = vmatpush1.bf16.msra.mxu0 0
        %1938 = vmatprep.subr.bf16.mxu0 0
        %1939 = vmatpush1.bf16.msra.mxu0 0
        %1940 = vmatprep.subr.bf16.mxu0 0
        %1941 = vmatpush1.bf16.msra.mxu0 0
        %1942 = vmatprep.subr.bf16.mxu0 0
        %1943 = vmatpush1.bf16.msra.mxu0 0
        %1944 = vmatprep.subr.bf16.mxu0 0
        %1945 = vmatpush1.bf16.msra.mxu0 0
        %1946 = vmatprep.subr.bf16.mxu0 0
        %1947 = vmatpush1.bf16.msra.mxu0 0
        %1948 = vmatprep.subr.bf16.mxu0 0
        %1949 = vmatpush1.bf16.msra.mxu0 0
        %1950 = vmatprep.subr.bf16.mxu0 0
        %1951 = vmatpush1.bf16.msra.mxu0 0
        %1952 = vmatprep.subr.bf16.mxu0 0
        %1953 = vmatpush1.bf16.msra.mxu0 0
        %1954 = vmatprep.subr.bf16.mxu0 0
        %1955 = vmatpush1.bf16.msra.mxu0 0
        %1956 = vmatprep.mubr.bf16.mxu0 0
        %1957 = vmatmul.mubr.bf16.gmra.mrb[0].mxu0 %v1919
        %v1958 = vpop.f32.mrb[0].mxu0
        %v1959 = vadd.f32 %v1881, %v1958
        %v1960 = vpop.f32.mrb[0].mxu0
        %v1961 = vpop.f32.mrb[0].mxu0
        %v1962 = vadd.f32 %v1884, %v1961
        %v1963 = vpop.f32.mrb[0].mxu0
        %1964 = vmatprep.mubr.bf16.mxu0 0
        %1965 = vmatmul.mubr.bf16.gmra.mrb[0].mxu0 %v1922
        %v1966 = vpop.f32.mrb[0].mxu0
        %v1967 = vadd.f32 %v1889, %v1966
        %v1968 = vpop.f32.mrb[0].mxu0
        %v1969 = vpop.f32.mrb[0].mxu0
        %v1970 = vpop.f32.mrb[0].mxu0
        %1971 = vdwg.mxu0
        %v1972 = vld [vmem:[%s9] sm:$0x1]
        %v1974 = vlaneseq
        %v1975 = vshrl.u32 %v1974, 7
        %v1976 = vsub.s32 0, %v1975
        %v1977 = vrot.slane %v1972, %v1976
        %v1979 = vadd.f32 %v1959, %v1977
        %v1980 = vadd.f32 %v1962, %v1977
        %v1981 = vadd.f32 %v1967, %v1977
        %v1982 = vadd.f32 %v739, %v1979
        %v1983 = vadd.f32 %v740, %v1980
        %v1984 = vadd.f32 %v741, %v1981
        %1985 = vadd.xlane.f32.xlu0 %v1982
        %v1986 = vpop.xlane.xlu0 %1985
        %1987 = vadd.xlane.f32.xlu0 %v1983
        %v1988 = vpop.xlane.xlu0 %1987
        %v1989 = vsel %vm1217, %v1984, 0.0
        %1990 = vadd.xlane.f32.xlu0 %v1989
        %v1991 = vpop.xlane.xlu0 %1990
        %v1992 = vrcp.pop 128.0
        %v1993 = vmul.f32 %v1986, %v1992
        %v1994 = vmul.f32 %v1988, %v1992
        %v1995 = vmul.f32 %v1991, %v1992
        %v1996 = vsub.f32 %v1982, %v1993
        %v1997 = vsub.f32 %v1983, %v1994
        %v1998 = vsub.f32 %v1984, %v1995
        %v1999 = vmul.f32 %v1996, %v1996
        %v2000 = vmul.f32 %v1997, %v1997
        %v2001 = vmul.f32 %v1998, %v1998
        %2002 = vadd.xlane.f32.xlu0 %v1999
        %v2003 = vpop.xlane.xlu0 %2002
        %2004 = vadd.xlane.f32.xlu0 %v2000
        %v2005 = vpop.xlane.xlu0 %2004
        %v2006 = vsel %vm1217, %v2001, 0.0
        %2007 = vadd.xlane.f32.xlu0 %v2006
        %v2008 = vpop.xlane.xlu0 %2007
        %v2009 = vmul.f32 %v2003, %v1992
        %v2010 = vmul.f32 %v2005, %v1992
        %v2011 = vmul.f32 %v2008, %v1992
        %v2012 = vadd.f32 %v2009, 1e-05
        %v2013 = vadd.f32 %v2010, 1e-05
        %v2014 = vadd.f32 %v2011, 1e-05
        %v2015 = vrsqrt.pop %v2012
        %v2016 = vrsqrt.pop %v2013
        %v2017 = vrsqrt.pop %v2014
        %v2018 = vmul.f32 %v1996, %v2015
        %v2019 = vmul.f32 %v1997, %v2016
        %v2020 = vmul.f32 %v1998, %v2017
        %v2021 = vld [vmem:[%s18] sm:$0x1]
        %v2023 = vlaneseq
        %v2024 = vshrl.u32 %v2023, 7
        %v2025 = vsub.s32 0, %v2024
        %v2026 = vrot.slane %v2021, %v2025
        %v2028 = vmul.f32 %v2018, %v2026
        %v2029 = vmul.f32 %v2019, %v2026
        %v2030 = vmul.f32 %v2020, %v2026
        %v2031 = vld [vmem:[%s19] sm:$0x1]
        %v2033 = vlaneseq
        %v2034 = vshrl.u32 %v2033, 7
        %v2035 = vsub.s32 0, %v2034
        %v2036 = vrot.slane %v2031, %v2035
        %v2038 = vadd.f32 %v2028, %v2036
        %v2039 = vadd.f32 %v2029, %v2036
        %v2040 = vadd.f32 %v2030, %v2036
        %v2041 = vpack.c.bf16 %v2039, %v2038
        %v2042 = vpack.c.bf16 %v2040, %v2040
        %v2043 = vpack.c.bf16 %v743, %v742
        %v2044 = vpack.c.bf16 %v744, %v744
        %v2045 = vld [vmem:[%s10] sm:$0xf]
        %v2046 = vld [vmem:[%s10 + $0x4] sm:$0xf]
        %v2047 = vld [vmem:[%s10 + $0x8] sm:$0xf]
        %v2048 = vld [vmem:[%s10 + $0xc] sm:$0xf]
        %v2049 = vld [vmem:[%s10 + $0x10] sm:$0xf]
        %v2050 = vld [vmem:[%s10 + $0x14] sm:$0xf]
        %v2051 = vld [vmem:[%s10 + $0x18] sm:$0xf]
        %v2052 = vld [vmem:[%s10 + $0x1c] sm:$0xf]
        %v2053 = vld [vmem:[%s10 + $0x20] sm:$0xf]
        %v2054 = vld [vmem:[%s10 + $0x24] sm:$0xf]
        %v2055 = vld [vmem:[%s10 + $0x28] sm:$0xf]
        %v2056 = vld [vmem:[%s10 + $0x2c] sm:$0xf]
        %v2057 = vld [vmem:[%s10 + $0x30] sm:$0xf]
        %v2058 = vld [vmem:[%s10 + $0x34] sm:$0xf]
        %v2059 = vld [vmem:[%s10 + $0x38] sm:$0xf]
        %v2060 = vld [vmem:[%s10 + $0x3c] sm:$0xf]
        %v2061 = vld [vmem:[%s13] sm:$0x1]
        %v2063 = vlaneseq
        %v2064 = vshrl.u32 %v2063, 7
        %v2065 = vsub.s32 0, %v2064
        %v2066 = vrot.slane %v2061, %v2065
        %v2084 = vunpack.c.l.b16 %v2045
        %v2085 = vunpack.c.l.b16 %v2046
        %v2086 = vunpack.c.l.b16 %v2047
        %v2087 = vunpack.c.l.b16 %v2048
        %v2088 = vunpack.c.l.b16 %v2049
        %v2089 = vunpack.c.l.b16 %v2050
        %v2090 = vunpack.c.l.b16 %v2051
        %v2091 = vunpack.c.l.b16 %v2052
        %v2092 = vunpack.c.l.b16 %v2053
        %v2093 = vunpack.c.l.b16 %v2054
        %v2094 = vunpack.c.l.b16 %v2055
        %v2095 = vunpack.c.l.b16 %v2056
        %v2096 = vunpack.c.l.b16 %v2057
        %v2097 = vunpack.c.l.b16 %v2058
        %v2098 = vunpack.c.l.b16 %v2059
        %v2099 = vunpack.c.l.b16 %v2060
        %v2100 = vpack.c.b16 %v2085, %v2084
        %v2101 = vpack.c.b16 %v2087, %v2086
        %v2102 = vpack.c.b16 %v2089, %v2088
        %v2103 = vpack.c.b16 %v2091, %v2090
        %v2104 = vpack.c.b16 %v2093, %v2092
        %v2105 = vpack.c.b16 %v2095, %v2094
        %v2106 = vpack.c.b16 %v2097, %v2096
        %v2107 = vpack.c.b16 %v2099, %v2098
        %2116 = vmatprep.subr.bf16.mxu0 0
        %2117 = vmatpush1.bf16.msra.mxu0 %v2100
        %2118 = vmatprep.subr.bf16.mxu0 0
        %2119 = vmatpush1.bf16.msra.mxu0 %v2101
        %2120 = vmatprep.subr.bf16.mxu0 0
        %2121 = vmatpush1.bf16.msra.mxu0 %v2102
        %2122 = vmatprep.subr.bf16.mxu0 0
        %2123 = vmatpush1.bf16.msra.mxu0 %v2103
        %2124 = vmatprep.subr.bf16.mxu0 0
        %2125 = vmatpush1.bf16.msra.mxu0 %v2104
        %2126 = vmatprep.subr.bf16.mxu0 0
        %2127 = vmatpush1.bf16.msra.mxu0 %v2105
        %2128 = vmatprep.subr.bf16.mxu0 0
        %2129 = vmatpush1.bf16.msra.mxu0 %v2106
        %2130 = vmatprep.subr.bf16.mxu0 0
        %2131 = vmatpush1.bf16.msra.mxu0 %v2107
        %2132 = vmatprep.subr.bf16.mxu0 0
        %2133 = vmatpush1.bf16.msra.mxu0 0
        %2134 = vmatprep.subr.bf16.mxu0 0
        %2135 = vmatpush1.bf16.msra.mxu0 0
        %2136 = vmatprep.subr.bf16.mxu0 0
        %2137 = vmatpush1.bf16.msra.mxu0 0
        %2138 = vmatprep.subr.bf16.mxu0 0
        %2139 = vmatpush1.bf16.msra.mxu0 0
        %2140 = vmatprep.subr.bf16.mxu0 0
        %2141 = vmatpush1.bf16.msra.mxu0 0
        %2142 = vmatprep.subr.bf16.mxu0 0
        %2143 = vmatpush1.bf16.msra.mxu0 0
        %2144 = vmatprep.subr.bf16.mxu0 0
        %2145 = vmatpush1.bf16.msra.mxu0 0
        %2146 = vmatprep.subr.bf16.mxu0 0
        %2147 = vmatpush1.bf16.msra.mxu0 0
        %2148 = vmatprep.mubr.bf16.mxu0 0
        %2149 = vmatmul.mubr.bf16.gmra.mrb[0].mxu0 %v2041
        %v2150 = vpop.f32.mrb[0].mxu0
        %v2151 = vadd.f32 %v2066, %v2150
        %v2152 = vpop.f32.mrb[0].mxu0
        %v2153 = vpop.f32.mrb[0].mxu0
        %v2154 = vadd.f32 %v2066, %v2153
        %v2155 = vpop.f32.mrb[0].mxu0
        %2156 = vmatprep.mubr.bf16.mxu0 0
        %2157 = vmatmul.mubr.bf16.gmra.mrb[0].mxu0 %v2042
        %v2158 = vpop.f32.mrb[0].mxu0
        %v2159 = vadd.f32 %v2066, %v2158
        %v2160 = vpop.f32.mrb[0].mxu0
        %v2161 = vpop.f32.mrb[0].mxu0
        %v2162 = vpop.f32.mrb[0].mxu0
        %2163 = vdwg.mxu0
        %v2164 = vld [vmem:[%s11] sm:$0xf]
        %v2165 = vld [vmem:[%s11 + $0x4] sm:$0xf]
        %v2166 = vld [vmem:[%s11 + $0x8] sm:$0xf]
        %v2167 = vld [vmem:[%s11 + $0xc] sm:$0xf]
        %v2168 = vld [vmem:[%s11 + $0x10] sm:$0xf]
        %v2169 = vld [vmem:[%s11 + $0x14] sm:$0xf]
        %v2170 = vld [vmem:[%s11 + $0x18] sm:$0xf]
        %v2171 = vld [vmem:[%s11 + $0x1c] sm:$0xf]
        %v2172 = vld [vmem:[%s11 + $0x20] sm:$0xf]
        %v2173 = vld [vmem:[%s11 + $0x24] sm:$0xf]
        %v2174 = vld [vmem:[%s11 + $0x28] sm:$0xf]
        %v2175 = vld [vmem:[%s11 + $0x2c] sm:$0xf]
        %v2176 = vld [vmem:[%s11 + $0x30] sm:$0xf]
        %v2177 = vld [vmem:[%s11 + $0x34] sm:$0xf]
        %v2178 = vld [vmem:[%s11 + $0x38] sm:$0xf]
        %v2179 = vld [vmem:[%s11 + $0x3c] sm:$0xf]
        %v2180 = vld [vmem:[%s14] sm:$0x1]
        %v2182 = vlaneseq
        %v2183 = vshrl.u32 %v2182, 7
        %v2184 = vsub.s32 0, %v2183
        %v2185 = vrot.slane %v2180, %v2184
        %v2203 = vunpack.c.l.b16 %v2164
        %v2204 = vunpack.c.l.b16 %v2165
        %v2205 = vunpack.c.l.b16 %v2166
        %v2206 = vunpack.c.l.b16 %v2167
        %v2207 = vunpack.c.l.b16 %v2168
        %v2208 = vunpack.c.l.b16 %v2169
        %v2209 = vunpack.c.l.b16 %v2170
        %v2210 = vunpack.c.l.b16 %v2171
        %v2211 = vunpack.c.l.b16 %v2172
        %v2212 = vunpack.c.l.b16 %v2173
        %v2213 = vunpack.c.l.b16 %v2174
        %v2214 = vunpack.c.l.b16 %v2175
        %v2215 = vunpack.c.l.b16 %v2176
        %v2216 = vunpack.c.l.b16 %v2177
        %v2217 = vunpack.c.l.b16 %v2178
        %v2218 = vunpack.c.l.b16 %v2179
        %v2219 = vpack.c.b16 %v2204, %v2203
        %v2220 = vpack.c.b16 %v2206, %v2205
        %v2221 = vpack.c.b16 %v2208, %v2207
        %v2222 = vpack.c.b16 %v2210, %v2209
        %v2223 = vpack.c.b16 %v2212, %v2211
        %v2224 = vpack.c.b16 %v2214, %v2213
        %v2225 = vpack.c.b16 %v2216, %v2215
        %v2226 = vpack.c.b16 %v2218, %v2217
        %2235 = vmatprep.subr.bf16.mxu0 0
        %2236 = vmatpush1.bf16.msra.mxu0 %v2219
        %2237 = vmatprep.subr.bf16.mxu0 0
        %2238 = vmatpush1.bf16.msra.mxu0 %v2220
        %2239 = vmatprep.subr.bf16.mxu0 0
        %2240 = vmatpush1.bf16.msra.mxu0 %v2221
        %2241 = vmatprep.subr.bf16.mxu0 0
        %2242 = vmatpush1.bf16.msra.mxu0 %v2222
        %2243 = vmatprep.subr.bf16.mxu0 0
        %2244 = vmatpush1.bf16.msra.mxu0 %v2223
        %2245 = vmatprep.subr.bf16.mxu0 0
        %2246 = vmatpush1.bf16.msra.mxu0 %v2224
        %2247 = vmatprep.subr.bf16.mxu0 0
        %2248 = vmatpush1.bf16.msra.mxu0 %v2225
        %2249 = vmatprep.subr.bf16.mxu0 0
        %2250 = vmatpush1.bf16.msra.mxu0 %v2226
        %2251 = vmatprep.subr.bf16.mxu0 0
        %2252 = vmatpush1.bf16.msra.mxu0 0
        %2253 = vmatprep.subr.bf16.mxu0 0
        %2254 = vmatpush1.bf16.msra.mxu0 0
        %2255 = vmatprep.subr.bf16.mxu0 0
        %2256 = vmatpush1.bf16.msra.mxu0 0
        %2257 = vmatprep.subr.bf16.mxu0 0
        %2258 = vmatpush1.bf16.msra.mxu0 0
        %2259 = vmatprep.subr.bf16.mxu0 0
        %2260 = vmatpush1.bf16.msra.mxu0 0
        %2261 = vmatprep.subr.bf16.mxu0 0
        %2262 = vmatpush1.bf16.msra.mxu0 0
        %2263 = vmatprep.subr.bf16.mxu0 0
        %2264 = vmatpush1.bf16.msra.mxu0 0
        %2265 = vmatprep.subr.bf16.mxu0 0
        %2266 = vmatpush1.bf16.msra.mxu0 0
        %2267 = vmatprep.mubr.bf16.mxu0 0
        %2268 = vmatmul.mubr.bf16.gmra.mrb[0].mxu0 %v2043
        %v2269 = vpop.f32.mrb[0].mxu0
        %v2270 = vadd.f32 %v2185, %v2269
        %v2271 = vpop.f32.mrb[0].mxu0
        %v2272 = vpop.f32.mrb[0].mxu0
        %v2273 = vadd.f32 %v2185, %v2272
        %v2274 = vpop.f32.mrb[0].mxu0
        %2275 = vmatprep.mubr.bf16.mxu0 0
        %2276 = vmatmul.mubr.bf16.gmra.mrb[0].mxu0 %v2044
        %v2277 = vpop.f32.mrb[0].mxu0
        %v2278 = vadd.f32 %v2185, %v2277
        %v2279 = vpop.f32.mrb[0].mxu0
        %v2280 = vpop.f32.mrb[0].mxu0
        %v2281 = vpop.f32.mrb[0].mxu0
        %2282 = vdwg.mxu0
        %v2283 = vld [vmem:[%s12] sm:$0xf]
        %v2284 = vld [vmem:[%s12 + $0x4] sm:$0xf]
        %v2285 = vld [vmem:[%s12 + $0x8] sm:$0xf]
        %v2286 = vld [vmem:[%s12 + $0xc] sm:$0xf]
        %v2287 = vld [vmem:[%s12 + $0x10] sm:$0xf]
        %v2288 = vld [vmem:[%s12 + $0x14] sm:$0xf]
        %v2289 = vld [vmem:[%s12 + $0x18] sm:$0xf]
        %v2290 = vld [vmem:[%s12 + $0x1c] sm:$0xf]
        %v2291 = vld [vmem:[%s12 + $0x20] sm:$0xf]
        %v2292 = vld [vmem:[%s12 + $0x24] sm:$0xf]
        %v2293 = vld [vmem:[%s12 + $0x28] sm:$0xf]
        %v2294 = vld [vmem:[%s12 + $0x2c] sm:$0xf]
        %v2295 = vld [vmem:[%s12 + $0x30] sm:$0xf]
        %v2296 = vld [vmem:[%s12 + $0x34] sm:$0xf]
        %v2297 = vld [vmem:[%s12 + $0x38] sm:$0xf]
        %v2298 = vld [vmem:[%s12 + $0x3c] sm:$0xf]
        %v2299 = vld [vmem:[%s15] sm:$0x1]
        %v2301 = vlaneseq
        %v2302 = vshrl.u32 %v2301, 7
        %v2303 = vsub.s32 0, %v2302
        %v2304 = vrot.slane %v2299, %v2303
        %v2322 = vunpack.c.l.b16 %v2283
        %v2323 = vunpack.c.l.b16 %v2284
        %v2324 = vunpack.c.l.b16 %v2285
        %v2325 = vunpack.c.l.b16 %v2286
        %v2326 = vunpack.c.l.b16 %v2287
        %v2327 = vunpack.c.l.b16 %v2288
        %v2328 = vunpack.c.l.b16 %v2289
        %v2329 = vunpack.c.l.b16 %v2290
        %v2330 = vunpack.c.l.b16 %v2291
        %v2331 = vunpack.c.l.b16 %v2292
        %v2332 = vunpack.c.l.b16 %v2293
        %v2333 = vunpack.c.l.b16 %v2294
        %v2334 = vunpack.c.l.b16 %v2295
        %v2335 = vunpack.c.l.b16 %v2296
        %v2336 = vunpack.c.l.b16 %v2297
        %v2337 = vunpack.c.l.b16 %v2298
        %v2338 = vpack.c.b16 %v2323, %v2322
        %v2339 = vpack.c.b16 %v2325, %v2324
        %v2340 = vpack.c.b16 %v2327, %v2326
        %v2341 = vpack.c.b16 %v2329, %v2328
        %v2342 = vpack.c.b16 %v2331, %v2330
        %v2343 = vpack.c.b16 %v2333, %v2332
        %v2344 = vpack.c.b16 %v2335, %v2334
        %v2345 = vpack.c.b16 %v2337, %v2336
        %2354 = vmatprep.subr.bf16.mxu0 0
        %2355 = vmatpush1.bf16.msra.mxu0 %v2338
        %2356 = vmatprep.subr.bf16.mxu0 0
        %2357 = vmatpush1.bf16.msra.mxu0 %v2339
        %2358 = vmatprep.subr.bf16.mxu0 0
        %2359 = vmatpush1.bf16.msra.mxu0 %v2340
        %2360 = vmatprep.subr.bf16.mxu0 0
        %2361 = vmatpush1.bf16.msra.mxu0 %v2341
        %2362 = vmatprep.subr.bf16.mxu0 0
        %2363 = vmatpush1.bf16.msra.mxu0 %v2342
        %2364 = vmatprep.subr.bf16.mxu0 0
        %2365 = vmatpush1.bf16.msra.mxu0 %v2343
        %2366 = vmatprep.subr.bf16.mxu0 0
        %2367 = vmatpush1.bf16.msra.mxu0 %v2344
        %2368 = vmatprep.subr.bf16.mxu0 0
        %2369 = vmatpush1.bf16.msra.mxu0 %v2345
        %2370 = vmatprep.subr.bf16.mxu0 0
        %2371 = vmatpush1.bf16.msra.mxu0 0
        %2372 = vmatprep.subr.bf16.mxu0 0
        %2373 = vmatpush1.bf16.msra.mxu0 0
        %2374 = vmatprep.subr.bf16.mxu0 0
        %2375 = vmatpush1.bf16.msra.mxu0 0
        %2376 = vmatprep.subr.bf16.mxu0 0
        %2377 = vmatpush1.bf16.msra.mxu0 0
        %2378 = vmatprep.subr.bf16.mxu0 0
        %2379 = vmatpush1.bf16.msra.mxu0 0
        %2380 = vmatprep.subr.bf16.mxu0 0
        %2381 = vmatpush1.bf16.msra.mxu0 0
        %2382 = vmatprep.subr.bf16.mxu0 0
        %2383 = vmatpush1.bf16.msra.mxu0 0
        %2384 = vmatprep.subr.bf16.mxu0 0
        %2385 = vmatpush1.bf16.msra.mxu0 0
        %2386 = vmatprep.mubr.bf16.mxu0 0
        %2387 = vmatmul.mubr.bf16.gmra.mrb[0].mxu0 %v2043
        %v2388 = vpop.f32.mrb[0].mxu0
        %v2389 = vadd.f32 %v2304, %v2388
        %v2390 = vpop.f32.mrb[0].mxu0
        %v2391 = vpop.f32.mrb[0].mxu0
        %v2392 = vadd.f32 %v2304, %v2391
        %v2393 = vpop.f32.mrb[0].mxu0
        %2394 = vmatprep.mubr.bf16.mxu0 0
        %2395 = vmatmul.mubr.bf16.gmra.mrb[0].mxu0 %v2044
        %v2396 = vpop.f32.mrb[0].mxu0
        %v2397 = vadd.f32 %v2304, %v2396
        %v2398 = vpop.f32.mrb[0].mxu0
        %v2399 = vpop.f32.mrb[0].mxu0
        %v2400 = vpop.f32.mrb[0].mxu0
        %2401 = vdwg.mxu0
        %v2402 = vmul.f32 %v2151, 0.125
        %v2403 = vmul.f32 %v2154, 0.125
        %v2404 = vmul.f32 %v2159, 0.125
        %v2405 = vpack.c.bf16 %v2403, %v2402
        %v2406 = vpack.c.bf16 %v2404, %v2404
        %v2407 = vpack.c.bf16 %v2273, %v2270
        %v2408 = vpack.c.bf16 %v2278, %v2278
        %v2410 = vsel %vm1111, %v2405, 0
        %v2413 = vsel %vm1111, %v2406, 0
        %v2416 = vsel %vm1111, %v2407, 0
        %v2419 = vsel %vm1111, %v2408, 0
        %2421 = vmatprep.subr.bf16.mxu0 0
        %2422 = vmatpush1.bf16.xpose.msra.mxu0 %v2416
        %2423 = vmatprep.subr.bf16.mxu0 0
        %2424 = vmatpush1.bf16.xpose.msra.mxu0 %v2419
        %2425 = vmatprep.subr.bf16.mxu0 0
        %2426 = vmatpush1.bf16.xpose.msra.mxu0 0
        %2427 = vmatprep.subr.bf16.mxu0 0
        %2428 = vmatpush1.bf16.xpose.msra.mxu0 0
        %2429 = vmatprep.subr.bf16.mxu0 0
        %2430 = vmatpush1.bf16.xpose.msra.mxu0 0
        %2431 = vmatprep.subr.bf16.mxu0 0
        %2432 = vmatpush1.bf16.xpose.msra.mxu0 0
        %2433 = vmatprep.subr.bf16.mxu0 0
        %2434 = vmatpush1.bf16.xpose.msra.mxu0 0
        %2435 = vmatprep.subr.bf16.mxu0 0
        %2436 = vmatpush1.bf16.xpose.msra.mxu0 0
        %2437 = vmatprep.subr.bf16.mxu0 0
        %2438 = vmatpush1.bf16.xpose.msra.mxu0 0
        %2439 = vmatprep.subr.bf16.mxu0 0
        %2440 = vmatpush1.bf16.xpose.msra.mxu0 0
        %2441 = vmatprep.subr.bf16.mxu0 0
        %2442 = vmatpush1.bf16.xpose.msra.mxu0 0
        %2443 = vmatprep.subr.bf16.mxu0 0
        %2444 = vmatpush1.bf16.xpose.msra.mxu0 0
        %2445 = vmatprep.subr.bf16.mxu0 0
        %2446 = vmatpush1.bf16.xpose.msra.mxu0 0
        %2447 = vmatprep.subr.bf16.mxu0 0
        %2448 = vmatpush1.bf16.xpose.msra.mxu0 0
        %2449 = vmatprep.subr.bf16.mxu0 0
        %2450 = vmatpush1.bf16.xpose.msra.mxu0 0
        %2451 = vmatprep.subr.bf16.mxu0 0
        %2452 = vmatpush1.bf16.xpose.msra.mxu0 0
        %2453 = vmatprep.mubr.bf16.mxu0 0
        %2454 = vmatmul.mubr.bf16.gmra.mrb[0].mxu0 %v2410
        %v2455 = vpop.f32.mrb[0].mxu0
        %v2456 = vadd.f32 0.0, %v2455
        %v2457 = vpop.f32.mrb[0].mxu0
        %v2458 = vpop.f32.mrb[0].mxu0
        %v2459 = vadd.f32 0.0, %v2458
        %v2460 = vpop.f32.mrb[0].mxu0
        %2461 = vmatprep.mubr.bf16.mxu0 0
        %2462 = vmatmul.mubr.bf16.gmra.mrb[0].mxu0 %v2413
        %v2463 = vpop.f32.mrb[0].mxu0
        %v2464 = vadd.f32 0.0, %v2463
        %v2465 = vpop.f32.mrb[0].mxu0
        %v2466 = vpop.f32.mrb[0].mxu0
        %v2467 = vpop.f32.mrb[0].mxu0
        %2468 = vdwg.mxu0
        %v2469 = vsel %vm1172, %v2456, -inf
        %2470 = vmax.xlane.f32.xlu0 %v2469
        %v2471 = vpop.xlane.xlu0 %2470
        %v2472 = vsel %vm1172, %v2459, -inf
        %2473 = vmax.xlane.f32.xlu0 %v2472
        %v2474 = vpop.xlane.xlu0 %2473
        %v2475 = vsel %vm1179, %v2464, -inf
        %2476 = vmax.xlane.f32.xlu0 %v2475
        %v2477 = vpop.xlane.xlu0 %2476
        %v2478 = vsub.f32 %v2456, %v2471
        %v2479 = vsub.f32 %v2459, %v2474
        %v2480 = vsub.f32 %v2464, %v2477
        %v2481 = vmul.f32 %v2478, 1.442695
        %v2482 = vpow.pop %v2481
        %v2483 = vmul.f32 %v2479, 1.442695
        %v2484 = vpow.pop %v2483
        %v2485 = vmul.f32 %v2480, 1.442695
        %v2486 = vpow.pop %v2485
        %v2487 = vsel %vm1172, %v2482, 0.0
        %2488 = vadd.xlane.f32.xlu0 %v2487
        %v2489 = vpop.xlane.xlu0 %2488
        %v2490 = vsel %vm1172, %v2484, 0.0
        %2491 = vadd.xlane.f32.xlu0 %v2490
        %v2492 = vpop.xlane.xlu0 %2491
        %v2493 = vsel %vm1179, %v2486, 0.0
        %2494 = vadd.xlane.f32.xlu0 %v2493
        %v2495 = vpop.xlane.xlu0 %2494
        %v2496 = vrcp.pop %v2489
        %v2497 = vrcp.pop %v2492
        %v2498 = vrcp.pop %v2495
        %v2499 = vmul.f32 %v2482, %v2496
        %v2500 = vmul.f32 %v2484, %v2497
        %v2501 = vmul.f32 %v2486, %v2498
        %v2502 = vpack.c.bf16 %v2500, %v2499
        %v2503 = vpack.c.bf16 %v2501, %v2501
        %v2504 = vpack.c.bf16 %v2392, %v2389
        %v2505 = vpack.c.bf16 %v2397, %v2397
        %v2507 = vsel %vm1172, %v2502, 0
        %v2510 = vsel %vm1172, %v2503, 0
        %v2513 = vand.u32 %v2505, %v1219
        %2515 = vmatprep.subr.bf16.mxu0 0
        %2516 = vmatpush1.bf16.msra.mxu0 %v2504
        %2517 = vmatprep.subr.bf16.mxu0 0
        %2518 = vmatpush1.bf16.msra.mxu0 %v2513
        %2519 = vmatprep.subr.bf16.mxu0 0
        %2520 = vmatpush1.bf16.msra.mxu0 0
        %2521 = vmatprep.subr.bf16.mxu0 0
        %2522 = vmatpush1.bf16.msra.mxu0 0
        %2523 = vmatprep.subr.bf16.mxu0 0
        %2524 = vmatpush1.bf16.msra.mxu0 0
        %2525 = vmatprep.subr.bf16.mxu0 0
        %2526 = vmatpush1.bf16.msra.mxu0 0
        %2527 = vmatprep.subr.bf16.mxu0 0
        %2528 = vmatpush1.bf16.msra.mxu0 0
        %2529 = vmatprep.subr.bf16.mxu0 0
        %2530 = vmatpush1.bf16.msra.mxu0 0
        %2531 = vmatprep.subr.bf16.mxu0 0
        %2532 = vmatpush1.bf16.msra.mxu0 0
        %2533 = vmatprep.subr.bf16.mxu0 0
        %2534 = vmatpush1.bf16.msra.mxu0 0
        %2535 = vmatprep.subr.bf16.mxu0 0
        %2536 = vmatpush1.bf16.msra.mxu0 0
        %2537 = vmatprep.subr.bf16.mxu0 0
        %2538 = vmatpush1.bf16.msra.mxu0 0
        %2539 = vmatprep.subr.bf16.mxu0 0
        %2540 = vmatpush1.bf16.msra.mxu0 0
        %2541 = vmatprep.subr.bf16.mxu0 0
        %2542 = vmatpush1.bf16.msra.mxu0 0
        %2543 = vmatprep.subr.bf16.mxu0 0
        %2544 = vmatpush1.bf16.msra.mxu0 0
        %2545 = vmatprep.subr.bf16.mxu0 0
        %2546 = vmatpush1.bf16.msra.mxu0 0
        %2547 = vmatprep.mubr.bf16.mxu0 0
        %2548 = vmatmul.mubr.bf16.gmra.mrb[0].mxu0 %v2507
        %v2549 = vpop.f32.mrb[0].mxu0
        %v2550 = vadd.f32 0.0, %v2549
        %v2551 = vpop.f32.mrb[0].mxu0
        %v2552 = vpop.f32.mrb[0].mxu0
        %v2553 = vadd.f32 0.0, %v2552
        %v2554 = vpop.f32.mrb[0].mxu0
        %2555 = vmatprep.mubr.bf16.mxu0 0
        %2556 = vmatmul.mubr.bf16.gmra.mrb[0].mxu0 %v2510
        %v2557 = vpop.f32.mrb[0].mxu0
        %v2558 = vadd.f32 0.0, %v2557
        %v2559 = vpop.f32.mrb[0].mxu0
        %v2560 = vpop.f32.mrb[0].mxu0
        %v2561 = vpop.f32.mrb[0].mxu0
        %2562 = vdwg.mxu0
        %v2563 = vpack.c.bf16 %v2553, %v2550
        %v2564 = vpack.c.bf16 %v2558, %v2558
        %v2565 = vld [vmem:[%s16] sm:$0xf]
        %v2566 = vld [vmem:[%s16 + $0x4] sm:$0xf]
        %v2567 = vld [vmem:[%s16 + $0x8] sm:$0xf]
        %v2568 = vld [vmem:[%s16 + $0xc] sm:$0xf]
        %v2569 = vld [vmem:[%s16 + $0x10] sm:$0xf]
        %v2570 = vld [vmem:[%s16 + $0x14] sm:$0xf]
        %v2571 = vld [vmem:[%s16 + $0x18] sm:$0xf]
        %v2572 = vld [vmem:[%s16 + $0x1c] sm:$0xf]
        %s2573 = scalar_lea.vmem %s10, 64
        %v2574 = vld [vmem:[%s2573] sm:$0xf]
        %v2575 = vld [vmem:[%s2573 + $0x4] sm:$0xf]
        %v2576 = vld [vmem:[%s2573 + $0x8] sm:$0xf]
        %v2577 = vld [vmem:[%s2573 + $0xc] sm:$0xf]
        %v2578 = vld [vmem:[%s2573 + $0x10] sm:$0xf]
        %v2579 = vld [vmem:[%s2573 + $0x14] sm:$0xf]
        %v2580 = vld [vmem:[%s2573 + $0x18] sm:$0xf]
        %v2581 = vld [vmem:[%s2573 + $0x1c] sm:$0xf]
        %v2582 = vld [vmem:[%s2573 + $0x20] sm:$0xf]
        %v2583 = vld [vmem:[%s2573 + $0x24] sm:$0xf]
        %v2584 = vld [vmem:[%s2573 + $0x28] sm:$0xf]
        %v2585 = vld [vmem:[%s2573 + $0x2c] sm:$0xf]
        %v2586 = vld [vmem:[%s2573 + $0x30] sm:$0xf]
        %v2587 = vld [vmem:[%s2573 + $0x34] sm:$0xf]
        %v2588 = vld [vmem:[%s2573 + $0x38] sm:$0xf]
        %v2589 = vld [vmem:[%s2573 + $0x3c] sm:$0xf]
        %s2590 = scalar_lea.vmem %s13, 1
        %v2591 = vld [vmem:[%s2590] sm:$0x1]
        %v2593 = vlaneseq
        %v2594 = vshrl.u32 %v2593, 7
        %v2595 = vsub.s32 0, %v2594
        %v2596 = vrot.slane %v2591, %v2595
        %v2614 = vunpack.c.l.b16 %v2574
        %v2615 = vunpack.c.l.b16 %v2575
        %v2616 = vunpack.c.l.b16 %v2576
        %v2617 = vunpack.c.l.b16 %v2577
        %v2618 = vunpack.c.l.b16 %v2578
        %v2619 = vunpack.c.l.b16 %v2579
        %v2620 = vunpack.c.l.b16 %v2580
        %v2621 = vunpack.c.l.b16 %v2581
        %v2622 = vunpack.c.l.b16 %v2582
        %v2623 = vunpack.c.l.b16 %v2583
        %v2624 = vunpack.c.l.b16 %v2584
        %v2625 = vunpack.c.l.b16 %v2585
        %v2626 = vunpack.c.l.b16 %v2586
        %v2627 = vunpack.c.l.b16 %v2587
        %v2628 = vunpack.c.l.b16 %v2588
        %v2629 = vunpack.c.l.b16 %v2589
        %v2630 = vpack.c.b16 %v2615, %v2614
        %v2631 = vpack.c.b16 %v2617, %v2616
        %v2632 = vpack.c.b16 %v2619, %v2618
        %v2633 = vpack.c.b16 %v2621, %v2620
        %v2634 = vpack.c.b16 %v2623, %v2622
        %v2635 = vpack.c.b16 %v2625, %v2624
        %v2636 = vpack.c.b16 %v2627, %v2626
        %v2637 = vpack.c.b16 %v2629, %v2628
        %2646 = vmatprep.subr.bf16.mxu0 0
        %2647 = vmatpush1.bf16.msra.mxu0 %v2630
        %2648 = vmatprep.subr.bf16.mxu0 0
        %2649 = vmatpush1.bf16.msra.mxu0 %v2631
        %2650 = vmatprep.subr.bf16.mxu0 0
        %2651 = vmatpush1.bf16.msra.mxu0 %v2632
        %2652 = vmatprep.subr.bf16.mxu0 0
        %2653 = vmatpush1.bf16.msra.mxu0 %v2633
        %2654 = vmatprep.subr.bf16.mxu0 0
        %2655 = vmatpush1.bf16.msra.mxu0 %v2634
        %2656 = vmatprep.subr.bf16.mxu0 0
        %2657 = vmatpush1.bf16.msra.mxu0 %v2635
        %2658 = vmatprep.subr.bf16.mxu0 0
        %2659 = vmatpush1.bf16.msra.mxu0 %v2636
        %2660 = vmatprep.subr.bf16.mxu0 0
        %2661 = vmatpush1.bf16.msra.mxu0 %v2637
        %2662 = vmatprep.subr.bf16.mxu0 0
        %2663 = vmatpush1.bf16.msra.mxu0 0
        %2664 = vmatprep.subr.bf16.mxu0 0
        %2665 = vmatpush1.bf16.msra.mxu0 0
        %2666 = vmatprep.subr.bf16.mxu0 0
        %2667 = vmatpush1.bf16.msra.mxu0 0
        %2668 = vmatprep.subr.bf16.mxu0 0
        %2669 = vmatpush1.bf16.msra.mxu0 0
        %2670 = vmatprep.subr.bf16.mxu0 0
        %2671 = vmatpush1.bf16.msra.mxu0 0
        %2672 = vmatprep.subr.bf16.mxu0 0
        %2673 = vmatpush1.bf16.msra.mxu0 0
        %2674 = vmatprep.subr.bf16.mxu0 0
        %2675 = vmatpush1.bf16.msra.mxu0 0
        %2676 = vmatprep.subr.bf16.mxu0 0
        %2677 = vmatpush1.bf16.msra.mxu0 0
        %2678 = vmatprep.mubr.bf16.mxu0 0
        %2679 = vmatmul.mubr.bf16.gmra.mrb[0].mxu0 %v2041
        %v2680 = vpop.f32.mrb[0].mxu0
        %v2681 = vadd.f32 %v2596, %v2680
        %v2682 = vpop.f32.mrb[0].mxu0
        %v2683 = vpop.f32.mrb[0].mxu0
        %v2684 = vadd.f32 %v2596, %v2683
        %v2685 = vpop.f32.mrb[0].mxu0
        %2686 = vmatprep.mubr.bf16.mxu0 0
        %2687 = vmatmul.mubr.bf16.gmra.mrb[0].mxu0 %v2042
        %v2688 = vpop.f32.mrb[0].mxu0
        %v2689 = vadd.f32 %v2596, %v2688
        %v2690 = vpop.f32.mrb[0].mxu0
        %v2691 = vpop.f32.mrb[0].mxu0
        %v2692 = vpop.f32.mrb[0].mxu0
        %2693 = vdwg.mxu0
        %s2694 = scalar_lea.vmem %s11, 64
        %v2695 = vld [vmem:[%s2694] sm:$0xf]
        %v2696 = vld [vmem:[%s2694 + $0x4] sm:$0xf]
        %v2697 = vld [vmem:[%s2694 + $0x8] sm:$0xf]
        %v2698 = vld [vmem:[%s2694 + $0xc] sm:$0xf]
        %v2699 = vld [vmem:[%s2694 + $0x10] sm:$0xf]
        %v2700 = vld [vmem:[%s2694 + $0x14] sm:$0xf]
        %v2701 = vld [vmem:[%s2694 + $0x18] sm:$0xf]
        %v2702 = vld [vmem:[%s2694 + $0x1c] sm:$0xf]
        %v2703 = vld [vmem:[%s2694 + $0x20] sm:$0xf]
        %v2704 = vld [vmem:[%s2694 + $0x24] sm:$0xf]
        %v2705 = vld [vmem:[%s2694 + $0x28] sm:$0xf]
        %v2706 = vld [vmem:[%s2694 + $0x2c] sm:$0xf]
        %v2707 = vld [vmem:[%s2694 + $0x30] sm:$0xf]
        %v2708 = vld [vmem:[%s2694 + $0x34] sm:$0xf]
        %v2709 = vld [vmem:[%s2694 + $0x38] sm:$0xf]
        %v2710 = vld [vmem:[%s2694 + $0x3c] sm:$0xf]
        %s2711 = scalar_lea.vmem %s14, 1
        %v2712 = vld [vmem:[%s2711] sm:$0x1]
        %v2714 = vlaneseq
        %v2715 = vshrl.u32 %v2714, 7
        %v2716 = vsub.s32 0, %v2715
        %v2717 = vrot.slane %v2712, %v2716
        %v2735 = vunpack.c.l.b16 %v2695
        %v2736 = vunpack.c.l.b16 %v2696
        %v2737 = vunpack.c.l.b16 %v2697
        %v2738 = vunpack.c.l.b16 %v2698
        %v2739 = vunpack.c.l.b16 %v2699
        %v2740 = vunpack.c.l.b16 %v2700
        %v2741 = vunpack.c.l.b16 %v2701
        %v2742 = vunpack.c.l.b16 %v2702
        %v2743 = vunpack.c.l.b16 %v2703
        %v2744 = vunpack.c.l.b16 %v2704
        %v2745 = vunpack.c.l.b16 %v2705
        %v2746 = vunpack.c.l.b16 %v2706
        %v2747 = vunpack.c.l.b16 %v2707
        %v2748 = vunpack.c.l.b16 %v2708
        %v2749 = vunpack.c.l.b16 %v2709
        %v2750 = vunpack.c.l.b16 %v2710
        %v2751 = vpack.c.b16 %v2736, %v2735
        %v2752 = vpack.c.b16 %v2738, %v2737
        %v2753 = vpack.c.b16 %v2740, %v2739
        %v2754 = vpack.c.b16 %v2742, %v2741
        %v2755 = vpack.c.b16 %v2744, %v2743
        %v2756 = vpack.c.b16 %v2746, %v2745
        %v2757 = vpack.c.b16 %v2748, %v2747
        %v2758 = vpack.c.b16 %v2750, %v2749
        %2767 = vmatprep.subr.bf16.mxu0 0
        %2768 = vmatpush1.bf16.msra.mxu0 %v2751
        %2769 = vmatprep.subr.bf16.mxu0 0
        %2770 = vmatpush1.bf16.msra.mxu0 %v2752
        %2771 = vmatprep.subr.bf16.mxu0 0
        %2772 = vmatpush1.bf16.msra.mxu0 %v2753
        %2773 = vmatprep.subr.bf16.mxu0 0
        %2774 = vmatpush1.bf16.msra.mxu0 %v2754
        %2775 = vmatprep.subr.bf16.mxu0 0
        %2776 = vmatpush1.bf16.msra.mxu0 %v2755
        %2777 = vmatprep.subr.bf16.mxu0 0
        %2778 = vmatpush1.bf16.msra.mxu0 %v2756
        %2779 = vmatprep.subr.bf16.mxu0 0
        %2780 = vmatpush1.bf16.msra.mxu0 %v2757
        %2781 = vmatprep.subr.bf16.mxu0 0
        %2782 = vmatpush1.bf16.msra.mxu0 %v2758
        %2783 = vmatprep.subr.bf16.mxu0 0
        %2784 = vmatpush1.bf16.msra.mxu0 0
        %2785 = vmatprep.subr.bf16.mxu0 0
        %2786 = vmatpush1.bf16.msra.mxu0 0
        %2787 = vmatprep.subr.bf16.mxu0 0
        %2788 = vmatpush1.bf16.msra.mxu0 0
        %2789 = vmatprep.subr.bf16.mxu0 0
        %2790 = vmatpush1.bf16.msra.mxu0 0
        %2791 = vmatprep.subr.bf16.mxu0 0
        %2792 = vmatpush1.bf16.msra.mxu0 0
        %2793 = vmatprep.subr.bf16.mxu0 0
        %2794 = vmatpush1.bf16.msra.mxu0 0
        %2795 = vmatprep.subr.bf16.mxu0 0
        %2796 = vmatpush1.bf16.msra.mxu0 0
        %2797 = vmatprep.subr.bf16.mxu0 0
        %2798 = vmatpush1.bf16.msra.mxu0 0
        %2799 = vmatprep.mubr.bf16.mxu0 0
        %2800 = vmatmul.mubr.bf16.gmra.mrb[0].mxu0 %v2043
        %v2801 = vpop.f32.mrb[0].mxu0
        %v2802 = vadd.f32 %v2717, %v2801
        %v2803 = vpop.f32.mrb[0].mxu0
        %v2804 = vpop.f32.mrb[0].mxu0
        %v2805 = vadd.f32 %v2717, %v2804
        %v2806 = vpop.f32.mrb[0].mxu0
        %2807 = vmatprep.mubr.bf16.mxu0 0
        %2808 = vmatmul.mubr.bf16.gmra.mrb[0].mxu0 %v2044
        %v2809 = vpop.f32.mrb[0].mxu0
        %v2810 = vadd.f32 %v2717, %v2809
        %v2811 = vpop.f32.mrb[0].mxu0
        %v2812 = vpop.f32.mrb[0].mxu0
        %v2813 = vpop.f32.mrb[0].mxu0
        %2814 = vdwg.mxu0
        %s2815 = scalar_lea.vmem %s12, 64
        %v2816 = vld [vmem:[%s2815] sm:$0xf]
        %v2817 = vld [vmem:[%s2815 + $0x4] sm:$0xf]
        %v2818 = vld [vmem:[%s2815 + $0x8] sm:$0xf]
        %v2819 = vld [vmem:[%s2815 + $0xc] sm:$0xf]
        %v2820 = vld [vmem:[%s2815 + $0x10] sm:$0xf]
        %v2821 = vld [vmem:[%s2815 + $0x14] sm:$0xf]
        %v2822 = vld [vmem:[%s2815 + $0x18] sm:$0xf]
        %v2823 = vld [vmem:[%s2815 + $0x1c] sm:$0xf]
        %v2824 = vld [vmem:[%s2815 + $0x20] sm:$0xf]
        %v2825 = vld [vmem:[%s2815 + $0x24] sm:$0xf]
        %v2826 = vld [vmem:[%s2815 + $0x28] sm:$0xf]
        %v2827 = vld [vmem:[%s2815 + $0x2c] sm:$0xf]
        %v2828 = vld [vmem:[%s2815 + $0x30] sm:$0xf]
        %v2829 = vld [vmem:[%s2815 + $0x34] sm:$0xf]
        %v2830 = vld [vmem:[%s2815 + $0x38] sm:$0xf]
        %v2831 = vld [vmem:[%s2815 + $0x3c] sm:$0xf]
        %s2832 = scalar_lea.vmem %s15, 1
        %v2833 = vld [vmem:[%s2832] sm:$0x1]
        %v2835 = vlaneseq
        %v2836 = vshrl.u32 %v2835, 7
        %v2837 = vsub.s32 0, %v2836
        %v2838 = vrot.slane %v2833, %v2837
        %v2856 = vunpack.c.l.b16 %v2816
        %v2857 = vunpack.c.l.b16 %v2817
        %v2858 = vunpack.c.l.b16 %v2818
        %v2859 = vunpack.c.l.b16 %v2819
        %v2860 = vunpack.c.l.b16 %v2820
        %v2861 = vunpack.c.l.b16 %v2821
        %v2862 = vunpack.c.l.b16 %v2822
        %v2863 = vunpack.c.l.b16 %v2823
        %v2864 = vunpack.c.l.b16 %v2824
        %v2865 = vunpack.c.l.b16 %v2825
        %v2866 = vunpack.c.l.b16 %v2826
        %v2867 = vunpack.c.l.b16 %v2827
        %v2868 = vunpack.c.l.b16 %v2828
        %v2869 = vunpack.c.l.b16 %v2829
        %v2870 = vunpack.c.l.b16 %v2830
        %v2871 = vunpack.c.l.b16 %v2831
        %v2872 = vpack.c.b16 %v2857, %v2856
        %v2873 = vpack.c.b16 %v2859, %v2858
        %v2874 = vpack.c.b16 %v2861, %v2860
        %v2875 = vpack.c.b16 %v2863, %v2862
        %v2876 = vpack.c.b16 %v2865, %v2864
        %v2877 = vpack.c.b16 %v2867, %v2866
        %v2878 = vpack.c.b16 %v2869, %v2868
        %v2879 = vpack.c.b16 %v2871, %v2870
        %2888 = vmatprep.subr.bf16.mxu0 0
        %2889 = vmatpush1.bf16.msra.mxu0 %v2872
        %2890 = vmatprep.subr.bf16.mxu0 0
        %2891 = vmatpush1.bf16.msra.mxu0 %v2873
        %2892 = vmatprep.subr.bf16.mxu0 0
        %2893 = vmatpush1.bf16.msra.mxu0 %v2874
        %2894 = vmatprep.subr.bf16.mxu0 0
        %2895 = vmatpush1.bf16.msra.mxu0 %v2875
        %2896 = vmatprep.subr.bf16.mxu0 0
        %2897 = vmatpush1.bf16.msra.mxu0 %v2876
        %2898 = vmatprep.subr.bf16.mxu0 0
        %2899 = vmatpush1.bf16.msra.mxu0 %v2877
        %2900 = vmatprep.subr.bf16.mxu0 0
        %2901 = vmatpush1.bf16.msra.mxu0 %v2878
        %2902 = vmatprep.subr.bf16.mxu0 0
        %2903 = vmatpush1.bf16.msra.mxu0 %v2879
        %2904 = vmatprep.subr.bf16.mxu0 0
        %2905 = vmatpush1.bf16.msra.mxu0 0
        %2906 = vmatprep.subr.bf16.mxu0 0
        %2907 = vmatpush1.bf16.msra.mxu0 0
        %2908 = vmatprep.subr.bf16.mxu0 0
        %2909 = vmatpush1.bf16.msra.mxu0 0
        %2910 = vmatprep.subr.bf16.mxu0 0
        %2911 = vmatpush1.bf16.msra.mxu0 0
        %2912 = vmatprep.subr.bf16.mxu0 0
        %2913 = vmatpush1.bf16.msra.mxu0 0
        %2914 = vmatprep.subr.bf16.mxu0 0
        %2915 = vmatpush1.bf16.msra.mxu0 0
        %2916 = vmatprep.subr.bf16.mxu0 0
        %2917 = vmatpush1.bf16.msra.mxu0 0
        %2918 = vmatprep.subr.bf16.mxu0 0
        %2919 = vmatpush1.bf16.msra.mxu0 0
        %2920 = vmatprep.mubr.bf16.mxu0 0
        %2921 = vmatmul.mubr.bf16.gmra.mrb[0].mxu0 %v2043
        %v2922 = vpop.f32.mrb[0].mxu0
        %v2923 = vadd.f32 %v2838, %v2922
        %v2924 = vpop.f32.mrb[0].mxu0
        %v2925 = vpop.f32.mrb[0].mxu0
        %v2926 = vadd.f32 %v2838, %v2925
        %v2927 = vpop.f32.mrb[0].mxu0
        %2928 = vmatprep.mubr.bf16.mxu0 0
        %2929 = vmatmul.mubr.bf16.gmra.mrb[0].mxu0 %v2044
        %v2930 = vpop.f32.mrb[0].mxu0
        %v2931 = vadd.f32 %v2838, %v2930
        %v2932 = vpop.f32.mrb[0].mxu0
        %v2933 = vpop.f32.mrb[0].mxu0
        %v2934 = vpop.f32.mrb[0].mxu0
        %2935 = vdwg.mxu0
        %v2936 = vmul.f32 %v2681, 0.125
        %v2937 = vmul.f32 %v2684, 0.125
        %v2938 = vmul.f32 %v2689, 0.125
        %v2939 = vpack.c.bf16 %v2937, %v2936
        %v2940 = vpack.c.bf16 %v2938, %v2938
        %v2941 = vpack.c.bf16 %v2805, %v2802
        %v2942 = vpack.c.bf16 %v2810, %v2810
        %v2944 = vsel %vm1111, %v2939, 0
        %v2947 = vsel %vm1111, %v2940, 0
        %v2950 = vsel %vm1111, %v2941, 0
        %v2953 = vsel %vm1111, %v2942, 0
        %2955 = vmatprep.subr.bf16.mxu0 0
        %2956 = vmatpush1.bf16.xpose.msra.mxu0 %v2950
        %2957 = vmatprep.subr.bf16.mxu0 0
        %2958 = vmatpush1.bf16.xpose.msra.mxu0 %v2953
        %2959 = vmatprep.subr.bf16.mxu0 0
        %2960 = vmatpush1.bf16.xpose.msra.mxu0 0
        %2961 = vmatprep.subr.bf16.mxu0 0
        %2962 = vmatpush1.bf16.xpose.msra.mxu0 0
        %2963 = vmatprep.subr.bf16.mxu0 0
        %2964 = vmatpush1.bf16.xpose.msra.mxu0 0
        %2965 = vmatprep.subr.bf16.mxu0 0
        %2966 = vmatpush1.bf16.xpose.msra.mxu0 0
        %2967 = vmatprep.subr.bf16.mxu0 0
        %2968 = vmatpush1.bf16.xpose.msra.mxu0 0
        %2969 = vmatprep.subr.bf16.mxu0 0
        %2970 = vmatpush1.bf16.xpose.msra.mxu0 0
        %2971 = vmatprep.subr.bf16.mxu0 0
        %2972 = vmatpush1.bf16.xpose.msra.mxu0 0
        %2973 = vmatprep.subr.bf16.mxu0 0
        %2974 = vmatpush1.bf16.xpose.msra.mxu0 0
        %2975 = vmatprep.subr.bf16.mxu0 0
        %2976 = vmatpush1.bf16.xpose.msra.mxu0 0
        %2977 = vmatprep.subr.bf16.mxu0 0
        %2978 = vmatpush1.bf16.xpose.msra.mxu0 0
        %2979 = vmatprep.subr.bf16.mxu0 0
        %2980 = vmatpush1.bf16.xpose.msra.mxu0 0
        %2981 = vmatprep.subr.bf16.mxu0 0
        %2982 = vmatpush1.bf16.xpose.msra.mxu0 0
        %2983 = vmatprep.subr.bf16.mxu0 0
        %2984 = vmatpush1.bf16.xpose.msra.mxu0 0
        %2985 = vmatprep.subr.bf16.mxu0 0
        %2986 = vmatpush1.bf16.xpose.msra.mxu0 0
        %2987 = vmatprep.mubr.bf16.mxu0 0
        %2988 = vmatmul.mubr.bf16.gmra.mrb[0].mxu0 %v2944
        %v2989 = vpop.f32.mrb[0].mxu0
        %v2990 = vadd.f32 0.0, %v2989
        %v2991 = vpop.f32.mrb[0].mxu0
        %v2992 = vpop.f32.mrb[0].mxu0
        %v2993 = vadd.f32 0.0, %v2992
        %v2994 = vpop.f32.mrb[0].mxu0
        %2995 = vmatprep.mubr.bf16.mxu0 0
        %2996 = vmatmul.mubr.bf16.gmra.mrb[0].mxu0 %v2947
        %v2997 = vpop.f32.mrb[0].mxu0
        %v2998 = vadd.f32 0.0, %v2997
        %v2999 = vpop.f32.mrb[0].mxu0
        %v3000 = vpop.f32.mrb[0].mxu0
        %v3001 = vpop.f32.mrb[0].mxu0
        %3002 = vdwg.mxu0
        %v3003 = vsel %vm1172, %v2990, -inf
        %3004 = vmax.xlane.f32.xlu0 %v3003
        %v3005 = vpop.xlane.xlu0 %3004
        %v3006 = vsel %vm1172, %v2993, -inf
        %3007 = vmax.xlane.f32.xlu0 %v3006
        %v3008 = vpop.xlane.xlu0 %3007
        %v3009 = vsel %vm1179, %v2998, -inf
        %3010 = vmax.xlane.f32.xlu0 %v3009
        %v3011 = vpop.xlane.xlu0 %3010
        %v3012 = vsub.f32 %v2990, %v3005
        %v3013 = vsub.f32 %v2993, %v3008
        %v3014 = vsub.f32 %v2998, %v3011
        %v3015 = vmul.f32 %v3012, 1.442695
        %v3016 = vpow.pop %v3015
        %v3017 = vmul.f32 %v3013, 1.442695
        %v3018 = vpow.pop %v3017
        %v3019 = vmul.f32 %v3014, 1.442695
        %v3020 = vpow.pop %v3019
        %v3021 = vsel %vm1172, %v3016, 0.0
        %3022 = vadd.xlane.f32.xlu0 %v3021
        %v3023 = vpop.xlane.xlu0 %3022
        %v3024 = vsel %vm1172, %v3018, 0.0
        %3025 = vadd.xlane.f32.xlu0 %v3024
        %v3026 = vpop.xlane.xlu0 %3025
        %v3027 = vsel %vm1179, %v3020, 0.0
        %3028 = vadd.xlane.f32.xlu0 %v3027
        %v3029 = vpop.xlane.xlu0 %3028
        %v3030 = vrcp.pop %v3023
        %v3031 = vrcp.pop %v3026
        %v3032 = vrcp.pop %v3029
        %v3033 = vmul.f32 %v3016, %v3030
        %v3034 = vmul.f32 %v3018, %v3031
        %v3035 = vmul.f32 %v3020, %v3032
        %v3036 = vpack.c.bf16 %v3034, %v3033
        %v3037 = vpack.c.bf16 %v3035, %v3035
        %v3038 = vpack.c.bf16 %v2926, %v2923
        %v3039 = vpack.c.bf16 %v2931, %v2931
        %v3041 = vsel %vm1172, %v3036, 0
        %v3044 = vsel %vm1172, %v3037, 0
        %v3047 = vand.u32 %v3039, %v1219
        %3049 = vmatprep.subr.bf16.mxu0 0
        %3050 = vmatpush1.bf16.msra.mxu0 %v3038
        %3051 = vmatprep.subr.bf16.mxu0 0
        %3052 = vmatpush1.bf16.msra.mxu0 %v3047
        %3053 = vmatprep.subr.bf16.mxu0 0
        %3054 = vmatpush1.bf16.msra.mxu0 0
        %3055 = vmatprep.subr.bf16.mxu0 0
        %3056 = vmatpush1.bf16.msra.mxu0 0
        %3057 = vmatprep.subr.bf16.mxu0 0
        %3058 = vmatpush1.bf16.msra.mxu0 0
        %3059 = vmatprep.subr.bf16.mxu0 0
        %3060 = vmatpush1.bf16.msra.mxu0 0
        %3061 = vmatprep.subr.bf16.mxu0 0
        %3062 = vmatpush1.bf16.msra.mxu0 0
        %3063 = vmatprep.subr.bf16.mxu0 0
        %3064 = vmatpush1.bf16.msra.mxu0 0
        %3065 = vmatprep.subr.bf16.mxu0 0
        %3066 = vmatpush1.bf16.msra.mxu0 0
        %3067 = vmatprep.subr.bf16.mxu0 0
        %3068 = vmatpush1.bf16.msra.mxu0 0
        %3069 = vmatprep.subr.bf16.mxu0 0
        %3070 = vmatpush1.bf16.msra.mxu0 0
        %3071 = vmatprep.subr.bf16.mxu0 0
        %3072 = vmatpush1.bf16.msra.mxu0 0
        %3073 = vmatprep.subr.bf16.mxu0 0
        %3074 = vmatpush1.bf16.msra.mxu0 0
        %3075 = vmatprep.subr.bf16.mxu0 0
        %3076 = vmatpush1.bf16.msra.mxu0 0
        %3077 = vmatprep.subr.bf16.mxu0 0
        %3078 = vmatpush1.bf16.msra.mxu0 0
        %3079 = vmatprep.subr.bf16.mxu0 0
        %3080 = vmatpush1.bf16.msra.mxu0 0
        %3081 = vmatprep.mubr.bf16.mxu0 0
        %3082 = vmatmul.mubr.bf16.gmra.mrb[0].mxu0 %v3041
        %v3083 = vpop.f32.mrb[0].mxu0
        %v3084 = vadd.f32 0.0, %v3083
        %v3085 = vpop.f32.mrb[0].mxu0
        %v3086 = vpop.f32.mrb[0].mxu0
        %v3087 = vadd.f32 0.0, %v3086
        %v3088 = vpop.f32.mrb[0].mxu0
        %3089 = vmatprep.mubr.bf16.mxu0 0
        %3090 = vmatmul.mubr.bf16.gmra.mrb[0].mxu0 %v3044
        %v3091 = vpop.f32.mrb[0].mxu0
        %v3092 = vadd.f32 0.0, %v3091
        %v3093 = vpop.f32.mrb[0].mxu0
        %v3094 = vpop.f32.mrb[0].mxu0
        %v3095 = vpop.f32.mrb[0].mxu0
        %3096 = vdwg.mxu0
        %v3097 = vpack.c.bf16 %v3087, %v3084
        %v3098 = vpack.c.bf16 %v3092, %v3092
        %s3099 = scalar_lea.vmem %s16, 32
        %v3100 = vld [vmem:[%s3099] sm:$0xf]
        %v3101 = vld [vmem:[%s3099 + $0x4] sm:$0xf]
        %v3102 = vld [vmem:[%s3099 + $0x8] sm:$0xf]
        %v3103 = vld [vmem:[%s3099 + $0xc] sm:$0xf]
        %v3104 = vld [vmem:[%s3099 + $0x10] sm:$0xf]
        %v3105 = vld [vmem:[%s3099 + $0x14] sm:$0xf]
        %v3106 = vld [vmem:[%s3099 + $0x18] sm:$0xf]
        %v3107 = vld [vmem:[%s3099 + $0x1c] sm:$0xf]
        %v3116 = vunpack.c.l.b16 %v3100
        %v3117 = vunpack.c.l.b16 %v3101
        %v3118 = vunpack.c.l.b16 %v3102
        %v3119 = vunpack.c.l.b16 %v3103
        %v3120 = vunpack.c.l.b16 %v3104
        %v3121 = vunpack.c.l.b16 %v3105
        %v3122 = vunpack.c.l.b16 %v3106
        %v3123 = vunpack.c.l.b16 %v3107
        %v3124 = vpack.c.b16 %v3117, %v3116
        %v3125 = vpack.c.b16 %v3119, %v3118
        %v3126 = vpack.c.b16 %v3121, %v3120
        %v3127 = vpack.c.b16 %v3123, %v3122
        %v3133 = vsel %vm1111, %v3097, 0
        %v3136 = vsel %vm1111, %v3098, 0
        %3138 = vmatprep.subr.bf16.mxu0 0
        %3139 = vmatpush1.bf16.msra.mxu0 %v3124
        %3140 = vmatprep.subr.bf16.mxu0 0
        %3141 = vmatpush1.bf16.msra.mxu0 %v3125
        %3142 = vmatprep.subr.bf16.mxu0 0
        %3143 = vmatpush1.bf16.msra.mxu0 %v3126
        %3144 = vmatprep.subr.bf16.mxu0 0
        %3145 = vmatpush1.bf16.msra.mxu0 %v3127
        %3146 = vmatprep.subr.bf16.mxu0 0
        %3147 = vmatpush1.bf16.msra.mxu0 0
        %3148 = vmatprep.subr.bf16.mxu0 0
        %3149 = vmatpush1.bf16.msra.mxu0 0
        %3150 = vmatprep.subr.bf16.mxu0 0
        %3151 = vmatpush1.bf16.msra.mxu0 0
        %3152 = vmatprep.subr.bf16.mxu0 0
        %3153 = vmatpush1.bf16.msra.mxu0 0
        %3154 = vmatprep.subr.bf16.mxu0 0
        %3155 = vmatpush1.bf16.msra.mxu0 0
        %3156 = vmatprep.subr.bf16.mxu0 0
        %3157 = vmatpush1.bf16.msra.mxu0 0
        %3158 = vmatprep.subr.bf16.mxu0 0
        %3159 = vmatpush1.bf16.msra.mxu0 0
        %3160 = vmatprep.subr.bf16.mxu0 0
        %3161 = vmatpush1.bf16.msra.mxu0 0
        %3162 = vmatprep.subr.bf16.mxu0 0
        %3163 = vmatpush1.bf16.msra.mxu0 0
        %3164 = vmatprep.subr.bf16.mxu0 0
        %3165 = vmatpush1.bf16.msra.mxu0 0
        %3166 = vmatprep.subr.bf16.mxu0 0
        %3167 = vmatpush1.bf16.msra.mxu0 0
        %3168 = vmatprep.subr.bf16.mxu0 0
        %3169 = vmatpush1.bf16.msra.mxu0 0
        %3170 = vmatprep.mubr.bf16.mxu0 0
        %3171 = vmatmul.mubr.bf16.gmra.mrb[0].mxu0 %v3133
        %v3172 = vpop.f32.mrb[0].mxu0
        %v3173 = vadd.f32 0.0, %v3172
        %v3174 = vpop.f32.mrb[0].mxu0
        %v3175 = vpop.f32.mrb[0].mxu0
        %v3176 = vadd.f32 0.0, %v3175
        %v3177 = vpop.f32.mrb[0].mxu0
        %3178 = vmatprep.mubr.bf16.mxu0 0
        %3179 = vmatmul.mubr.bf16.gmra.mrb[0].mxu0 %v3136
        %v3180 = vpop.f32.mrb[0].mxu0
        %v3181 = vadd.f32 0.0, %v3180
        %v3182 = vpop.f32.mrb[0].mxu0
        %v3183 = vpop.f32.mrb[0].mxu0
        %v3184 = vpop.f32.mrb[0].mxu0
        %3185 = vdwg.mxu0
        %v3194 = vunpack.c.l.b16 %v2565
        %v3195 = vunpack.c.l.b16 %v2566
        %v3196 = vunpack.c.l.b16 %v2567
        %v3197 = vunpack.c.l.b16 %v2568
        %v3198 = vunpack.c.l.b16 %v2569
        %v3199 = vunpack.c.l.b16 %v2570
        %v3200 = vunpack.c.l.b16 %v2571
        %v3201 = vunpack.c.l.b16 %v2572
        %v3202 = vpack.c.b16 %v3195, %v3194
        %v3203 = vpack.c.b16 %v3197, %v3196
        %v3204 = vpack.c.b16 %v3199, %v3198
        %v3205 = vpack.c.b16 %v3201, %v3200
        %v3211 = vsel %vm1111, %v2563, 0
        %v3214 = vsel %vm1111, %v2564, 0
        %3216 = vmatprep.subr.bf16.mxu0 0
        %3217 = vmatpush1.bf16.msra.mxu0 %v3202
        %3218 = vmatprep.subr.bf16.mxu0 0
        %3219 = vmatpush1.bf16.msra.mxu0 %v3203
        %3220 = vmatprep.subr.bf16.mxu0 0
        %3221 = vmatpush1.bf16.msra.mxu0 %v3204
        %3222 = vmatprep.subr.bf16.mxu0 0
        %3223 = vmatpush1.bf16.msra.mxu0 %v3205
        %3224 = vmatprep.subr.bf16.mxu0 0
        %3225 = vmatpush1.bf16.msra.mxu0 0
        %3226 = vmatprep.subr.bf16.mxu0 0
        %3227 = vmatpush1.bf16.msra.mxu0 0
        %3228 = vmatprep.subr.bf16.mxu0 0
        %3229 = vmatpush1.bf16.msra.mxu0 0
        %3230 = vmatprep.subr.bf16.mxu0 0
        %3231 = vmatpush1.bf16.msra.mxu0 0
        %3232 = vmatprep.subr.bf16.mxu0 0
        %3233 = vmatpush1.bf16.msra.mxu0 0
        %3234 = vmatprep.subr.bf16.mxu0 0
        %3235 = vmatpush1.bf16.msra.mxu0 0
        %3236 = vmatprep.subr.bf16.mxu0 0
        %3237 = vmatpush1.bf16.msra.mxu0 0
        %3238 = vmatprep.subr.bf16.mxu0 0
        %3239 = vmatpush1.bf16.msra.mxu0 0
        %3240 = vmatprep.subr.bf16.mxu0 0
        %3241 = vmatpush1.bf16.msra.mxu0 0
        %3242 = vmatprep.subr.bf16.mxu0 0
        %3243 = vmatpush1.bf16.msra.mxu0 0
        %3244 = vmatprep.subr.bf16.mxu0 0
        %3245 = vmatpush1.bf16.msra.mxu0 0
        %3246 = vmatprep.subr.bf16.mxu0 0
        %3247 = vmatpush1.bf16.msra.mxu0 0
        %3248 = vmatprep.mubr.bf16.mxu0 0
        %3249 = vmatmul.mubr.bf16.gmra.mrb[0].mxu0 %v3211
        %v3250 = vpop.f32.mrb[0].mxu0
        %v3251 = vadd.f32 %v3173, %v3250
        %v3252 = vpop.f32.mrb[0].mxu0
        %v3253 = vpop.f32.mrb[0].mxu0
        %v3254 = vadd.f32 %v3176, %v3253
        %v3255 = vpop.f32.mrb[0].mxu0
        %3256 = vmatprep.mubr.bf16.mxu0 0
        %3257 = vmatmul.mubr.bf16.gmra.mrb[0].mxu0 %v3214
        %v3258 = vpop.f32.mrb[0].mxu0
        %v3259 = vadd.f32 %v3181, %v3258
        %v3260 = vpop.f32.mrb[0].mxu0
        %v3261 = vpop.f32.mrb[0].mxu0
        %v3262 = vpop.f32.mrb[0].mxu0
        %3263 = vdwg.mxu0
        %v3264 = vld [vmem:[%s17] sm:$0x1]
        %v3266 = vlaneseq
        %v3267 = vshrl.u32 %v3266, 7
        %v3268 = vsub.s32 0, %v3267
        %v3269 = vrot.slane %v3264, %v3268
        %v3271 = vadd.f32 %v3251, %v3269
        %v3272 = vadd.f32 %v3254, %v3269
        %v3273 = vadd.f32 %v3259, %v3269
        %v3274 = vadd.f32 %v2038, %v3271
        %v3275 = vadd.f32 %v2039, %v3272
        %v3276 = vadd.f32 %v2040, %v3273
        %3277 = vadd.xlane.f32.xlu0 %v3274
        %v3278 = vpop.xlane.xlu0 %3277
        %3279 = vadd.xlane.f32.xlu0 %v3275
        %v3280 = vpop.xlane.xlu0 %3279
        %v3281 = vsel %vm1217, %v3276, 0.0
        %3282 = vadd.xlane.f32.xlu0 %v3281
        %v3283 = vpop.xlane.xlu0 %3282
        %v3284 = vmul.f32 %v3278, %v1992
        %v3285 = vmul.f32 %v3280, %v1992
        %v3286 = vmul.f32 %v3283, %v1992
        %v3287 = vsub.f32 %v3274, %v3284
        %v3288 = vsub.f32 %v3275, %v3285
        %v3289 = vsub.f32 %v3276, %v3286
        %v3290 = vmul.f32 %v3287, %v3287
        %v3291 = vmul.f32 %v3288, %v3288
        %v3292 = vmul.f32 %v3289, %v3289
        %3293 = vadd.xlane.f32.xlu0 %v3290
        %v3294 = vpop.xlane.xlu0 %3293
        %3295 = vadd.xlane.f32.xlu0 %v3291
        %v3296 = vpop.xlane.xlu0 %3295
        %v3297 = vsel %vm1217, %v3292, 0.0
        %3298 = vadd.xlane.f32.xlu0 %v3297
        %v3299 = vpop.xlane.xlu0 %3298
        %v3300 = vmul.f32 %v3294, %v1992
        %v3301 = vmul.f32 %v3296, %v1992
        %v3302 = vmul.f32 %v3299, %v1992
        %v3303 = vadd.f32 %v3300, 1e-05
        %v3304 = vadd.f32 %v3301, 1e-05
        %v3305 = vadd.f32 %v3302, 1e-05
        %v3306 = vrsqrt.pop %v3303
        %v3307 = vrsqrt.pop %v3304
        %v3308 = vrsqrt.pop %v3305
        %v3309 = vmul.f32 %v3287, %v3306
        %v3310 = vmul.f32 %v3288, %v3307
        %v3311 = vmul.f32 %v3289, %v3308
        %v3312 = vld [vmem:[%s20] sm:$0x1]
        %v3314 = vlaneseq
        %v3315 = vshrl.u32 %v3314, 7
        %v3316 = vsub.s32 0, %v3315
        %v3317 = vrot.slane %v3312, %v3316
        %v3319 = vmul.f32 %v3309, %v3317
        %v3320 = vmul.f32 %v3310, %v3317
        %v3321 = vmul.f32 %v3311, %v3317
        %v3322 = vld [vmem:[%s21] sm:$0x1]
        %v3324 = vlaneseq
        %v3325 = vshrl.u32 %v3324, 7
        %v3326 = vsub.s32 0, %v3325
        %v3327 = vrot.slane %v3322, %v3326
        %v3329 = vadd.f32 %v3319, %v3327
        %v3330 = vadd.f32 %v3320, %v3327
        %v3331 = vadd.f32 %v3321, %v3327
        %3332 = vst [vmem:[%s719] sm:$0xff] %v3329
        %3333 = vst [vmem:[%s719 + $0x8] sm:$0xff] %v3330
        %3334 = vst [vmem:[%s719 + $0x10] sm:$0x1] %v3331
        %v3335 = vadd.f32 %v3329, %v3330
        %v3336 = vsel %vm1217, %v3331, 0.0
        %v3337 = vadd.f32 %v3335, %v3336
        %v3338 = vrot.slane %v3337, 4
        %v3339 = vadd.f32 %v3337, %v3338
        %v3340 = vrot.slane %v3339, 2
        %v3341 = vadd.f32 %v3339, %v3340
        %v3342 = vrot.slane %v3341, 1
        %v3343 = vadd.f32 %v3341, %v3342
        %v3344 = vrcp.pop 17.0
        %v3345 = vmul.f32 %v3343, %v3344
        %3346 = vst [vmem:[%s737] sm:$0x1] %v3345
        %s3347 = sand.u32 %s518, 1
        %s3348 = scalar_lea.sflag [#allocation3], %s3347
        %s3349 = sand.u32 %s518, 1
        %s3350 = smul.addr %s3349, 24
        %s3351 = scalar_lea.vmem [#allocation2], %s3350
        %p3352 = scmp.lt.s32.totalorder %s38, 1
        %s3353 = scalar_select %p3352, %s38, 1
        %s3354 = scalar_lea.vmem %s23, %s3353
        // Predicated region
        $region109: #{cardiovascular_predictor.8} parent=107 // pred_check
          %p3355 = pneg %p528
        $region110: #{cardiovascular_predictor.8} parent=107 // pred_check_branch
          %3357 = sbr.rel (%p3355) target = $region112
        $region111: #{cardiovascular_predictor.8} parent=107 // pred_region
          %s3359 = ssub.s32 384, 384
          %3360 = vsyncadd %s3348, %s3359
          %s3361 = smul.addr %s38, 3
          %s3362 = smul.addr %s3361, 128
          %s3363 = scalar_lea.hbm %s22, %s3362
          %s3364 = sshll.u32 %s3351, 4
          %s3365 = int_to_ptr.vmem [resolvable:$true] %s3364
          %3370 = dma.vmem_to_hbm [thread:$0]  %s3365, 384, %s3363, %s3348, 128, 128, 8
        $region112: #{cardiovascular_predictor.8} parent=107 // pred_fallthru
          _
        // Predicated region
        $region113: #{cardiovascular_predictor.8} parent=107 // pred_check
          %p3371 = pneg %p554
        $region114: #{cardiovascular_predictor.8} parent=107 // pred_check_branch
          %3373 = sbr.rel (%p3371) target = $region116
        $region115: #{cardiovascular_predictor.8} parent=107 // pred_region
          _
        $region116: #{cardiovascular_predictor.8} parent=107 // pred_fallthru
          _
      $region108: #{cardiovascular_predictor.8} parent=5 // pred_fallthru
        _
      %p3374 = scmp.le.s32.totalorder 2, %s33
      // Predicated region
      $region117: #{cardiovascular_predictor.8} parent=5 // pred_check
        %p3375 = pneg %p3374
      $region118: #{cardiovascular_predictor.8} parent=5 // pred_check_branch
        %3377 = sbr.rel (%p3375) target = $region120
      $region119: #{cardiovascular_predictor.8} parent=5 // pred_region
        %s3378 = ssub.s32 %s33, 2
        // Predicated region
        $region121: #{cardiovascular_predictor.8} parent=119 // pred_check
          %p3379 = pneg %p534
        $region122: #{cardiovascular_predictor.8} parent=119 // pred_check_branch
          %3381 = sbr.rel (%p3379) target = $region124
        $region123: #{cardiovascular_predictor.8} parent=119 // pred_region
          %s3382 = sand.u32 %s519, 1
          %s3383 = scalar_lea.sflag [#allocation3], %s3382
          %s3384 = sand.u32 %s519, 1
          %s3385 = smul.addr %s3384, 24
          %s3386 = scalar_lea.vmem [#allocation2], %s3385
          %3387 = dma.done %s3383, 384
        $region124: #{cardiovascular_predictor.8} parent=119 // pred_fallthru
          _
        // Predicated region
        $region125: #{cardiovascular_predictor.8} parent=119 // pred_check
          %p3388 = pneg %p560
        $region126: #{cardiovascular_predictor.8} parent=119 // pred_check_branch
          %3390 = sbr.rel (%p3388) target = $region128
        $region127: #{cardiovascular_predictor.8} parent=119 // pred_region
          %p3391 = scmp.lt.s32.totalorder %s39, 1
          %s3392 = scalar_select %p3391, %s39, 1
          %s3393 = scalar_lea.vmem %s23, %s3392
        $region128: #{cardiovascular_predictor.8} parent=119 // pred_fallthru
          _
      $region120: #{cardiovascular_predictor.8} parent=5 // pred_fallthru
        _
    $region6: #{cardiovascular_predictor.8} parent=1 // loop_footer
      %s37 = sadd.s32 1, %s33
    $region7: #{cardiovascular_predictor.8} parent=1 // loop_footer_branch
      %32 = sbr.rel target = $region3
    $region8: #{cardiovascular_predictor.8} parent=1 // loop_exit
      _
    %3394 = vsyncpa [#allocation3], 1
    %s3395 = scalar_lea.sflag [#allocation3], 1
    %3396 = vsyncpa %s3395, 1

// kernel: cardiovascular_predictor.7
$region0: #{cardiovascular_predictor.7}
  #allocation0 [shape = 'u32[]', space=smem, size = 0x4, offset = 0x4, fixed_abs, tag = 'smem constant byte address 0x4 - core index']
  #allocation1 [shape = 'u32[144,128]{1,0:T(1,128)}', space=vmem, size = 0x12000, scoped, tag = 'internal scratch']
  %s0 = inlined_call_operand.vmem [shape: f32[2,17,128], index: 0, kind: input, shape index: {}]
  %s1 = inlined_call_operand.vmem [shape: f32[2,17,128], index: 1, kind: input, shape index: {}]
  %s2 = inlined_call_operand.vmem [shape: bf16[2,128,64], index: 2, kind: input, shape index: {}]
  %s3 = inlined_call_operand.vmem [shape: bf16[2,128,64], index: 3, kind: input, shape index: {}]
  %s4 = inlined_call_operand.vmem [shape: bf16[2,128,64], index: 4, kind: input, shape index: {}]
  %s5 = inlined_call_operand.vmem [shape: f32[2,1,64], index: 5, kind: input, shape index: {}]
  %s6 = inlined_call_operand.vmem [shape: f32[2,1,64], index: 6, kind: input, shape index: {}]
  %s7 = inlined_call_operand.vmem [shape: f32[2,1,64], index: 7, kind: input, shape index: {}]
  %s8 = inlined_call_operand.vmem [shape: bf16[2,64,128], index: 8, kind: input, shape index: {}]
  %s9 = inlined_call_operand.vmem [shape: f32[1,128], index: 9, kind: input, shape index: {}]
  %s10 = inlined_call_operand.vmem [shape: bf16[2,128,64], index: 10, kind: input, shape index: {}]
  %s11 = inlined_call_operand.vmem [shape: bf16[2,128,64], index: 11, kind: input, shape index: {}]
  %s12 = inlined_call_operand.vmem [shape: bf16[2,128,64], index: 12, kind: input, shape index: {}]
  %s13 = inlined_call_operand.vmem [shape: f32[2,1,64], index: 13, kind: input, shape index: {}]
  %s14 = inlined_call_operand.vmem [shape: f32[2,1,64], index: 14, kind: input, shape index: {}]
  %s15 = inlined_call_operand.vmem [shape: f32[2,1,64], index: 15, kind: input, shape index: {}]
  %s16 = inlined_call_operand.vmem [shape: bf16[2,64,128], index: 16, kind: input, shape index: {}]
  %s17 = inlined_call_operand.vmem [shape: f32[1,128], index: 17, kind: input, shape index: {}]
  %s18 = inlined_call_operand.vmem [shape: f32[1,128], index: 18, kind: input, shape index: {}]
  %s19 = inlined_call_operand.vmem [shape: f32[1,128], index: 19, kind: input, shape index: {}]
  %s20 = inlined_call_operand.vmem [shape: f32[1,128], index: 20, kind: input, shape index: {}]
  %s21 = inlined_call_operand.vmem [shape: f32[1,128], index: 21, kind: input, shape index: {}]
  %s22 = inlined_call_operand.vmem [shape: f32[2,17,128], index: 22, kind: output, shape index: {0}]
  %s23 = inlined_call_operand.vmem [shape: f32[2,1,128], index: 23, kind: output, shape index: {1}]
  %24 = xla_tuple %s22, %s23
  %s25 = sld [smem:[#allocation0]]
  $region129: #{cardiovascular_predictor.7} parent=0
    _
  %s27 = ssub.s32 1, %s25
  %s28 = scalar_select 0, %s27, %s25
  loop: start=0, step=1, limit=4
  $region2: #{cardiovascular_predictor.7} parent=0 // loop_pre_header
    _
  $region3: #{cardiovascular_predictor.7} parent=0 // loop_header
    %s30 = sphi 0, %s34
    %p31 = scmp.ge.s32.totalorder %s30, 4
    %s40 = sphi 0, %s42
    %s43 = sphi 0, %s40
    %s44 = sphi 0, %s43
    %s60 = sphi 0, %s44
    %s66 = sphi 0, %s68
    %s69 = sphi 0, %s66
    %s70 = sphi 0, %s69
    %s86 = sphi 0, %s70
    %s90 = sphi 0, %s90
    %s92 = sphi 0, %s90
    %s93 = sphi 0, %s92
    %s107 = sphi 0, %s93
    %s111 = sphi 0, %s111
    %s113 = sphi 0, %s111
    %s114 = sphi 0, %s113
    %s128 = sphi 0, %s114
    %s132 = sphi 0, %s132
    %s134 = sphi 0, %s132
    %s135 = sphi 0, %s134
    %s149 = sphi 0, %s135
    %s153 = sphi 0, %s153
    %s155 = sphi 0, %s153
    %s156 = sphi 0, %s155
    %s170 = sphi 0, %s156
    %s174 = sphi 0, %s174
    %s176 = sphi 0, %s174
    %s177 = sphi 0, %s176
    %s191 = sphi 0, %s177
    %s195 = sphi 0, %s195
    %s197 = sphi 0, %s195
    %s198 = sphi 0, %s197
    %s212 = sphi 0, %s198
    %s216 = sphi 0, %s216
    %s218 = sphi 0, %s216
    %s219 = sphi 0, %s218
    %s233 = sphi 0, %s219
    %s237 = sphi 0, %s237
    %s239 = sphi 0, %s237
    %s240 = sphi 0, %s239
    %s254 = sphi 0, %s240
    %s258 = sphi 0, %s258
    %s260 = sphi 0, %s258
    %s261 = sphi 0, %s260
    %s275 = sphi 0, %s261
    %s279 = sphi 0, %s279
    %s281 = sphi 0, %s279
    %s282 = sphi 0, %s281
    %s296 = sphi 0, %s282
    %s300 = sphi 0, %s300
    %s302 = sphi 0, %s300
    %s303 = sphi 0, %s302
    %s317 = sphi 0, %s303
    %s321 = sphi 0, %s321
    %s323 = sphi 0, %s321
    %s324 = sphi 0, %s323
    %s338 = sphi 0, %s324
    %s342 = sphi 0, %s342
    %s344 = sphi 0, %s342
    %s345 = sphi 0, %s344
    %s359 = sphi 0, %s345
    %s363 = sphi 0, %s363
    %s365 = sphi 0, %s363
    %s366 = sphi 0, %s365
    %s380 = sphi 0, %s366
    %s384 = sphi 0, %s384
    %s386 = sphi 0, %s384
    %s387 = sphi 0, %s386
    %s401 = sphi 0, %s387
    %s405 = sphi 0, %s405
    %s407 = sphi 0, %s405
    %s408 = sphi 0, %s407
    %s422 = sphi 0, %s408
    %s426 = sphi 0, %s426
    %s428 = sphi 0, %s426
    %s429 = sphi 0, %s428
    %s443 = sphi 0, %s429
    %s447 = sphi 0, %s447
    %s449 = sphi 0, %s447
    %s450 = sphi 0, %s449
    %s464 = sphi 0, %s450
    %s468 = sphi 0, %s468
    %s470 = sphi 0, %s468
    %s471 = sphi 0, %s470
    %s485 = sphi 0, %s471
    %s489 = sphi 0, %s489
    %s491 = sphi 0, %s489
    %s492 = sphi 0, %s491
    %s506 = sphi 0, %s492
    %s512 = sphi 0, %s514
    %s515 = sphi 0, %s512
    %s516 = sphi 0, %s515
    %s532 = sphi 0, %s516
    %s538 = sphi 0, %s540
    %s541 = sphi 0, %s538
    %s542 = sphi 0, %s541
    %s558 = sphi 0, %s542
  $region4: #{cardiovascular_predictor.7} parent=0 // loop_header_branch
    %33 = sbr.rel (%p31) target = $region8
  $region5: #{cardiovascular_predictor.7} parent=0 // loop_body
    %s35 = ssub.s32 %s30, 1
    %s36 = ssub.s32 %s30, 2
    %s37 = sadd.s32 %s30, 1
    %s38 = ssub.s32 %s30, %s37
    %p39 = scmp.eq.s32.totalorder %s38, 0
    %s41 = sadd.s32 %s40, 1
    %s42 = scalar_select %p39, %s40, %s41
    %p45 = pneg %p39
    %p46 = scmp.eq.s32.totalorder %s30, 1
    %p47 = por %p45, %p46
    %p48 = scmp.ne.s32.totalorder %s40, %s43
    %p49 = scmp.eq.s32.totalorder %s30, 0
    %p50 = por %p48, %p49
    %p51 = scmp.ne.s32.totalorder %s40, %s43
    %p52 = scmp.eq.s32.totalorder %s35, 1
    %p53 = por %p51, %p52
    %p54 = scmp.ne.s32.totalorder %s43, %s44
    %p55 = scmp.eq.s32.totalorder %s35, 0
    %p56 = por %p54, %p55
    %p57 = scmp.ne.s32.totalorder %s43, %s44
    %p58 = scmp.eq.s32.totalorder %s36, 1
    %p59 = por %p57, %p58
    %p61 = scmp.ne.s32.totalorder %s44, %s60
    %p62 = scmp.eq.s32.totalorder %s36, 0
    %p63 = por %p61, %p62
    %s64 = ssub.s32 %s30, %s37
    %p65 = scmp.eq.s32.totalorder %s64, 0
    %s67 = sadd.s32 %s66, 1
    %s68 = scalar_select %p65, %s66, %s67
    %p71 = pneg %p65
    %p72 = scmp.eq.s32.totalorder %s30, 1
    %p73 = por %p71, %p72
    %p74 = scmp.ne.s32.totalorder %s66, %s69
    %p75 = scmp.eq.s32.totalorder %s30, 0
    %p76 = por %p74, %p75
    %p77 = scmp.ne.s32.totalorder %s66, %s69
    %p78 = scmp.eq.s32.totalorder %s35, 1
    %p79 = por %p77, %p78
    %p80 = scmp.ne.s32.totalorder %s69, %s70
    %p81 = scmp.eq.s32.totalorder %s35, 0
    %p82 = por %p80, %p81
    %p83 = scmp.ne.s32.totalorder %s69, %s70
    %p84 = scmp.eq.s32.totalorder %s36, 1
    %p85 = por %p83, %p84
    %p87 = scmp.ne.s32.totalorder %s70, %s86
    %p88 = scmp.eq.s32.totalorder %s36, 0
    %p89 = por %p87, %p88
    %s91 = sadd.s32 %s90, 1
    %p94 = scmp.eq.s32.totalorder %s30, 1
    %p95 = scmp.ne.s32.totalorder %s90, %s92
    %p96 = scmp.eq.s32.totalorder %s30, 0
    %p97 = por %p95, %p96
    %p98 = scmp.ne.s32.totalorder %s90, %s92
    %p99 = scmp.eq.s32.totalorder %s35, 1
    %p100 = por %p98, %p99
    %p101 = scmp.ne.s32.totalorder %s92, %s93
    %p102 = scmp.eq.s32.totalorder %s35, 0
    %p103 = por %p101, %p102
    %p104 = scmp.ne.s32.totalorder %s92, %s93
    %p105 = scmp.eq.s32.totalorder %s36, 1
    %p106 = por %p104, %p105
    %p108 = scmp.ne.s32.totalorder %s93, %s107
    %p109 = scmp.eq.s32.totalorder %s36, 0
    %p110 = por %p108, %p109
    %s112 = sadd.s32 %s111, 1
    %p115 = scmp.eq.s32.totalorder %s30, 1
    %p116 = scmp.ne.s32.totalorder %s111, %s113
    %p117 = scmp.eq.s32.totalorder %s30, 0
    %p118 = por %p116, %p117
    %p119 = scmp.ne.s32.totalorder %s111, %s113
    %p120 = scmp.eq.s32.totalorder %s35, 1
    %p121 = por %p119, %p120
    %p122 = scmp.ne.s32.totalorder %s113, %s114
    %p123 = scmp.eq.s32.totalorder %s35, 0
    %p124 = por %p122, %p123
    %p125 = scmp.ne.s32.totalorder %s113, %s114
    %p126 = scmp.eq.s32.totalorder %s36, 1
    %p127 = por %p125, %p126
    %p129 = scmp.ne.s32.totalorder %s114, %s128
    %p130 = scmp.eq.s32.totalorder %s36, 0
    %p131 = por %p129, %p130
    %s133 = sadd.s32 %s132, 1
    %p136 = scmp.eq.s32.totalorder %s30, 1
    %p137 = scmp.ne.s32.totalorder %s132, %s134
    %p138 = scmp.eq.s32.totalorder %s30, 0
    %p139 = por %p137, %p138
    %p140 = scmp.ne.s32.totalorder %s132, %s134
    %p141 = scmp.eq.s32.totalorder %s35, 1
    %p142 = por %p140, %p141
    %p143 = scmp.ne.s32.totalorder %s134, %s135
    %p144 = scmp.eq.s32.totalorder %s35, 0
    %p145 = por %p143, %p144
    %p146 = scmp.ne.s32.totalorder %s134, %s135
    %p147 = scmp.eq.s32.totalorder %s36, 1
    %p148 = por %p146, %p147
    %p150 = scmp.ne.s32.totalorder %s135, %s149
    %p151 = scmp.eq.s32.totalorder %s36, 0
    %p152 = por %p150, %p151
    %s154 = sadd.s32 %s153, 1
    %p157 = scmp.eq.s32.totalorder %s30, 1
    %p158 = scmp.ne.s32.totalorder %s153, %s155
    %p159 = scmp.eq.s32.totalorder %s30, 0
    %p160 = por %p158, %p159
    %p161 = scmp.ne.s32.totalorder %s153, %s155
    %p162 = scmp.eq.s32.totalorder %s35, 1
    %p163 = por %p161, %p162
    %p164 = scmp.ne.s32.totalorder %s155, %s156
    %p165 = scmp.eq.s32.totalorder %s35, 0
    %p166 = por %p164, %p165
    %p167 = scmp.ne.s32.totalorder %s155, %s156
    %p168 = scmp.eq.s32.totalorder %s36, 1
    %p169 = por %p167, %p168
    %p171 = scmp.ne.s32.totalorder %s156, %s170
    %p172 = scmp.eq.s32.totalorder %s36, 0
    %p173 = por %p171, %p172
    %s175 = sadd.s32 %s174, 1
    %p178 = scmp.eq.s32.totalorder %s30, 1
    %p179 = scmp.ne.s32.totalorder %s174, %s176
    %p180 = scmp.eq.s32.totalorder %s30, 0
    %p181 = por %p179, %p180
    %p182 = scmp.ne.s32.totalorder %s174, %s176
    %p183 = scmp.eq.s32.totalorder %s35, 1
    %p184 = por %p182, %p183
    %p185 = scmp.ne.s32.totalorder %s176, %s177
    %p186 = scmp.eq.s32.totalorder %s35, 0
    %p187 = por %p185, %p186
    %p188 = scmp.ne.s32.totalorder %s176, %s177
    %p189 = scmp.eq.s32.totalorder %s36, 1
    %p190 = por %p188, %p189
    %p192 = scmp.ne.s32.totalorder %s177, %s191
    %p193 = scmp.eq.s32.totalorder %s36, 0
    %p194 = por %p192, %p193
    %s196 = sadd.s32 %s195, 1
    %p199 = scmp.eq.s32.totalorder %s30, 1
    %p200 = scmp.ne.s32.totalorder %s195, %s197
    %p201 = scmp.eq.s32.totalorder %s30, 0
    %p202 = por %p200, %p201
    %p203 = scmp.ne.s32.totalorder %s195, %s197
    %p204 = scmp.eq.s32.totalorder %s35, 1
    %p205 = por %p203, %p204
    %p206 = scmp.ne.s32.totalorder %s197, %s198
    %p207 = scmp.eq.s32.totalorder %s35, 0
    %p208 = por %p206, %p207
    %p209 = scmp.ne.s32.totalorder %s197, %s198
    %p210 = scmp.eq.s32.totalorder %s36, 1
    %p211 = por %p209, %p210
    %p213 = scmp.ne.s32.totalorder %s198, %s212
    %p214 = scmp.eq.s32.totalorder %s36, 0
    %p215 = por %p213, %p214
    %s217 = sadd.s32 %s216, 1
    %p220 = scmp.eq.s32.totalorder %s30, 1
    %p221 = scmp.ne.s32.totalorder %s216, %s218
    %p222 = scmp.eq.s32.totalorder %s30, 0
    %p223 = por %p221, %p222
    %p224 = scmp.ne.s32.totalorder %s216, %s218
    %p225 = scmp.eq.s32.totalorder %s35, 1
    %p226 = por %p224, %p225
    %p227 = scmp.ne.s32.totalorder %s218, %s219
    %p228 = scmp.eq.s32.totalorder %s35, 0
    %p229 = por %p227, %p228
    %p230 = scmp.ne.s32.totalorder %s218, %s219
    %p231 = scmp.eq.s32.totalorder %s36, 1
    %p232 = por %p230, %p231
    %p234 = scmp.ne.s32.totalorder %s219, %s233
    %p235 = scmp.eq.s32.totalorder %s36, 0
    %p236 = por %p234, %p235
    %s238 = sadd.s32 %s237, 1
    %p241 = scmp.eq.s32.totalorder %s30, 1
    %p242 = scmp.ne.s32.totalorder %s237, %s239
    %p243 = scmp.eq.s32.totalorder %s30, 0
    %p244 = por %p242, %p243
    %p245 = scmp.ne.s32.totalorder %s237, %s239
    %p246 = scmp.eq.s32.totalorder %s35, 1
    %p247 = por %p245, %p246
    %p248 = scmp.ne.s32.totalorder %s239, %s240
    %p249 = scmp.eq.s32.totalorder %s35, 0
    %p250 = por %p248, %p249
    %p251 = scmp.ne.s32.totalorder %s239, %s240
    %p252 = scmp.eq.s32.totalorder %s36, 1
    %p253 = por %p251, %p252
    %p255 = scmp.ne.s32.totalorder %s240, %s254
    %p256 = scmp.eq.s32.totalorder %s36, 0
    %p257 = por %p255, %p256
    %s259 = sadd.s32 %s258, 1
    %p262 = scmp.eq.s32.totalorder %s30, 1
    %p263 = scmp.ne.s32.totalorder %s258, %s260
    %p264 = scmp.eq.s32.totalorder %s30, 0
    %p265 = por %p263, %p264
    %p266 = scmp.ne.s32.totalorder %s258, %s260
    %p267 = scmp.eq.s32.totalorder %s35, 1
    %p268 = por %p266, %p267
    %p269 = scmp.ne.s32.totalorder %s260, %s261
    %p270 = scmp.eq.s32.totalorder %s35, 0
    %p271 = por %p269, %p270
    %p272 = scmp.ne.s32.totalorder %s260, %s261
    %p273 = scmp.eq.s32.totalorder %s36, 1
    %p274 = por %p272, %p273
    %p276 = scmp.ne.s32.totalorder %s261, %s275
    %p277 = scmp.eq.s32.totalorder %s36, 0
    %p278 = por %p276, %p277
    %s280 = sadd.s32 %s279, 1
    %p283 = scmp.eq.s32.totalorder %s30, 1
    %p284 = scmp.ne.s32.totalorder %s279, %s281
    %p285 = scmp.eq.s32.totalorder %s30, 0
    %p286 = por %p284, %p285
    %p287 = scmp.ne.s32.totalorder %s279, %s281
    %p288 = scmp.eq.s32.totalorder %s35, 1
    %p289 = por %p287, %p288
    %p290 = scmp.ne.s32.totalorder %s281, %s282
    %p291 = scmp.eq.s32.totalorder %s35, 0
    %p292 = por %p290, %p291
    %p293 = scmp.ne.s32.totalorder %s281, %s282
    %p294 = scmp.eq.s32.totalorder %s36, 1
    %p295 = por %p293, %p294
    %p297 = scmp.ne.s32.totalorder %s282, %s296
    %p298 = scmp.eq.s32.totalorder %s36, 0
    %p299 = por %p297, %p298
    %s301 = sadd.s32 %s300, 1
    %p304 = scmp.eq.s32.totalorder %s30, 1
    %p305 = scmp.ne.s32.totalorder %s300, %s302
    %p306 = scmp.eq.s32.totalorder %s30, 0
    %p307 = por %p305, %p306
    %p308 = scmp.ne.s32.totalorder %s300, %s302
    %p309 = scmp.eq.s32.totalorder %s35, 1
    %p310 = por %p308, %p309
    %p311 = scmp.ne.s32.totalorder %s302, %s303
    %p312 = scmp.eq.s32.totalorder %s35, 0
    %p313 = por %p311, %p312
    %p314 = scmp.ne.s32.totalorder %s302, %s303
    %p315 = scmp.eq.s32.totalorder %s36, 1
    %p316 = por %p314, %p315
    %p318 = scmp.ne.s32.totalorder %s303, %s317
    %p319 = scmp.eq.s32.totalorder %s36, 0
    %p320 = por %p318, %p319
    %s322 = sadd.s32 %s321, 1
    %p325 = scmp.eq.s32.totalorder %s30, 1
    %p326 = scmp.ne.s32.totalorder %s321, %s323
    %p327 = scmp.eq.s32.totalorder %s30, 0
    %p328 = por %p326, %p327
    %p329 = scmp.ne.s32.totalorder %s321, %s323
    %p330 = scmp.eq.s32.totalorder %s35, 1
    %p331 = por %p329, %p330
    %p332 = scmp.ne.s32.totalorder %s323, %s324
    %p333 = scmp.eq.s32.totalorder %s35, 0
    %p334 = por %p332, %p333
    %p335 = scmp.ne.s32.totalorder %s323, %s324
    %p336 = scmp.eq.s32.totalorder %s36, 1
    %p337 = por %p335, %p336
    %p339 = scmp.ne.s32.totalorder %s324, %s338
    %p340 = scmp.eq.s32.totalorder %s36, 0
    %p341 = por %p339, %p340
    %s343 = sadd.s32 %s342, 1
    %p346 = scmp.eq.s32.totalorder %s30, 1
    %p347 = scmp.ne.s32.totalorder %s342, %s344
    %p348 = scmp.eq.s32.totalorder %s30, 0
    %p349 = por %p347, %p348
    %p350 = scmp.ne.s32.totalorder %s342, %s344
    %p351 = scmp.eq.s32.totalorder %s35, 1
    %p352 = por %p350, %p351
    %p353 = scmp.ne.s32.totalorder %s344, %s345
    %p354 = scmp.eq.s32.totalorder %s35, 0
    %p355 = por %p353, %p354
    %p356 = scmp.ne.s32.totalorder %s344, %s345
    %p357 = scmp.eq.s32.totalorder %s36, 1
    %p358 = por %p356, %p357
    %p360 = scmp.ne.s32.totalorder %s345, %s359
    %p361 = scmp.eq.s32.totalorder %s36, 0
    %p362 = por %p360, %p361
    %s364 = sadd.s32 %s363, 1
    %p367 = scmp.eq.s32.totalorder %s30, 1
    %p368 = scmp.ne.s32.totalorder %s363, %s365
    %p369 = scmp.eq.s32.totalorder %s30, 0
    %p370 = por %p368, %p369
    %p371 = scmp.ne.s32.totalorder %s363, %s365
    %p372 = scmp.eq.s32.totalorder %s35, 1
    %p373 = por %p371, %p372
    %p374 = scmp.ne.s32.totalorder %s365, %s366
    %p375 = scmp.eq.s32.totalorder %s35, 0
    %p376 = por %p374, %p375
    %p377 = scmp.ne.s32.totalorder %s365, %s366
    %p378 = scmp.eq.s32.totalorder %s36, 1
    %p379 = por %p377, %p378
    %p381 = scmp.ne.s32.totalorder %s366, %s380
    %p382 = scmp.eq.s32.totalorder %s36, 0
    %p383 = por %p381, %p382
    %s385 = sadd.s32 %s384, 1
    %p388 = scmp.eq.s32.totalorder %s30, 1
    %p389 = scmp.ne.s32.totalorder %s384, %s386
    %p390 = scmp.eq.s32.totalorder %s30, 0
    %p391 = por %p389, %p390
    %p392 = scmp.ne.s32.totalorder %s384, %s386
    %p393 = scmp.eq.s32.totalorder %s35, 1
    %p394 = por %p392, %p393
    %p395 = scmp.ne.s32.totalorder %s386, %s387
    %p396 = scmp.eq.s32.totalorder %s35, 0
    %p397 = por %p395, %p396
    %p398 = scmp.ne.s32.totalorder %s386, %s387
    %p399 = scmp.eq.s32.totalorder %s36, 1
    %p400 = por %p398, %p399
    %p402 = scmp.ne.s32.totalorder %s387, %s401
    %p403 = scmp.eq.s32.totalorder %s36, 0
    %p404 = por %p402, %p403
    %s406 = sadd.s32 %s405, 1
    %p409 = scmp.eq.s32.totalorder %s30, 1
    %p410 = scmp.ne.s32.totalorder %s405, %s407
    %p411 = scmp.eq.s32.totalorder %s30, 0
    %p412 = por %p410, %p411
    %p413 = scmp.ne.s32.totalorder %s405, %s407
    %p414 = scmp.eq.s32.totalorder %s35, 1
    %p415 = por %p413, %p414
    %p416 = scmp.ne.s32.totalorder %s407, %s408
    %p417 = scmp.eq.s32.totalorder %s35, 0
    %p418 = por %p416, %p417
    %p419 = scmp.ne.s32.totalorder %s407, %s408
    %p420 = scmp.eq.s32.totalorder %s36, 1
    %p421 = por %p419, %p420
    %p423 = scmp.ne.s32.totalorder %s408, %s422
    %p424 = scmp.eq.s32.totalorder %s36, 0
    %p425 = por %p423, %p424
    %s427 = sadd.s32 %s426, 1
    %p430 = scmp.eq.s32.totalorder %s30, 1
    %p431 = scmp.ne.s32.totalorder %s426, %s428
    %p432 = scmp.eq.s32.totalorder %s30, 0
    %p433 = por %p431, %p432
    %p434 = scmp.ne.s32.totalorder %s426, %s428
    %p435 = scmp.eq.s32.totalorder %s35, 1
    %p436 = por %p434, %p435
    %p437 = scmp.ne.s32.totalorder %s428, %s429
    %p438 = scmp.eq.s32.totalorder %s35, 0
    %p439 = por %p437, %p438
    %p440 = scmp.ne.s32.totalorder %s428, %s429
    %p441 = scmp.eq.s32.totalorder %s36, 1
    %p442 = por %p440, %p441
    %p444 = scmp.ne.s32.totalorder %s429, %s443
    %p445 = scmp.eq.s32.totalorder %s36, 0
    %p446 = por %p444, %p445
    %s448 = sadd.s32 %s447, 1
    %p451 = scmp.eq.s32.totalorder %s30, 1
    %p452 = scmp.ne.s32.totalorder %s447, %s449
    %p453 = scmp.eq.s32.totalorder %s30, 0
    %p454 = por %p452, %p453
    %p455 = scmp.ne.s32.totalorder %s447, %s449
    %p456 = scmp.eq.s32.totalorder %s35, 1
    %p457 = por %p455, %p456
    %p458 = scmp.ne.s32.totalorder %s449, %s450
    %p459 = scmp.eq.s32.totalorder %s35, 0
    %p460 = por %p458, %p459
    %p461 = scmp.ne.s32.totalorder %s449, %s450
    %p462 = scmp.eq.s32.totalorder %s36, 1
    %p463 = por %p461, %p462
    %p465 = scmp.ne.s32.totalorder %s450, %s464
    %p466 = scmp.eq.s32.totalorder %s36, 0
    %p467 = por %p465, %p466
    %s469 = sadd.s32 %s468, 1
    %p472 = scmp.eq.s32.totalorder %s30, 1
    %p473 = scmp.ne.s32.totalorder %s468, %s470
    %p474 = scmp.eq.s32.totalorder %s30, 0
    %p475 = por %p473, %p474
    %p476 = scmp.ne.s32.totalorder %s468, %s470
    %p477 = scmp.eq.s32.totalorder %s35, 1
    %p478 = por %p476, %p477
    %p479 = scmp.ne.s32.totalorder %s470, %s471
    %p480 = scmp.eq.s32.totalorder %s35, 0
    %p481 = por %p479, %p480
    %p482 = scmp.ne.s32.totalorder %s470, %s471
    %p483 = scmp.eq.s32.totalorder %s36, 1
    %p484 = por %p482, %p483
    %p486 = scmp.ne.s32.totalorder %s471, %s485
    %p487 = scmp.eq.s32.totalorder %s36, 0
    %p488 = por %p486, %p487
    %s490 = sadd.s32 %s489, 1
    %p493 = scmp.eq.s32.totalorder %s30, 1
    %p494 = scmp.ne.s32.totalorder %s489, %s491
    %p495 = scmp.eq.s32.totalorder %s30, 0
    %p496 = por %p494, %p495
    %p497 = scmp.ne.s32.totalorder %s489, %s491
    %p498 = scmp.eq.s32.totalorder %s35, 1
    %p499 = por %p497, %p498
    %p500 = scmp.ne.s32.totalorder %s491, %s492
    %p501 = scmp.eq.s32.totalorder %s35, 0
    %p502 = por %p500, %p501
    %p503 = scmp.ne.s32.totalorder %s491, %s492
    %p504 = scmp.eq.s32.totalorder %s36, 1
    %p505 = por %p503, %p504
    %p507 = scmp.ne.s32.totalorder %s492, %s506
    %p508 = scmp.eq.s32.totalorder %s36, 0
    %p509 = por %p507, %p508
    %s510 = ssub.s32 %s30, %s37
    %p511 = scmp.eq.s32.totalorder %s510, 0
    %s513 = sadd.s32 %s512, 1
    %s514 = scalar_select %p511, %s512, %s513
    %p517 = pneg %p511
    %p518 = scmp.eq.s32.totalorder %s30, 1
    %p519 = por %p517, %p518
    %p520 = scmp.ne.s32.totalorder %s512, %s515
    %p521 = scmp.eq.s32.totalorder %s30, 0
    %p522 = por %p520, %p521
    %p523 = scmp.ne.s32.totalorder %s512, %s515
    %p524 = scmp.eq.s32.totalorder %s35, 1
    %p525 = por %p523, %p524
    %p526 = scmp.ne.s32.totalorder %s515, %s516
    %p527 = scmp.eq.s32.totalorder %s35, 0
    %p528 = por %p526, %p527
    %p529 = scmp.ne.s32.totalorder %s515, %s516
    %p530 = scmp.eq.s32.totalorder %s36, 1
    %p531 = por %p529, %p530
    %p533 = scmp.ne.s32.totalorder %s516, %s532
    %p534 = scmp.eq.s32.totalorder %s36, 0
    %p535 = por %p533, %p534
    %s536 = ssub.s32 %s30, %s37
    %p537 = scmp.eq.s32.totalorder %s536, 0
    %s539 = sadd.s32 %s538, 1
    %s540 = scalar_select %p537, %s538, %s539
    %p543 = pneg %p537
    %p544 = scmp.eq.s32.totalorder %s30, 1
    %p545 = por %p543, %p544
    %p546 = scmp.ne.s32.totalorder %s538, %s541
    %p547 = scmp.eq.s32.totalorder %s30, 0
    %p548 = por %p546, %p547
    %p549 = scmp.ne.s32.totalorder %s538, %s541
    %p550 = scmp.eq.s32.totalorder %s35, 1
    %p551 = por %p549, %p550
    %p552 = scmp.ne.s32.totalorder %s541, %s542
    %p553 = scmp.eq.s32.totalorder %s35, 0
    %p554 = por %p552, %p553
    %p555 = scmp.ne.s32.totalorder %s541, %s542
    %p556 = scmp.eq.s32.totalorder %s36, 1
    %p557 = por %p555, %p556
    %p559 = scmp.ne.s32.totalorder %s542, %s558
    %p560 = scmp.eq.s32.totalorder %s36, 0
    %p561 = por %p559, %p560
    %p562 = scmp.le.s32.totalorder 1, %s30
    %p563 = scmp.lt.s32.totalorder %s30, 3
    %p564 = pnand %p562, %p563
    %p565 = pneg %p564
    // Predicated region
    $region9: #{cardiovascular_predictor.7} parent=5 // pred_check
      _
    $region10: #{cardiovascular_predictor.7} parent=5 // pred_check_branch
      %567 = sbr.rel (%p564) target = $region12
    $region11: #{cardiovascular_predictor.7} parent=5 // pred_region
      %s568 = ssub.s32 %s30, 1
      // Predicated region
      $region13: #{cardiovascular_predictor.7} parent=11 // pred_check
        %p569 = pneg %p103
      $region14: #{cardiovascular_predictor.7} parent=11 // pred_check_branch
        %571 = sbr.rel (%p569) target = $region16
      $region15: #{cardiovascular_predictor.7} parent=11 // pred_region
        _
      $region16: #{cardiovascular_predictor.7} parent=11 // pred_fallthru
        _
      // Predicated region
      $region17: #{cardiovascular_predictor.7} parent=11 // pred_check
        %p572 = pneg %p124
      $region18: #{cardiovascular_predictor.7} parent=11 // pred_check_branch
        %574 = sbr.rel (%p572) target = $region20
      $region19: #{cardiovascular_predictor.7} parent=11 // pred_region
        _
      $region20: #{cardiovascular_predictor.7} parent=11 // pred_fallthru
        _
      // Predicated region
      $region21: #{cardiovascular_predictor.7} parent=11 // pred_check
        %p575 = pneg %p145
      $region22: #{cardiovascular_predictor.7} parent=11 // pred_check_branch
        %577 = sbr.rel (%p575) target = $region24
      $region23: #{cardiovascular_predictor.7} parent=11 // pred_region
        _
      $region24: #{cardiovascular_predictor.7} parent=11 // pred_fallthru
        _
      // Predicated region
      $region25: #{cardiovascular_predictor.7} parent=11 // pred_check
        %p578 = pneg %p166
      $region26: #{cardiovascular_predictor.7} parent=11 // pred_check_branch
        %580 = sbr.rel (%p578) target = $region28
      $region27: #{cardiovascular_predictor.7} parent=11 // pred_region
        _
      $region28: #{cardiovascular_predictor.7} parent=11 // pred_fallthru
        _
      // Predicated region
      $region29: #{cardiovascular_predictor.7} parent=11 // pred_check
        %p581 = pneg %p187
      $region30: #{cardiovascular_predictor.7} parent=11 // pred_check_branch
        %583 = sbr.rel (%p581) target = $region32
      $region31: #{cardiovascular_predictor.7} parent=11 // pred_region
        _
      $region32: #{cardiovascular_predictor.7} parent=11 // pred_fallthru
        _
      // Predicated region
      $region33: #{cardiovascular_predictor.7} parent=11 // pred_check
        %p584 = pneg %p208
      $region34: #{cardiovascular_predictor.7} parent=11 // pred_check_branch
        %586 = sbr.rel (%p584) target = $region36
      $region35: #{cardiovascular_predictor.7} parent=11 // pred_region
        _
      $region36: #{cardiovascular_predictor.7} parent=11 // pred_fallthru
        _
      // Predicated region
      $region37: #{cardiovascular_predictor.7} parent=11 // pred_check
        %p587 = pneg %p229
      $region38: #{cardiovascular_predictor.7} parent=11 // pred_check_branch
        %589 = sbr.rel (%p587) target = $region40
      $region39: #{cardiovascular_predictor.7} parent=11 // pred_region
        _
      $region40: #{cardiovascular_predictor.7} parent=11 // pred_fallthru
        _
      // Predicated region
      $region41: #{cardiovascular_predictor.7} parent=11 // pred_check
        %p590 = pneg %p250
      $region42: #{cardiovascular_predictor.7} parent=11 // pred_check_branch
        %592 = sbr.rel (%p590) target = $region44
      $region43: #{cardiovascular_predictor.7} parent=11 // pred_region
        _
      $region44: #{cardiovascular_predictor.7} parent=11 // pred_fallthru
        _
      // Predicated region
      $region45: #{cardiovascular_predictor.7} parent=11 // pred_check
        %p593 = pneg %p271
      $region46: #{cardiovascular_predictor.7} parent=11 // pred_check_branch
        %595 = sbr.rel (%p593) target = $region48
      $region47: #{cardiovascular_predictor.7} parent=11 // pred_region
        _
      $region48: #{cardiovascular_predictor.7} parent=11 // pred_fallthru
        _
      // Predicated region
      $region49: #{cardiovascular_predictor.7} parent=11 // pred_check
        %p596 = pneg %p292
      $region50: #{cardiovascular_predictor.7} parent=11 // pred_check_branch
        %598 = sbr.rel (%p596) target = $region52
      $region51: #{cardiovascular_predictor.7} parent=11 // pred_region
        _
      $region52: #{cardiovascular_predictor.7} parent=11 // pred_fallthru
        _
      // Predicated region
      $region53: #{cardiovascular_predictor.7} parent=11 // pred_check
        %p599 = pneg %p313
      $region54: #{cardiovascular_predictor.7} parent=11 // pred_check_branch
        %601 = sbr.rel (%p599) target = $region56
      $region55: #{cardiovascular_predictor.7} parent=11 // pred_region
        _
      $region56: #{cardiovascular_predictor.7} parent=11 // pred_fallthru
        _
      // Predicated region
      $region57: #{cardiovascular_predictor.7} parent=11 // pred_check
        %p602 = pneg %p334
      $region58: #{cardiovascular_predictor.7} parent=11 // pred_check_branch
        %604 = sbr.rel (%p602) target = $region60
      $region59: #{cardiovascular_predictor.7} parent=11 // pred_region
        _
      $region60: #{cardiovascular_predictor.7} parent=11 // pred_fallthru
        _
      // Predicated region
      $region61: #{cardiovascular_predictor.7} parent=11 // pred_check
        %p605 = pneg %p355
      $region62: #{cardiovascular_predictor.7} parent=11 // pred_check_branch
        %607 = sbr.rel (%p605) target = $region64
      $region63: #{cardiovascular_predictor.7} parent=11 // pred_region
        _
      $region64: #{cardiovascular_predictor.7} parent=11 // pred_fallthru
        _
      // Predicated region
      $region65: #{cardiovascular_predictor.7} parent=11 // pred_check
        %p608 = pneg %p376
      $region66: #{cardiovascular_predictor.7} parent=11 // pred_check_branch
        %610 = sbr.rel (%p608) target = $region68
      $region67: #{cardiovascular_predictor.7} parent=11 // pred_region
        _
      $region68: #{cardiovascular_predictor.7} parent=11 // pred_fallthru
        _
      // Predicated region
      $region69: #{cardiovascular_predictor.7} parent=11 // pred_check
        %p611 = pneg %p397
      $region70: #{cardiovascular_predictor.7} parent=11 // pred_check_branch
        %613 = sbr.rel (%p611) target = $region72
      $region71: #{cardiovascular_predictor.7} parent=11 // pred_region
        _
      $region72: #{cardiovascular_predictor.7} parent=11 // pred_fallthru
        _
      // Predicated region
      $region73: #{cardiovascular_predictor.7} parent=11 // pred_check
        %p614 = pneg %p418
      $region74: #{cardiovascular_predictor.7} parent=11 // pred_check_branch
        %616 = sbr.rel (%p614) target = $region76
      $region75: #{cardiovascular_predictor.7} parent=11 // pred_region
        _
      $region76: #{cardiovascular_predictor.7} parent=11 // pred_fallthru
        _
      // Predicated region
      $region77: #{cardiovascular_predictor.7} parent=11 // pred_check
        %p617 = pneg %p439
      $region78: #{cardiovascular_predictor.7} parent=11 // pred_check_branch
        %619 = sbr.rel (%p617) target = $region80
      $region79: #{cardiovascular_predictor.7} parent=11 // pred_region
        _
      $region80: #{cardiovascular_predictor.7} parent=11 // pred_fallthru
        _
      // Predicated region
      $region81: #{cardiovascular_predictor.7} parent=11 // pred_check
        %p620 = pneg %p460
      $region82: #{cardiovascular_predictor.7} parent=11 // pred_check_branch
        %622 = sbr.rel (%p620) target = $region84
      $region83: #{cardiovascular_predictor.7} parent=11 // pred_region
        _
      $region84: #{cardiovascular_predictor.7} parent=11 // pred_fallthru
        _
      // Predicated region
      $region85: #{cardiovascular_predictor.7} parent=11 // pred_check
        %p623 = pneg %p481
      $region86: #{cardiovascular_predictor.7} parent=11 // pred_check_branch
        %625 = sbr.rel (%p623) target = $region88
      $region87: #{cardiovascular_predictor.7} parent=11 // pred_region
        _
      $region88: #{cardiovascular_predictor.7} parent=11 // pred_fallthru
        _
      // Predicated region
      $region89: #{cardiovascular_predictor.7} parent=11 // pred_check
        %p626 = pneg %p502
      $region90: #{cardiovascular_predictor.7} parent=11 // pred_check_branch
        %628 = sbr.rel (%p626) target = $region92
      $region91: #{cardiovascular_predictor.7} parent=11 // pred_region
        _
      $region92: #{cardiovascular_predictor.7} parent=11 // pred_fallthru
        _
    $region12: #{cardiovascular_predictor.7} parent=5 // pred_fallthru
      _
    %p629 = scmp.lt.s32.totalorder %s30, 2
    // Predicated region
    $region93: #{cardiovascular_predictor.7} parent=5 // pred_check
      %p630 = pneg %p629
    $region94: #{cardiovascular_predictor.7} parent=5 // pred_check_branch
      %632 = sbr.rel (%p630) target = $region96
    $region95: #{cardiovascular_predictor.7} parent=5 // pred_region
      // Predicated region
      $region97: #{cardiovascular_predictor.7} parent=95 // pred_check
        %p633 = pneg %p50
      $region98: #{cardiovascular_predictor.7} parent=95 // pred_check_branch
        %635 = sbr.rel (%p633) target = $region100
      $region99: #{cardiovascular_predictor.7} parent=95 // pred_region
        %p636 = scmp.lt.s32.totalorder %s30, 1
        %s637 = scalar_select %p636, %s30, 1
        %s638 = smul.addr %s637, 3
        %s639 = smul.addr %s638, 8
        %s640 = scalar_lea.vmem %s0, %s639
      $region100: #{cardiovascular_predictor.7} parent=95 // pred_fallthru
        _
      // Predicated region
      $region101: #{cardiovascular_predictor.7} parent=95 // pred_check
        %p641 = pneg %p76
      $region102: #{cardiovascular_predictor.7} parent=95 // pred_check_branch
        %643 = sbr.rel (%p641) target = $region104
      $region103: #{cardiovascular_predictor.7} parent=95 // pred_region
        %p644 = scmp.lt.s32.totalorder %s30, 1
        %s645 = scalar_select %p644, %s30, 1
        %s646 = smul.addr %s645, 3
        %s647 = smul.addr %s646, 8
        %s648 = scalar_lea.vmem %s1, %s647
      $region104: #{cardiovascular_predictor.7} parent=95 // pred_fallthru
        _
    $region96: #{cardiovascular_predictor.7} parent=5 // pred_fallthru
      _
    %p649 = scmp.le.s32.totalorder 1, %s30
    %p650 = scmp.lt.s32.totalorder %s30, 3
    %p651 = pnand %p649, %p650
    %p652 = pneg %p651
    // Predicated region
    $region105: #{cardiovascular_predictor.7} parent=5 // pred_check
      _
    $region106: #{cardiovascular_predictor.7} parent=5 // pred_check_branch
      %654 = sbr.rel (%p651) target = $region108
    $region107: #{cardiovascular_predictor.7} parent=5 // pred_region
      %s655 = ssub.s32 %s30, 1
      %p656 = scmp.lt.s32.totalorder %s35, 1
      %s657 = scalar_select %p656, %s35, 1
      %s658 = smul.addr %s657, 3
      %s659 = smul.addr %s658, 8
      %s660 = scalar_lea.vmem %s0, %s659
      %p661 = pneg %p56
      %p662 = pneg %p53
      %p663 = scmp.lt.s32.totalorder %s35, 1
      %s664 = scalar_select %p663, %s35, 1
      %s665 = smul.addr %s664, 3
      %s666 = smul.addr %s665, 8
      %s667 = scalar_lea.vmem %s1, %s666
      %p668 = pneg %p82
      %p669 = pneg %p79
      %p670 = pneg %p103
      %p671 = pneg %p100
      %p672 = pneg %p124
      %p673 = pneg %p121
      %p674 = pneg %p145
      %p675 = pneg %p142
      %p676 = pneg %p166
      %p677 = pneg %p163
      %p678 = pneg %p187
      %p679 = pneg %p184
      %p680 = pneg %p208
      %p681 = pneg %p205
      %p682 = pneg %p229
      %p683 = pneg %p226
      %p684 = pneg %p250
      %p685 = pneg %p247
      %p686 = pneg %p271
      %p687 = pneg %p268
      %p688 = pneg %p292
      %p689 = pneg %p289
      %p690 = pneg %p313
      %p691 = pneg %p310
      %p692 = pneg %p334
      %p693 = pneg %p331
      %p694 = pneg %p355
      %p695 = pneg %p352
      %p696 = pneg %p376
      %p697 = pneg %p373
      %p698 = pneg %p397
      %p699 = pneg %p394
      %p700 = pneg %p418
      %p701 = pneg %p415
      %p702 = pneg %p439
      %p703 = pneg %p436
      %p704 = pneg %p460
      %p705 = pneg %p457
      %p706 = pneg %p481
      %p707 = pneg %p478
      %p708 = pneg %p502
      %p709 = pneg %p499
      %p710 = pneg %p528
      %p711 = pneg %p525
      %p712 = scmp.lt.s32.totalorder %s35, 1
      %s713 = scalar_select %p712, %s35, 1
      %s714 = smul.addr %s713, 3
      %s715 = smul.addr %s714, 8
      %s716 = scalar_lea.vmem %s22, %s715
      %p717 = pneg %p554
      %p718 = pneg %p551
      %p719 = scmp.lt.s32.totalorder %s35, 1
      %s720 = scalar_select %p719, %s35, 1
      %s721 = scalar_lea.vmem %s23, %s720
      %p722 = scmp.lt.s32.totalorder %s35, 1
      %s723 = scalar_select %p722, %s35, 1
      %s724 = smul.addr %s723, 3
      %s725 = smul.addr %s724, 8
      %s726 = scalar_lea.vmem %s0, %s725
      %p727 = scmp.lt.s32.totalorder %s35, 1
      %s728 = scalar_select %p727, %s35, 1
      %s729 = smul.addr %s728, 3
      %s730 = smul.addr %s729, 8
      %s731 = scalar_lea.vmem %s1, %s730
      %p732 = scmp.lt.s32.totalorder %s35, 1
      %s733 = scalar_select %p732, %s35, 1
      %s734 = smul.addr %s733, 3
      %s735 = smul.addr %s734, 8
      %s736 = scalar_lea.vmem %s22, %s735
      %p737 = scmp.lt.s32.totalorder %s35, 1
      %s738 = scalar_select %p737, %s35, 1
      %s739 = scalar_lea.vmem %s23, %s738
      %v741 = vld [vmem:[%s726] sm:$0xff]
      %v742 = vld [vmem:[%s726 + $0x8] sm:$0xff]
      %v743 = vld [vmem:[%s726 + $0x10] sm:$0x1]
      %v744 = vld [vmem:[%s731] sm:$0xff]
      %v745 = vld [vmem:[%s731 + $0x8] sm:$0xff]
      %v746 = vld [vmem:[%s731 + $0x10] sm:$0x1]
      %v747 = vpack.c.bf16 %v742, %v741
      %v748 = vpack.c.bf16 %v743, %v743
      %v749 = vld [vmem:[%s2] sm:$0xf]
      %v750 = vld [vmem:[%s2 + $0x4] sm:$0xf]
      %v751 = vld [vmem:[%s2 + $0x8] sm:$0xf]
      %v752 = vld [vmem:[%s2 + $0xc] sm:$0xf]
      %v753 = vld [vmem:[%s2 + $0x10] sm:$0xf]
      %v754 = vld [vmem:[%s2 + $0x14] sm:$0xf]
      %v755 = vld [vmem:[%s2 + $0x18] sm:$0xf]
      %v756 = vld [vmem:[%s2 + $0x1c] sm:$0xf]
      %v757 = vld [vmem:[%s2 + $0x20] sm:$0xf]
      %v758 = vld [vmem:[%s2 + $0x24] sm:$0xf]
      %v759 = vld [vmem:[%s2 + $0x28] sm:$0xf]
      %v760 = vld [vmem:[%s2 + $0x2c] sm:$0xf]
      %v761 = vld [vmem:[%s2 + $0x30] sm:$0xf]
      %v762 = vld [vmem:[%s2 + $0x34] sm:$0xf]
      %v763 = vld [vmem:[%s2 + $0x38] sm:$0xf]
      %v764 = vld [vmem:[%s2 + $0x3c] sm:$0xf]
      %v765 = vld [vmem:[%s5] sm:$0x1]
      %v767 = vlaneseq
      %v768 = vshrl.u32 %v767, 7
      %v769 = vsub.s32 0, %v768
      %v770 = vrot.slane %v765, %v769
      %v788 = vunpack.c.l.b16 %v749
      %v789 = vunpack.c.l.b16 %v750
      %v790 = vunpack.c.l.b16 %v751
      %v791 = vunpack.c.l.b16 %v752
      %v792 = vunpack.c.l.b16 %v753
      %v793 = vunpack.c.l.b16 %v754
      %v794 = vunpack.c.l.b16 %v755
      %v795 = vunpack.c.l.b16 %v756
      %v796 = vunpack.c.l.b16 %v757
      %v797 = vunpack.c.l.b16 %v758
      %v798 = vunpack.c.l.b16 %v759
      %v799 = vunpack.c.l.b16 %v760
      %v800 = vunpack.c.l.b16 %v761
      %v801 = vunpack.c.l.b16 %v762
      %v802 = vunpack.c.l.b16 %v763
      %v803 = vunpack.c.l.b16 %v764
      %v804 = vpack.c.b16 %v789, %v788
      %v805 = vpack.c.b16 %v791, %v790
      %v806 = vpack.c.b16 %v793, %v792
      %v807 = vpack.c.b16 %v795, %v794
      %v808 = vpack.c.b16 %v797, %v796
      %v809 = vpack.c.b16 %v799, %v798
      %v810 = vpack.c.b16 %v801, %v800
      %v811 = vpack.c.b16 %v803, %v802
      %820 = vmatprep.subr.bf16.mxu0 0
      %821 = vmatpush1.bf16.msra.mxu0 %v804
      %822 = vmatprep.subr.bf16.mxu0 0
      %823 = vmatpush1.bf16.msra.mxu0 %v805
      %824 = vmatprep.subr.bf16.mxu0 0
      %825 = vmatpush1.bf16.msra.mxu0 %v806
      %826 = vmatprep.subr.bf16.mxu0 0
      %827 = vmatpush1.bf16.msra.mxu0 %v807
      %828 = vmatprep.subr.bf16.mxu0 0
      %829 = vmatpush1.bf16.msra.mxu0 %v808
      %830 = vmatprep.subr.bf16.mxu0 0
      %831 = vmatpush1.bf16.msra.mxu0 %v809
      %832 = vmatprep.subr.bf16.mxu0 0
      %833 = vmatpush1.bf16.msra.mxu0 %v810
      %834 = vmatprep.subr.bf16.mxu0 0
      %835 = vmatpush1.bf16.msra.mxu0 %v811
      %836 = vmatprep.subr.bf16.mxu0 0
      %837 = vmatpush1.bf16.msra.mxu0 0
      %838 = vmatprep.subr.bf16.mxu0 0
      %839 = vmatpush1.bf16.msra.mxu0 0
      %840 = vmatprep.subr.bf16.mxu0 0
      %841 = vmatpush1.bf16.msra.mxu0 0
      %842 = vmatprep.subr.bf16.mxu0 0
      %843 = vmatpush1.bf16.msra.mxu0 0
      %844 = vmatprep.subr.bf16.mxu0 0
      %845 = vmatpush1.bf16.msra.mxu0 0
      %846 = vmatprep.subr.bf16.mxu0 0
      %847 = vmatpush1.bf16.msra.mxu0 0
      %848 = vmatprep.subr.bf16.mxu0 0
      %849 = vmatpush1.bf16.msra.mxu0 0
      %850 = vmatprep.subr.bf16.mxu0 0
      %851 = vmatpush1.bf16.msra.mxu0 0
      %852 = vmatprep.mubr.bf16.mxu0 0
      %853 = vmatmul.mubr.bf16.gmra.mrb[0].mxu0 %v747
      %v854 = vpop.f32.mrb[0].mxu0
      %v855 = vadd.f32 %v770, %v854
      %v856 = vpop.f32.mrb[0].mxu0
      %v857 = vpop.f32.mrb[0].mxu0
      %v858 = vadd.f32 %v770, %v857
      %v859 = vpop.f32.mrb[0].mxu0
      %860 = vmatprep.mubr.bf16.mxu0 0
      %861 = vmatmul.mubr.bf16.gmra.mrb[0].mxu0 %v748
      %v862 = vpop.f32.mrb[0].mxu0
      %v863 = vadd.f32 %v770, %v862
      %v864 = vpop.f32.mrb[0].mxu0
      %v865 = vpop.f32.mrb[0].mxu0
      %v866 = vpop.f32.mrb[0].mxu0
      %867 = vdwg.mxu0
      %v868 = vld [vmem:[%s3] sm:$0xf]
      %v869 = vld [vmem:[%s3 + $0x4] sm:$0xf]
      %v870 = vld [vmem:[%s3 + $0x8] sm:$0xf]
      %v871 = vld [vmem:[%s3 + $0xc] sm:$0xf]
      %v872 = vld [vmem:[%s3 + $0x10] sm:$0xf]
      %v873 = vld [vmem:[%s3 + $0x14] sm:$0xf]
      %v874 = vld [vmem:[%s3 + $0x18] sm:$0xf]
      %v875 = vld [vmem:[%s3 + $0x1c] sm:$0xf]
      %v876 = vld [vmem:[%s3 + $0x20] sm:$0xf]
      %v877 = vld [vmem:[%s3 + $0x24] sm:$0xf]
      %v878 = vld [vmem:[%s3 + $0x28] sm:$0xf]
      %v879 = vld [vmem:[%s3 + $0x2c] sm:$0xf]
      %v880 = vld [vmem:[%s3 + $0x30] sm:$0xf]
      %v881 = vld [vmem:[%s3 + $0x34] sm:$0xf]
      %v882 = vld [vmem:[%s3 + $0x38] sm:$0xf]
      %v883 = vld [vmem:[%s3 + $0x3c] sm:$0xf]
      %v884 = vld [vmem:[%s6] sm:$0x1]
      %v886 = vlaneseq
      %v887 = vshrl.u32 %v886, 7
      %v888 = vsub.s32 0, %v887
      %v889 = vrot.slane %v884, %v888
      %v907 = vunpack.c.l.b16 %v868
      %v908 = vunpack.c.l.b16 %v869
      %v909 = vunpack.c.l.b16 %v870
      %v910 = vunpack.c.l.b16 %v871
      %v911 = vunpack.c.l.b16 %v872
      %v912 = vunpack.c.l.b16 %v873
      %v913 = vunpack.c.l.b16 %v874
      %v914 = vunpack.c.l.b16 %v875
      %v915 = vunpack.c.l.b16 %v876
      %v916 = vunpack.c.l.b16 %v877
      %v917 = vunpack.c.l.b16 %v878
      %v918 = vunpack.c.l.b16 %v879
      %v919 = vunpack.c.l.b16 %v880
      %v920 = vunpack.c.l.b16 %v881
      %v921 = vunpack.c.l.b16 %v882
      %v922 = vunpack.c.l.b16 %v883
      %v923 = vpack.c.b16 %v908, %v907
      %v924 = vpack.c.b16 %v910, %v909
      %v925 = vpack.c.b16 %v912, %v911
      %v926 = vpack.c.b16 %v914, %v913
      %v927 = vpack.c.b16 %v916, %v915
      %v928 = vpack.c.b16 %v918, %v917
      %v929 = vpack.c.b16 %v920, %v919
      %v930 = vpack.c.b16 %v922, %v921
      %939 = vmatprep.subr.bf16.mxu0 0
      %940 = vmatpush1.bf16.msra.mxu0 %v923
      %941 = vmatprep.subr.bf16.mxu0 0
      %942 = vmatpush1.bf16.msra.mxu0 %v924
      %943 = vmatprep.subr.bf16.mxu0 0
      %944 = vmatpush1.bf16.msra.mxu0 %v925
      %945 = vmatprep.subr.bf16.mxu0 0
      %946 = vmatpush1.bf16.msra.mxu0 %v926
      %947 = vmatprep.subr.bf16.mxu0 0
      %948 = vmatpush1.bf16.msra.mxu0 %v927
      %949 = vmatprep.subr.bf16.mxu0 0
      %950 = vmatpush1.bf16.msra.mxu0 %v928
      %951 = vmatprep.subr.bf16.mxu0 0
      %952 = vmatpush1.bf16.msra.mxu0 %v929
      %953 = vmatprep.subr.bf16.mxu0 0
      %954 = vmatpush1.bf16.msra.mxu0 %v930
      %955 = vmatprep.subr.bf16.mxu0 0
      %956 = vmatpush1.bf16.msra.mxu0 0
      %957 = vmatprep.subr.bf16.mxu0 0
      %958 = vmatpush1.bf16.msra.mxu0 0
      %959 = vmatprep.subr.bf16.mxu0 0
      %960 = vmatpush1.bf16.msra.mxu0 0
      %961 = vmatprep.subr.bf16.mxu0 0
      %962 = vmatpush1.bf16.msra.mxu0 0
      %963 = vmatprep.subr.bf16.mxu0 0
      %964 = vmatpush1.bf16.msra.mxu0 0
      %965 = vmatprep.subr.bf16.mxu0 0
      %966 = vmatpush1.bf16.msra.mxu0 0
      %967 = vmatprep.subr.bf16.mxu0 0
      %968 = vmatpush1.bf16.msra.mxu0 0
      %969 = vmatprep.subr.bf16.mxu0 0
      %970 = vmatpush1.bf16.msra.mxu0 0
      %971 = vmatprep.mubr.bf16.mxu0 0
      %972 = vmatmul.mubr.bf16.gmra.mrb[0].mxu0 %v747
      %v973 = vpop.f32.mrb[0].mxu0
      %v974 = vadd.f32 %v889, %v973
      %v975 = vpop.f32.mrb[0].mxu0
      %v976 = vpop.f32.mrb[0].mxu0
      %v977 = vadd.f32 %v889, %v976
      %v978 = vpop.f32.mrb[0].mxu0
      %979 = vmatprep.mubr.bf16.mxu0 0
      %980 = vmatmul.mubr.bf16.gmra.mrb[0].mxu0 %v748
      %v981 = vpop.f32.mrb[0].mxu0
      %v982 = vadd.f32 %v889, %v981
      %v983 = vpop.f32.mrb[0].mxu0
      %v984 = vpop.f32.mrb[0].mxu0
      %v985 = vpop.f32.mrb[0].mxu0
      %986 = vdwg.mxu0
      %v987 = vld [vmem:[%s4] sm:$0xf]
      %v988 = vld [vmem:[%s4 + $0x4] sm:$0xf]
      %v989 = vld [vmem:[%s4 + $0x8] sm:$0xf]
      %v990 = vld [vmem:[%s4 + $0xc] sm:$0xf]
      %v991 = vld [vmem:[%s4 + $0x10] sm:$0xf]
      %v992 = vld [vmem:[%s4 + $0x14] sm:$0xf]
      %v993 = vld [vmem:[%s4 + $0x18] sm:$0xf]
      %v994 = vld [vmem:[%s4 + $0x1c] sm:$0xf]
      %v995 = vld [vmem:[%s4 + $0x20] sm:$0xf]
      %v996 = vld [vmem:[%s4 + $0x24] sm:$0xf]
      %v997 = vld [vmem:[%s4 + $0x28] sm:$0xf]
      %v998 = vld [vmem:[%s4 + $0x2c] sm:$0xf]
      %v999 = vld [vmem:[%s4 + $0x30] sm:$0xf]
      %v1000 = vld [vmem:[%s4 + $0x34] sm:$0xf]
      %v1001 = vld [vmem:[%s4 + $0x38] sm:$0xf]
      %v1002 = vld [vmem:[%s4 + $0x3c] sm:$0xf]
      %v1003 = vld [vmem:[%s7] sm:$0x1]
      %v1005 = vlaneseq
      %v1006 = vshrl.u32 %v1005, 7
      %v1007 = vsub.s32 0, %v1006
      %v1008 = vrot.slane %v1003, %v1007
      %v1026 = vunpack.c.l.b16 %v987
      %v1027 = vunpack.c.l.b16 %v988
      %v1028 = vunpack.c.l.b16 %v989
      %v1029 = vunpack.c.l.b16 %v990
      %v1030 = vunpack.c.l.b16 %v991
      %v1031 = vunpack.c.l.b16 %v992
      %v1032 = vunpack.c.l.b16 %v993
      %v1033 = vunpack.c.l.b16 %v994
      %v1034 = vunpack.c.l.b16 %v995
      %v1035 = vunpack.c.l.b16 %v996
      %v1036 = vunpack.c.l.b16 %v997
      %v1037 = vunpack.c.l.b16 %v998
      %v1038 = vunpack.c.l.b16 %v999
      %v1039 = vunpack.c.l.b16 %v1000
      %v1040 = vunpack.c.l.b16 %v1001
      %v1041 = vunpack.c.l.b16 %v1002
      %v1042 = vpack.c.b16 %v1027, %v1026
      %v1043 = vpack.c.b16 %v1029, %v1028
      %v1044 = vpack.c.b16 %v1031, %v1030
      %v1045 = vpack.c.b16 %v1033, %v1032
      %v1046 = vpack.c.b16 %v1035, %v1034
      %v1047 = vpack.c.b16 %v1037, %v1036
      %v1048 = vpack.c.b16 %v1039, %v1038
      %v1049 = vpack.c.b16 %v1041, %v1040
      %1058 = vmatprep.subr.bf16.mxu0 0
      %1059 = vmatpush1.bf16.msra.mxu0 %v1042
      %1060 = vmatprep.subr.bf16.mxu0 0
      %1061 = vmatpush1.bf16.msra.mxu0 %v1043
      %1062 = vmatprep.subr.bf16.mxu0 0
      %1063 = vmatpush1.bf16.msra.mxu0 %v1044
      %1064 = vmatprep.subr.bf16.mxu0 0
      %1065 = vmatpush1.bf16.msra.mxu0 %v1045
      %1066 = vmatprep.subr.bf16.mxu0 0
      %1067 = vmatpush1.bf16.msra.mxu0 %v1046
      %1068 = vmatprep.subr.bf16.mxu0 0
      %1069 = vmatpush1.bf16.msra.mxu0 %v1047
      %1070 = vmatprep.subr.bf16.mxu0 0
      %1071 = vmatpush1.bf16.msra.mxu0 %v1048
      %1072 = vmatprep.subr.bf16.mxu0 0
      %1073 = vmatpush1.bf16.msra.mxu0 %v1049
      %1074 = vmatprep.subr.bf16.mxu0 0
      %1075 = vmatpush1.bf16.msra.mxu0 0
      %1076 = vmatprep.subr.bf16.mxu0 0
      %1077 = vmatpush1.bf16.msra.mxu0 0
      %1078 = vmatprep.subr.bf16.mxu0 0
      %1079 = vmatpush1.bf16.msra.mxu0 0
      %1080 = vmatprep.subr.bf16.mxu0 0
      %1081 = vmatpush1.bf16.msra.mxu0 0
      %1082 = vmatprep.subr.bf16.mxu0 0
      %1083 = vmatpush1.bf16.msra.mxu0 0
      %1084 = vmatprep.subr.bf16.mxu0 0
      %1085 = vmatpush1.bf16.msra.mxu0 0
      %1086 = vmatprep.subr.bf16.mxu0 0
      %1087 = vmatpush1.bf16.msra.mxu0 0
      %1088 = vmatprep.subr.bf16.mxu0 0
      %1089 = vmatpush1.bf16.msra.mxu0 0
      %1090 = vmatprep.mubr.bf16.mxu0 0
      %1091 = vmatmul.mubr.bf16.gmra.mrb[0].mxu0 %v747
      %v1092 = vpop.f32.mrb[0].mxu0
      %v1093 = vadd.f32 %v1008, %v1092
      %v1094 = vpop.f32.mrb[0].mxu0
      %v1095 = vpop.f32.mrb[0].mxu0
      %v1096 = vadd.f32 %v1008, %v1095
      %v1097 = vpop.f32.mrb[0].mxu0
      %1098 = vmatprep.mubr.bf16.mxu0 0
      %1099 = vmatmul.mubr.bf16.gmra.mrb[0].mxu0 %v748
      %v1100 = vpop.f32.mrb[0].mxu0
      %v1101 = vadd.f32 %v1008, %v1100
      %v1102 = vpop.f32.mrb[0].mxu0
      %v1103 = vpop.f32.mrb[0].mxu0
      %v1104 = vpop.f32.mrb[0].mxu0
      %1105 = vdwg.mxu0
      %v1106 = vmul.f32 %v855, 0.125
      %v1107 = vmul.f32 %v858, 0.125
      %v1108 = vmul.f32 %v863, 0.125
      %v1109 = vpack.c.bf16 %v1107, %v1106
      %v1110 = vpack.c.bf16 %v1108, %v1108
      %v1111 = vpack.c.bf16 %v977, %v974
      %v1112 = vpack.c.bf16 %v982, %v982
      %vm1113 = vcmask 523264
      %v1115 = vsel %vm1113, %v1109, 0
      %v1118 = vsel %vm1113, %v1110, 0
      %v1121 = vsel %vm1113, %v1111, 0
      %v1124 = vsel %vm1113, %v1112, 0
      %1126 = vmatprep.subr.bf16.mxu0 0
      %1127 = vmatpush1.bf16.xpose.msra.mxu0 %v1121
      %1128 = vmatprep.subr.bf16.mxu0 0
      %1129 = vmatpush1.bf16.xpose.msra.mxu0 %v1124
      %1130 = vmatprep.subr.bf16.mxu0 0
      %1131 = vmatpush1.bf16.xpose.msra.mxu0 0
      %1132 = vmatprep.subr.bf16.mxu0 0
      %1133 = vmatpush1.bf16.xpose.msra.mxu0 0
      %1134 = vmatprep.subr.bf16.mxu0 0
      %1135 = vmatpush1.bf16.xpose.msra.mxu0 0
      %1136 = vmatprep.subr.bf16.mxu0 0
      %1137 = vmatpush1.bf16.xpose.msra.mxu0 0
      %1138 = vmatprep.subr.bf16.mxu0 0
      %1139 = vmatpush1.bf16.xpose.msra.mxu0 0
      %1140 = vmatprep.subr.bf16.mxu0 0
      %1141 = vmatpush1.bf16.xpose.msra.mxu0 0
      %1142 = vmatprep.subr.bf16.mxu0 0
      %1143 = vmatpush1.bf16.xpose.msra.mxu0 0
      %1144 = vmatprep.subr.bf16.mxu0 0
      %1145 = vmatpush1.bf16.xpose.msra.mxu0 0
      %1146 = vmatprep.subr.bf16.mxu0 0
      %1147 = vmatpush1.bf16.xpose.msra.mxu0 0
      %1148 = vmatprep.subr.bf16.mxu0 0
      %1149 = vmatpush1.bf16.xpose.msra.mxu0 0
      %1150 = vmatprep.subr.bf16.mxu0 0
      %1151 = vmatpush1.bf16.xpose.msra.mxu0 0
      %1152 = vmatprep.subr.bf16.mxu0 0
      %1153 = vmatpush1.bf16.xpose.msra.mxu0 0
      %1154 = vmatprep.subr.bf16.mxu0 0
      %1155 = vmatpush1.bf16.xpose.msra.mxu0 0
      %1156 = vmatprep.subr.bf16.mxu0 0
      %1157 = vmatpush1.bf16.xpose.msra.mxu0 0
      %1158 = vmatprep.mubr.bf16.mxu0 0
      %1159 = vmatmul.mubr.bf16.gmra.mrb[0].mxu0 %v1115
      %v1160 = vpop.f32.mrb[0].mxu0
      %v1161 = vadd.f32 0.0, %v1160
      %v1162 = vpop.f32.mrb[0].mxu0
      %v1163 = vpop.f32.mrb[0].mxu0
      %v1164 = vadd.f32 0.0, %v1163
      %v1165 = vpop.f32.mrb[0].mxu0
      %1166 = vmatprep.mubr.bf16.mxu0 0
      %1167 = vmatmul.mubr.bf16.gmra.mrb[0].mxu0 %v1118
      %v1168 = vpop.f32.mrb[0].mxu0
      %v1169 = vadd.f32 0.0, %v1168
      %v1170 = vpop.f32.mrb[0].mxu0
      %v1171 = vpop.f32.mrb[0].mxu0
      %v1172 = vpop.f32.mrb[0].mxu0
      %1173 = vdwg.mxu0
      %vm1174 = vcmask 138240
      %v1175 = vsel %vm1174, %v1161, -inf
      %1176 = vmax.xlane.f32.xlu0 %v1175
      %v1177 = vpop.xlane.xlu0 %1176
      %v1178 = vsel %vm1174, %v1164, -inf
      %1179 = vmax.xlane.f32.xlu0 %v1178
      %v1180 = vpop.xlane.xlu0 %1179
      %vm1181 = vcmask 131072
      %v1182 = vsel %vm1181, %v1169, -inf
      %1183 = vmax.xlane.f32.xlu0 %v1182
      %v1184 = vpop.xlane.xlu0 %1183
      %v1185 = vsub.f32 %v1161, %v1177
      %v1186 = vsub.f32 %v1164, %v1180
      %v1187 = vsub.f32 %v1169, %v1184
      %v1188 = vmul.f32 %v1185, 1.442695
      %v1189 = vpow.pop %v1188
      %v1190 = vmul.f32 %v1186, 1.442695
      %v1191 = vpow.pop %v1190
      %v1192 = vmul.f32 %v1187, 1.442695
      %v1193 = vpow.pop %v1192
      %v1194 = vsel %vm1174, %v1189, 0.0
      %1195 = vadd.xlane.f32.xlu0 %v1194
      %v1196 = vpop.xlane.xlu0 %1195
      %v1197 = vsel %vm1174, %v1191, 0.0
      %1198 = vadd.xlane.f32.xlu0 %v1197
      %v1199 = vpop.xlane.xlu0 %1198
      %v1200 = vsel %vm1181, %v1193, 0.0
      %1201 = vadd.xlane.f32.xlu0 %v1200
      %v1202 = vpop.xlane.xlu0 %1201
      %v1203 = vrcp.pop %v1196
      %v1204 = vrcp.pop %v1199
      %v1205 = vrcp.pop %v1202
      %v1206 = vmul.f32 %v1189, %v1203
      %v1207 = vmul.f32 %v1191, %v1204
      %v1208 = vmul.f32 %v1193, %v1205
      %v1209 = vpack.c.bf16 %v1207, %v1206
      %v1210 = vpack.c.bf16 %v1208, %v1208
      %v1211 = vpack.c.bf16 %v1096, %v1093
      %v1212 = vpack.c.bf16 %v1101, %v1101
      %v1214 = vsel %vm1174, %v1209, 0
      %v1217 = vsel %vm1174, %v1210, 0
      %vm1219 = vcmask 1040384
      %v1220 = vsel 0, 4294967295, 65535
      %v1221 = vsel %vm1219, %v1220, 0
      %v1223 = vand.u32 %v1212, %v1221
      %1225 = vmatprep.subr.bf16.mxu0 0
      %1226 = vmatpush1.bf16.msra.mxu0 %v1211
      %1227 = vmatprep.subr.bf16.mxu0 0
      %1228 = vmatpush1.bf16.msra.mxu0 %v1223
      %1229 = vmatprep.subr.bf16.mxu0 0
      %1230 = vmatpush1.bf16.msra.mxu0 0
      %1231 = vmatprep.subr.bf16.mxu0 0
      %1232 = vmatpush1.bf16.msra.mxu0 0
      %1233 = vmatprep.subr.bf16.mxu0 0
      %1234 = vmatpush1.bf16.msra.mxu0 0
      %1235 = vmatprep.subr.bf16.mxu0 0
      %1236 = vmatpush1.bf16.msra.mxu0 0
      %1237 = vmatprep.subr.bf16.mxu0 0
      %1238 = vmatpush1.bf16.msra.mxu0 0
      %1239 = vmatprep.subr.bf16.mxu0 0
      %1240 = vmatpush1.bf16.msra.mxu0 0
      %1241 = vmatprep.subr.bf16.mxu0 0
      %1242 = vmatpush1.bf16.msra.mxu0 0
      %1243 = vmatprep.subr.bf16.mxu0 0
      %1244 = vmatpush1.bf16.msra.mxu0 0
      %1245 = vmatprep.subr.bf16.mxu0 0
      %1246 = vmatpush1.bf16.msra.mxu0 0
      %1247 = vmatprep.subr.bf16.mxu0 0
      %1248 = vmatpush1.bf16.msra.mxu0 0
      %1249 = vmatprep.subr.bf16.mxu0 0
      %1250 = vmatpush1.bf16.msra.mxu0 0
      %1251 = vmatprep.subr.bf16.mxu0 0
      %1252 = vmatpush1.bf16.msra.mxu0 0
      %1253 = vmatprep.subr.bf16.mxu0 0
      %1254 = vmatpush1.bf16.msra.mxu0 0
      %1255 = vmatprep.subr.bf16.mxu0 0
      %1256 = vmatpush1.bf16.msra.mxu0 0
      %1257 = vmatprep.mubr.bf16.mxu0 0
      %1258 = vmatmul.mubr.bf16.gmra.mrb[0].mxu0 %v1214
      %v1259 = vpop.f32.mrb[0].mxu0
      %v1260 = vadd.f32 0.0, %v1259
      %v1261 = vpop.f32.mrb[0].mxu0
      %v1262 = vpop.f32.mrb[0].mxu0
      %v1263 = vadd.f32 0.0, %v1262
      %v1264 = vpop.f32.mrb[0].mxu0
      %1265 = vmatprep.mubr.bf16.mxu0 0
      %1266 = vmatmul.mubr.bf16.gmra.mrb[0].mxu0 %v1217
      %v1267 = vpop.f32.mrb[0].mxu0
      %v1268 = vadd.f32 0.0, %v1267
      %v1269 = vpop.f32.mrb[0].mxu0
      %v1270 = vpop.f32.mrb[0].mxu0
      %v1271 = vpop.f32.mrb[0].mxu0
      %1272 = vdwg.mxu0
      %v1273 = vpack.c.bf16 %v1263, %v1260
      %v1274 = vpack.c.bf16 %v1268, %v1268
      %v1275 = vld [vmem:[%s8] sm:$0xf]
      %v1276 = vld [vmem:[%s8 + $0x4] sm:$0xf]
      %v1277 = vld [vmem:[%s8 + $0x8] sm:$0xf]
      %v1278 = vld [vmem:[%s8 + $0xc] sm:$0xf]
      %v1279 = vld [vmem:[%s8 + $0x10] sm:$0xf]
      %v1280 = vld [vmem:[%s8 + $0x14] sm:$0xf]
      %v1281 = vld [vmem:[%s8 + $0x18] sm:$0xf]
      %v1282 = vld [vmem:[%s8 + $0x1c] sm:$0xf]
      %s1283 = scalar_lea.vmem %s2, 64
      %v1284 = vld [vmem:[%s1283] sm:$0xf]
      %v1285 = vld [vmem:[%s1283 + $0x4] sm:$0xf]
      %v1286 = vld [vmem:[%s1283 + $0x8] sm:$0xf]
      %v1287 = vld [vmem:[%s1283 + $0xc] sm:$0xf]
      %v1288 = vld [vmem:[%s1283 + $0x10] sm:$0xf]
      %v1289 = vld [vmem:[%s1283 + $0x14] sm:$0xf]
      %v1290 = vld [vmem:[%s1283 + $0x18] sm:$0xf]
      %v1291 = vld [vmem:[%s1283 + $0x1c] sm:$0xf]
      %v1292 = vld [vmem:[%s1283 + $0x20] sm:$0xf]
      %v1293 = vld [vmem:[%s1283 + $0x24] sm:$0xf]
      %v1294 = vld [vmem:[%s1283 + $0x28] sm:$0xf]
      %v1295 = vld [vmem:[%s1283 + $0x2c] sm:$0xf]
      %v1296 = vld [vmem:[%s1283 + $0x30] sm:$0xf]
      %v1297 = vld [vmem:[%s1283 + $0x34] sm:$0xf]
      %v1298 = vld [vmem:[%s1283 + $0x38] sm:$0xf]
      %v1299 = vld [vmem:[%s1283 + $0x3c] sm:$0xf]
      %s1300 = scalar_lea.vmem %s5, 1
      %v1301 = vld [vmem:[%s1300] sm:$0x1]
      %v1303 = vlaneseq
      %v1304 = vshrl.u32 %v1303, 7
      %v1305 = vsub.s32 0, %v1304
      %v1306 = vrot.slane %v1301, %v1305
      %v1324 = vunpack.c.l.b16 %v1284
      %v1325 = vunpack.c.l.b16 %v1285
      %v1326 = vunpack.c.l.b16 %v1286
      %v1327 = vunpack.c.l.b16 %v1287
      %v1328 = vunpack.c.l.b16 %v1288
      %v1329 = vunpack.c.l.b16 %v1289
      %v1330 = vunpack.c.l.b16 %v1290
      %v1331 = vunpack.c.l.b16 %v1291
      %v1332 = vunpack.c.l.b16 %v1292
      %v1333 = vunpack.c.l.b16 %v1293
      %v1334 = vunpack.c.l.b16 %v1294
      %v1335 = vunpack.c.l.b16 %v1295
      %v1336 = vunpack.c.l.b16 %v1296
      %v1337 = vunpack.c.l.b16 %v1297
      %v1338 = vunpack.c.l.b16 %v1298
      %v1339 = vunpack.c.l.b16 %v1299
      %v1340 = vpack.c.b16 %v1325, %v1324
      %v1341 = vpack.c.b16 %v1327, %v1326
      %v1342 = vpack.c.b16 %v1329, %v1328
      %v1343 = vpack.c.b16 %v1331, %v1330
      %v1344 = vpack.c.b16 %v1333, %v1332
      %v1345 = vpack.c.b16 %v1335, %v1334
      %v1346 = vpack.c.b16 %v1337, %v1336
      %v1347 = vpack.c.b16 %v1339, %v1338
      %1356 = vmatprep.subr.bf16.mxu0 0
      %1357 = vmatpush1.bf16.msra.mxu0 %v1340
      %1358 = vmatprep.subr.bf16.mxu0 0
      %1359 = vmatpush1.bf16.msra.mxu0 %v1341
      %1360 = vmatprep.subr.bf16.mxu0 0
      %1361 = vmatpush1.bf16.msra.mxu0 %v1342
      %1362 = vmatprep.subr.bf16.mxu0 0
      %1363 = vmatpush1.bf16.msra.mxu0 %v1343
      %1364 = vmatprep.subr.bf16.mxu0 0
      %1365 = vmatpush1.bf16.msra.mxu0 %v1344
      %1366 = vmatprep.subr.bf16.mxu0 0
      %1367 = vmatpush1.bf16.msra.mxu0 %v1345
      %1368 = vmatprep.subr.bf16.mxu0 0
      %1369 = vmatpush1.bf16.msra.mxu0 %v1346
      %1370 = vmatprep.subr.bf16.mxu0 0
      %1371 = vmatpush1.bf16.msra.mxu0 %v1347
      %1372 = vmatprep.subr.bf16.mxu0 0
      %1373 = vmatpush1.bf16.msra.mxu0 0
      %1374 = vmatprep.subr.bf16.mxu0 0
      %1375 = vmatpush1.bf16.msra.mxu0 0
      %1376 = vmatprep.subr.bf16.mxu0 0
      %1377 = vmatpush1.bf16.msra.mxu0 0
      %1378 = vmatprep.subr.bf16.mxu0 0
      %1379 = vmatpush1.bf16.msra.mxu0 0
      %1380 = vmatprep.subr.bf16.mxu0 0
      %1381 = vmatpush1.bf16.msra.mxu0 0
      %1382 = vmatprep.subr.bf16.mxu0 0
      %1383 = vmatpush1.bf16.msra.mxu0 0
      %1384 = vmatprep.subr.bf16.mxu0 0
      %1385 = vmatpush1.bf16.msra.mxu0 0
      %1386 = vmatprep.subr.bf16.mxu0 0
      %1387 = vmatpush1.bf16.msra.mxu0 0
      %1388 = vmatprep.mubr.bf16.mxu0 0
      %1389 = vmatmul.mubr.bf16.gmra.mrb[0].mxu0 %v747
      %v1390 = vpop.f32.mrb[0].mxu0
      %v1391 = vadd.f32 %v1306, %v1390
      %v1392 = vpop.f32.mrb[0].mxu0
      %v1393 = vpop.f32.mrb[0].mxu0
      %v1394 = vadd.f32 %v1306, %v1393
      %v1395 = vpop.f32.mrb[0].mxu0
      %1396 = vmatprep.mubr.bf16.mxu0 0
      %1397 = vmatmul.mubr.bf16.gmra.mrb[0].mxu0 %v748
      %v1398 = vpop.f32.mrb[0].mxu0
      %v1399 = vadd.f32 %v1306, %v1398
      %v1400 = vpop.f32.mrb[0].mxu0
      %v1401 = vpop.f32.mrb[0].mxu0
      %v1402 = vpop.f32.mrb[0].mxu0
      %1403 = vdwg.mxu0
      %s1404 = scalar_lea.vmem %s3, 64
      %v1405 = vld [vmem:[%s1404] sm:$0xf]
      %v1406 = vld [vmem:[%s1404 + $0x4] sm:$0xf]
      %v1407 = vld [vmem:[%s1404 + $0x8] sm:$0xf]
      %v1408 = vld [vmem:[%s1404 + $0xc] sm:$0xf]
      %v1409 = vld [vmem:[%s1404 + $0x10] sm:$0xf]
      %v1410 = vld [vmem:[%s1404 + $0x14] sm:$0xf]
      %v1411 = vld [vmem:[%s1404 + $0x18] sm:$0xf]
      %v1412 = vld [vmem:[%s1404 + $0x1c] sm:$0xf]
      %v1413 = vld [vmem:[%s1404 + $0x20] sm:$0xf]
      %v1414 = vld [vmem:[%s1404 + $0x24] sm:$0xf]
      %v1415 = vld [vmem:[%s1404 + $0x28] sm:$0xf]
      %v1416 = vld [vmem:[%s1404 + $0x2c] sm:$0xf]
      %v1417 = vld [vmem:[%s1404 + $0x30] sm:$0xf]
      %v1418 = vld [vmem:[%s1404 + $0x34] sm:$0xf]
      %v1419 = vld [vmem:[%s1404 + $0x38] sm:$0xf]
      %v1420 = vld [vmem:[%s1404 + $0x3c] sm:$0xf]
      %s1421 = scalar_lea.vmem %s6, 1
      %v1422 = vld [vmem:[%s1421] sm:$0x1]
      %v1424 = vlaneseq
      %v1425 = vshrl.u32 %v1424, 7
      %v1426 = vsub.s32 0, %v1425
      %v1427 = vrot.slane %v1422, %v1426
      %v1445 = vunpack.c.l.b16 %v1405
      %v1446 = vunpack.c.l.b16 %v1406
      %v1447 = vunpack.c.l.b16 %v1407
      %v1448 = vunpack.c.l.b16 %v1408
      %v1449 = vunpack.c.l.b16 %v1409
      %v1450 = vunpack.c.l.b16 %v1410
      %v1451 = vunpack.c.l.b16 %v1411
      %v1452 = vunpack.c.l.b16 %v1412
      %v1453 = vunpack.c.l.b16 %v1413
      %v1454 = vunpack.c.l.b16 %v1414
      %v1455 = vunpack.c.l.b16 %v1415
      %v1456 = vunpack.c.l.b16 %v1416
      %v1457 = vunpack.c.l.b16 %v1417
      %v1458 = vunpack.c.l.b16 %v1418
      %v1459 = vunpack.c.l.b16 %v1419
      %v1460 = vunpack.c.l.b16 %v1420
      %v1461 = vpack.c.b16 %v1446, %v1445
      %v1462 = vpack.c.b16 %v1448, %v1447
      %v1463 = vpack.c.b16 %v1450, %v1449
      %v1464 = vpack.c.b16 %v1452, %v1451
      %v1465 = vpack.c.b16 %v1454, %v1453
      %v1466 = vpack.c.b16 %v1456, %v1455
      %v1467 = vpack.c.b16 %v1458, %v1457
      %v1468 = vpack.c.b16 %v1460, %v1459
      %1477 = vmatprep.subr.bf16.mxu0 0
      %1478 = vmatpush1.bf16.msra.mxu0 %v1461
      %1479 = vmatprep.subr.bf16.mxu0 0
      %1480 = vmatpush1.bf16.msra.mxu0 %v1462
      %1481 = vmatprep.subr.bf16.mxu0 0
      %1482 = vmatpush1.bf16.msra.mxu0 %v1463
      %1483 = vmatprep.subr.bf16.mxu0 0
      %1484 = vmatpush1.bf16.msra.mxu0 %v1464
      %1485 = vmatprep.subr.bf16.mxu0 0
      %1486 = vmatpush1.bf16.msra.mxu0 %v1465
      %1487 = vmatprep.subr.bf16.mxu0 0
      %1488 = vmatpush1.bf16.msra.mxu0 %v1466
      %1489 = vmatprep.subr.bf16.mxu0 0
      %1490 = vmatpush1.bf16.msra.mxu0 %v1467
      %1491 = vmatprep.subr.bf16.mxu0 0
      %1492 = vmatpush1.bf16.msra.mxu0 %v1468
      %1493 = vmatprep.subr.bf16.mxu0 0
      %1494 = vmatpush1.bf16.msra.mxu0 0
      %1495 = vmatprep.subr.bf16.mxu0 0
      %1496 = vmatpush1.bf16.msra.mxu0 0
      %1497 = vmatprep.subr.bf16.mxu0 0
      %1498 = vmatpush1.bf16.msra.mxu0 0
      %1499 = vmatprep.subr.bf16.mxu0 0
      %1500 = vmatpush1.bf16.msra.mxu0 0
      %1501 = vmatprep.subr.bf16.mxu0 0
      %1502 = vmatpush1.bf16.msra.mxu0 0
      %1503 = vmatprep.subr.bf16.mxu0 0
      %1504 = vmatpush1.bf16.msra.mxu0 0
      %1505 = vmatprep.subr.bf16.mxu0 0
      %1506 = vmatpush1.bf16.msra.mxu0 0
      %1507 = vmatprep.subr.bf16.mxu0 0
      %1508 = vmatpush1.bf16.msra.mxu0 0
      %1509 = vmatprep.mubr.bf16.mxu0 0
      %1510 = vmatmul.mubr.bf16.gmra.mrb[0].mxu0 %v747
      %v1511 = vpop.f32.mrb[0].mxu0
      %v1512 = vadd.f32 %v1427, %v1511
      %v1513 = vpop.f32.mrb[0].mxu0
      %v1514 = vpop.f32.mrb[0].mxu0
      %v1515 = vadd.f32 %v1427, %v1514
      %v1516 = vpop.f32.mrb[0].mxu0
      %1517 = vmatprep.mubr.bf16.mxu0 0
      %1518 = vmatmul.mubr.bf16.gmra.mrb[0].mxu0 %v748
      %v1519 = vpop.f32.mrb[0].mxu0
      %v1520 = vadd.f32 %v1427, %v1519
      %v1521 = vpop.f32.mrb[0].mxu0
      %v1522 = vpop.f32.mrb[0].mxu0
      %v1523 = vpop.f32.mrb[0].mxu0
      %1524 = vdwg.mxu0
      %s1525 = scalar_lea.vmem %s4, 64
      %v1526 = vld [vmem:[%s1525] sm:$0xf]
      %v1527 = vld [vmem:[%s1525 + $0x4] sm:$0xf]
      %v1528 = vld [vmem:[%s1525 + $0x8] sm:$0xf]
      %v1529 = vld [vmem:[%s1525 + $0xc] sm:$0xf]
      %v1530 = vld [vmem:[%s1525 + $0x10] sm:$0xf]
      %v1531 = vld [vmem:[%s1525 + $0x14] sm:$0xf]
      %v1532 = vld [vmem:[%s1525 + $0x18] sm:$0xf]
      %v1533 = vld [vmem:[%s1525 + $0x1c] sm:$0xf]
      %v1534 = vld [vmem:[%s1525 + $0x20] sm:$0xf]
      %v1535 = vld [vmem:[%s1525 + $0x24] sm:$0xf]
      %v1536 = vld [vmem:[%s1525 + $0x28] sm:$0xf]
      %v1537 = vld [vmem:[%s1525 + $0x2c] sm:$0xf]
      %v1538 = vld [vmem:[%s1525 + $0x30] sm:$0xf]
      %v1539 = vld [vmem:[%s1525 + $0x34] sm:$0xf]
      %v1540 = vld [vmem:[%s1525 + $0x38] sm:$0xf]
      %v1541 = vld [vmem:[%s1525 + $0x3c] sm:$0xf]
      %s1542 = scalar_lea.vmem %s7, 1
      %v1543 = vld [vmem:[%s1542] sm:$0x1]
      %v1545 = vlaneseq
      %v1546 = vshrl.u32 %v1545, 7
      %v1547 = vsub.s32 0, %v1546
      %v1548 = vrot.slane %v1543, %v1547
      %v1566 = vunpack.c.l.b16 %v1526
      %v1567 = vunpack.c.l.b16 %v1527
      %v1568 = vunpack.c.l.b16 %v1528
      %v1569 = vunpack.c.l.b16 %v1529
      %v1570 = vunpack.c.l.b16 %v1530
      %v1571 = vunpack.c.l.b16 %v1531
      %v1572 = vunpack.c.l.b16 %v1532
      %v1573 = vunpack.c.l.b16 %v1533
      %v1574 = vunpack.c.l.b16 %v1534
      %v1575 = vunpack.c.l.b16 %v1535
      %v1576 = vunpack.c.l.b16 %v1536
      %v1577 = vunpack.c.l.b16 %v1537
      %v1578 = vunpack.c.l.b16 %v1538
      %v1579 = vunpack.c.l.b16 %v1539
      %v1580 = vunpack.c.l.b16 %v1540
      %v1581 = vunpack.c.l.b16 %v1541
      %v1582 = vpack.c.b16 %v1567, %v1566
      %v1583 = vpack.c.b16 %v1569, %v1568
      %v1584 = vpack.c.b16 %v1571, %v1570
      %v1585 = vpack.c.b16 %v1573, %v1572
      %v1586 = vpack.c.b16 %v1575, %v1574
      %v1587 = vpack.c.b16 %v1577, %v1576
      %v1588 = vpack.c.b16 %v1579, %v1578
      %v1589 = vpack.c.b16 %v1581, %v1580
      %1598 = vmatprep.subr.bf16.mxu0 0
      %1599 = vmatpush1.bf16.msra.mxu0 %v1582
      %1600 = vmatprep.subr.bf16.mxu0 0
      %1601 = vmatpush1.bf16.msra.mxu0 %v1583
      %1602 = vmatprep.subr.bf16.mxu0 0
      %1603 = vmatpush1.bf16.msra.mxu0 %v1584
      %1604 = vmatprep.subr.bf16.mxu0 0
      %1605 = vmatpush1.bf16.msra.mxu0 %v1585
      %1606 = vmatprep.subr.bf16.mxu0 0
      %1607 = vmatpush1.bf16.msra.mxu0 %v1586
      %1608 = vmatprep.subr.bf16.mxu0 0
      %1609 = vmatpush1.bf16.msra.mxu0 %v1587
      %1610 = vmatprep.subr.bf16.mxu0 0
      %1611 = vmatpush1.bf16.msra.mxu0 %v1588
      %1612 = vmatprep.subr.bf16.mxu0 0
      %1613 = vmatpush1.bf16.msra.mxu0 %v1589
      %1614 = vmatprep.subr.bf16.mxu0 0
      %1615 = vmatpush1.bf16.msra.mxu0 0
      %1616 = vmatprep.subr.bf16.mxu0 0
      %1617 = vmatpush1.bf16.msra.mxu0 0
      %1618 = vmatprep.subr.bf16.mxu0 0
      %1619 = vmatpush1.bf16.msra.mxu0 0
      %1620 = vmatprep.subr.bf16.mxu0 0
      %1621 = vmatpush1.bf16.msra.mxu0 0
      %1622 = vmatprep.subr.bf16.mxu0 0
      %1623 = vmatpush1.bf16.msra.mxu0 0
      %1624 = vmatprep.subr.bf16.mxu0 0
      %1625 = vmatpush1.bf16.msra.mxu0 0
      %1626 = vmatprep.subr.bf16.mxu0 0
      %1627 = vmatpush1.bf16.msra.mxu0 0
      %1628 = vmatprep.subr.bf16.mxu0 0
      %1629 = vmatpush1.bf16.msra.mxu0 0
      %1630 = vmatprep.mubr.bf16.mxu0 0
      %1631 = vmatmul.mubr.bf16.gmra.mrb[0].mxu0 %v747
      %v1632 = vpop.f32.mrb[0].mxu0
      %v1633 = vadd.f32 %v1548, %v1632
      %v1634 = vpop.f32.mrb[0].mxu0
      %v1635 = vpop.f32.mrb[0].mxu0
      %v1636 = vadd.f32 %v1548, %v1635
      %v1637 = vpop.f32.mrb[0].mxu0
      %1638 = vmatprep.mubr.bf16.mxu0 0
      %1639 = vmatmul.mubr.bf16.gmra.mrb[0].mxu0 %v748
      %v1640 = vpop.f32.mrb[0].mxu0
      %v1641 = vadd.f32 %v1548, %v1640
      %v1642 = vpop.f32.mrb[0].mxu0
      %v1643 = vpop.f32.mrb[0].mxu0
      %v1644 = vpop.f32.mrb[0].mxu0
      %1645 = vdwg.mxu0
      %v1646 = vmul.f32 %v1391, 0.125
      %v1647 = vmul.f32 %v1394, 0.125
      %v1648 = vmul.f32 %v1399, 0.125
      %v1649 = vpack.c.bf16 %v1647, %v1646
      %v1650 = vpack.c.bf16 %v1648, %v1648
      %v1651 = vpack.c.bf16 %v1515, %v1512
      %v1652 = vpack.c.bf16 %v1520, %v1520
      %v1654 = vsel %vm1113, %v1649, 0
      %v1657 = vsel %vm1113, %v1650, 0
      %v1660 = vsel %vm1113, %v1651, 0
      %v1663 = vsel %vm1113, %v1652, 0
      %1665 = vmatprep.subr.bf16.mxu0 0
      %1666 = vmatpush1.bf16.xpose.msra.mxu0 %v1660
      %1667 = vmatprep.subr.bf16.mxu0 0
      %1668 = vmatpush1.bf16.xpose.msra.mxu0 %v1663
      %1669 = vmatprep.subr.bf16.mxu0 0
      %1670 = vmatpush1.bf16.xpose.msra.mxu0 0
      %1671 = vmatprep.subr.bf16.mxu0 0
      %1672 = vmatpush1.bf16.xpose.msra.mxu0 0
      %1673 = vmatprep.subr.bf16.mxu0 0
      %1674 = vmatpush1.bf16.xpose.msra.mxu0 0
      %1675 = vmatprep.subr.bf16.mxu0 0
      %1676 = vmatpush1.bf16.xpose.msra.mxu0 0
      %1677 = vmatprep.subr.bf16.mxu0 0
      %1678 = vmatpush1.bf16.xpose.msra.mxu0 0
      %1679 = vmatprep.subr.bf16.mxu0 0
      %1680 = vmatpush1.bf16.xpose.msra.mxu0 0
      %1681 = vmatprep.subr.bf16.mxu0 0
      %1682 = vmatpush1.bf16.xpose.msra.mxu0 0
      %1683 = vmatprep.subr.bf16.mxu0 0
      %1684 = vmatpush1.bf16.xpose.msra.mxu0 0
      %1685 = vmatprep.subr.bf16.mxu0 0
      %1686 = vmatpush1.bf16.xpose.msra.mxu0 0
      %1687 = vmatprep.subr.bf16.mxu0 0
      %1688 = vmatpush1.bf16.xpose.msra.mxu0 0
      %1689 = vmatprep.subr.bf16.mxu0 0
      %1690 = vmatpush1.bf16.xpose.msra.mxu0 0
      %1691 = vmatprep.subr.bf16.mxu0 0
      %1692 = vmatpush1.bf16.xpose.msra.mxu0 0
      %1693 = vmatprep.subr.bf16.mxu0 0
      %1694 = vmatpush1.bf16.xpose.msra.mxu0 0
      %1695 = vmatprep.subr.bf16.mxu0 0
      %1696 = vmatpush1.bf16.xpose.msra.mxu0 0
      %1697 = vmatprep.mubr.bf16.mxu0 0
      %1698 = vmatmul.mubr.bf16.gmra.mrb[0].mxu0 %v1654
      %v1699 = vpop.f32.mrb[0].mxu0
      %v1700 = vadd.f32 0.0, %v1699
      %v1701 = vpop.f32.mrb[0].mxu0
      %v1702 = vpop.f32.mrb[0].mxu0
      %v1703 = vadd.f32 0.0, %v1702
      %v1704 = vpop.f32.mrb[0].mxu0
      %1705 = vmatprep.mubr.bf16.mxu0 0
      %1706 = vmatmul.mubr.bf16.gmra.mrb[0].mxu0 %v1657
      %v1707 = vpop.f32.mrb[0].mxu0
      %v1708 = vadd.f32 0.0, %v1707
      %v1709 = vpop.f32.mrb[0].mxu0
      %v1710 = vpop.f32.mrb[0].mxu0
      %v1711 = vpop.f32.mrb[0].mxu0
      %1712 = vdwg.mxu0
      %v1713 = vsel %vm1174, %v1700, -inf
      %1714 = vmax.xlane.f32.xlu0 %v1713
      %v1715 = vpop.xlane.xlu0 %1714
      %v1716 = vsel %vm1174, %v1703, -inf
      %1717 = vmax.xlane.f32.xlu0 %v1716
      %v1718 = vpop.xlane.xlu0 %1717
      %v1719 = vsel %vm1181, %v1708, -inf
      %1720 = vmax.xlane.f32.xlu0 %v1719
      %v1721 = vpop.xlane.xlu0 %1720
      %v1722 = vsub.f32 %v1700, %v1715
      %v1723 = vsub.f32 %v1703, %v1718
      %v1724 = vsub.f32 %v1708, %v1721
      %v1725 = vmul.f32 %v1722, 1.442695
      %v1726 = vpow.pop %v1725
      %v1727 = vmul.f32 %v1723, 1.442695
      %v1728 = vpow.pop %v1727
      %v1729 = vmul.f32 %v1724, 1.442695
      %v1730 = vpow.pop %v1729
      %v1731 = vsel %vm1174, %v1726, 0.0
      %1732 = vadd.xlane.f32.xlu0 %v1731
      %v1733 = vpop.xlane.xlu0 %1732
      %v1734 = vsel %vm1174, %v1728, 0.0
      %1735 = vadd.xlane.f32.xlu0 %v1734
      %v1736 = vpop.xlane.xlu0 %1735
      %v1737 = vsel %vm1181, %v1730, 0.0
      %1738 = vadd.xlane.f32.xlu0 %v1737
      %v1739 = vpop.xlane.xlu0 %1738
      %v1740 = vrcp.pop %v1733
      %v1741 = vrcp.pop %v1736
      %v1742 = vrcp.pop %v1739
      %v1743 = vmul.f32 %v1726, %v1740
      %v1744 = vmul.f32 %v1728, %v1741
      %v1745 = vmul.f32 %v1730, %v1742
      %v1746 = vpack.c.bf16 %v1744, %v1743
      %v1747 = vpack.c.bf16 %v1745, %v1745
      %v1748 = vpack.c.bf16 %v1636, %v1633
      %v1749 = vpack.c.bf16 %v1641, %v1641
      %v1751 = vsel %vm1174, %v1746, 0
      %v1754 = vsel %vm1174, %v1747, 0
      %v1757 = vand.u32 %v1749, %v1221
      %1759 = vmatprep.subr.bf16.mxu0 0
      %1760 = vmatpush1.bf16.msra.mxu0 %v1748
      %1761 = vmatprep.subr.bf16.mxu0 0
      %1762 = vmatpush1.bf16.msra.mxu0 %v1757
      %1763 = vmatprep.subr.bf16.mxu0 0
      %1764 = vmatpush1.bf16.msra.mxu0 0
      %1765 = vmatprep.subr.bf16.mxu0 0
      %1766 = vmatpush1.bf16.msra.mxu0 0
      %1767 = vmatprep.subr.bf16.mxu0 0
      %1768 = vmatpush1.bf16.msra.mxu0 0
      %1769 = vmatprep.subr.bf16.mxu0 0
      %1770 = vmatpush1.bf16.msra.mxu0 0
      %1771 = vmatprep.subr.bf16.mxu0 0
      %1772 = vmatpush1.bf16.msra.mxu0 0
      %1773 = vmatprep.subr.bf16.mxu0 0
      %1774 = vmatpush1.bf16.msra.mxu0 0
      %1775 = vmatprep.subr.bf16.mxu0 0
      %1776 = vmatpush1.bf16.msra.mxu0 0
      %1777 = vmatprep.subr.bf16.mxu0 0
      %1778 = vmatpush1.bf16.msra.mxu0 0
      %1779 = vmatprep.subr.bf16.mxu0 0
      %1780 = vmatpush1.bf16.msra.mxu0 0
      %1781 = vmatprep.subr.bf16.mxu0 0
      %1782 = vmatpush1.bf16.msra.mxu0 0
      %1783 = vmatprep.subr.bf16.mxu0 0
      %1784 = vmatpush1.bf16.msra.mxu0 0
      %1785 = vmatprep.subr.bf16.mxu0 0
      %1786 = vmatpush1.bf16.msra.mxu0 0
      %1787 = vmatprep.subr.bf16.mxu0 0
      %1788 = vmatpush1.bf16.msra.mxu0 0
      %1789 = vmatprep.subr.bf16.mxu0 0
      %1790 = vmatpush1.bf16.msra.mxu0 0
      %1791 = vmatprep.mubr.bf16.mxu0 0
      %1792 = vmatmul.mubr.bf16.gmra.mrb[0].mxu0 %v1751
      %v1793 = vpop.f32.mrb[0].mxu0
      %v1794 = vadd.f32 0.0, %v1793
      %v1795 = vpop.f32.mrb[0].mxu0
      %v1796 = vpop.f32.mrb[0].mxu0
      %v1797 = vadd.f32 0.0, %v1796
      %v1798 = vpop.f32.mrb[0].mxu0
      %1799 = vmatprep.mubr.bf16.mxu0 0
      %1800 = vmatmul.mubr.bf16.gmra.mrb[0].mxu0 %v1754
      %v1801 = vpop.f32.mrb[0].mxu0
      %v1802 = vadd.f32 0.0, %v1801
      %v1803 = vpop.f32.mrb[0].mxu0
      %v1804 = vpop.f32.mrb[0].mxu0
      %v1805 = vpop.f32.mrb[0].mxu0
      %1806 = vdwg.mxu0
      %v1807 = vpack.c.bf16 %v1797, %v1794
      %v1808 = vpack.c.bf16 %v1802, %v1802
      %s1809 = scalar_lea.vmem %s8, 32
      %v1810 = vld [vmem:[%s1809] sm:$0xf]
      %v1811 = vld [vmem:[%s1809 + $0x4] sm:$0xf]
      %v1812 = vld [vmem:[%s1809 + $0x8] sm:$0xf]
      %v1813 = vld [vmem:[%s1809 + $0xc] sm:$0xf]
      %v1814 = vld [vmem:[%s1809 + $0x10] sm:$0xf]
      %v1815 = vld [vmem:[%s1809 + $0x14] sm:$0xf]
      %v1816 = vld [vmem:[%s1809 + $0x18] sm:$0xf]
      %v1817 = vld [vmem:[%s1809 + $0x1c] sm:$0xf]
      %v1826 = vunpack.c.l.b16 %v1810
      %v1827 = vunpack.c.l.b16 %v1811
      %v1828 = vunpack.c.l.b16 %v1812
      %v1829 = vunpack.c.l.b16 %v1813
      %v1830 = vunpack.c.l.b16 %v1814
      %v1831 = vunpack.c.l.b16 %v1815
      %v1832 = vunpack.c.l.b16 %v1816
      %v1833 = vunpack.c.l.b16 %v1817
      %v1834 = vpack.c.b16 %v1827, %v1826
      %v1835 = vpack.c.b16 %v1829, %v1828
      %v1836 = vpack.c.b16 %v1831, %v1830
      %v1837 = vpack.c.b16 %v1833, %v1832
      %v1843 = vsel %vm1113, %v1807, 0
      %v1846 = vsel %vm1113, %v1808, 0
      %1848 = vmatprep.subr.bf16.mxu0 0
      %1849 = vmatpush1.bf16.msra.mxu0 %v1834
      %1850 = vmatprep.subr.bf16.mxu0 0
      %1851 = vmatpush1.bf16.msra.mxu0 %v1835
      %1852 = vmatprep.subr.bf16.mxu0 0
      %1853 = vmatpush1.bf16.msra.mxu0 %v1836
      %1854 = vmatprep.subr.bf16.mxu0 0
      %1855 = vmatpush1.bf16.msra.mxu0 %v1837
      %1856 = vmatprep.subr.bf16.mxu0 0
      %1857 = vmatpush1.bf16.msra.mxu0 0
      %1858 = vmatprep.subr.bf16.mxu0 0
      %1859 = vmatpush1.bf16.msra.mxu0 0
      %1860 = vmatprep.subr.bf16.mxu0 0
      %1861 = vmatpush1.bf16.msra.mxu0 0
      %1862 = vmatprep.subr.bf16.mxu0 0
      %1863 = vmatpush1.bf16.msra.mxu0 0
      %1864 = vmatprep.subr.bf16.mxu0 0
      %1865 = vmatpush1.bf16.msra.mxu0 0
      %1866 = vmatprep.subr.bf16.mxu0 0
      %1867 = vmatpush1.bf16.msra.mxu0 0
      %1868 = vmatprep.subr.bf16.mxu0 0
      %1869 = vmatpush1.bf16.msra.mxu0 0
      %1870 = vmatprep.subr.bf16.mxu0 0
      %1871 = vmatpush1.bf16.msra.mxu0 0
      %1872 = vmatprep.subr.bf16.mxu0 0
      %1873 = vmatpush1.bf16.msra.mxu0 0
      %1874 = vmatprep.subr.bf16.mxu0 0
      %1875 = vmatpush1.bf16.msra.mxu0 0
      %1876 = vmatprep.subr.bf16.mxu0 0
      %1877 = vmatpush1.bf16.msra.mxu0 0
      %1878 = vmatprep.subr.bf16.mxu0 0
      %1879 = vmatpush1.bf16.msra.mxu0 0
      %1880 = vmatprep.mubr.bf16.mxu0 0
      %1881 = vmatmul.mubr.bf16.gmra.mrb[0].mxu0 %v1843
      %v1882 = vpop.f32.mrb[0].mxu0
      %v1883 = vadd.f32 0.0, %v1882
      %v1884 = vpop.f32.mrb[0].mxu0
      %v1885 = vpop.f32.mrb[0].mxu0
      %v1886 = vadd.f32 0.0, %v1885
      %v1887 = vpop.f32.mrb[0].mxu0
      %1888 = vmatprep.mubr.bf16.mxu0 0
      %1889 = vmatmul.mubr.bf16.gmra.mrb[0].mxu0 %v1846
      %v1890 = vpop.f32.mrb[0].mxu0
      %v1891 = vadd.f32 0.0, %v1890
      %v1892 = vpop.f32.mrb[0].mxu0
      %v1893 = vpop.f32.mrb[0].mxu0
      %v1894 = vpop.f32.mrb[0].mxu0
      %1895 = vdwg.mxu0
      %v1904 = vunpack.c.l.b16 %v1275
      %v1905 = vunpack.c.l.b16 %v1276
      %v1906 = vunpack.c.l.b16 %v1277
      %v1907 = vunpack.c.l.b16 %v1278
      %v1908 = vunpack.c.l.b16 %v1279
      %v1909 = vunpack.c.l.b16 %v1280
      %v1910 = vunpack.c.l.b16 %v1281
      %v1911 = vunpack.c.l.b16 %v1282
      %v1912 = vpack.c.b16 %v1905, %v1904
      %v1913 = vpack.c.b16 %v1907, %v1906
      %v1914 = vpack.c.b16 %v1909, %v1908
      %v1915 = vpack.c.b16 %v1911, %v1910
      %v1921 = vsel %vm1113, %v1273, 0
      %v1924 = vsel %vm1113, %v1274, 0
      %1926 = vmatprep.subr.bf16.mxu0 0
      %1927 = vmatpush1.bf16.msra.mxu0 %v1912
      %1928 = vmatprep.subr.bf16.mxu0 0
      %1929 = vmatpush1.bf16.msra.mxu0 %v1913
      %1930 = vmatprep.subr.bf16.mxu0 0
      %1931 = vmatpush1.bf16.msra.mxu0 %v1914
      %1932 = vmatprep.subr.bf16.mxu0 0
      %1933 = vmatpush1.bf16.msra.mxu0 %v1915
      %1934 = vmatprep.subr.bf16.mxu0 0
      %1935 = vmatpush1.bf16.msra.mxu0 0
      %1936 = vmatprep.subr.bf16.mxu0 0
      %1937 = vmatpush1.bf16.msra.mxu0 0
      %1938 = vmatprep.subr.bf16.mxu0 0
      %1939 = vmatpush1.bf16.msra.mxu0 0
      %1940 = vmatprep.subr.bf16.mxu0 0
      %1941 = vmatpush1.bf16.msra.mxu0 0
      %1942 = vmatprep.subr.bf16.mxu0 0
      %1943 = vmatpush1.bf16.msra.mxu0 0
      %1944 = vmatprep.subr.bf16.mxu0 0
      %1945 = vmatpush1.bf16.msra.mxu0 0
      %1946 = vmatprep.subr.bf16.mxu0 0
      %1947 = vmatpush1.bf16.msra.mxu0 0
      %1948 = vmatprep.subr.bf16.mxu0 0
      %1949 = vmatpush1.bf16.msra.mxu0 0
      %1950 = vmatprep.subr.bf16.mxu0 0
      %1951 = vmatpush1.bf16.msra.mxu0 0
      %1952 = vmatprep.subr.bf16.mxu0 0
      %1953 = vmatpush1.bf16.msra.mxu0 0
      %1954 = vmatprep.subr.bf16.mxu0 0
      %1955 = vmatpush1.bf16.msra.mxu0 0
      %1956 = vmatprep.subr.bf16.mxu0 0
      %1957 = vmatpush1.bf16.msra.mxu0 0
      %1958 = vmatprep.mubr.bf16.mxu0 0
      %1959 = vmatmul.mubr.bf16.gmra.mrb[0].mxu0 %v1921
      %v1960 = vpop.f32.mrb[0].mxu0
      %v1961 = vadd.f32 %v1883, %v1960
      %v1962 = vpop.f32.mrb[0].mxu0
      %v1963 = vpop.f32.mrb[0].mxu0
      %v1964 = vadd.f32 %v1886, %v1963
      %v1965 = vpop.f32.mrb[0].mxu0
      %1966 = vmatprep.mubr.bf16.mxu0 0
      %1967 = vmatmul.mubr.bf16.gmra.mrb[0].mxu0 %v1924
      %v1968 = vpop.f32.mrb[0].mxu0
      %v1969 = vadd.f32 %v1891, %v1968
      %v1970 = vpop.f32.mrb[0].mxu0
      %v1971 = vpop.f32.mrb[0].mxu0
      %v1972 = vpop.f32.mrb[0].mxu0
      %1973 = vdwg.mxu0
      %v1974 = vld [vmem:[%s9] sm:$0x1]
      %v1976 = vlaneseq
      %v1977 = vshrl.u32 %v1976, 7
      %v1978 = vsub.s32 0, %v1977
      %v1979 = vrot.slane %v1974, %v1978
      %v1981 = vadd.f32 %v1961, %v1979
      %v1982 = vadd.f32 %v1964, %v1979
      %v1983 = vadd.f32 %v1969, %v1979
      %v1984 = vadd.f32 %v741, %v1981
      %v1985 = vadd.f32 %v742, %v1982
      %v1986 = vadd.f32 %v743, %v1983
      %1987 = vadd.xlane.f32.xlu0 %v1984
      %v1988 = vpop.xlane.xlu0 %1987
      %1989 = vadd.xlane.f32.xlu0 %v1985
      %v1990 = vpop.xlane.xlu0 %1989
      %v1991 = vsel %vm1219, %v1986, 0.0
      %1992 = vadd.xlane.f32.xlu0 %v1991
      %v1993 = vpop.xlane.xlu0 %1992
      %v1994 = vrcp.pop 128.0
      %v1995 = vmul.f32 %v1988, %v1994
      %v1996 = vmul.f32 %v1990, %v1994
      %v1997 = vmul.f32 %v1993, %v1994
      %v1998 = vsub.f32 %v1984, %v1995
      %v1999 = vsub.f32 %v1985, %v1996
      %v2000 = vsub.f32 %v1986, %v1997
      %v2001 = vmul.f32 %v1998, %v1998
      %v2002 = vmul.f32 %v1999, %v1999
      %v2003 = vmul.f32 %v2000, %v2000
      %2004 = vadd.xlane.f32.xlu0 %v2001
      %v2005 = vpop.xlane.xlu0 %2004
      %2006 = vadd.xlane.f32.xlu0 %v2002
      %v2007 = vpop.xlane.xlu0 %2006
      %v2008 = vsel %vm1219, %v2003, 0.0
      %2009 = vadd.xlane.f32.xlu0 %v2008
      %v2010 = vpop.xlane.xlu0 %2009
      %v2011 = vmul.f32 %v2005, %v1994
      %v2012 = vmul.f32 %v2007, %v1994
      %v2013 = vmul.f32 %v2010, %v1994
      %v2014 = vadd.f32 %v2011, 1e-05
      %v2015 = vadd.f32 %v2012, 1e-05
      %v2016 = vadd.f32 %v2013, 1e-05
      %v2017 = vrsqrt.pop %v2014
      %v2018 = vrsqrt.pop %v2015
      %v2019 = vrsqrt.pop %v2016
      %v2020 = vmul.f32 %v1998, %v2017
      %v2021 = vmul.f32 %v1999, %v2018
      %v2022 = vmul.f32 %v2000, %v2019
      %v2023 = vld [vmem:[%s18] sm:$0x1]
      %v2025 = vlaneseq
      %v2026 = vshrl.u32 %v2025, 7
      %v2027 = vsub.s32 0, %v2026
      %v2028 = vrot.slane %v2023, %v2027
      %v2030 = vmul.f32 %v2020, %v2028
      %v2031 = vmul.f32 %v2021, %v2028
      %v2032 = vmul.f32 %v2022, %v2028
      %v2033 = vld [vmem:[%s19] sm:$0x1]
      %v2035 = vlaneseq
      %v2036 = vshrl.u32 %v2035, 7
      %v2037 = vsub.s32 0, %v2036
      %v2038 = vrot.slane %v2033, %v2037
      %v2040 = vadd.f32 %v2030, %v2038
      %v2041 = vadd.f32 %v2031, %v2038
      %v2042 = vadd.f32 %v2032, %v2038
      %v2043 = vpack.c.bf16 %v2041, %v2040
      %v2044 = vpack.c.bf16 %v2042, %v2042
      %v2045 = vpack.c.bf16 %v745, %v744
      %v2046 = vpack.c.bf16 %v746, %v746
      %v2047 = vld [vmem:[%s10] sm:$0xf]
      %v2048 = vld [vmem:[%s10 + $0x4] sm:$0xf]
      %v2049 = vld [vmem:[%s10 + $0x8] sm:$0xf]
      %v2050 = vld [vmem:[%s10 + $0xc] sm:$0xf]
      %v2051 = vld [vmem:[%s10 + $0x10] sm:$0xf]
      %v2052 = vld [vmem:[%s10 + $0x14] sm:$0xf]
      %v2053 = vld [vmem:[%s10 + $0x18] sm:$0xf]
      %v2054 = vld [vmem:[%s10 + $0x1c] sm:$0xf]
      %v2055 = vld [vmem:[%s10 + $0x20] sm:$0xf]
      %v2056 = vld [vmem:[%s10 + $0x24] sm:$0xf]
      %v2057 = vld [vmem:[%s10 + $0x28] sm:$0xf]
      %v2058 = vld [vmem:[%s10 + $0x2c] sm:$0xf]
      %v2059 = vld [vmem:[%s10 + $0x30] sm:$0xf]
      %v2060 = vld [vmem:[%s10 + $0x34] sm:$0xf]
      %v2061 = vld [vmem:[%s10 + $0x38] sm:$0xf]
      %v2062 = vld [vmem:[%s10 + $0x3c] sm:$0xf]
      %v2063 = vld [vmem:[%s13] sm:$0x1]
      %v2065 = vlaneseq
      %v2066 = vshrl.u32 %v2065, 7
      %v2067 = vsub.s32 0, %v2066
      %v2068 = vrot.slane %v2063, %v2067
      %v2086 = vunpack.c.l.b16 %v2047
      %v2087 = vunpack.c.l.b16 %v2048
      %v2088 = vunpack.c.l.b16 %v2049
      %v2089 = vunpack.c.l.b16 %v2050
      %v2090 = vunpack.c.l.b16 %v2051
      %v2091 = vunpack.c.l.b16 %v2052
      %v2092 = vunpack.c.l.b16 %v2053
      %v2093 = vunpack.c.l.b16 %v2054
      %v2094 = vunpack.c.l.b16 %v2055
      %v2095 = vunpack.c.l.b16 %v2056
      %v2096 = vunpack.c.l.b16 %v2057
      %v2097 = vunpack.c.l.b16 %v2058
      %v2098 = vunpack.c.l.b16 %v2059
      %v2099 = vunpack.c.l.b16 %v2060
      %v2100 = vunpack.c.l.b16 %v2061
      %v2101 = vunpack.c.l.b16 %v2062
      %v2102 = vpack.c.b16 %v2087, %v2086
      %v2103 = vpack.c.b16 %v2089, %v2088
      %v2104 = vpack.c.b16 %v2091, %v2090
      %v2105 = vpack.c.b16 %v2093, %v2092
      %v2106 = vpack.c.b16 %v2095, %v2094
      %v2107 = vpack.c.b16 %v2097, %v2096
      %v2108 = vpack.c.b16 %v2099, %v2098
      %v2109 = vpack.c.b16 %v2101, %v2100
      %2118 = vmatprep.subr.bf16.mxu0 0
      %2119 = vmatpush1.bf16.msra.mxu0 %v2102
      %2120 = vmatprep.subr.bf16.mxu0 0
      %2121 = vmatpush1.bf16.msra.mxu0 %v2103
      %2122 = vmatprep.subr.bf16.mxu0 0
      %2123 = vmatpush1.bf16.msra.mxu0 %v2104
      %2124 = vmatprep.subr.bf16.mxu0 0
      %2125 = vmatpush1.bf16.msra.mxu0 %v2105
      %2126 = vmatprep.subr.bf16.mxu0 0
      %2127 = vmatpush1.bf16.msra.mxu0 %v2106
      %2128 = vmatprep.subr.bf16.mxu0 0
      %2129 = vmatpush1.bf16.msra.mxu0 %v2107
      %2130 = vmatprep.subr.bf16.mxu0 0
      %2131 = vmatpush1.bf16.msra.mxu0 %v2108
      %2132 = vmatprep.subr.bf16.mxu0 0
      %2133 = vmatpush1.bf16.msra.mxu0 %v2109
      %2134 = vmatprep.subr.bf16.mxu0 0
      %2135 = vmatpush1.bf16.msra.mxu0 0
      %2136 = vmatprep.subr.bf16.mxu0 0
      %2137 = vmatpush1.bf16.msra.mxu0 0
      %2138 = vmatprep.subr.bf16.mxu0 0
      %2139 = vmatpush1.bf16.msra.mxu0 0
      %2140 = vmatprep.subr.bf16.mxu0 0
      %2141 = vmatpush1.bf16.msra.mxu0 0
      %2142 = vmatprep.subr.bf16.mxu0 0
      %2143 = vmatpush1.bf16.msra.mxu0 0
      %2144 = vmatprep.subr.bf16.mxu0 0
      %2145 = vmatpush1.bf16.msra.mxu0 0
      %2146 = vmatprep.subr.bf16.mxu0 0
      %2147 = vmatpush1.bf16.msra.mxu0 0
      %2148 = vmatprep.subr.bf16.mxu0 0
      %2149 = vmatpush1.bf16.msra.mxu0 0
      %2150 = vmatprep.mubr.bf16.mxu0 0
      %2151 = vmatmul.mubr.bf16.gmra.mrb[0].mxu0 %v2043
      %v2152 = vpop.f32.mrb[0].mxu0
      %v2153 = vadd.f32 %v2068, %v2152
      %v2154 = vpop.f32.mrb[0].mxu0
      %v2155 = vpop.f32.mrb[0].mxu0
      %v2156 = vadd.f32 %v2068, %v2155
      %v2157 = vpop.f32.mrb[0].mxu0
      %2158 = vmatprep.mubr.bf16.mxu0 0
      %2159 = vmatmul.mubr.bf16.gmra.mrb[0].mxu0 %v2044
      %v2160 = vpop.f32.mrb[0].mxu0
      %v2161 = vadd.f32 %v2068, %v2160
      %v2162 = vpop.f32.mrb[0].mxu0
      %v2163 = vpop.f32.mrb[0].mxu0
      %v2164 = vpop.f32.mrb[0].mxu0
      %2165 = vdwg.mxu0
      %v2166 = vld [vmem:[%s11] sm:$0xf]
      %v2167 = vld [vmem:[%s11 + $0x4] sm:$0xf]
      %v2168 = vld [vmem:[%s11 + $0x8] sm:$0xf]
      %v2169 = vld [vmem:[%s11 + $0xc] sm:$0xf]
      %v2170 = vld [vmem:[%s11 + $0x10] sm:$0xf]
      %v2171 = vld [vmem:[%s11 + $0x14] sm:$0xf]
      %v2172 = vld [vmem:[%s11 + $0x18] sm:$0xf]
      %v2173 = vld [vmem:[%s11 + $0x1c] sm:$0xf]
      %v2174 = vld [vmem:[%s11 + $0x20] sm:$0xf]
      %v2175 = vld [vmem:[%s11 + $0x24] sm:$0xf]
      %v2176 = vld [vmem:[%s11 + $0x28] sm:$0xf]
      %v2177 = vld [vmem:[%s11 + $0x2c] sm:$0xf]
      %v2178 = vld [vmem:[%s11 + $0x30] sm:$0xf]
      %v2179 = vld [vmem:[%s11 + $0x34] sm:$0xf]
      %v2180 = vld [vmem:[%s11 + $0x38] sm:$0xf]
      %v2181 = vld [vmem:[%s11 + $0x3c] sm:$0xf]
      %v2182 = vld [vmem:[%s14] sm:$0x1]
      %v2184 = vlaneseq
      %v2185 = vshrl.u32 %v2184, 7
      %v2186 = vsub.s32 0, %v2185
      %v2187 = vrot.slane %v2182, %v2186
      %v2205 = vunpack.c.l.b16 %v2166
      %v2206 = vunpack.c.l.b16 %v2167
      %v2207 = vunpack.c.l.b16 %v2168
      %v2208 = vunpack.c.l.b16 %v2169
      %v2209 = vunpack.c.l.b16 %v2170
      %v2210 = vunpack.c.l.b16 %v2171
      %v2211 = vunpack.c.l.b16 %v2172
      %v2212 = vunpack.c.l.b16 %v2173
      %v2213 = vunpack.c.l.b16 %v2174
      %v2214 = vunpack.c.l.b16 %v2175
      %v2215 = vunpack.c.l.b16 %v2176
      %v2216 = vunpack.c.l.b16 %v2177
      %v2217 = vunpack.c.l.b16 %v2178
      %v2218 = vunpack.c.l.b16 %v2179
      %v2219 = vunpack.c.l.b16 %v2180
      %v2220 = vunpack.c.l.b16 %v2181
      %v2221 = vpack.c.b16 %v2206, %v2205
      %v2222 = vpack.c.b16 %v2208, %v2207
      %v2223 = vpack.c.b16 %v2210, %v2209
      %v2224 = vpack.c.b16 %v2212, %v2211
      %v2225 = vpack.c.b16 %v2214, %v2213
      %v2226 = vpack.c.b16 %v2216, %v2215
      %v2227 = vpack.c.b16 %v2218, %v2217
      %v2228 = vpack.c.b16 %v2220, %v2219
      %2237 = vmatprep.subr.bf16.mxu0 0
      %2238 = vmatpush1.bf16.msra.mxu0 %v2221
      %2239 = vmatprep.subr.bf16.mxu0 0
      %2240 = vmatpush1.bf16.msra.mxu0 %v2222
      %2241 = vmatprep.subr.bf16.mxu0 0
      %2242 = vmatpush1.bf16.msra.mxu0 %v2223
      %2243 = vmatprep.subr.bf16.mxu0 0
      %2244 = vmatpush1.bf16.msra.mxu0 %v2224
      %2245 = vmatprep.subr.bf16.mxu0 0
      %2246 = vmatpush1.bf16.msra.mxu0 %v2225
      %2247 = vmatprep.subr.bf16.mxu0 0
      %2248 = vmatpush1.bf16.msra.mxu0 %v2226
      %2249 = vmatprep.subr.bf16.mxu0 0
      %2250 = vmatpush1.bf16.msra.mxu0 %v2227
      %2251 = vmatprep.subr.bf16.mxu0 0
      %2252 = vmatpush1.bf16.msra.mxu0 %v2228
      %2253 = vmatprep.subr.bf16.mxu0 0
      %2254 = vmatpush1.bf16.msra.mxu0 0
      %2255 = vmatprep.subr.bf16.mxu0 0
      %2256 = vmatpush1.bf16.msra.mxu0 0
      %2257 = vmatprep.subr.bf16.mxu0 0
      %2258 = vmatpush1.bf16.msra.mxu0 0
      %2259 = vmatprep.subr.bf16.mxu0 0
      %2260 = vmatpush1.bf16.msra.mxu0 0
      %2261 = vmatprep.subr.bf16.mxu0 0
      %2262 = vmatpush1.bf16.msra.mxu0 0
      %2263 = vmatprep.subr.bf16.mxu0 0
      %2264 = vmatpush1.bf16.msra.mxu0 0
      %2265 = vmatprep.subr.bf16.mxu0 0
      %2266 = vmatpush1.bf16.msra.mxu0 0
      %2267 = vmatprep.subr.bf16.mxu0 0
      %2268 = vmatpush1.bf16.msra.mxu0 0
      %2269 = vmatprep.mubr.bf16.mxu0 0
      %2270 = vmatmul.mubr.bf16.gmra.mrb[0].mxu0 %v2045
      %v2271 = vpop.f32.mrb[0].mxu0
      %v2272 = vadd.f32 %v2187, %v2271
      %v2273 = vpop.f32.mrb[0].mxu0
      %v2274 = vpop.f32.mrb[0].mxu0
      %v2275 = vadd.f32 %v2187, %v2274
      %v2276 = vpop.f32.mrb[0].mxu0
      %2277 = vmatprep.mubr.bf16.mxu0 0
      %2278 = vmatmul.mubr.bf16.gmra.mrb[0].mxu0 %v2046
      %v2279 = vpop.f32.mrb[0].mxu0
      %v2280 = vadd.f32 %v2187, %v2279
      %v2281 = vpop.f32.mrb[0].mxu0
      %v2282 = vpop.f32.mrb[0].mxu0
      %v2283 = vpop.f32.mrb[0].mxu0
      %2284 = vdwg.mxu0
      %v2285 = vld [vmem:[%s12] sm:$0xf]
      %v2286 = vld [vmem:[%s12 + $0x4] sm:$0xf]
      %v2287 = vld [vmem:[%s12 + $0x8] sm:$0xf]
      %v2288 = vld [vmem:[%s12 + $0xc] sm:$0xf]
      %v2289 = vld [vmem:[%s12 + $0x10] sm:$0xf]
      %v2290 = vld [vmem:[%s12 + $0x14] sm:$0xf]
      %v2291 = vld [vmem:[%s12 + $0x18] sm:$0xf]
      %v2292 = vld [vmem:[%s12 + $0x1c] sm:$0xf]
      %v2293 = vld [vmem:[%s12 + $0x20] sm:$0xf]
      %v2294 = vld [vmem:[%s12 + $0x24] sm:$0xf]
      %v2295 = vld [vmem:[%s12 + $0x28] sm:$0xf]
      %v2296 = vld [vmem:[%s12 + $0x2c] sm:$0xf]
      %v2297 = vld [vmem:[%s12 + $0x30] sm:$0xf]
      %v2298 = vld [vmem:[%s12 + $0x34] sm:$0xf]
      %v2299 = vld [vmem:[%s12 + $0x38] sm:$0xf]
      %v2300 = vld [vmem:[%s12 + $0x3c] sm:$0xf]
      %v2301 = vld [vmem:[%s15] sm:$0x1]
      %v2303 = vlaneseq
      %v2304 = vshrl.u32 %v2303, 7
      %v2305 = vsub.s32 0, %v2304
      %v2306 = vrot.slane %v2301, %v2305
      %v2324 = vunpack.c.l.b16 %v2285
      %v2325 = vunpack.c.l.b16 %v2286
      %v2326 = vunpack.c.l.b16 %v2287
      %v2327 = vunpack.c.l.b16 %v2288
      %v2328 = vunpack.c.l.b16 %v2289
      %v2329 = vunpack.c.l.b16 %v2290
      %v2330 = vunpack.c.l.b16 %v2291
      %v2331 = vunpack.c.l.b16 %v2292
      %v2332 = vunpack.c.l.b16 %v2293
      %v2333 = vunpack.c.l.b16 %v2294
      %v2334 = vunpack.c.l.b16 %v2295
      %v2335 = vunpack.c.l.b16 %v2296
      %v2336 = vunpack.c.l.b16 %v2297
      %v2337 = vunpack.c.l.b16 %v2298
      %v2338 = vunpack.c.l.b16 %v2299
      %v2339 = vunpack.c.l.b16 %v2300
      %v2340 = vpack.c.b16 %v2325, %v2324
      %v2341 = vpack.c.b16 %v2327, %v2326
      %v2342 = vpack.c.b16 %v2329, %v2328
      %v2343 = vpack.c.b16 %v2331, %v2330
      %v2344 = vpack.c.b16 %v2333, %v2332
      %v2345 = vpack.c.b16 %v2335, %v2334
      %v2346 = vpack.c.b16 %v2337, %v2336
      %v2347 = vpack.c.b16 %v2339, %v2338
      %2356 = vmatprep.subr.bf16.mxu0 0
      %2357 = vmatpush1.bf16.msra.mxu0 %v2340
      %2358 = vmatprep.subr.bf16.mxu0 0
      %2359 = vmatpush1.bf16.msra.mxu0 %v2341
      %2360 = vmatprep.subr.bf16.mxu0 0
      %2361 = vmatpush1.bf16.msra.mxu0 %v2342
      %2362 = vmatprep.subr.bf16.mxu0 0
      %2363 = vmatpush1.bf16.msra.mxu0 %v2343
      %2364 = vmatprep.subr.bf16.mxu0 0
      %2365 = vmatpush1.bf16.msra.mxu0 %v2344
      %2366 = vmatprep.subr.bf16.mxu0 0
      %2367 = vmatpush1.bf16.msra.mxu0 %v2345
      %2368 = vmatprep.subr.bf16.mxu0 0
      %2369 = vmatpush1.bf16.msra.mxu0 %v2346
      %2370 = vmatprep.subr.bf16.mxu0 0
      %2371 = vmatpush1.bf16.msra.mxu0 %v2347
      %2372 = vmatprep.subr.bf16.mxu0 0
      %2373 = vmatpush1.bf16.msra.mxu0 0
      %2374 = vmatprep.subr.bf16.mxu0 0
      %2375 = vmatpush1.bf16.msra.mxu0 0
      %2376 = vmatprep.subr.bf16.mxu0 0
      %2377 = vmatpush1.bf16.msra.mxu0 0
      %2378 = vmatprep.subr.bf16.mxu0 0
      %2379 = vmatpush1.bf16.msra.mxu0 0
      %2380 = vmatprep.subr.bf16.mxu0 0
      %2381 = vmatpush1.bf16.msra.mxu0 0
      %2382 = vmatprep.subr.bf16.mxu0 0
      %2383 = vmatpush1.bf16.msra.mxu0 0
      %2384 = vmatprep.subr.bf16.mxu0 0
      %2385 = vmatpush1.bf16.msra.mxu0 0
      %2386 = vmatprep.subr.bf16.mxu0 0
      %2387 = vmatpush1.bf16.msra.mxu0 0
      %2388 = vmatprep.mubr.bf16.mxu0 0
      %2389 = vmatmul.mubr.bf16.gmra.mrb[0].mxu0 %v2045
      %v2390 = vpop.f32.mrb[0].mxu0
      %v2391 = vadd.f32 %v2306, %v2390
      %v2392 = vpop.f32.mrb[0].mxu0
      %v2393 = vpop.f32.mrb[0].mxu0
      %v2394 = vadd.f32 %v2306, %v2393
      %v2395 = vpop.f32.mrb[0].mxu0
      %2396 = vmatprep.mubr.bf16.mxu0 0
      %2397 = vmatmul.mubr.bf16.gmra.mrb[0].mxu0 %v2046
      %v2398 = vpop.f32.mrb[0].mxu0
      %v2399 = vadd.f32 %v2306, %v2398
      %v2400 = vpop.f32.mrb[0].mxu0
      %v2401 = vpop.f32.mrb[0].mxu0
      %v2402 = vpop.f32.mrb[0].mxu0
      %2403 = vdwg.mxu0
      %v2404 = vmul.f32 %v2153, 0.125
      %v2405 = vmul.f32 %v2156, 0.125
      %v2406 = vmul.f32 %v2161, 0.125
      %v2407 = vpack.c.bf16 %v2405, %v2404
      %v2408 = vpack.c.bf16 %v2406, %v2406
      %v2409 = vpack.c.bf16 %v2275, %v2272
      %v2410 = vpack.c.bf16 %v2280, %v2280
      %v2412 = vsel %vm1113, %v2407, 0
      %v2415 = vsel %vm1113, %v2408, 0
      %v2418 = vsel %vm1113, %v2409, 0
      %v2421 = vsel %vm1113, %v2410, 0
      %2423 = vmatprep.subr.bf16.mxu0 0
      %2424 = vmatpush1.bf16.xpose.msra.mxu0 %v2418
      %2425 = vmatprep.subr.bf16.mxu0 0
      %2426 = vmatpush1.bf16.xpose.msra.mxu0 %v2421
      %2427 = vmatprep.subr.bf16.mxu0 0
      %2428 = vmatpush1.bf16.xpose.msra.mxu0 0
      %2429 = vmatprep.subr.bf16.mxu0 0
      %2430 = vmatpush1.bf16.xpose.msra.mxu0 0
      %2431 = vmatprep.subr.bf16.mxu0 0
      %2432 = vmatpush1.bf16.xpose.msra.mxu0 0
      %2433 = vmatprep.subr.bf16.mxu0 0
      %2434 = vmatpush1.bf16.xpose.msra.mxu0 0
      %2435 = vmatprep.subr.bf16.mxu0 0
      %2436 = vmatpush1.bf16.xpose.msra.mxu0 0
      %2437 = vmatprep.subr.bf16.mxu0 0
      %2438 = vmatpush1.bf16.xpose.msra.mxu0 0
      %2439 = vmatprep.subr.bf16.mxu0 0
      %2440 = vmatpush1.bf16.xpose.msra.mxu0 0
      %2441 = vmatprep.subr.bf16.mxu0 0
      %2442 = vmatpush1.bf16.xpose.msra.mxu0 0
      %2443 = vmatprep.subr.bf16.mxu0 0
      %2444 = vmatpush1.bf16.xpose.msra.mxu0 0
      %2445 = vmatprep.subr.bf16.mxu0 0
      %2446 = vmatpush1.bf16.xpose.msra.mxu0 0
      %2447 = vmatprep.subr.bf16.mxu0 0
      %2448 = vmatpush1.bf16.xpose.msra.mxu0 0
      %2449 = vmatprep.subr.bf16.mxu0 0
      %2450 = vmatpush1.bf16.xpose.msra.mxu0 0
      %2451 = vmatprep.subr.bf16.mxu0 0
      %2452 = vmatpush1.bf16.xpose.msra.mxu0 0
      %2453 = vmatprep.subr.bf16.mxu0 0
      %2454 = vmatpush1.bf16.xpose.msra.mxu0 0
      %2455 = vmatprep.mubr.bf16.mxu0 0
      %2456 = vmatmul.mubr.bf16.gmra.mrb[0].mxu0 %v2412
      %v2457 = vpop.f32.mrb[0].mxu0
      %v2458 = vadd.f32 0.0, %v2457
      %v2459 = vpop.f32.mrb[0].mxu0
      %v2460 = vpop.f32.mrb[0].mxu0
      %v2461 = vadd.f32 0.0, %v2460
      %v2462 = vpop.f32.mrb[0].mxu0
      %2463 = vmatprep.mubr.bf16.mxu0 0
      %2464 = vmatmul.mubr.bf16.gmra.mrb[0].mxu0 %v2415
      %v2465 = vpop.f32.mrb[0].mxu0
      %v2466 = vadd.f32 0.0, %v2465
      %v2467 = vpop.f32.mrb[0].mxu0
      %v2468 = vpop.f32.mrb[0].mxu0
      %v2469 = vpop.f32.mrb[0].mxu0
      %2470 = vdwg.mxu0
      %v2471 = vsel %vm1174, %v2458, -inf
      %2472 = vmax.xlane.f32.xlu0 %v2471
      %v2473 = vpop.xlane.xlu0 %2472
      %v2474 = vsel %vm1174, %v2461, -inf
      %2475 = vmax.xlane.f32.xlu0 %v2474
      %v2476 = vpop.xlane.xlu0 %2475
      %v2477 = vsel %vm1181, %v2466, -inf
      %2478 = vmax.xlane.f32.xlu0 %v2477
      %v2479 = vpop.xlane.xlu0 %2478
      %v2480 = vsub.f32 %v2458, %v2473
      %v2481 = vsub.f32 %v2461, %v2476
      %v2482 = vsub.f32 %v2466, %v2479
      %v2483 = vmul.f32 %v2480, 1.442695
      %v2484 = vpow.pop %v2483
      %v2485 = vmul.f32 %v2481, 1.442695
      %v2486 = vpow.pop %v2485
      %v2487 = vmul.f32 %v2482, 1.442695
      %v2488 = vpow.pop %v2487
      %v2489 = vsel %vm1174, %v2484, 0.0
      %2490 = vadd.xlane.f32.xlu0 %v2489
      %v2491 = vpop.xlane.xlu0 %2490
      %v2492 = vsel %vm1174, %v2486, 0.0
      %2493 = vadd.xlane.f32.xlu0 %v2492
      %v2494 = vpop.xlane.xlu0 %2493
      %v2495 = vsel %vm1181, %v2488, 0.0
      %2496 = vadd.xlane.f32.xlu0 %v2495
      %v2497 = vpop.xlane.xlu0 %2496
      %v2498 = vrcp.pop %v2491
      %v2499 = vrcp.pop %v2494
      %v2500 = vrcp.pop %v2497
      %v2501 = vmul.f32 %v2484, %v2498
      %v2502 = vmul.f32 %v2486, %v2499
      %v2503 = vmul.f32 %v2488, %v2500
      %v2504 = vpack.c.bf16 %v2502, %v2501
      %v2505 = vpack.c.bf16 %v2503, %v2503
      %v2506 = vpack.c.bf16 %v2394, %v2391
      %v2507 = vpack.c.bf16 %v2399, %v2399
      %v2509 = vsel %vm1174, %v2504, 0
      %v2512 = vsel %vm1174, %v2505, 0
      %v2515 = vand.u32 %v2507, %v1221
      %2517 = vmatprep.subr.bf16.mxu0 0
      %2518 = vmatpush1.bf16.msra.mxu0 %v2506
      %2519 = vmatprep.subr.bf16.mxu0 0
      %2520 = vmatpush1.bf16.msra.mxu0 %v2515
      %2521 = vmatprep.subr.bf16.mxu0 0
      %2522 = vmatpush1.bf16.msra.mxu0 0
      %2523 = vmatprep.subr.bf16.mxu0 0
      %2524 = vmatpush1.bf16.msra.mxu0 0
      %2525 = vmatprep.subr.bf16.mxu0 0
      %2526 = vmatpush1.bf16.msra.mxu0 0
      %2527 = vmatprep.subr.bf16.mxu0 0
      %2528 = vmatpush1.bf16.msra.mxu0 0
      %2529 = vmatprep.subr.bf16.mxu0 0
      %2530 = vmatpush1.bf16.msra.mxu0 0
      %2531 = vmatprep.subr.bf16.mxu0 0
      %2532 = vmatpush1.bf16.msra.mxu0 0
      %2533 = vmatprep.subr.bf16.mxu0 0
      %2534 = vmatpush1.bf16.msra.mxu0 0
      %2535 = vmatprep.subr.bf16.mxu0 0
      %2536 = vmatpush1.bf16.msra.mxu0 0
      %2537 = vmatprep.subr.bf16.mxu0 0
      %2538 = vmatpush1.bf16.msra.mxu0 0
      %2539 = vmatprep.subr.bf16.mxu0 0
      %2540 = vmatpush1.bf16.msra.mxu0 0
      %2541 = vmatprep.subr.bf16.mxu0 0
      %2542 = vmatpush1.bf16.msra.mxu0 0
      %2543 = vmatprep.subr.bf16.mxu0 0
      %2544 = vmatpush1.bf16.msra.mxu0 0
      %2545 = vmatprep.subr.bf16.mxu0 0
      %2546 = vmatpush1.bf16.msra.mxu0 0
      %2547 = vmatprep.subr.bf16.mxu0 0
      %2548 = vmatpush1.bf16.msra.mxu0 0
      %2549 = vmatprep.mubr.bf16.mxu0 0
      %2550 = vmatmul.mubr.bf16.gmra.mrb[0].mxu0 %v2509
      %v2551 = vpop.f32.mrb[0].mxu0
      %v2552 = vadd.f32 0.0, %v2551
      %v2553 = vpop.f32.mrb[0].mxu0
      %v2554 = vpop.f32.mrb[0].mxu0
      %v2555 = vadd.f32 0.0, %v2554
      %v2556 = vpop.f32.mrb[0].mxu0
      %2557 = vmatprep.mubr.bf16.mxu0 0
      %2558 = vmatmul.mubr.bf16.gmra.mrb[0].mxu0 %v2512
      %v2559 = vpop.f32.mrb[0].mxu0
      %v2560 = vadd.f32 0.0, %v2559
      %v2561 = vpop.f32.mrb[0].mxu0
      %v2562 = vpop.f32.mrb[0].mxu0
      %v2563 = vpop.f32.mrb[0].mxu0
      %2564 = vdwg.mxu0
      %v2565 = vpack.c.bf16 %v2555, %v2552
      %v2566 = vpack.c.bf16 %v2560, %v2560
      %v2567 = vld [vmem:[%s16] sm:$0xf]
      %v2568 = vld [vmem:[%s16 + $0x4] sm:$0xf]
      %v2569 = vld [vmem:[%s16 + $0x8] sm:$0xf]
      %v2570 = vld [vmem:[%s16 + $0xc] sm:$0xf]
      %v2571 = vld [vmem:[%s16 + $0x10] sm:$0xf]
      %v2572 = vld [vmem:[%s16 + $0x14] sm:$0xf]
      %v2573 = vld [vmem:[%s16 + $0x18] sm:$0xf]
      %v2574 = vld [vmem:[%s16 + $0x1c] sm:$0xf]
      %s2575 = scalar_lea.vmem %s10, 64
      %v2576 = vld [vmem:[%s2575] sm:$0xf]
      %v2577 = vld [vmem:[%s2575 + $0x4] sm:$0xf]
      %v2578 = vld [vmem:[%s2575 + $0x8] sm:$0xf]
      %v2579 = vld [vmem:[%s2575 + $0xc] sm:$0xf]
      %v2580 = vld [vmem:[%s2575 + $0x10] sm:$0xf]
      %v2581 = vld [vmem:[%s2575 + $0x14] sm:$0xf]
      %v2582 = vld [vmem:[%s2575 + $0x18] sm:$0xf]
      %v2583 = vld [vmem:[%s2575 + $0x1c] sm:$0xf]
      %v2584 = vld [vmem:[%s2575 + $0x20] sm:$0xf]
      %v2585 = vld [vmem:[%s2575 + $0x24] sm:$0xf]
      %v2586 = vld [vmem:[%s2575 + $0x28] sm:$0xf]
      %v2587 = vld [vmem:[%s2575 + $0x2c] sm:$0xf]
      %v2588 = vld [vmem:[%s2575 + $0x30] sm:$0xf]
      %v2589 = vld [vmem:[%s2575 + $0x34] sm:$0xf]
      %v2590 = vld [vmem:[%s2575 + $0x38] sm:$0xf]
      %v2591 = vld [vmem:[%s2575 + $0x3c] sm:$0xf]
      %s2592 = scalar_lea.vmem %s13, 1
      %v2593 = vld [vmem:[%s2592] sm:$0x1]
      %v2595 = vlaneseq
      %v2596 = vshrl.u32 %v2595, 7
      %v2597 = vsub.s32 0, %v2596
      %v2598 = vrot.slane %v2593, %v2597
      %v2616 = vunpack.c.l.b16 %v2576
      %v2617 = vunpack.c.l.b16 %v2577
      %v2618 = vunpack.c.l.b16 %v2578
      %v2619 = vunpack.c.l.b16 %v2579
      %v2620 = vunpack.c.l.b16 %v2580
      %v2621 = vunpack.c.l.b16 %v2581
      %v2622 = vunpack.c.l.b16 %v2582
      %v2623 = vunpack.c.l.b16 %v2583
      %v2624 = vunpack.c.l.b16 %v2584
      %v2625 = vunpack.c.l.b16 %v2585
      %v2626 = vunpack.c.l.b16 %v2586
      %v2627 = vunpack.c.l.b16 %v2587
      %v2628 = vunpack.c.l.b16 %v2588
      %v2629 = vunpack.c.l.b16 %v2589
      %v2630 = vunpack.c.l.b16 %v2590
      %v2631 = vunpack.c.l.b16 %v2591
      %v2632 = vpack.c.b16 %v2617, %v2616
      %v2633 = vpack.c.b16 %v2619, %v2618
      %v2634 = vpack.c.b16 %v2621, %v2620
      %v2635 = vpack.c.b16 %v2623, %v2622
      %v2636 = vpack.c.b16 %v2625, %v2624
      %v2637 = vpack.c.b16 %v2627, %v2626
      %v2638 = vpack.c.b16 %v2629, %v2628
      %v2639 = vpack.c.b16 %v2631, %v2630
      %2648 = vmatprep.subr.bf16.mxu0 0
      %2649 = vmatpush1.bf16.msra.mxu0 %v2632
      %2650 = vmatprep.subr.bf16.mxu0 0
      %2651 = vmatpush1.bf16.msra.mxu0 %v2633
      %2652 = vmatprep.subr.bf16.mxu0 0
      %2653 = vmatpush1.bf16.msra.mxu0 %v2634
      %2654 = vmatprep.subr.bf16.mxu0 0
      %2655 = vmatpush1.bf16.msra.mxu0 %v2635
      %2656 = vmatprep.subr.bf16.mxu0 0
      %2657 = vmatpush1.bf16.msra.mxu0 %v2636
      %2658 = vmatprep.subr.bf16.mxu0 0
      %2659 = vmatpush1.bf16.msra.mxu0 %v2637
      %2660 = vmatprep.subr.bf16.mxu0 0
      %2661 = vmatpush1.bf16.msra.mxu0 %v2638
      %2662 = vmatprep.subr.bf16.mxu0 0
      %2663 = vmatpush1.bf16.msra.mxu0 %v2639
      %2664 = vmatprep.subr.bf16.mxu0 0
      %2665 = vmatpush1.bf16.msra.mxu0 0
      %2666 = vmatprep.subr.bf16.mxu0 0
      %2667 = vmatpush1.bf16.msra.mxu0 0
      %2668 = vmatprep.subr.bf16.mxu0 0
      %2669 = vmatpush1.bf16.msra.mxu0 0
      %2670 = vmatprep.subr.bf16.mxu0 0
      %2671 = vmatpush1.bf16.msra.mxu0 0
      %2672 = vmatprep.subr.bf16.mxu0 0
      %2673 = vmatpush1.bf16.msra.mxu0 0
      %2674 = vmatprep.subr.bf16.mxu0 0
      %2675 = vmatpush1.bf16.msra.mxu0 0
      %2676 = vmatprep.subr.bf16.mxu0 0
      %2677 = vmatpush1.bf16.msra.mxu0 0
      %2678 = vmatprep.subr.bf16.mxu0 0
      %2679 = vmatpush1.bf16.msra.mxu0 0
      %2680 = vmatprep.mubr.bf16.mxu0 0
      %2681 = vmatmul.mubr.bf16.gmra.mrb[0].mxu0 %v2043
      %v2682 = vpop.f32.mrb[0].mxu0
      %v2683 = vadd.f32 %v2598, %v2682
      %v2684 = vpop.f32.mrb[0].mxu0
      %v2685 = vpop.f32.mrb[0].mxu0
      %v2686 = vadd.f32 %v2598, %v2685
      %v2687 = vpop.f32.mrb[0].mxu0
      %2688 = vmatprep.mubr.bf16.mxu0 0
      %2689 = vmatmul.mubr.bf16.gmra.mrb[0].mxu0 %v2044
      %v2690 = vpop.f32.mrb[0].mxu0
      %v2691 = vadd.f32 %v2598, %v2690
      %v2692 = vpop.f32.mrb[0].mxu0
      %v2693 = vpop.f32.mrb[0].mxu0
      %v2694 = vpop.f32.mrb[0].mxu0
      %2695 = vdwg.mxu0
      %s2696 = scalar_lea.vmem %s11, 64
      %v2697 = vld [vmem:[%s2696] sm:$0xf]
      %v2698 = vld [vmem:[%s2696 + $0x4] sm:$0xf]
      %v2699 = vld [vmem:[%s2696 + $0x8] sm:$0xf]
      %v2700 = vld [vmem:[%s2696 + $0xc] sm:$0xf]
      %v2701 = vld [vmem:[%s2696 + $0x10] sm:$0xf]
      %v2702 = vld [vmem:[%s2696 + $0x14] sm:$0xf]
      %v2703 = vld [vmem:[%s2696 + $0x18] sm:$0xf]
      %v2704 = vld [vmem:[%s2696 + $0x1c] sm:$0xf]
      %v2705 = vld [vmem:[%s2696 + $0x20] sm:$0xf]
      %v2706 = vld [vmem:[%s2696 + $0x24] sm:$0xf]
      %v2707 = vld [vmem:[%s2696 + $0x28] sm:$0xf]
      %v2708 = vld [vmem:[%s2696 + $0x2c] sm:$0xf]
      %v2709 = vld [vmem:[%s2696 + $0x30] sm:$0xf]
      %v2710 = vld [vmem:[%s2696 + $0x34] sm:$0xf]
      %v2711 = vld [vmem:[%s2696 + $0x38] sm:$0xf]
      %v2712 = vld [vmem:[%s2696 + $0x3c] sm:$0xf]
      %s2713 = scalar_lea.vmem %s14, 1
      %v2714 = vld [vmem:[%s2713] sm:$0x1]
      %v2716 = vlaneseq
      %v2717 = vshrl.u32 %v2716, 7
      %v2718 = vsub.s32 0, %v2717
      %v2719 = vrot.slane %v2714, %v2718
      %v2737 = vunpack.c.l.b16 %v2697
      %v2738 = vunpack.c.l.b16 %v2698
      %v2739 = vunpack.c.l.b16 %v2699
      %v2740 = vunpack.c.l.b16 %v2700
      %v2741 = vunpack.c.l.b16 %v2701
      %v2742 = vunpack.c.l.b16 %v2702
      %v2743 = vunpack.c.l.b16 %v2703
      %v2744 = vunpack.c.l.b16 %v2704
      %v2745 = vunpack.c.l.b16 %v2705
      %v2746 = vunpack.c.l.b16 %v2706
      %v2747 = vunpack.c.l.b16 %v2707
      %v2748 = vunpack.c.l.b16 %v2708
      %v2749 = vunpack.c.l.b16 %v2709
      %v2750 = vunpack.c.l.b16 %v2710
      %v2751 = vunpack.c.l.b16 %v2711
      %v2752 = vunpack.c.l.b16 %v2712
      %v2753 = vpack.c.b16 %v2738, %v2737
      %v2754 = vpack.c.b16 %v2740, %v2739
      %v2755 = vpack.c.b16 %v2742, %v2741
      %v2756 = vpack.c.b16 %v2744, %v2743
      %v2757 = vpack.c.b16 %v2746, %v2745
      %v2758 = vpack.c.b16 %v2748, %v2747
      %v2759 = vpack.c.b16 %v2750, %v2749
      %v2760 = vpack.c.b16 %v2752, %v2751
      %2769 = vmatprep.subr.bf16.mxu0 0
      %2770 = vmatpush1.bf16.msra.mxu0 %v2753
      %2771 = vmatprep.subr.bf16.mxu0 0
      %2772 = vmatpush1.bf16.msra.mxu0 %v2754
      %2773 = vmatprep.subr.bf16.mxu0 0
      %2774 = vmatpush1.bf16.msra.mxu0 %v2755
      %2775 = vmatprep.subr.bf16.mxu0 0
      %2776 = vmatpush1.bf16.msra.mxu0 %v2756
      %2777 = vmatprep.subr.bf16.mxu0 0
      %2778 = vmatpush1.bf16.msra.mxu0 %v2757
      %2779 = vmatprep.subr.bf16.mxu0 0
      %2780 = vmatpush1.bf16.msra.mxu0 %v2758
      %2781 = vmatprep.subr.bf16.mxu0 0
      %2782 = vmatpush1.bf16.msra.mxu0 %v2759
      %2783 = vmatprep.subr.bf16.mxu0 0
      %2784 = vmatpush1.bf16.msra.mxu0 %v2760
      %2785 = vmatprep.subr.bf16.mxu0 0
      %2786 = vmatpush1.bf16.msra.mxu0 0
      %2787 = vmatprep.subr.bf16.mxu0 0
      %2788 = vmatpush1.bf16.msra.mxu0 0
      %2789 = vmatprep.subr.bf16.mxu0 0
      %2790 = vmatpush1.bf16.msra.mxu0 0
      %2791 = vmatprep.subr.bf16.mxu0 0
      %2792 = vmatpush1.bf16.msra.mxu0 0
      %2793 = vmatprep.subr.bf16.mxu0 0
      %2794 = vmatpush1.bf16.msra.mxu0 0
      %2795 = vmatprep.subr.bf16.mxu0 0
      %2796 = vmatpush1.bf16.msra.mxu0 0
      %2797 = vmatprep.subr.bf16.mxu0 0
      %2798 = vmatpush1.bf16.msra.mxu0 0
      %2799 = vmatprep.subr.bf16.mxu0 0
      %2800 = vmatpush1.bf16.msra.mxu0 0
      %2801 = vmatprep.mubr.bf16.mxu0 0
      %2802 = vmatmul.mubr.bf16.gmra.mrb[0].mxu0 %v2045
      %v2803 = vpop.f32.mrb[0].mxu0
      %v2804 = vadd.f32 %v2719, %v2803
      %v2805 = vpop.f32.mrb[0].mxu0
      %v2806 = vpop.f32.mrb[0].mxu0
      %v2807 = vadd.f32 %v2719, %v2806
      %v2808 = vpop.f32.mrb[0].mxu0
      %2809 = vmatprep.mubr.bf16.mxu0 0
      %2810 = vmatmul.mubr.bf16.gmra.mrb[0].mxu0 %v2046
      %v2811 = vpop.f32.mrb[0].mxu0
      %v2812 = vadd.f32 %v2719, %v2811
      %v2813 = vpop.f32.mrb[0].mxu0
      %v2814 = vpop.f32.mrb[0].mxu0
      %v2815 = vpop.f32.mrb[0].mxu0
      %2816 = vdwg.mxu0
      %s2817 = scalar_lea.vmem %s12, 64
      %v2818 = vld [vmem:[%s2817] sm:$0xf]
      %v2819 = vld [vmem:[%s2817 + $0x4] sm:$0xf]
      %v2820 = vld [vmem:[%s2817 + $0x8] sm:$0xf]
      %v2821 = vld [vmem:[%s2817 + $0xc] sm:$0xf]
      %v2822 = vld [vmem:[%s2817 + $0x10] sm:$0xf]
      %v2823 = vld [vmem:[%s2817 + $0x14] sm:$0xf]
      %v2824 = vld [vmem:[%s2817 + $0x18] sm:$0xf]
      %v2825 = vld [vmem:[%s2817 + $0x1c] sm:$0xf]
      %v2826 = vld [vmem:[%s2817 + $0x20] sm:$0xf]
      %v2827 = vld [vmem:[%s2817 + $0x24] sm:$0xf]
      %v2828 = vld [vmem:[%s2817 + $0x28] sm:$0xf]
      %v2829 = vld [vmem:[%s2817 + $0x2c] sm:$0xf]
      %v2830 = vld [vmem:[%s2817 + $0x30] sm:$0xf]
      %v2831 = vld [vmem:[%s2817 + $0x34] sm:$0xf]
      %v2832 = vld [vmem:[%s2817 + $0x38] sm:$0xf]
      %v2833 = vld [vmem:[%s2817 + $0x3c] sm:$0xf]
      %s2834 = scalar_lea.vmem %s15, 1
      %v2835 = vld [vmem:[%s2834] sm:$0x1]
      %v2837 = vlaneseq
      %v2838 = vshrl.u32 %v2837, 7
      %v2839 = vsub.s32 0, %v2838
      %v2840 = vrot.slane %v2835, %v2839
      %v2858 = vunpack.c.l.b16 %v2818
      %v2859 = vunpack.c.l.b16 %v2819
      %v2860 = vunpack.c.l.b16 %v2820
      %v2861 = vunpack.c.l.b16 %v2821
      %v2862 = vunpack.c.l.b16 %v2822
      %v2863 = vunpack.c.l.b16 %v2823
      %v2864 = vunpack.c.l.b16 %v2824
      %v2865 = vunpack.c.l.b16 %v2825
      %v2866 = vunpack.c.l.b16 %v2826
      %v2867 = vunpack.c.l.b16 %v2827
      %v2868 = vunpack.c.l.b16 %v2828
      %v2869 = vunpack.c.l.b16 %v2829
      %v2870 = vunpack.c.l.b16 %v2830
      %v2871 = vunpack.c.l.b16 %v2831
      %v2872 = vunpack.c.l.b16 %v2832
      %v2873 = vunpack.c.l.b16 %v2833
      %v2874 = vpack.c.b16 %v2859, %v2858
      %v2875 = vpack.c.b16 %v2861, %v2860
      %v2876 = vpack.c.b16 %v2863, %v2862
      %v2877 = vpack.c.b16 %v2865, %v2864
      %v2878 = vpack.c.b16 %v2867, %v2866
      %v2879 = vpack.c.b16 %v2869, %v2868
      %v2880 = vpack.c.b16 %v2871, %v2870
      %v2881 = vpack.c.b16 %v2873, %v2872
      %2890 = vmatprep.subr.bf16.mxu0 0
      %2891 = vmatpush1.bf16.msra.mxu0 %v2874
      %2892 = vmatprep.subr.bf16.mxu0 0
      %2893 = vmatpush1.bf16.msra.mxu0 %v2875
      %2894 = vmatprep.subr.bf16.mxu0 0
      %2895 = vmatpush1.bf16.msra.mxu0 %v2876
      %2896 = vmatprep.subr.bf16.mxu0 0
      %2897 = vmatpush1.bf16.msra.mxu0 %v2877
      %2898 = vmatprep.subr.bf16.mxu0 0
      %2899 = vmatpush1.bf16.msra.mxu0 %v2878
      %2900 = vmatprep.subr.bf16.mxu0 0
      %2901 = vmatpush1.bf16.msra.mxu0 %v2879
      %2902 = vmatprep.subr.bf16.mxu0 0
      %2903 = vmatpush1.bf16.msra.mxu0 %v2880
      %2904 = vmatprep.subr.bf16.mxu0 0
      %2905 = vmatpush1.bf16.msra.mxu0 %v2881
      %2906 = vmatprep.subr.bf16.mxu0 0
      %2907 = vmatpush1.bf16.msra.mxu0 0
      %2908 = vmatprep.subr.bf16.mxu0 0
      %2909 = vmatpush1.bf16.msra.mxu0 0
      %2910 = vmatprep.subr.bf16.mxu0 0
      %2911 = vmatpush1.bf16.msra.mxu0 0
      %2912 = vmatprep.subr.bf16.mxu0 0
      %2913 = vmatpush1.bf16.msra.mxu0 0
      %2914 = vmatprep.subr.bf16.mxu0 0
      %2915 = vmatpush1.bf16.msra.mxu0 0
      %2916 = vmatprep.subr.bf16.mxu0 0
      %2917 = vmatpush1.bf16.msra.mxu0 0
      %2918 = vmatprep.subr.bf16.mxu0 0
      %2919 = vmatpush1.bf16.msra.mxu0 0
      %2920 = vmatprep.subr.bf16.mxu0 0
      %2921 = vmatpush1.bf16.msra.mxu0 0
      %2922 = vmatprep.mubr.bf16.mxu0 0
      %2923 = vmatmul.mubr.bf16.gmra.mrb[0].mxu0 %v2045
      %v2924 = vpop.f32.mrb[0].mxu0
      %v2925 = vadd.f32 %v2840, %v2924
      %v2926 = vpop.f32.mrb[0].mxu0
      %v2927 = vpop.f32.mrb[0].mxu0
      %v2928 = vadd.f32 %v2840, %v2927
      %v2929 = vpop.f32.mrb[0].mxu0
      %2930 = vmatprep.mubr.bf16.mxu0 0
      %2931 = vmatmul.mubr.bf16.gmra.mrb[0].mxu0 %v2046
      %v2932 = vpop.f32.mrb[0].mxu0
      %v2933 = vadd.f32 %v2840, %v2932
      %v2934 = vpop.f32.mrb[0].mxu0
      %v2935 = vpop.f32.mrb[0].mxu0
      %v2936 = vpop.f32.mrb[0].mxu0
      %2937 = vdwg.mxu0
      %v2938 = vmul.f32 %v2683, 0.125
      %v2939 = vmul.f32 %v2686, 0.125
      %v2940 = vmul.f32 %v2691, 0.125
      %v2941 = vpack.c.bf16 %v2939, %v2938
      %v2942 = vpack.c.bf16 %v2940, %v2940
      %v2943 = vpack.c.bf16 %v2807, %v2804
      %v2944 = vpack.c.bf16 %v2812, %v2812
      %v2946 = vsel %vm1113, %v2941, 0
      %v2949 = vsel %vm1113, %v2942, 0
      %v2952 = vsel %vm1113, %v2943, 0
      %v2955 = vsel %vm1113, %v2944, 0
      %2957 = vmatprep.subr.bf16.mxu0 0
      %2958 = vmatpush1.bf16.xpose.msra.mxu0 %v2952
      %2959 = vmatprep.subr.bf16.mxu0 0
      %2960 = vmatpush1.bf16.xpose.msra.mxu0 %v2955
      %2961 = vmatprep.subr.bf16.mxu0 0
      %2962 = vmatpush1.bf16.xpose.msra.mxu0 0
      %2963 = vmatprep.subr.bf16.mxu0 0
      %2964 = vmatpush1.bf16.xpose.msra.mxu0 0
      %2965 = vmatprep.subr.bf16.mxu0 0
      %2966 = vmatpush1.bf16.xpose.msra.mxu0 0
      %2967 = vmatprep.subr.bf16.mxu0 0
      %2968 = vmatpush1.bf16.xpose.msra.mxu0 0
      %2969 = vmatprep.subr.bf16.mxu0 0
      %2970 = vmatpush1.bf16.xpose.msra.mxu0 0
      %2971 = vmatprep.subr.bf16.mxu0 0
      %2972 = vmatpush1.bf16.xpose.msra.mxu0 0
      %2973 = vmatprep.subr.bf16.mxu0 0
      %2974 = vmatpush1.bf16.xpose.msra.mxu0 0
      %2975 = vmatprep.subr.bf16.mxu0 0
      %2976 = vmatpush1.bf16.xpose.msra.mxu0 0
      %2977 = vmatprep.subr.bf16.mxu0 0
      %2978 = vmatpush1.bf16.xpose.msra.mxu0 0
      %2979 = vmatprep.subr.bf16.mxu0 0
      %2980 = vmatpush1.bf16.xpose.msra.mxu0 0
      %2981 = vmatprep.subr.bf16.mxu0 0
      %2982 = vmatpush1.bf16.xpose.msra.mxu0 0
      %2983 = vmatprep.subr.bf16.mxu0 0
      %2984 = vmatpush1.bf16.xpose.msra.mxu0 0
      %2985 = vmatprep.subr.bf16.mxu0 0
      %2986 = vmatpush1.bf16.xpose.msra.mxu0 0
      %2987 = vmatprep.subr.bf16.mxu0 0
      %2988 = vmatpush1.bf16.xpose.msra.mxu0 0
      %2989 = vmatprep.mubr.bf16.mxu0 0
      %2990 = vmatmul.mubr.bf16.gmra.mrb[0].mxu0 %v2946
      %v2991 = vpop.f32.mrb[0].mxu0
      %v2992 = vadd.f32 0.0, %v2991
      %v2993 = vpop.f32.mrb[0].mxu0
      %v2994 = vpop.f32.mrb[0].mxu0
      %v2995 = vadd.f32 0.0, %v2994
      %v2996 = vpop.f32.mrb[0].mxu0
      %2997 = vmatprep.mubr.bf16.mxu0 0
      %2998 = vmatmul.mubr.bf16.gmra.mrb[0].mxu0 %v2949
      %v2999 = vpop.f32.mrb[0].mxu0
      %v3000 = vadd.f32 0.0, %v2999
      %v3001 = vpop.f32.mrb[0].mxu0
      %v3002 = vpop.f32.mrb[0].mxu0
      %v3003 = vpop.f32.mrb[0].mxu0
      %3004 = vdwg.mxu0
      %v3005 = vsel %vm1174, %v2992, -inf
      %3006 = vmax.xlane.f32.xlu0 %v3005
      %v3007 = vpop.xlane.xlu0 %3006
      %v3008 = vsel %vm1174, %v2995, -inf
      %3009 = vmax.xlane.f32.xlu0 %v3008
      %v3010 = vpop.xlane.xlu0 %3009
      %v3011 = vsel %vm1181, %v3000, -inf
      %3012 = vmax.xlane.f32.xlu0 %v3011
      %v3013 = vpop.xlane.xlu0 %3012
      %v3014 = vsub.f32 %v2992, %v3007
      %v3015 = vsub.f32 %v2995, %v3010
      %v3016 = vsub.f32 %v3000, %v3013
      %v3017 = vmul.f32 %v3014, 1.442695
      %v3018 = vpow.pop %v3017
      %v3019 = vmul.f32 %v3015, 1.442695
      %v3020 = vpow.pop %v3019
      %v3021 = vmul.f32 %v3016, 1.442695
      %v3022 = vpow.pop %v3021
      %v3023 = vsel %vm1174, %v3018, 0.0
      %3024 = vadd.xlane.f32.xlu0 %v3023
      %v3025 = vpop.xlane.xlu0 %3024
      %v3026 = vsel %vm1174, %v3020, 0.0
      %3027 = vadd.xlane.f32.xlu0 %v3026
      %v3028 = vpop.xlane.xlu0 %3027
      %v3029 = vsel %vm1181, %v3022, 0.0
      %3030 = vadd.xlane.f32.xlu0 %v3029
      %v3031 = vpop.xlane.xlu0 %3030
      %v3032 = vrcp.pop %v3025
      %v3033 = vrcp.pop %v3028
      %v3034 = vrcp.pop %v3031
      %v3035 = vmul.f32 %v3018, %v3032
      %v3036 = vmul.f32 %v3020, %v3033
      %v3037 = vmul.f32 %v3022, %v3034
      %v3038 = vpack.c.bf16 %v3036, %v3035
      %v3039 = vpack.c.bf16 %v3037, %v3037
      %v3040 = vpack.c.bf16 %v2928, %v2925
      %v3041 = vpack.c.bf16 %v2933, %v2933
      %v3043 = vsel %vm1174, %v3038, 0
      %v3046 = vsel %vm1174, %v3039, 0
      %v3049 = vand.u32 %v3041, %v1221
      %3051 = vmatprep.subr.bf16.mxu0 0
      %3052 = vmatpush1.bf16.msra.mxu0 %v3040
      %3053 = vmatprep.subr.bf16.mxu0 0
      %3054 = vmatpush1.bf16.msra.mxu0 %v3049
      %3055 = vmatprep.subr.bf16.mxu0 0
      %3056 = vmatpush1.bf16.msra.mxu0 0
      %3057 = vmatprep.subr.bf16.mxu0 0
      %3058 = vmatpush1.bf16.msra.mxu0 0
      %3059 = vmatprep.subr.bf16.mxu0 0
      %3060 = vmatpush1.bf16.msra.mxu0 0
      %3061 = vmatprep.subr.bf16.mxu0 0
      %3062 = vmatpush1.bf16.msra.mxu0 0
      %3063 = vmatprep.subr.bf16.mxu0 0
      %3064 = vmatpush1.bf16.msra.mxu0 0
      %3065 = vmatprep.subr.bf16.mxu0 0
      %3066 = vmatpush1.bf16.msra.mxu0 0
      %3067 = vmatprep.subr.bf16.mxu0 0
      %3068 = vmatpush1.bf16.msra.mxu0 0
      %3069 = vmatprep.subr.bf16.mxu0 0
      %3070 = vmatpush1.bf16.msra.mxu0 0
      %3071 = vmatprep.subr.bf16.mxu0 0
      %3072 = vmatpush1.bf16.msra.mxu0 0
      %3073 = vmatprep.subr.bf16.mxu0 0
      %3074 = vmatpush1.bf16.msra.mxu0 0
      %3075 = vmatprep.subr.bf16.mxu0 0
      %3076 = vmatpush1.bf16.msra.mxu0 0
      %3077 = vmatprep.subr.bf16.mxu0 0
      %3078 = vmatpush1.bf16.msra.mxu0 0
      %3079 = vmatprep.subr.bf16.mxu0 0
      %3080 = vmatpush1.bf16.msra.mxu0 0
      %3081 = vmatprep.subr.bf16.mxu0 0
      %3082 = vmatpush1.bf16.msra.mxu0 0
      %3083 = vmatprep.mubr.bf16.mxu0 0
      %3084 = vmatmul.mubr.bf16.gmra.mrb[0].mxu0 %v3043
      %v3085 = vpop.f32.mrb[0].mxu0
      %v3086 = vadd.f32 0.0, %v3085
      %v3087 = vpop.f32.mrb[0].mxu0
      %v3088 = vpop.f32.mrb[0].mxu0
      %v3089 = vadd.f32 0.0, %v3088
      %v3090 = vpop.f32.mrb[0].mxu0
      %3091 = vmatprep.mubr.bf16.mxu0 0
      %3092 = vmatmul.mubr.bf16.gmra.mrb[0].mxu0 %v3046
      %v3093 = vpop.f32.mrb[0].mxu0
      %v3094 = vadd.f32 0.0, %v3093
      %v3095 = vpop.f32.mrb[0].mxu0
      %v3096 = vpop.f32.mrb[0].mxu0
      %v3097 = vpop.f32.mrb[0].mxu0
      %3098 = vdwg.mxu0
      %v3099 = vpack.c.bf16 %v3089, %v3086
      %v3100 = vpack.c.bf16 %v3094, %v3094
      %s3101 = scalar_lea.vmem %s16, 32
      %v3102 = vld [vmem:[%s3101] sm:$0xf]
      %v3103 = vld [vmem:[%s3101 + $0x4] sm:$0xf]
      %v3104 = vld [vmem:[%s3101 + $0x8] sm:$0xf]
      %v3105 = vld [vmem:[%s3101 + $0xc] sm:$0xf]
      %v3106 = vld [vmem:[%s3101 + $0x10] sm:$0xf]
      %v3107 = vld [vmem:[%s3101 + $0x14] sm:$0xf]
      %v3108 = vld [vmem:[%s3101 + $0x18] sm:$0xf]
      %v3109 = vld [vmem:[%s3101 + $0x1c] sm:$0xf]
      %v3118 = vunpack.c.l.b16 %v3102
      %v3119 = vunpack.c.l.b16 %v3103
      %v3120 = vunpack.c.l.b16 %v3104
      %v3121 = vunpack.c.l.b16 %v3105
      %v3122 = vunpack.c.l.b16 %v3106
      %v3123 = vunpack.c.l.b16 %v3107
      %v3124 = vunpack.c.l.b16 %v3108
      %v3125 = vunpack.c.l.b16 %v3109
      %v3126 = vpack.c.b16 %v3119, %v3118
      %v3127 = vpack.c.b16 %v3121, %v3120
      %v3128 = vpack.c.b16 %v3123, %v3122
      %v3129 = vpack.c.b16 %v3125, %v3124
      %v3135 = vsel %vm1113, %v3099, 0
      %v3138 = vsel %vm1113, %v3100, 0
      %3140 = vmatprep.subr.bf16.mxu0 0
      %3141 = vmatpush1.bf16.msra.mxu0 %v3126
      %3142 = vmatprep.subr.bf16.mxu0 0
      %3143 = vmatpush1.bf16.msra.mxu0 %v3127
      %3144 = vmatprep.subr.bf16.mxu0 0
      %3145 = vmatpush1.bf16.msra.mxu0 %v3128
      %3146 = vmatprep.subr.bf16.mxu0 0
      %3147 = vmatpush1.bf16.msra.mxu0 %v3129
      %3148 = vmatprep.subr.bf16.mxu0 0
      %3149 = vmatpush1.bf16.msra.mxu0 0
      %3150 = vmatprep.subr.bf16.mxu0 0
      %3151 = vmatpush1.bf16.msra.mxu0 0
      %3152 = vmatprep.subr.bf16.mxu0 0
      %3153 = vmatpush1.bf16.msra.mxu0 0
      %3154 = vmatprep.subr.bf16.mxu0 0
      %3155 = vmatpush1.bf16.msra.mxu0 0
      %3156 = vmatprep.subr.bf16.mxu0 0
      %3157 = vmatpush1.bf16.msra.mxu0 0
      %3158 = vmatprep.subr.bf16.mxu0 0
      %3159 = vmatpush1.bf16.msra.mxu0 0
      %3160 = vmatprep.subr.bf16.mxu0 0
      %3161 = vmatpush1.bf16.msra.mxu0 0
      %3162 = vmatprep.subr.bf16.mxu0 0
      %3163 = vmatpush1.bf16.msra.mxu0 0
      %3164 = vmatprep.subr.bf16.mxu0 0
      %3165 = vmatpush1.bf16.msra.mxu0 0
      %3166 = vmatprep.subr.bf16.mxu0 0
      %3167 = vmatpush1.bf16.msra.mxu0 0
      %3168 = vmatprep.subr.bf16.mxu0 0
      %3169 = vmatpush1.bf16.msra.mxu0 0
      %3170 = vmatprep.subr.bf16.mxu0 0
      %3171 = vmatpush1.bf16.msra.mxu0 0
      %3172 = vmatprep.mubr.bf16.mxu0 0
      %3173 = vmatmul.mubr.bf16.gmra.mrb[0].mxu0 %v3135
      %v3174 = vpop.f32.mrb[0].mxu0
      %v3175 = vadd.f32 0.0, %v3174
      %v3176 = vpop.f32.mrb[0].mxu0
      %v3177 = vpop.f32.mrb[0].mxu0
      %v3178 = vadd.f32 0.0, %v3177
      %v3179 = vpop.f32.mrb[0].mxu0
      %3180 = vmatprep.mubr.bf16.mxu0 0
      %3181 = vmatmul.mubr.bf16.gmra.mrb[0].mxu0 %v3138
      %v3182 = vpop.f32.mrb[0].mxu0
      %v3183 = vadd.f32 0.0, %v3182
      %v3184 = vpop.f32.mrb[0].mxu0
      %v3185 = vpop.f32.mrb[0].mxu0
      %v3186 = vpop.f32.mrb[0].mxu0
      %3187 = vdwg.mxu0
      %v3196 = vunpack.c.l.b16 %v2567
      %v3197 = vunpack.c.l.b16 %v2568
      %v3198 = vunpack.c.l.b16 %v2569
      %v3199 = vunpack.c.l.b16 %v2570
      %v3200 = vunpack.c.l.b16 %v2571
      %v3201 = vunpack.c.l.b16 %v2572
      %v3202 = vunpack.c.l.b16 %v2573
      %v3203 = vunpack.c.l.b16 %v2574
      %v3204 = vpack.c.b16 %v3197, %v3196
      %v3205 = vpack.c.b16 %v3199, %v3198
      %v3206 = vpack.c.b16 %v3201, %v3200
      %v3207 = vpack.c.b16 %v3203, %v3202
      %v3213 = vsel %vm1113, %v2565, 0
      %v3216 = vsel %vm1113, %v2566, 0
      %3218 = vmatprep.subr.bf16.mxu0 0
      %3219 = vmatpush1.bf16.msra.mxu0 %v3204
      %3220 = vmatprep.subr.bf16.mxu0 0
      %3221 = vmatpush1.bf16.msra.mxu0 %v3205
      %3222 = vmatprep.subr.bf16.mxu0 0
      %3223 = vmatpush1.bf16.msra.mxu0 %v3206
      %3224 = vmatprep.subr.bf16.mxu0 0
      %3225 = vmatpush1.bf16.msra.mxu0 %v3207
      %3226 = vmatprep.subr.bf16.mxu0 0
      %3227 = vmatpush1.bf16.msra.mxu0 0
      %3228 = vmatprep.subr.bf16.mxu0 0
      %3229 = vmatpush1.bf16.msra.mxu0 0
      %3230 = vmatprep.subr.bf16.mxu0 0
      %3231 = vmatpush1.bf16.msra.mxu0 0
      %3232 = vmatprep.subr.bf16.mxu0 0
      %3233 = vmatpush1.bf16.msra.mxu0 0
      %3234 = vmatprep.subr.bf16.mxu0 0
      %3235 = vmatpush1.bf16.msra.mxu0 0
      %3236 = vmatprep.subr.bf16.mxu0 0
      %3237 = vmatpush1.bf16.msra.mxu0 0
      %3238 = vmatprep.subr.bf16.mxu0 0
      %3239 = vmatpush1.bf16.msra.mxu0 0
      %3240 = vmatprep.subr.bf16.mxu0 0
      %3241 = vmatpush1.bf16.msra.mxu0 0
      %3242 = vmatprep.subr.bf16.mxu0 0
      %3243 = vmatpush1.bf16.msra.mxu0 0
      %3244 = vmatprep.subr.bf16.mxu0 0
      %3245 = vmatpush1.bf16.msra.mxu0 0
      %3246 = vmatprep.subr.bf16.mxu0 0
      %3247 = vmatpush1.bf16.msra.mxu0 0
      %3248 = vmatprep.subr.bf16.mxu0 0
      %3249 = vmatpush1.bf16.msra.mxu0 0
      %3250 = vmatprep.mubr.bf16.mxu0 0
      %3251 = vmatmul.mubr.bf16.gmra.mrb[0].mxu0 %v3213
      %v3252 = vpop.f32.mrb[0].mxu0
      %v3253 = vadd.f32 %v3175, %v3252
      %v3254 = vpop.f32.mrb[0].mxu0
      %v3255 = vpop.f32.mrb[0].mxu0
      %v3256 = vadd.f32 %v3178, %v3255
      %v3257 = vpop.f32.mrb[0].mxu0
      %3258 = vmatprep.mubr.bf16.mxu0 0
      %3259 = vmatmul.mubr.bf16.gmra.mrb[0].mxu0 %v3216
      %v3260 = vpop.f32.mrb[0].mxu0
      %v3261 = vadd.f32 %v3183, %v3260
      %v3262 = vpop.f32.mrb[0].mxu0
      %v3263 = vpop.f32.mrb[0].mxu0
      %v3264 = vpop.f32.mrb[0].mxu0
      %3265 = vdwg.mxu0
      %v3266 = vld [vmem:[%s17] sm:$0x1]
      %v3268 = vlaneseq
      %v3269 = vshrl.u32 %v3268, 7
      %v3270 = vsub.s32 0, %v3269
      %v3271 = vrot.slane %v3266, %v3270
      %v3273 = vadd.f32 %v3253, %v3271
      %v3274 = vadd.f32 %v3256, %v3271
      %v3275 = vadd.f32 %v3261, %v3271
      %v3276 = vadd.f32 %v2040, %v3273
      %v3277 = vadd.f32 %v2041, %v3274
      %v3278 = vadd.f32 %v2042, %v3275
      %3279 = vadd.xlane.f32.xlu0 %v3276
      %v3280 = vpop.xlane.xlu0 %3279
      %3281 = vadd.xlane.f32.xlu0 %v3277
      %v3282 = vpop.xlane.xlu0 %3281
      %v3283 = vsel %vm1219, %v3278, 0.0
      %3284 = vadd.xlane.f32.xlu0 %v3283
      %v3285 = vpop.xlane.xlu0 %3284
      %v3286 = vmul.f32 %v3280, %v1994
      %v3287 = vmul.f32 %v3282, %v1994
      %v3288 = vmul.f32 %v3285, %v1994
      %v3289 = vsub.f32 %v3276, %v3286
      %v3290 = vsub.f32 %v3277, %v3287
      %v3291 = vsub.f32 %v3278, %v3288
      %v3292 = vmul.f32 %v3289, %v3289
      %v3293 = vmul.f32 %v3290, %v3290
      %v3294 = vmul.f32 %v3291, %v3291
      %3295 = vadd.xlane.f32.xlu0 %v3292
      %v3296 = vpop.xlane.xlu0 %3295
      %3297 = vadd.xlane.f32.xlu0 %v3293
      %v3298 = vpop.xlane.xlu0 %3297
      %v3299 = vsel %vm1219, %v3294, 0.0
      %3300 = vadd.xlane.f32.xlu0 %v3299
      %v3301 = vpop.xlane.xlu0 %3300
      %v3302 = vmul.f32 %v3296, %v1994
      %v3303 = vmul.f32 %v3298, %v1994
      %v3304 = vmul.f32 %v3301, %v1994
      %v3305 = vadd.f32 %v3302, 1e-05
      %v3306 = vadd.f32 %v3303, 1e-05
      %v3307 = vadd.f32 %v3304, 1e-05
      %v3308 = vrsqrt.pop %v3305
      %v3309 = vrsqrt.pop %v3306
      %v3310 = vrsqrt.pop %v3307
      %v3311 = vmul.f32 %v3289, %v3308
      %v3312 = vmul.f32 %v3290, %v3309
      %v3313 = vmul.f32 %v3291, %v3310
      %v3314 = vld [vmem:[%s20] sm:$0x1]
      %v3316 = vlaneseq
      %v3317 = vshrl.u32 %v3316, 7
      %v3318 = vsub.s32 0, %v3317
      %v3319 = vrot.slane %v3314, %v3318
      %v3321 = vmul.f32 %v3311, %v3319
      %v3322 = vmul.f32 %v3312, %v3319
      %v3323 = vmul.f32 %v3313, %v3319
      %v3324 = vld [vmem:[%s21] sm:$0x1]
      %v3326 = vlaneseq
      %v3327 = vshrl.u32 %v3326, 7
      %v3328 = vsub.s32 0, %v3327
      %v3329 = vrot.slane %v3324, %v3328
      %v3331 = vadd.f32 %v3321, %v3329
      %v3332 = vadd.f32 %v3322, %v3329
      %v3333 = vadd.f32 %v3323, %v3329
      %3334 = vst [vmem:[%s736] sm:$0xff] %v3331
      %3335 = vst [vmem:[%s736 + $0x8] sm:$0xff] %v3332
      %3336 = vst [vmem:[%s736 + $0x10] sm:$0x1] %v3333
      %v3337 = vadd.f32 %v3331, %v3332
      %v3338 = vsel %vm1219, %v3333, 0.0
      %v3339 = vadd.f32 %v3337, %v3338
      %v3340 = vrot.slane %v3339, 4
      %v3341 = vadd.f32 %v3339, %v3340
      %v3342 = vrot.slane %v3341, 2
      %v3343 = vadd.f32 %v3341, %v3342
      %v3344 = vrot.slane %v3343, 1
      %v3345 = vadd.f32 %v3343, %v3344
      %v3346 = vrcp.pop 17.0
      %v3347 = vmul.f32 %v3345, %v3346
      %3348 = vst [vmem:[%s739] sm:$0x1] %v3347
      %p3349 = scmp.lt.s32.totalorder %s35, 1
      %s3350 = scalar_select %p3349, %s35, 1
      %s3351 = smul.addr %s3350, 3
      %s3352 = smul.addr %s3351, 8
      %s3353 = scalar_lea.vmem %s22, %s3352
      %p3354 = scmp.lt.s32.totalorder %s35, 1
      %s3355 = scalar_select %p3354, %s35, 1
      %s3356 = scalar_lea.vmem %s23, %s3355
      // Predicated region
      $region109: #{cardiovascular_predictor.7} parent=107 // pred_check
        %p3357 = pneg %p525
      $region110: #{cardiovascular_predictor.7} parent=107 // pred_check_branch
        %3359 = sbr.rel (%p3357) target = $region112
      $region111: #{cardiovascular_predictor.7} parent=107 // pred_region
        _
      $region112: #{cardiovascular_predictor.7} parent=107 // pred_fallthru
        _
      // Predicated region
      $region113: #{cardiovascular_predictor.7} parent=107 // pred_check
        %p3360 = pneg %p551
      $region114: #{cardiovascular_predictor.7} parent=107 // pred_check_branch
        %3362 = sbr.rel (%p3360) target = $region116
      $region115: #{cardiovascular_predictor.7} parent=107 // pred_region
        _
      $region116: #{cardiovascular_predictor.7} parent=107 // pred_fallthru
        _
    $region108: #{cardiovascular_predictor.7} parent=5 // pred_fallthru
      _
    %p3363 = scmp.le.s32.totalorder 2, %s30
    // Predicated region
    $region117: #{cardiovascular_predictor.7} parent=5 // pred_check
      %p3364 = pneg %p3363
    $region118: #{cardiovascular_predictor.7} parent=5 // pred_check_branch
      %3366 = sbr.rel (%p3364) target = $region120
    $region119: #{cardiovascular_predictor.7} parent=5 // pred_region
      %s3367 = ssub.s32 %s30, 2
      // Predicated region
      $region121: #{cardiovascular_predictor.7} parent=119 // pred_check
        %p3368 = pneg %p531
      $region122: #{cardiovascular_predictor.7} parent=119 // pred_check_branch
        %3370 = sbr.rel (%p3368) target = $region124
      $region123: #{cardiovascular_predictor.7} parent=119 // pred_region
        %p3371 = scmp.lt.s32.totalorder %s36, 1
        %s3372 = scalar_select %p3371, %s36, 1
        %s3373 = smul.addr %s3372, 3
        %s3374 = smul.addr %s3373, 8
        %s3375 = scalar_lea.vmem %s22, %s3374
      $region124: #{cardiovascular_predictor.7} parent=119 // pred_fallthru
        _
      // Predicated region
      $region125: #{cardiovascular_predictor.7} parent=119 // pred_check
        %p3376 = pneg %p557
      $region126: #{cardiovascular_predictor.7} parent=119 // pred_check_branch
        %3378 = sbr.rel (%p3376) target = $region128
      $region127: #{cardiovascular_predictor.7} parent=119 // pred_region
        %p3379 = scmp.lt.s32.totalorder %s36, 1
        %s3380 = scalar_select %p3379, %s36, 1
        %s3381 = scalar_lea.vmem %s23, %s3380
      $region128: #{cardiovascular_predictor.7} parent=119 // pred_fallthru
        _
    $region120: #{cardiovascular_predictor.7} parent=5 // pred_fallthru
      _
  $region6: #{cardiovascular_predictor.7} parent=0 // loop_footer
    %s34 = sadd.s32 1, %s30
  $region7: #{cardiovascular_predictor.7} parent=0 // loop_footer_branch
    %29 = sbr.rel target = $region3
  $region8: #{cardiovascular_predictor.7} parent=0 // loop_exit
    _

</llo_original>
